<compile_context>
chip_gen: v7x
topology: tpu7x:2x2x1
jax: 0.10.0
libtpu: 0.0.40
codegen_flags: <defaults>
</compile_context>

<pallas_src>
import numpy as np
import jax
import jax.numpy as jnp
from jax import lax
from jax.experimental import pallas as pl
from jax.experimental.pallas import tpu as pltpu


_BLOCKS = ("pt4", "pt3", "out2_d", "out3_d", "out4_d", "out5_d")
_LANE = 128


def _round_up(x, m):
    return (x + m - 1) // m * m


# ---------------------------------------------------------------------------
# Parameter init (deterministic, synthetic — mirrors the module's __init__)
# ---------------------------------------------------------------------------
def init_block_params(key, C):
    ks = jax.random.split(key, 8)
    return dict(
        wdw=0.2 * jax.random.normal(ks[0], (3, 3, C), jnp.float32),   # torch (C,1,3,3)
        bdw=0.1 * jax.random.normal(ks[1], (C,), jnp.float32),
        wpw=(float(C) ** -0.5) * jax.random.normal(ks[2], (C, C), jnp.float32),  # (Cin,Cout)
        bpw=0.1 * jax.random.normal(ks[3], (C,), jnp.float32),
        gamma=1.0 + 0.1 * jax.random.normal(ks[4], (C,), jnp.float32),
        beta=0.1 * jax.random.normal(ks[5], (C,), jnp.float32),
        rmean=0.1 * jax.random.normal(ks[6], (C,), jnp.float32),
        rvar=jnp.abs(jax.random.normal(ks[7], (C,), jnp.float32)) + 0.5,
    )


def init_bifpn_params(key, inner_channels):
    keys = jax.random.split(key, len(_BLOCKS))
    params = {n: init_block_params(k, inner_channels) for n, k in zip(_BLOCKS, keys)}
    params["pt4_w"] = jnp.ones((2,), jnp.float32)
    params["pt3_w"] = jnp.ones((2,), jnp.float32)
    params["out2_w"] = jnp.ones((2,), jnp.float32)
    params["out3_w"] = jnp.ones((3,), jnp.float32)
    params["out4_w"] = jnp.ones((3,), jnp.float32)
    params["out5_w"] = jnp.ones((2,), jnp.float32)
    return params


# ---------------------------------------------------------------------------
# Constant folding (exact: all ops linear), packed for the (C, H*W) layout
# ---------------------------------------------------------------------------
def _fold_block(p, eps=1e-5):
    scale = p["gamma"] / jnp.sqrt(p["rvar"] + eps)              # (C,)
    shift = p["beta"] - p["rmean"] * scale
    dw_ck = p["wdw"].reshape(9, -1).T                           # (C, 9): tap t = 3*(dy+1)+(dx+1)
    pw_t = (p["wpw"] * scale[None, :]).T                        # (Cout, Cin), BN scale folded
    b_col = (p["bdw"] @ p["wpw"] + p["bpw"]) * scale + shift    # (C,)
    return dw_ck, pw_t, b_col.reshape(-1, 1)


def _fusion_coefs(params):
    def n(w):
        w = jnp.maximum(w, 0.0)
        return w, jnp.sum(w)
    pt4_w, s4 = n(params["pt4_w"])
    pt3_w, s3 = n(params["pt3_w"])
    o2_w, s2 = n(params["out2_w"])
    o3_w, so3 = n(params["out3_w"])
    o4_w, so4 = n(params["out4_w"])
    o5_w, so5 = n(params["out5_w"])
    return jnp.stack([
        pt4_w[0] / s4, pt4_w[1] / s4,
        pt3_w[0] / s3, pt3_w[0] / s3,        # index [0] twice: reference bug reproduced
        o2_w[0] / s2, o2_w[0] / s2,          # index [0] twice: reference bug reproduced
        o3_w[0] / so3, o3_w[1] / so3, o3_w[2] / so3,
        o4_w[0] / so4, o4_w[1] / so4, o4_w[2] / so4,
        o5_w[0] / so5, o5_w[1] / so5,
    ]).astype(jnp.float32)                   # (14,)


# ---------------------------------------------------------------------------
# Nearest up/down-sampling as 0/1 gather matrices (applied on the MXU in-kernel)
# ---------------------------------------------------------------------------
def _up_matrix(hs, ws, p_src, p_dst):
    """M (p_src, p_dst) with (x_small @ M) = nearest 2x upsample of the flat slab."""
    hb, wb = 2 * hs, 2 * ws
    m = np.zeros((p_src, p_dst), np.float32)
    for i in range(hb * wb):
        yb, xb = divmod(i, wb)
        m[(yb // 2) * ws + xb // 2, i] = 1.0
    return jnp.asarray(m)


def _down_matrix(hb, wb, p_src, p_dst):
    """M (p_src, p_dst) with (x_big @ M) = stride-2 nearest downsample of the flat slab."""
    hs, ws = hb // 2, wb // 2
    m = np.zeros((p_src, p_dst), np.float32)
    for i in range(hs * ws):
        ys, xs = divmod(i, ws)
        m[(2 * ys) * wb + 2 * xs, i] = 1.0
    return jnp.asarray(m)


# ---------------------------------------------------------------------------
# Fused BiFPN forward (single pallas_call).  NCHW in / NCHW out (PyTorch conv.)
# ---------------------------------------------------------------------------
def bifpn_forward(params, in2, in3, in4, in5):
    N, C, H2, W2 = in2.shape
    H3, W3 = in3.shape[2:]
    H4, W4 = in4.shape[2:]
    H5, W5 = in5.shape[2:]
    for w in (W2, W3, W4, W5):
        assert w > 0 and (w & (w - 1)) == 0, "widths must be powers of two"

    P2 = _round_up(H2 * W2, _LANE)
    P3 = _round_up(H3 * W3, _LANE)
    P4 = _round_up(H4 * W4, _LANE)
    P5 = _round_up(H5 * W5, _LANE)

    # ---- folded params, packed into 3 operands (fewer tiny DMAs) ----
    coefs = _fusion_coefs(params)
    dw_l, pw_l, b_l = [], [], []
    for name in _BLOCKS:
        dw, pw_t, b = _fold_block(params[name])
        dw_l.append(dw)
        pw_l.append(pw_t)
        b_l.append(b)
    dw_all = jnp.stack(dw_l)        # (6, C, 9)
    pw_all = jnp.stack(pw_l)        # (6, C, C)
    b_all = jnp.stack(b_l)          # (6, C, 1)

    up54 = _up_matrix(H5, W5, P5, P4)
    up43 = _up_matrix(H4, W4, P4, P3)
    up32 = _up_matrix(H3, W3, P3, P2)
    dn23 = _down_matrix(H2, W2, P2, P3)
    dn34 = _down_matrix(H3, W3, P3, P4)
    dn45 = _down_matrix(H4, W4, P4, P5)

    # ---- flatten spatial dims onto the lane axis, zero-pad to a 128 multiple ----
    def flat_pad(x, p):
        n, c, h, w = x.shape
        xf = x.reshape(n, c, h * w)
        if p > h * w:
            xf = jnp.pad(xf, ((0, 0), (0, 0), (0, p - h * w)))
        return xf

    in2f = flat_pad(in2, P2)
    in3f = flat_pad(in3, P3)
    in4f = flat_pad(in4, P4)
    in5f = flat_pad(in5, P5)

    f32 = jnp.float32
    HIGH = jax.lax.Precision.HIGHEST

    def kernel(coef_ref,
               in2_ref, in3_ref, in4_ref, in5_ref,
               dw_ref, pw_ref, b_ref,
               up54_ref, up43_ref, up32_ref, dn23_ref, dn34_ref, dn45_ref,
               out2_ref, out3_ref, out4_ref, out5_ref):

        def conv_block(x, blk, h, w):
            """depthwise 3x3 (SAME) -> 1x1 conv -> folded BN -> ReLU on a (C, P) slab."""
            p = x.shape[-1]
            pos = lax.broadcasted_iota(jnp.int32, (1, p), 1)
            wmod = jnp.bitwise_and(pos, w - 1)            # w is a power of two
            dwb = dw_ref[blk]                             # (C, 9) depthwise taps
            acc = x * dwb[:, 4:5]                         # centre tap seeds the accumulator
            for t in (0, 1, 2, 3, 5, 6, 7, 8):
                dy, dx = t // 3 - 1, t % 3 - 1
                s = dy * w + dx
                rolled = pltpu.roll(x, (-s) % p, 1)       # rolled[:, i] = x[:, (i + s) % p]
                conds = []
                if dy < 0:
                    conds.append(pos >= w)
                if dy > 0:
                    conds.append(pos < (h - 1) * w)
                if dx < 0:
                    conds.append(wmod != 0)
                if dx > 0:
                    conds.append(wmod != w - 1)
                cond = conds[0]
                for extra in conds[1:]:
                    cond = jnp.logical_and(cond, extra)
                m = cond.astype(f32)                      # (1, P) zero-pad border mask
                acc = acc + rolled * m * dwb[:, t:t + 1]
            # 1x1 conv with BN scale folded into the weights (small MXU matmul);
            # both conv biases + BN shift folded into the bias column.
            y = jnp.dot(pw_ref[blk], acc, precision=HIGH, preferred_element_type=f32)
            y = y + b_ref[blk]
            return jnp.maximum(y, 0.0)

        def resample(x, m_ref):
            # Nearest up/down-sampling = gather via a precomputed 0/1 matrix on the MXU.
            return jnp.dot(x, m_ref[...], precision=HIGH, preferred_element_type=f32)

        x2 = in2_ref[0]
        x3 = in3_ref[0]
        x4 = in4_ref[0]
        x5 = in5_ref[0]

        # ---- top-down path ----
        pt4 = conv_block(coef_ref[0] * x4 + coef_ref[1] * resample(x5, up54_ref),
                         0, H4, W4)
        # NOTE: the reference module reuses weight index [0] for BOTH terms of pt3 /
        # out2_d while dividing by the full weight sum; the precomputed coefficients
        # reproduce that exactly.
        pt3 = conv_block(coef_ref[2] * x3 + coef_ref[3] * resample(pt4, up43_ref),
                         1, H3, W3)
        out2 = conv_block(coef_ref[4] * x2 + coef_ref[5] * resample(pt3, up32_ref),
                          2, H2, W2)
        out2_ref[0] = out2

        # ---- bottom-up path ----
        out3 = conv_block(coef_ref[6] * x3 + coef_ref[7] * pt3
                          + coef_ref[8] * resample(out2, dn23_ref),
                          3, H3, W3)
        out3_ref[0] = out3
        out4 = conv_block(coef_ref[9] * x4 + coef_ref[10] * pt4
                          + coef_ref[11] * resample(out3, dn34_ref),
                          4, H4, W4)
        out4_ref[0] = out4
        out5 = conv_block(coef_ref[12] * x5 + coef_ref[13] * resample(out4, dn45_ref),
                          5, H5, W5)
        out5_ref[0] = out5

    def level_spec(p):
        return pl.BlockSpec((1, C, p), lambda n, *_: (n, 0, 0))

    def const_spec(shape):
        nd = len(shape)
        return pl.BlockSpec(shape, lambda n, *_: (0,) * nd)

    grid_spec = pltpu.PrefetchScalarGridSpec(
        num_scalar_prefetch=1,
        grid=(N,),
        in_specs=[level_spec(P2), level_spec(P3), level_spec(P4), level_spec(P5),
                  const_spec(dw_all.shape), const_spec(pw_all.shape), const_spec(b_all.shape),
                  const_spec(up54.shape), const_spec(up43.shape), const_spec(up32.shape),
                  const_spec(dn23.shape), const_spec(dn34.shape), const_spec(dn45.shape)],
        out_specs=[level_spec(P2), level_spec(P3), level_spec(P4), level_spec(P5)],
    )
    out_shape = tuple(jax.ShapeDtypeStruct((N, C, p), f32) for p in (P2, P3, P4, P5))

    o2f, o3f, o4f, o5f = pl.pallas_call(
        kernel,
        grid_spec=grid_spec,
        out_shape=out_shape,
        compiler_params=pltpu.CompilerParams(
            dimension_semantics=("parallel",)),    # v7x: one batch element per TensorCore
    )(coefs, in2f, in3f, in4f, in5f, dw_all, pw_all, b_all,
      up54, up43, up32, dn23, dn34, dn45)

    def unflat(o, h, w):
        return o[:, :, :h * w].reshape(N, C, h, w)

    return (unflat(o2f, H2, W2), unflat(o3f, H3, W3),
            unflat(o4f, H4, W4), unflat(o5f, H5, W5))


# ---------------------------------------------------------------------------
# Pure-JAX reference (lax.conv, raw/unfolded params) for correctness check
# ---------------------------------------------------------------------------
def _up2_ref(x):
    return jnp.repeat(jnp.repeat(x, 2, axis=2), 2, axis=3)


def _down2_ref(x):
    return x[:, :, ::2, ::2]


def _ref_block(x, p, eps=1e-5):
    C = x.shape[1]
    dw = lax.conv_general_dilated(
        x, p["wdw"].reshape(3, 3, 1, C),
        window_strides=(1, 1), padding="SAME",
        dimension_numbers=("NCHW", "HWIO", "NCHW"),
        feature_group_count=C)
    dw = dw + p["bdw"].reshape(1, C, 1, 1)
    y = jnp.einsum("nchw,cd->ndhw", dw, p["wpw"]) + p["bpw"].reshape(1, C, 1, 1)
    scale = p["gamma"] / jnp.sqrt(p["rvar"] + eps)
    shift = p["beta"] - p["rmean"] * scale
    y = y * scale.reshape(1, C, 1, 1) + shift.reshape(1, C, 1, 1)
    return jnp.maximum(y, 0.0)


def bifpn_forward_ref(params, in2, in3, in4, in5):
    relu = lambda w: jnp.maximum(w, 0.0)
    blk = lambda name, x: _ref_block(x, params[name])
    pt4_w = relu(params["pt4_w"])
    pt4 = blk("pt4", (pt4_w[0] * in4 + pt4_w[1] * _up2_ref(in5)) / jnp.sum(pt4_w))
    pt3_w = relu(params["pt3_w"])
    pt3 = blk("pt3", (pt3_w[0] * in3 + pt3_w[0] * _up2_ref(pt4)) / jnp.sum(pt3_w))
    out2_w = relu(params["out2_w"])
    out2_d = blk("out2_d", (out2_w[0] * in2 + out2_w[0] * _up2_ref(pt3)) / jnp.sum(out2_w))
    out3_w = relu(params["out3_w"])
    out3_d = blk("out3_d", (out3_w[0] * in3 + out3_w[1] * pt3
                            + out3_w[2] * _down2_ref(out2_d)) / jnp.sum(out3_w))
    out4_w = relu(params["out4_w"])
    out4_d = blk("out4_d", (out4_w[0] * in4 + out4_w[1] * pt4
                            + out4_w[2] * _down2_ref(out3_d)) / jnp.sum(out4_w))
    out5_w = relu(params["out5_w"])
    out5_d = blk("out5_d", (out5_w[0] * in5 + out5_w[1] * _down2_ref(out4_d)) / jnp.sum(out5_w))
    return out2_d, out3_d, out4_d, out5_d


# ---------------------------------------------------------------------------
if __name__ == "__main__":
    inner_channels = 8
    N = 2
    H2 = 16                       # in2 spatial; in3/in4/in5 are /2, /4, /8

    key = jax.random.PRNGKey(0)
    kp, k2, k3, k4, k5 = jax.random.split(key, 5)
    params = init_bifpn_params(kp, inner_channels)

    in2 = jax.random.normal(k2, (N, inner_channels, H2, H2), jnp.float32)
    in3 = jax.random.normal(k3, (N, inner_channels, H2 // 2, H2 // 2), jnp.float32)
    in4 = jax.random.normal(k4, (N, inner_channels, H2 // 4, H2 // 4), jnp.float32)
    in5 = jax.random.normal(k5, (N, inner_channels, H2 // 8, H2 // 8), jnp.float32)

    fwd = jax.jit(bifpn_forward)
    outs = jax.block_until_ready(fwd(params, in2, in3, in4, in5))

    refs = jax.block_until_ready(jax.jit(bifpn_forward_ref)(params, in2, in3, in4, in5))
    # Tolerance leaves headroom for MXU contract-precision differences between the
    # in-kernel dots and the XLA-compiled reference ops; structural errors are O(1).
    for o, r in zip(outs, refs):
        np.testing.assert_allclose(np.asarray(o), np.asarray(r), rtol=1e-2, atol=1e-2)

    out2_d, out3_d, out4_d, out5_d = outs
    assert out2_d.shape == (N, inner_channels, H2, H2)
    assert out3_d.shape == (N, inner_channels, H2 // 2, H2 // 2)
    assert out4_d.shape == (N, inner_channels, H2 // 4, H2 // 4)
    assert out5_d.shape == (N, inner_channels, H2 // 8, H2 // 8)

    print("KERNEL_OK")
</pallas_src>

<mosaic_0001>
module attributes {stable_mosaic.version = 11 : i64} {
  func.func @kernel(%arg0: i32, %arg1: memref<14xf32, #tpu.memory_space<smem>>, %arg2: memref<1x8x256xf32, #tpu.memory_space<vmem>>, %arg3: memref<1x8x128xf32, #tpu.memory_space<vmem>>, %arg4: memref<1x8x128xf32, #tpu.memory_space<vmem>>, %arg5: memref<1x8x128xf32, #tpu.memory_space<vmem>>, %arg6: memref<6x8x9xf32, #tpu.memory_space<vmem>>, %arg7: memref<6x8x8xf32, #tpu.memory_space<vmem>>, %arg8: memref<6x8x1xf32, #tpu.memory_space<vmem>>, %arg9: memref<128x128xf32, #tpu.memory_space<vmem>>, %arg10: memref<128x128xf32, #tpu.memory_space<vmem>>, %arg11: memref<128x256xf32, #tpu.memory_space<vmem>>, %arg12: memref<256x128xf32, #tpu.memory_space<vmem>>, %arg13: memref<128x128xf32, #tpu.memory_space<vmem>>, %arg14: memref<128x128xf32, #tpu.memory_space<vmem>>, %arg15: memref<1x8x256xf32, #tpu.memory_space<vmem>>, %arg16: memref<1x8x128xf32, #tpu.memory_space<vmem>>, %arg17: memref<1x8x128xf32, #tpu.memory_space<vmem>>, %arg18: memref<1x8x128xf32, #tpu.memory_space<vmem>>) attributes {dimension_semantics = [#tpu.dimension_semantics<parallel>], iteration_bounds = array<i64: 2>, scalar_prefetch = 1 : i64, scratch_operands = 0 : i64, tpu.core_type = #tpu.core_type<tc>, window_params = [{transform_indices = @transform_0, window_bounds = array<i64: 1, 8, 256>}, {transform_indices = @transform_1, window_bounds = array<i64: 1, 8, 128>}, {transform_indices = @transform_2, window_bounds = array<i64: 1, 8, 128>}, {transform_indices = @transform_3, window_bounds = array<i64: 1, 8, 128>}, {pipeline_mode = #tpu.pipeline_mode<synchronous>, transform_indices = @transform_4, window_bounds = array<i64: 6, 8, 9>}, {pipeline_mode = #tpu.pipeline_mode<synchronous>, transform_indices = @transform_5, window_bounds = array<i64: 6, 8, 8>}, {pipeline_mode = #tpu.pipeline_mode<synchronous>, transform_indices = @transform_6, window_bounds = array<i64: 6, 8, 1>}, {pipeline_mode = #tpu.pipeline_mode<synchronous>, transform_indices = @transform_7, window_bounds = array<i64: 128, 128>}, {pipeline_mode = #tpu.pipeline_mode<synchronous>, transform_indices = @transform_8, window_bounds = array<i64: 128, 128>}, {pipeline_mode = #tpu.pipeline_mode<synchronous>, transform_indices = @transform_9, window_bounds = array<i64: 128, 256>}, {pipeline_mode = #tpu.pipeline_mode<synchronous>, transform_indices = @transform_10, window_bounds = array<i64: 256, 128>}, {pipeline_mode = #tpu.pipeline_mode<synchronous>, transform_indices = @transform_11, window_bounds = array<i64: 128, 128>}, {pipeline_mode = #tpu.pipeline_mode<synchronous>, transform_indices = @transform_12, window_bounds = array<i64: 128, 128>}, {transform_indices = @transform_13, window_bounds = array<i64: 1, 8, 256>}, {transform_indices = @transform_14, window_bounds = array<i64: 1, 8, 128>}, {transform_indices = @transform_15, window_bounds = array<i64: 1, 8, 128>}, {transform_indices = @transform_16, window_bounds = array<i64: 1, 8, 128>}]} {
    %c0 = arith.constant 0 : index
    %c0_0 = arith.constant 0 : index
    %c0_1 = arith.constant 0 : index
    %0 = vector.load %arg2[%c0, %c0_0, %c0_1] : memref<1x8x256xf32, #tpu.memory_space<vmem>>, vector<1x8x256xf32>
    %1 = vector.shape_cast %0 : vector<1x8x256xf32> to vector<8x256xf32>
    %c0_2 = arith.constant 0 : index
    %c0_3 = arith.constant 0 : index
    %c0_4 = arith.constant 0 : index
    %2 = vector.load %arg3[%c0_2, %c0_3, %c0_4] : memref<1x8x128xf32, #tpu.memory_space<vmem>>, vector<1x8x128xf32>
    %3 = vector.shape_cast %2 : vector<1x8x128xf32> to vector<8x128xf32>
    %c0_5 = arith.constant 0 : index
    %c0_6 = arith.constant 0 : index
    %c0_7 = arith.constant 0 : index
    %4 = vector.load %arg4[%c0_5, %c0_6, %c0_7] : memref<1x8x128xf32, #tpu.memory_space<vmem>>, vector<1x8x128xf32>
    %5 = vector.shape_cast %4 : vector<1x8x128xf32> to vector<8x128xf32>
    %c0_8 = arith.constant 0 : index
    %c0_9 = arith.constant 0 : index
    %c0_10 = arith.constant 0 : index
    %6 = vector.load %arg5[%c0_8, %c0_9, %c0_10] : memref<1x8x128xf32, #tpu.memory_space<vmem>>, vector<1x8x128xf32>
    %7 = vector.shape_cast %6 : vector<1x8x128xf32> to vector<8x128xf32>
    %c0_11 = arith.constant 0 : index
    %8 = memref.load %arg1[%c0_11] : memref<14xf32, #tpu.memory_space<smem>>
    %9 = vector.broadcast %8 : f32 to vector<8x128xf32>
    %10 = arith.mulf %9, %5 : vector<8x128xf32>
    %c1 = arith.constant 1 : index
    %11 = memref.load %arg1[%c1] : memref<14xf32, #tpu.memory_space<smem>>
    %c0_12 = arith.constant 0 : index
    %c0_13 = arith.constant 0 : index
    %12 = vector.load %arg9[%c0_12, %c0_13] : memref<128x128xf32, #tpu.memory_space<vmem>>, vector<128x128xf32>
    %cst = arith.constant dense<0.000000e+00> : vector<8x128xf32>
    %13 = tpu.matmul %7, %12, %cst {dimension_numbers = #tpu.dot_dimension_numbers<[1], [0], [0], [1], [0, 0, 1, 1], [], []>, precision = #tpu.contract_precision<fp32>} : vector<8x128xf32>, vector<128x128xf32>, vector<8x128xf32> -> vector<8x128xf32>
    %14 = vector.broadcast %11 : f32 to vector<8x128xf32>
    %15 = arith.mulf %14, %13 : vector<8x128xf32>
    %16 = arith.addf %10, %15 : vector<8x128xf32>
    %17 = tpu.iota {dimensions = array<i32: 1>} : vector<1x128xi32>
    %c3_i32 = arith.constant 3 : i32
    %18 = vector.broadcast %c3_i32 : i32 to vector<1x128xi32>
    %19 = arith.andi %17, %18 : vector<1x128xi32>
    %c0_14 = arith.constant 0 : index
    %c0_15 = arith.constant 0 : index
    %c0_16 = arith.constant 0 : index
    %20 = vector.load %arg6[%c0_14, %c0_15, %c0_16] : memref<6x8x9xf32, #tpu.memory_space<vmem>>, vector<1x8x9xf32>
    %21 = vector.shape_cast %20 : vector<1x8x9xf32> to vector<8x9xf32>
    %22 = vector.extract_strided_slice %21 {offsets = [0, 4], sizes = [8, 1], strides = [1, 1]} : vector<8x9xf32> to vector<8x1xf32>
    %23 = vector.broadcast %22 : vector<8x1xf32> to vector<8x128xf32>
    %24 = arith.mulf %16, %23 : vector<8x128xf32>
    %c5_i32 = arith.constant 5 : i32
    %25 = tpu.dynamic_rotate %16 by %c5_i32 dim 1 : vector<8x128xf32>, i32 -> vector<8x128xf32>
    %c4_i32 = arith.constant 4 : i32
    %26 = vector.broadcast %c4_i32 : i32 to vector<1x128xi32>
    %27 = arith.cmpi sge, %17, %26 : vector<1x128xi32>
    %c0_i32 = arith.constant 0 : i32
    %28 = vector.broadcast %c0_i32 : i32 to vector<1x128xi32>
    %29 = arith.cmpi ne, %19, %28 : vector<1x128xi32>
    %30 = arith.andi %27, %29 : vector<1x128xi1>
    %31 = arith.extui %30 : vector<1x128xi1> to vector<1x128xi32>
    %32 = arith.sitofp %31 : vector<1x128xi32> to vector<1x128xf32>
    %33 = vector.broadcast %32 : vector<1x128xf32> to vector<8x128xf32>
    %34 = arith.mulf %25, %33 : vector<8x128xf32>
    %35 = vector.extract_strided_slice %21 {offsets = [0, 0], sizes = [8, 1], strides = [1, 1]} : vector<8x9xf32> to vector<8x1xf32>
    %36 = vector.broadcast %35 : vector<8x1xf32> to vector<8x128xf32>
    %37 = arith.mulf %34, %36 : vector<8x128xf32>
    %38 = arith.addf %24, %37 : vector<8x128xf32>
    %c4_i32_17 = arith.constant 4 : i32
    %39 = tpu.dynamic_rotate %16 by %c4_i32_17 dim 1 : vector<8x128xf32>, i32 -> vector<8x128xf32>
    %c4_i32_18 = arith.constant 4 : i32
    %40 = vector.broadcast %c4_i32_18 : i32 to vector<1x128xi32>
    %41 = arith.cmpi sge, %17, %40 : vector<1x128xi32>
    %42 = arith.extui %41 : vector<1x128xi1> to vector<1x128xi32>
    %43 = arith.sitofp %42 : vector<1x128xi32> to vector<1x128xf32>
    %44 = vector.broadcast %43 : vector<1x128xf32> to vector<8x128xf32>
    %45 = arith.mulf %39, %44 : vector<8x128xf32>
    %46 = vector.extract_strided_slice %21 {offsets = [0, 1], sizes = [8, 1], strides = [1, 1]} : vector<8x9xf32> to vector<8x1xf32>
    %47 = vector.broadcast %46 : vector<8x1xf32> to vector<8x128xf32>
    %48 = arith.mulf %45, %47 : vector<8x128xf32>
    %49 = arith.addf %38, %48 : vector<8x128xf32>
    %c3_i32_19 = arith.constant 3 : i32
    %50 = tpu.dynamic_rotate %16 by %c3_i32_19 dim 1 : vector<8x128xf32>, i32 -> vector<8x128xf32>
    %c4_i32_20 = arith.constant 4 : i32
    %51 = vector.broadcast %c4_i32_20 : i32 to vector<1x128xi32>
    %52 = arith.cmpi sge, %17, %51 : vector<1x128xi32>
    %c3_i32_21 = arith.constant 3 : i32
    %53 = vector.broadcast %c3_i32_21 : i32 to vector<1x128xi32>
    %54 = arith.cmpi ne, %19, %53 : vector<1x128xi32>
    %55 = arith.andi %52, %54 : vector<1x128xi1>
    %56 = arith.extui %55 : vector<1x128xi1> to vector<1x128xi32>
    %57 = arith.sitofp %56 : vector<1x128xi32> to vector<1x128xf32>
    %58 = vector.broadcast %57 : vector<1x128xf32> to vector<8x128xf32>
    %59 = arith.mulf %50, %58 : vector<8x128xf32>
    %60 = vector.extract_strided_slice %21 {offsets = [0, 2], sizes = [8, 1], strides = [1, 1]} : vector<8x9xf32> to vector<8x1xf32>
    %61 = vector.broadcast %60 : vector<8x1xf32> to vector<8x128xf32>
    %62 = arith.mulf %59, %61 : vector<8x128xf32>
    %63 = arith.addf %49, %62 : vector<8x128xf32>
    %c1_i32 = arith.constant 1 : i32
    %64 = tpu.dynamic_rotate %16 by %c1_i32 dim 1 : vector<8x128xf32>, i32 -> vector<8x128xf32>
    %c0_i32_22 = arith.constant 0 : i32
    %65 = vector.broadcast %c0_i32_22 : i32 to vector<1x128xi32>
    %66 = arith.cmpi ne, %19, %65 : vector<1x128xi32>
    %67 = arith.extui %66 : vector<1x128xi1> to vector<1x128xi32>
    %68 = arith.sitofp %67 : vector<1x128xi32> to vector<1x128xf32>
    %69 = vector.broadcast %68 : vector<1x128xf32> to vector<8x128xf32>
    %70 = arith.mulf %64, %69 : vector<8x128xf32>
    %71 = vector.extract_strided_slice %21 {offsets = [0, 3], sizes = [8, 1], strides = [1, 1]} : vector<8x9xf32> to vector<8x1xf32>
    %72 = vector.broadcast %71 : vector<8x1xf32> to vector<8x128xf32>
    %73 = arith.mulf %70, %72 : vector<8x128xf32>
    %74 = arith.addf %63, %73 : vector<8x128xf32>
    %c127_i32 = arith.constant 127 : i32
    %75 = tpu.dynamic_rotate %16 by %c127_i32 dim 1 : vector<8x128xf32>, i32 -> vector<8x128xf32>
    %c3_i32_23 = arith.constant 3 : i32
    %76 = vector.broadcast %c3_i32_23 : i32 to vector<1x128xi32>
    %77 = arith.cmpi ne, %19, %76 : vector<1x128xi32>
    %78 = arith.extui %77 : vector<1x128xi1> to vector<1x128xi32>
    %79 = arith.sitofp %78 : vector<1x128xi32> to vector<1x128xf32>
    %80 = vector.broadcast %79 : vector<1x128xf32> to vector<8x128xf32>
    %81 = arith.mulf %75, %80 : vector<8x128xf32>
    %82 = vector.extract_strided_slice %21 {offsets = [0, 5], sizes = [8, 1], strides = [1, 1]} : vector<8x9xf32> to vector<8x1xf32>
    %83 = vector.broadcast %82 : vector<8x1xf32> to vector<8x128xf32>
    %84 = arith.mulf %81, %83 : vector<8x128xf32>
    %85 = arith.addf %74, %84 : vector<8x128xf32>
    %c125_i32 = arith.constant 125 : i32
    %86 = tpu.dynamic_rotate %16 by %c125_i32 dim 1 : vector<8x128xf32>, i32 -> vector<8x128xf32>
    %c12_i32 = arith.constant 12 : i32
    %87 = vector.broadcast %c12_i32 : i32 to vector<1x128xi32>
    %88 = arith.cmpi slt, %17, %87 : vector<1x128xi32>
    %c0_i32_24 = arith.constant 0 : i32
    %89 = vector.broadcast %c0_i32_24 : i32 to vector<1x128xi32>
    %90 = arith.cmpi ne, %19, %89 : vector<1x128xi32>
    %91 = arith.andi %88, %90 : vector<1x128xi1>
    %92 = arith.extui %91 : vector<1x128xi1> to vector<1x128xi32>
    %93 = arith.sitofp %92 : vector<1x128xi32> to vector<1x128xf32>
    %94 = vector.broadcast %93 : vector<1x128xf32> to vector<8x128xf32>
    %95 = arith.mulf %86, %94 : vector<8x128xf32>
    %96 = vector.extract_strided_slice %21 {offsets = [0, 6], sizes = [8, 1], strides = [1, 1]} : vector<8x9xf32> to vector<8x1xf32>
    %97 = vector.broadcast %96 : vector<8x1xf32> to vector<8x128xf32>
    %98 = arith.mulf %95, %97 : vector<8x128xf32>
    %99 = arith.addf %85, %98 : vector<8x128xf32>
    %c124_i32 = arith.constant 124 : i32
    %100 = tpu.dynamic_rotate %16 by %c124_i32 dim 1 : vector<8x128xf32>, i32 -> vector<8x128xf32>
    %c12_i32_25 = arith.constant 12 : i32
    %101 = vector.broadcast %c12_i32_25 : i32 to vector<1x128xi32>
    %102 = arith.cmpi slt, %17, %101 : vector<1x128xi32>
    %103 = arith.extui %102 : vector<1x128xi1> to vector<1x128xi32>
    %104 = arith.sitofp %103 : vector<1x128xi32> to vector<1x128xf32>
    %105 = vector.broadcast %104 : vector<1x128xf32> to vector<8x128xf32>
    %106 = arith.mulf %100, %105 : vector<8x128xf32>
    %107 = vector.extract_strided_slice %21 {offsets = [0, 7], sizes = [8, 1], strides = [1, 1]} : vector<8x9xf32> to vector<8x1xf32>
    %108 = vector.broadcast %107 : vector<8x1xf32> to vector<8x128xf32>
    %109 = arith.mulf %106, %108 : vector<8x128xf32>
    %110 = arith.addf %99, %109 : vector<8x128xf32>
    %c123_i32 = arith.constant 123 : i32
    %111 = tpu.dynamic_rotate %16 by %c123_i32 dim 1 : vector<8x128xf32>, i32 -> vector<8x128xf32>
    %c12_i32_26 = arith.constant 12 : i32
    %112 = vector.broadcast %c12_i32_26 : i32 to vector<1x128xi32>
    %113 = arith.cmpi slt, %17, %112 : vector<1x128xi32>
    %c3_i32_27 = arith.constant 3 : i32
    %114 = vector.broadcast %c3_i32_27 : i32 to vector<1x128xi32>
    %115 = arith.cmpi ne, %19, %114 : vector<1x128xi32>
    %116 = arith.andi %113, %115 : vector<1x128xi1>
    %117 = arith.extui %116 : vector<1x128xi1> to vector<1x128xi32>
    %118 = arith.sitofp %117 : vector<1x128xi32> to vector<1x128xf32>
    %119 = vector.broadcast %118 : vector<1x128xf32> to vector<8x128xf32>
    %120 = arith.mulf %111, %119 : vector<8x128xf32>
    %121 = vector.extract_strided_slice %21 {offsets = [0, 8], sizes = [8, 1], strides = [1, 1]} : vector<8x9xf32> to vector<8x1xf32>
    %122 = vector.broadcast %121 : vector<8x1xf32> to vector<8x128xf32>
    %123 = arith.mulf %120, %122 : vector<8x128xf32>
    %124 = arith.addf %110, %123 : vector<8x128xf32>
    %c0_28 = arith.constant 0 : index
    %c0_29 = arith.constant 0 : index
    %c0_30 = arith.constant 0 : index
    %125 = vector.load %arg7[%c0_28, %c0_29, %c0_30] : memref<6x8x8xf32, #tpu.memory_space<vmem>>, vector<1x8x8xf32>
    %126 = vector.shape_cast %125 : vector<1x8x8xf32> to vector<8x8xf32>
    %cst_31 = arith.constant dense<0.000000e+00> : vector<8x128xf32>
    %127 = tpu.matmul %126, %124, %cst_31 {dimension_numbers = #tpu.dot_dimension_numbers<[1], [0], [0], [1], [0, 0, 1, 1], [], []>, precision = #tpu.contract_precision<fp32>} : vector<8x8xf32>, vector<8x128xf32>, vector<8x128xf32> -> vector<8x128xf32>
    %c0_32 = arith.constant 0 : index
    %c0_33 = arith.constant 0 : index
    %c0_34 = arith.constant 0 : index
    %128 = vector.load %arg8[%c0_32, %c0_33, %c0_34] : memref<6x8x1xf32, #tpu.memory_space<vmem>>, vector<1x8x1xf32>
    %129 = vector.shape_cast %128 : vector<1x8x1xf32> to vector<8x1xf32>
    %130 = vector.broadcast %129 : vector<8x1xf32> to vector<8x128xf32>
    %131 = arith.addf %127, %130 : vector<8x128xf32>
    %cst_35 = arith.constant 0.000000e+00 : f32
    %132 = vector.broadcast %cst_35 : f32 to vector<8x128xf32>
    %133 = arith.maximumf %131, %132 : vector<8x128xf32>
    %c2 = arith.constant 2 : index
    %134 = memref.load %arg1[%c2] : memref<14xf32, #tpu.memory_space<smem>>
    %135 = vector.broadcast %134 : f32 to vector<8x128xf32>
    %136 = arith.mulf %135, %3 : vector<8x128xf32>
    %c3 = arith.constant 3 : index
    %137 = memref.load %arg1[%c3] : memref<14xf32, #tpu.memory_space<smem>>
    %c0_36 = arith.constant 0 : index
    %c0_37 = arith.constant 0 : index
    %138 = vector.load %arg10[%c0_36, %c0_37] : memref<128x128xf32, #tpu.memory_space<vmem>>, vector<128x128xf32>
    %cst_38 = arith.constant dense<0.000000e+00> : vector<8x128xf32>
    %139 = tpu.matmul %133, %138, %cst_38 {dimension_numbers = #tpu.dot_dimension_numbers<[1], [0], [0], [1], [0, 0, 1, 1], [], []>, precision = #tpu.contract_precision<fp32>} : vector<8x128xf32>, vector<128x128xf32>, vector<8x128xf32> -> vector<8x128xf32>
    %140 = vector.broadcast %137 : f32 to vector<8x128xf32>
    %141 = arith.mulf %140, %139 : vector<8x128xf32>
    %142 = arith.addf %136, %141 : vector<8x128xf32>
    %143 = tpu.iota {dimensions = array<i32: 1>} : vector<1x128xi32>
    %c7_i32 = arith.constant 7 : i32
    %144 = vector.broadcast %c7_i32 : i32 to vector<1x128xi32>
    %145 = arith.andi %143, %144 : vector<1x128xi32>
    %c1_39 = arith.constant 1 : index
    %c0_40 = arith.constant 0 : index
    %c0_41 = arith.constant 0 : index
    %146 = vector.load %arg6[%c1_39, %c0_40, %c0_41] : memref<6x8x9xf32, #tpu.memory_space<vmem>>, vector<1x8x9xf32>
    %147 = vector.shape_cast %146 : vector<1x8x9xf32> to vector<8x9xf32>
    %148 = vector.extract_strided_slice %147 {offsets = [0, 4], sizes = [8, 1], strides = [1, 1]} : vector<8x9xf32> to vector<8x1xf32>
    %149 = vector.broadcast %148 : vector<8x1xf32> to vector<8x128xf32>
    %150 = arith.mulf %142, %149 : vector<8x128xf32>
    %c9_i32 = arith.constant 9 : i32
    %151 = tpu.dynamic_rotate %142 by %c9_i32 dim 1 : vector<8x128xf32>, i32 -> vector<8x128xf32>
    %c8_i32 = arith.constant 8 : i32
    %152 = vector.broadcast %c8_i32 : i32 to vector<1x128xi32>
    %153 = arith.cmpi sge, %143, %152 : vector<1x128xi32>
    %c0_i32_42 = arith.constant 0 : i32
    %154 = vector.broadcast %c0_i32_42 : i32 to vector<1x128xi32>
    %155 = arith.cmpi ne, %145, %154 : vector<1x128xi32>
    %156 = arith.andi %153, %155 : vector<1x128xi1>
    %157 = arith.extui %156 : vector<1x128xi1> to vector<1x128xi32>
    %158 = arith.sitofp %157 : vector<1x128xi32> to vector<1x128xf32>
    %159 = vector.broadcast %158 : vector<1x128xf32> to vector<8x128xf32>
    %160 = arith.mulf %151, %159 : vector<8x128xf32>
    %161 = vector.extract_strided_slice %147 {offsets = [0, 0], sizes = [8, 1], strides = [1, 1]} : vector<8x9xf32> to vector<8x1xf32>
    %162 = vector.broadcast %161 : vector<8x1xf32> to vector<8x128xf32>
    %163 = arith.mulf %160, %162 : vector<8x128xf32>
    %164 = arith.addf %150, %163 : vector<8x128xf32>
    %c8_i32_43 = arith.constant 8 : i32
    %165 = tpu.dynamic_rotate %142 by %c8_i32_43 dim 1 : vector<8x128xf32>, i32 -> vector<8x128xf32>
    %c8_i32_44 = arith.constant 8 : i32
    %166 = vector.broadcast %c8_i32_44 : i32 to vector<1x128xi32>
    %167 = arith.cmpi sge, %143, %166 : vector<1x128xi32>
    %168 = arith.extui %167 : vector<1x128xi1> to vector<1x128xi32>
    %169 = arith.sitofp %168 : vector<1x128xi32> to vector<1x128xf32>
    %170 = vector.broadcast %169 : vector<1x128xf32> to vector<8x128xf32>
    %171 = arith.mulf %165, %170 : vector<8x128xf32>
    %172 = vector.extract_strided_slice %147 {offsets = [0, 1], sizes = [8, 1], strides = [1, 1]} : vector<8x9xf32> to vector<8x1xf32>
    %173 = vector.broadcast %172 : vector<8x1xf32> to vector<8x128xf32>
    %174 = arith.mulf %171, %173 : vector<8x128xf32>
    %175 = arith.addf %164, %174 : vector<8x128xf32>
    %c7_i32_45 = arith.constant 7 : i32
    %176 = tpu.dynamic_rotate %142 by %c7_i32_45 dim 1 : vector<8x128xf32>, i32 -> vector<8x128xf32>
    %c8_i32_46 = arith.constant 8 : i32
    %177 = vector.broadcast %c8_i32_46 : i32 to vector<1x128xi32>
    %178 = arith.cmpi sge, %143, %177 : vector<1x128xi32>
    %c7_i32_47 = arith.constant 7 : i32
    %179 = vector.broadcast %c7_i32_47 : i32 to vector<1x128xi32>
    %180 = arith.cmpi ne, %145, %179 : vector<1x128xi32>
    %181 = arith.andi %178, %180 : vector<1x128xi1>
    %182 = arith.extui %181 : vector<1x128xi1> to vector<1x128xi32>
    %183 = arith.sitofp %182 : vector<1x128xi32> to vector<1x128xf32>
    %184 = vector.broadcast %183 : vector<1x128xf32> to vector<8x128xf32>
    %185 = arith.mulf %176, %184 : vector<8x128xf32>
    %186 = vector.extract_strided_slice %147 {offsets = [0, 2], sizes = [8, 1], strides = [1, 1]} : vector<8x9xf32> to vector<8x1xf32>
    %187 = vector.broadcast %186 : vector<8x1xf32> to vector<8x128xf32>
    %188 = arith.mulf %185, %187 : vector<8x128xf32>
    %189 = arith.addf %175, %188 : vector<8x128xf32>
    %c1_i32_48 = arith.constant 1 : i32
    %190 = tpu.dynamic_rotate %142 by %c1_i32_48 dim 1 : vector<8x128xf32>, i32 -> vector<8x128xf32>
    %c0_i32_49 = arith.constant 0 : i32
    %191 = vector.broadcast %c0_i32_49 : i32 to vector<1x128xi32>
    %192 = arith.cmpi ne, %145, %191 : vector<1x128xi32>
    %193 = arith.extui %192 : vector<1x128xi1> to vector<1x128xi32>
    %194 = arith.sitofp %193 : vector<1x128xi32> to vector<1x128xf32>
    %195 = vector.broadcast %194 : vector<1x128xf32> to vector<8x128xf32>
    %196 = arith.mulf %190, %195 : vector<8x128xf32>
    %197 = vector.extract_strided_slice %147 {offsets = [0, 3], sizes = [8, 1], strides = [1, 1]} : vector<8x9xf32> to vector<8x1xf32>
    %198 = vector.broadcast %197 : vector<8x1xf32> to vector<8x128xf32>
    %199 = arith.mulf %196, %198 : vector<8x128xf32>
    %200 = arith.addf %189, %199 : vector<8x128xf32>
    %c127_i32_50 = arith.constant 127 : i32
    %201 = tpu.dynamic_rotate %142 by %c127_i32_50 dim 1 : vector<8x128xf32>, i32 -> vector<8x128xf32>
    %c7_i32_51 = arith.constant 7 : i32
    %202 = vector.broadcast %c7_i32_51 : i32 to vector<1x128xi32>
    %203 = arith.cmpi ne, %145, %202 : vector<1x128xi32>
    %204 = arith.extui %203 : vector<1x128xi1> to vector<1x128xi32>
    %205 = arith.sitofp %204 : vector<1x128xi32> to vector<1x128xf32>
    %206 = vector.broadcast %205 : vector<1x128xf32> to vector<8x128xf32>
    %207 = arith.mulf %201, %206 : vector<8x128xf32>
    %208 = vector.extract_strided_slice %147 {offsets = [0, 5], sizes = [8, 1], strides = [1, 1]} : vector<8x9xf32> to vector<8x1xf32>
    %209 = vector.broadcast %208 : vector<8x1xf32> to vector<8x128xf32>
    %210 = arith.mulf %207, %209 : vector<8x128xf32>
    %211 = arith.addf %200, %210 : vector<8x128xf32>
    %c121_i32 = arith.constant 121 : i32
    %212 = tpu.dynamic_rotate %142 by %c121_i32 dim 1 : vector<8x128xf32>, i32 -> vector<8x128xf32>
    %c56_i32 = arith.constant 56 : i32
    %213 = vector.broadcast %c56_i32 : i32 to vector<1x128xi32>
    %214 = arith.cmpi slt, %143, %213 : vector<1x128xi32>
    %c0_i32_52 = arith.constant 0 : i32
    %215 = vector.broadcast %c0_i32_52 : i32 to vector<1x128xi32>
    %216 = arith.cmpi ne, %145, %215 : vector<1x128xi32>
    %217 = arith.andi %214, %216 : vector<1x128xi1>
    %218 = arith.extui %217 : vector<1x128xi1> to vector<1x128xi32>
    %219 = arith.sitofp %218 : vector<1x128xi32> to vector<1x128xf32>
    %220 = vector.broadcast %219 : vector<1x128xf32> to vector<8x128xf32>
    %221 = arith.mulf %212, %220 : vector<8x128xf32>
    %222 = vector.extract_strided_slice %147 {offsets = [0, 6], sizes = [8, 1], strides = [1, 1]} : vector<8x9xf32> to vector<8x1xf32>
    %223 = vector.broadcast %222 : vector<8x1xf32> to vector<8x128xf32>
    %224 = arith.mulf %221, %223 : vector<8x128xf32>
    %225 = arith.addf %211, %224 : vector<8x128xf32>
    %c120_i32 = arith.constant 120 : i32
    %226 = tpu.dynamic_rotate %142 by %c120_i32 dim 1 : vector<8x128xf32>, i32 -> vector<8x128xf32>
    %c56_i32_53 = arith.constant 56 : i32
    %227 = vector.broadcast %c56_i32_53 : i32 to vector<1x128xi32>
    %228 = arith.cmpi slt, %143, %227 : vector<1x128xi32>
    %229 = arith.extui %228 : vector<1x128xi1> to vector<1x128xi32>
    %230 = arith.sitofp %229 : vector<1x128xi32> to vector<1x128xf32>
    %231 = vector.broadcast %230 : vector<1x128xf32> to vector<8x128xf32>
    %232 = arith.mulf %226, %231 : vector<8x128xf32>
    %233 = vector.extract_strided_slice %147 {offsets = [0, 7], sizes = [8, 1], strides = [1, 1]} : vector<8x9xf32> to vector<8x1xf32>
    %234 = vector.broadcast %233 : vector<8x1xf32> to vector<8x128xf32>
    %235 = arith.mulf %232, %234 : vector<8x128xf32>
    %236 = arith.addf %225, %235 : vector<8x128xf32>
    %c119_i32 = arith.constant 119 : i32
    %237 = tpu.dynamic_rotate %142 by %c119_i32 dim 1 : vector<8x128xf32>, i32 -> vector<8x128xf32>
    %c56_i32_54 = arith.constant 56 : i32
    %238 = vector.broadcast %c56_i32_54 : i32 to vector<1x128xi32>
    %239 = arith.cmpi slt, %143, %238 : vector<1x128xi32>
    %c7_i32_55 = arith.constant 7 : i32
    %240 = vector.broadcast %c7_i32_55 : i32 to vector<1x128xi32>
    %241 = arith.cmpi ne, %145, %240 : vector<1x128xi32>
    %242 = arith.andi %239, %241 : vector<1x128xi1>
    %243 = arith.extui %242 : vector<1x128xi1> to vector<1x128xi32>
    %244 = arith.sitofp %243 : vector<1x128xi32> to vector<1x128xf32>
    %245 = vector.broadcast %244 : vector<1x128xf32> to vector<8x128xf32>
    %246 = arith.mulf %237, %245 : vector<8x128xf32>
    %247 = vector.extract_strided_slice %147 {offsets = [0, 8], sizes = [8, 1], strides = [1, 1]} : vector<8x9xf32> to vector<8x1xf32>
    %248 = vector.broadcast %247 : vector<8x1xf32> to vector<8x128xf32>
    %249 = arith.mulf %246, %248 : vector<8x128xf32>
    %250 = arith.addf %236, %249 : vector<8x128xf32>
    %c1_56 = arith.constant 1 : index
    %c0_57 = arith.constant 0 : index
    %c0_58 = arith.constant 0 : index
    %251 = vector.load %arg7[%c1_56, %c0_57, %c0_58] : memref<6x8x8xf32, #tpu.memory_space<vmem>>, vector<1x8x8xf32>
    %252 = vector.shape_cast %251 : vector<1x8x8xf32> to vector<8x8xf32>
    %cst_59 = arith.constant dense<0.000000e+00> : vector<8x128xf32>
    %253 = tpu.matmul %252, %250, %cst_59 {dimension_numbers = #tpu.dot_dimension_numbers<[1], [0], [0], [1], [0, 0, 1, 1], [], []>, precision = #tpu.contract_precision<fp32>} : vector<8x8xf32>, vector<8x128xf32>, vector<8x128xf32> -> vector<8x128xf32>
    %c1_60 = arith.constant 1 : index
    %c0_61 = arith.constant 0 : index
    %c0_62 = arith.constant 0 : index
    %254 = vector.load %arg8[%c1_60, %c0_61, %c0_62] : memref<6x8x1xf32, #tpu.memory_space<vmem>>, vector<1x8x1xf32>
    %255 = vector.shape_cast %254 : vector<1x8x1xf32> to vector<8x1xf32>
    %256 = vector.broadcast %255 : vector<8x1xf32> to vector<8x128xf32>
    %257 = arith.addf %253, %256 : vector<8x128xf32>
    %cst_63 = arith.constant 0.000000e+00 : f32
    %258 = vector.broadcast %cst_63 : f32 to vector<8x128xf32>
    %259 = arith.maximumf %257, %258 : vector<8x128xf32>
    %c4 = arith.constant 4 : index
    %260 = memref.load %arg1[%c4] : memref<14xf32, #tpu.memory_space<smem>>
    %261 = vector.broadcast %260 : f32 to vector<8x256xf32>
    %262 = arith.mulf %261, %1 : vector<8x256xf32>
    %c5 = arith.constant 5 : index
    %263 = memref.load %arg1[%c5] : memref<14xf32, #tpu.memory_space<smem>>
    %c0_64 = arith.constant 0 : index
    %c0_65 = arith.constant 0 : index
    %264 = vector.load %arg11[%c0_64, %c0_65] : memref<128x256xf32, #tpu.memory_space<vmem>>, vector<128x256xf32>
    %cst_66 = arith.constant dense<0.000000e+00> : vector<8x256xf32>
    %265 = tpu.matmul %259, %264, %cst_66 {dimension_numbers = #tpu.dot_dimension_numbers<[1], [0], [0], [1], [0, 0, 1, 1], [], []>, precision = #tpu.contract_precision<fp32>} : vector<8x128xf32>, vector<128x256xf32>, vector<8x256xf32> -> vector<8x256xf32>
    %266 = vector.broadcast %263 : f32 to vector<8x256xf32>
    %267 = arith.mulf %266, %265 : vector<8x256xf32>
    %268 = arith.addf %262, %267 : vector<8x256xf32>
    %269 = tpu.iota {dimensions = array<i32: 1>} : vector<1x256xi32>
    %c15_i32 = arith.constant 15 : i32
    %270 = vector.broadcast %c15_i32 : i32 to vector<1x256xi32>
    %271 = arith.andi %269, %270 : vector<1x256xi32>
    %c2_67 = arith.constant 2 : index
    %c0_68 = arith.constant 0 : index
    %c0_69 = arith.constant 0 : index
    %272 = vector.load %arg6[%c2_67, %c0_68, %c0_69] : memref<6x8x9xf32, #tpu.memory_space<vmem>>, vector<1x8x9xf32>
    %273 = vector.shape_cast %272 : vector<1x8x9xf32> to vector<8x9xf32>
    %274 = vector.extract_strided_slice %273 {offsets = [0, 4], sizes = [8, 1], strides = [1, 1]} : vector<8x9xf32> to vector<8x1xf32>
    %275 = vector.broadcast %274 : vector<8x1xf32> to vector<8x256xf32>
    %276 = arith.mulf %268, %275 : vector<8x256xf32>
    %c17_i32 = arith.constant 17 : i32
    %277 = tpu.dynamic_rotate %268 by %c17_i32 dim 1 : vector<8x256xf32>, i32 -> vector<8x256xf32>
    %c16_i32 = arith.constant 16 : i32
    %278 = vector.broadcast %c16_i32 : i32 to vector<1x256xi32>
    %279 = arith.cmpi sge, %269, %278 : vector<1x256xi32>
    %c0_i32_70 = arith.constant 0 : i32
    %280 = vector.broadcast %c0_i32_70 : i32 to vector<1x256xi32>
    %281 = arith.cmpi ne, %271, %280 : vector<1x256xi32>
    %282 = arith.andi %279, %281 : vector<1x256xi1>
    %283 = arith.extui %282 : vector<1x256xi1> to vector<1x256xi32>
    %284 = arith.sitofp %283 : vector<1x256xi32> to vector<1x256xf32>
    %285 = vector.broadcast %284 : vector<1x256xf32> to vector<8x256xf32>
    %286 = arith.mulf %277, %285 : vector<8x256xf32>
    %287 = vector.extract_strided_slice %273 {offsets = [0, 0], sizes = [8, 1], strides = [1, 1]} : vector<8x9xf32> to vector<8x1xf32>
    %288 = vector.broadcast %287 : vector<8x1xf32> to vector<8x256xf32>
    %289 = arith.mulf %286, %288 : vector<8x256xf32>
    %290 = arith.addf %276, %289 : vector<8x256xf32>
    %c16_i32_71 = arith.constant 16 : i32
    %291 = tpu.dynamic_rotate %268 by %c16_i32_71 dim 1 : vector<8x256xf32>, i32 -> vector<8x256xf32>
    %c16_i32_72 = arith.constant 16 : i32
    %292 = vector.broadcast %c16_i32_72 : i32 to vector<1x256xi32>
    %293 = arith.cmpi sge, %269, %292 : vector<1x256xi32>
    %294 = arith.extui %293 : vector<1x256xi1> to vector<1x256xi32>
    %295 = arith.sitofp %294 : vector<1x256xi32> to vector<1x256xf32>
    %296 = vector.broadcast %295 : vector<1x256xf32> to vector<8x256xf32>
    %297 = arith.mulf %291, %296 : vector<8x256xf32>
    %298 = vector.extract_strided_slice %273 {offsets = [0, 1], sizes = [8, 1], strides = [1, 1]} : vector<8x9xf32> to vector<8x1xf32>
    %299 = vector.broadcast %298 : vector<8x1xf32> to vector<8x256xf32>
    %300 = arith.mulf %297, %299 : vector<8x256xf32>
    %301 = arith.addf %290, %300 : vector<8x256xf32>
    %c15_i32_73 = arith.constant 15 : i32
    %302 = tpu.dynamic_rotate %268 by %c15_i32_73 dim 1 : vector<8x256xf32>, i32 -> vector<8x256xf32>
    %c16_i32_74 = arith.constant 16 : i32
    %303 = vector.broadcast %c16_i32_74 : i32 to vector<1x256xi32>
    %304 = arith.cmpi sge, %269, %303 : vector<1x256xi32>
    %c15_i32_75 = arith.constant 15 : i32
    %305 = vector.broadcast %c15_i32_75 : i32 to vector<1x256xi32>
    %306 = arith.cmpi ne, %271, %305 : vector<1x256xi32>
    %307 = arith.andi %304, %306 : vector<1x256xi1>
    %308 = arith.extui %307 : vector<1x256xi1> to vector<1x256xi32>
    %309 = arith.sitofp %308 : vector<1x256xi32> to vector<1x256xf32>
    %310 = vector.broadcast %309 : vector<1x256xf32> to vector<8x256xf32>
    %311 = arith.mulf %302, %310 : vector<8x256xf32>
    %312 = vector.extract_strided_slice %273 {offsets = [0, 2], sizes = [8, 1], strides = [1, 1]} : vector<8x9xf32> to vector<8x1xf32>
    %313 = vector.broadcast %312 : vector<8x1xf32> to vector<8x256xf32>
    %314 = arith.mulf %311, %313 : vector<8x256xf32>
    %315 = arith.addf %301, %314 : vector<8x256xf32>
    %c1_i32_76 = arith.constant 1 : i32
    %316 = tpu.dynamic_rotate %268 by %c1_i32_76 dim 1 : vector<8x256xf32>, i32 -> vector<8x256xf32>
    %c0_i32_77 = arith.constant 0 : i32
    %317 = vector.broadcast %c0_i32_77 : i32 to vector<1x256xi32>
    %318 = arith.cmpi ne, %271, %317 : vector<1x256xi32>
    %319 = arith.extui %318 : vector<1x256xi1> to vector<1x256xi32>
    %320 = arith.sitofp %319 : vector<1x256xi32> to vector<1x256xf32>
    %321 = vector.broadcast %320 : vector<1x256xf32> to vector<8x256xf32>
    %322 = arith.mulf %316, %321 : vector<8x256xf32>
    %323 = vector.extract_strided_slice %273 {offsets = [0, 3], sizes = [8, 1], strides = [1, 1]} : vector<8x9xf32> to vector<8x1xf32>
    %324 = vector.broadcast %323 : vector<8x1xf32> to vector<8x256xf32>
    %325 = arith.mulf %322, %324 : vector<8x256xf32>
    %326 = arith.addf %315, %325 : vector<8x256xf32>
    %c255_i32 = arith.constant 255 : i32
    %327 = tpu.dynamic_rotate %268 by %c255_i32 dim 1 : vector<8x256xf32>, i32 -> vector<8x256xf32>
    %c15_i32_78 = arith.constant 15 : i32
    %328 = vector.broadcast %c15_i32_78 : i32 to vector<1x256xi32>
    %329 = arith.cmpi ne, %271, %328 : vector<1x256xi32>
    %330 = arith.extui %329 : vector<1x256xi1> to vector<1x256xi32>
    %331 = arith.sitofp %330 : vector<1x256xi32> to vector<1x256xf32>
    %332 = vector.broadcast %331 : vector<1x256xf32> to vector<8x256xf32>
    %333 = arith.mulf %327, %332 : vector<8x256xf32>
    %334 = vector.extract_strided_slice %273 {offsets = [0, 5], sizes = [8, 1], strides = [1, 1]} : vector<8x9xf32> to vector<8x1xf32>
    %335 = vector.broadcast %334 : vector<8x1xf32> to vector<8x256xf32>
    %336 = arith.mulf %333, %335 : vector<8x256xf32>
    %337 = arith.addf %326, %336 : vector<8x256xf32>
    %c241_i32 = arith.constant 241 : i32
    %338 = tpu.dynamic_rotate %268 by %c241_i32 dim 1 : vector<8x256xf32>, i32 -> vector<8x256xf32>
    %c240_i32 = arith.constant 240 : i32
    %339 = vector.broadcast %c240_i32 : i32 to vector<1x256xi32>
    %340 = arith.cmpi slt, %269, %339 : vector<1x256xi32>
    %c0_i32_79 = arith.constant 0 : i32
    %341 = vector.broadcast %c0_i32_79 : i32 to vector<1x256xi32>
    %342 = arith.cmpi ne, %271, %341 : vector<1x256xi32>
    %343 = arith.andi %340, %342 : vector<1x256xi1>
    %344 = arith.extui %343 : vector<1x256xi1> to vector<1x256xi32>
    %345 = arith.sitofp %344 : vector<1x256xi32> to vector<1x256xf32>
    %346 = vector.broadcast %345 : vector<1x256xf32> to vector<8x256xf32>
    %347 = arith.mulf %338, %346 : vector<8x256xf32>
    %348 = vector.extract_strided_slice %273 {offsets = [0, 6], sizes = [8, 1], strides = [1, 1]} : vector<8x9xf32> to vector<8x1xf32>
    %349 = vector.broadcast %348 : vector<8x1xf32> to vector<8x256xf32>
    %350 = arith.mulf %347, %349 : vector<8x256xf32>
    %351 = arith.addf %337, %350 : vector<8x256xf32>
    %c240_i32_80 = arith.constant 240 : i32
    %352 = tpu.dynamic_rotate %268 by %c240_i32_80 dim 1 : vector<8x256xf32>, i32 -> vector<8x256xf32>
    %c240_i32_81 = arith.constant 240 : i32
    %353 = vector.broadcast %c240_i32_81 : i32 to vector<1x256xi32>
    %354 = arith.cmpi slt, %269, %353 : vector<1x256xi32>
    %355 = arith.extui %354 : vector<1x256xi1> to vector<1x256xi32>
    %356 = arith.sitofp %355 : vector<1x256xi32> to vector<1x256xf32>
    %357 = vector.broadcast %356 : vector<1x256xf32> to vector<8x256xf32>
    %358 = arith.mulf %352, %357 : vector<8x256xf32>
    %359 = vector.extract_strided_slice %273 {offsets = [0, 7], sizes = [8, 1], strides = [1, 1]} : vector<8x9xf32> to vector<8x1xf32>
    %360 = vector.broadcast %359 : vector<8x1xf32> to vector<8x256xf32>
    %361 = arith.mulf %358, %360 : vector<8x256xf32>
    %362 = arith.addf %351, %361 : vector<8x256xf32>
    %c239_i32 = arith.constant 239 : i32
    %363 = tpu.dynamic_rotate %268 by %c239_i32 dim 1 : vector<8x256xf32>, i32 -> vector<8x256xf32>
    %c240_i32_82 = arith.constant 240 : i32
    %364 = vector.broadcast %c240_i32_82 : i32 to vector<1x256xi32>
    %365 = arith.cmpi slt, %269, %364 : vector<1x256xi32>
    %c15_i32_83 = arith.constant 15 : i32
    %366 = vector.broadcast %c15_i32_83 : i32 to vector<1x256xi32>
    %367 = arith.cmpi ne, %271, %366 : vector<1x256xi32>
    %368 = arith.andi %365, %367 : vector<1x256xi1>
    %369 = arith.extui %368 : vector<1x256xi1> to vector<1x256xi32>
    %370 = arith.sitofp %369 : vector<1x256xi32> to vector<1x256xf32>
    %371 = vector.broadcast %370 : vector<1x256xf32> to vector<8x256xf32>
    %372 = arith.mulf %363, %371 : vector<8x256xf32>
    %373 = vector.extract_strided_slice %273 {offsets = [0, 8], sizes = [8, 1], strides = [1, 1]} : vector<8x9xf32> to vector<8x1xf32>
    %374 = vector.broadcast %373 : vector<8x1xf32> to vector<8x256xf32>
    %375 = arith.mulf %372, %374 : vector<8x256xf32>
    %376 = arith.addf %362, %375 : vector<8x256xf32>
    %c2_84 = arith.constant 2 : index
    %c0_85 = arith.constant 0 : index
    %c0_86 = arith.constant 0 : index
    %377 = vector.load %arg7[%c2_84, %c0_85, %c0_86] : memref<6x8x8xf32, #tpu.memory_space<vmem>>, vector<1x8x8xf32>
    %378 = vector.shape_cast %377 : vector<1x8x8xf32> to vector<8x8xf32>
    %cst_87 = arith.constant dense<0.000000e+00> : vector<8x256xf32>
    %379 = tpu.matmul %378, %376, %cst_87 {dimension_numbers = #tpu.dot_dimension_numbers<[1], [0], [0], [1], [0, 0, 1, 1], [], []>, precision = #tpu.contract_precision<fp32>} : vector<8x8xf32>, vector<8x256xf32>, vector<8x256xf32> -> vector<8x256xf32>
    %c2_88 = arith.constant 2 : index
    %c0_89 = arith.constant 0 : index
    %c0_90 = arith.constant 0 : index
    %380 = vector.load %arg8[%c2_88, %c0_89, %c0_90] : memref<6x8x1xf32, #tpu.memory_space<vmem>>, vector<1x8x1xf32>
    %381 = vector.shape_cast %380 : vector<1x8x1xf32> to vector<8x1xf32>
    %382 = vector.broadcast %381 : vector<8x1xf32> to vector<8x256xf32>
    %383 = arith.addf %379, %382 : vector<8x256xf32>
    %cst_91 = arith.constant 0.000000e+00 : f32
    %384 = vector.broadcast %cst_91 : f32 to vector<8x256xf32>
    %385 = arith.maximumf %383, %384 : vector<8x256xf32>
    %c0_92 = arith.constant 0 : index
    %c0_93 = arith.constant 0 : index
    %c0_94 = arith.constant 0 : index
    %386 = vector.load %arg15[%c0_92, %c0_93, %c0_94] : memref<1x8x256xf32, #tpu.memory_space<vmem>>, vector<1x8x256xf32>
    %387 = vector.shape_cast %386 : vector<1x8x256xf32> to vector<8x256xf32>
    %388 = vector.shape_cast %385 : vector<8x256xf32> to vector<1x8x256xf32>
    tpu.vector_store %arg15[%c0_92, %c0_93, %c0_94], %388 {strides = array<i32>} : memref<1x8x256xf32, #tpu.memory_space<vmem>>, vector<1x8x256xf32>,
    %c6 = arith.constant 6 : index
    %389 = memref.load %arg1[%c6] : memref<14xf32, #tpu.memory_space<smem>>
    %390 = vector.broadcast %389 : f32 to vector<8x128xf32>
    %391 = arith.mulf %390, %3 : vector<8x128xf32>
    %c7 = arith.constant 7 : index
    %392 = memref.load %arg1[%c7] : memref<14xf32, #tpu.memory_space<smem>>
    %393 = vector.broadcast %392 : f32 to vector<8x128xf32>
    %394 = arith.mulf %393, %259 : vector<8x128xf32>
    %395 = arith.addf %391, %394 : vector<8x128xf32>
    %c8 = arith.constant 8 : index
    %396 = memref.load %arg1[%c8] : memref<14xf32, #tpu.memory_space<smem>>
    %c0_95 = arith.constant 0 : index
    %c0_96 = arith.constant 0 : index
    %397 = vector.load %arg12[%c0_95, %c0_96] : memref<256x128xf32, #tpu.memory_space<vmem>>, vector<256x128xf32>
    %cst_97 = arith.constant dense<0.000000e+00> : vector<8x128xf32>
    %398 = tpu.matmul %385, %397, %cst_97 {dimension_numbers = #tpu.dot_dimension_numbers<[1], [0], [0], [1], [0, 0, 1, 1], [], []>, precision = #tpu.contract_precision<fp32>} : vector<8x256xf32>, vector<256x128xf32>, vector<8x128xf32> -> vector<8x128xf32>
    %399 = vector.broadcast %396 : f32 to vector<8x128xf32>
    %400 = arith.mulf %399, %398 : vector<8x128xf32>
    %401 = arith.addf %395, %400 : vector<8x128xf32>
    %402 = tpu.iota {dimensions = array<i32: 1>} : vector<1x128xi32>
    %c7_i32_98 = arith.constant 7 : i32
    %403 = vector.broadcast %c7_i32_98 : i32 to vector<1x128xi32>
    %404 = arith.andi %402, %403 : vector<1x128xi32>
    %c3_99 = arith.constant 3 : index
    %c0_100 = arith.constant 0 : index
    %c0_101 = arith.constant 0 : index
    %405 = vector.load %arg6[%c3_99, %c0_100, %c0_101] : memref<6x8x9xf32, #tpu.memory_space<vmem>>, vector<1x8x9xf32>
    %406 = vector.shape_cast %405 : vector<1x8x9xf32> to vector<8x9xf32>
    %407 = vector.extract_strided_slice %406 {offsets = [0, 4], sizes = [8, 1], strides = [1, 1]} : vector<8x9xf32> to vector<8x1xf32>
    %408 = vector.broadcast %407 : vector<8x1xf32> to vector<8x128xf32>
    %409 = arith.mulf %401, %408 : vector<8x128xf32>
    %c9_i32_102 = arith.constant 9 : i32
    %410 = tpu.dynamic_rotate %401 by %c9_i32_102 dim 1 : vector<8x128xf32>, i32 -> vector<8x128xf32>
    %c8_i32_103 = arith.constant 8 : i32
    %411 = vector.broadcast %c8_i32_103 : i32 to vector<1x128xi32>
    %412 = arith.cmpi sge, %402, %411 : vector<1x128xi32>
    %c0_i32_104 = arith.constant 0 : i32
    %413 = vector.broadcast %c0_i32_104 : i32 to vector<1x128xi32>
    %414 = arith.cmpi ne, %404, %413 : vector<1x128xi32>
    %415 = arith.andi %412, %414 : vector<1x128xi1>
    %416 = arith.extui %415 : vector<1x128xi1> to vector<1x128xi32>
    %417 = arith.sitofp %416 : vector<1x128xi32> to vector<1x128xf32>
    %418 = vector.broadcast %417 : vector<1x128xf32> to vector<8x128xf32>
    %419 = arith.mulf %410, %418 : vector<8x128xf32>
    %420 = vector.extract_strided_slice %406 {offsets = [0, 0], sizes = [8, 1], strides = [1, 1]} : vector<8x9xf32> to vector<8x1xf32>
    %421 = vector.broadcast %420 : vector<8x1xf32> to vector<8x128xf32>
    %422 = arith.mulf %419, %421 : vector<8x128xf32>
    %423 = arith.addf %409, %422 : vector<8x128xf32>
    %c8_i32_105 = arith.constant 8 : i32
    %424 = tpu.dynamic_rotate %401 by %c8_i32_105 dim 1 : vector<8x128xf32>, i32 -> vector<8x128xf32>
    %c8_i32_106 = arith.constant 8 : i32
    %425 = vector.broadcast %c8_i32_106 : i32 to vector<1x128xi32>
    %426 = arith.cmpi sge, %402, %425 : vector<1x128xi32>
    %427 = arith.extui %426 : vector<1x128xi1> to vector<1x128xi32>
    %428 = arith.sitofp %427 : vector<1x128xi32> to vector<1x128xf32>
    %429 = vector.broadcast %428 : vector<1x128xf32> to vector<8x128xf32>
    %430 = arith.mulf %424, %429 : vector<8x128xf32>
    %431 = vector.extract_strided_slice %406 {offsets = [0, 1], sizes = [8, 1], strides = [1, 1]} : vector<8x9xf32> to vector<8x1xf32>
    %432 = vector.broadcast %431 : vector<8x1xf32> to vector<8x128xf32>
    %433 = arith.mulf %430, %432 : vector<8x128xf32>
    %434 = arith.addf %423, %433 : vector<8x128xf32>
    %c7_i32_107 = arith.constant 7 : i32
    %435 = tpu.dynamic_rotate %401 by %c7_i32_107 dim 1 : vector<8x128xf32>, i32 -> vector<8x128xf32>
    %c8_i32_108 = arith.constant 8 : i32
    %436 = vector.broadcast %c8_i32_108 : i32 to vector<1x128xi32>
    %437 = arith.cmpi sge, %402, %436 : vector<1x128xi32>
    %c7_i32_109 = arith.constant 7 : i32
    %438 = vector.broadcast %c7_i32_109 : i32 to vector<1x128xi32>
    %439 = arith.cmpi ne, %404, %438 : vector<1x128xi32>
    %440 = arith.andi %437, %439 : vector<1x128xi1>
    %441 = arith.extui %440 : vector<1x128xi1> to vector<1x128xi32>
    %442 = arith.sitofp %441 : vector<1x128xi32> to vector<1x128xf32>
    %443 = vector.broadcast %442 : vector<1x128xf32> to vector<8x128xf32>
    %444 = arith.mulf %435, %443 : vector<8x128xf32>
    %445 = vector.extract_strided_slice %406 {offsets = [0, 2], sizes = [8, 1], strides = [1, 1]} : vector<8x9xf32> to vector<8x1xf32>
    %446 = vector.broadcast %445 : vector<8x1xf32> to vector<8x128xf32>
    %447 = arith.mulf %444, %446 : vector<8x128xf32>
    %448 = arith.addf %434, %447 : vector<8x128xf32>
    %c1_i32_110 = arith.constant 1 : i32
    %449 = tpu.dynamic_rotate %401 by %c1_i32_110 dim 1 : vector<8x128xf32>, i32 -> vector<8x128xf32>
    %c0_i32_111 = arith.constant 0 : i32
    %450 = vector.broadcast %c0_i32_111 : i32 to vector<1x128xi32>
    %451 = arith.cmpi ne, %404, %450 : vector<1x128xi32>
    %452 = arith.extui %451 : vector<1x128xi1> to vector<1x128xi32>
    %453 = arith.sitofp %452 : vector<1x128xi32> to vector<1x128xf32>
    %454 = vector.broadcast %453 : vector<1x128xf32> to vector<8x128xf32>
    %455 = arith.mulf %449, %454 : vector<8x128xf32>
    %456 = vector.extract_strided_slice %406 {offsets = [0, 3], sizes = [8, 1], strides = [1, 1]} : vector<8x9xf32> to vector<8x1xf32>
    %457 = vector.broadcast %456 : vector<8x1xf32> to vector<8x128xf32>
    %458 = arith.mulf %455, %457 : vector<8x128xf32>
    %459 = arith.addf %448, %458 : vector<8x128xf32>
    %c127_i32_112 = arith.constant 127 : i32
    %460 = tpu.dynamic_rotate %401 by %c127_i32_112 dim 1 : vector<8x128xf32>, i32 -> vector<8x128xf32>
    %c7_i32_113 = arith.constant 7 : i32
    %461 = vector.broadcast %c7_i32_113 : i32 to vector<1x128xi32>
    %462 = arith.cmpi ne, %404, %461 : vector<1x128xi32>
    %463 = arith.extui %462 : vector<1x128xi1> to vector<1x128xi32>
    %464 = arith.sitofp %463 : vector<1x128xi32> to vector<1x128xf32>
    %465 = vector.broadcast %464 : vector<1x128xf32> to vector<8x128xf32>
    %466 = arith.mulf %460, %465 : vector<8x128xf32>
    %467 = vector.extract_strided_slice %406 {offsets = [0, 5], sizes = [8, 1], strides = [1, 1]} : vector<8x9xf32> to vector<8x1xf32>
    %468 = vector.broadcast %467 : vector<8x1xf32> to vector<8x128xf32>
    %469 = arith.mulf %466, %468 : vector<8x128xf32>
    %470 = arith.addf %459, %469 : vector<8x128xf32>
    %c121_i32_114 = arith.constant 121 : i32
    %471 = tpu.dynamic_rotate %401 by %c121_i32_114 dim 1 : vector<8x128xf32>, i32 -> vector<8x128xf32>
    %c56_i32_115 = arith.constant 56 : i32
    %472 = vector.broadcast %c56_i32_115 : i32 to vector<1x128xi32>
    %473 = arith.cmpi slt, %402, %472 : vector<1x128xi32>
    %c0_i32_116 = arith.constant 0 : i32
    %474 = vector.broadcast %c0_i32_116 : i32 to vector<1x128xi32>
    %475 = arith.cmpi ne, %404, %474 : vector<1x128xi32>
    %476 = arith.andi %473, %475 : vector<1x128xi1>
    %477 = arith.extui %476 : vector<1x128xi1> to vector<1x128xi32>
    %478 = arith.sitofp %477 : vector<1x128xi32> to vector<1x128xf32>
    %479 = vector.broadcast %478 : vector<1x128xf32> to vector<8x128xf32>
    %480 = arith.mulf %471, %479 : vector<8x128xf32>
    %481 = vector.extract_strided_slice %406 {offsets = [0, 6], sizes = [8, 1], strides = [1, 1]} : vector<8x9xf32> to vector<8x1xf32>
    %482 = vector.broadcast %481 : vector<8x1xf32> to vector<8x128xf32>
    %483 = arith.mulf %480, %482 : vector<8x128xf32>
    %484 = arith.addf %470, %483 : vector<8x128xf32>
    %c120_i32_117 = arith.constant 120 : i32
    %485 = tpu.dynamic_rotate %401 by %c120_i32_117 dim 1 : vector<8x128xf32>, i32 -> vector<8x128xf32>
    %c56_i32_118 = arith.constant 56 : i32
    %486 = vector.broadcast %c56_i32_118 : i32 to vector<1x128xi32>
    %487 = arith.cmpi slt, %402, %486 : vector<1x128xi32>
    %488 = arith.extui %487 : vector<1x128xi1> to vector<1x128xi32>
    %489 = arith.sitofp %488 : vector<1x128xi32> to vector<1x128xf32>
    %490 = vector.broadcast %489 : vector<1x128xf32> to vector<8x128xf32>
    %491 = arith.mulf %485, %490 : vector<8x128xf32>
    %492 = vector.extract_strided_slice %406 {offsets = [0, 7], sizes = [8, 1], strides = [1, 1]} : vector<8x9xf32> to vector<8x1xf32>
    %493 = vector.broadcast %492 : vector<8x1xf32> to vector<8x128xf32>
    %494 = arith.mulf %491, %493 : vector<8x128xf32>
    %495 = arith.addf %484, %494 : vector<8x128xf32>
    %c119_i32_119 = arith.constant 119 : i32
    %496 = tpu.dynamic_rotate %401 by %c119_i32_119 dim 1 : vector<8x128xf32>, i32 -> vector<8x128xf32>
    %c56_i32_120 = arith.constant 56 : i32
    %497 = vector.broadcast %c56_i32_120 : i32 to vector<1x128xi32>
    %498 = arith.cmpi slt, %402, %497 : vector<1x128xi32>
    %c7_i32_121 = arith.constant 7 : i32
    %499 = vector.broadcast %c7_i32_121 : i32 to vector<1x128xi32>
    %500 = arith.cmpi ne, %404, %499 : vector<1x128xi32>
    %501 = arith.andi %498, %500 : vector<1x128xi1>
    %502 = arith.extui %501 : vector<1x128xi1> to vector<1x128xi32>
    %503 = arith.sitofp %502 : vector<1x128xi32> to vector<1x128xf32>
    %504 = vector.broadcast %503 : vector<1x128xf32> to vector<8x128xf32>
    %505 = arith.mulf %496, %504 : vector<8x128xf32>
    %506 = vector.extract_strided_slice %406 {offsets = [0, 8], sizes = [8, 1], strides = [1, 1]} : vector<8x9xf32> to vector<8x1xf32>
    %507 = vector.broadcast %506 : vector<8x1xf32> to vector<8x128xf32>
    %508 = arith.mulf %505, %507 : vector<8x128xf32>
    %509 = arith.addf %495, %508 : vector<8x128xf32>
    %c3_122 = arith.constant 3 : index
    %c0_123 = arith.constant 0 : index
    %c0_124 = arith.constant 0 : index
    %510 = vector.load %arg7[%c3_122, %c0_123, %c0_124] : memref<6x8x8xf32, #tpu.memory_space<vmem>>, vector<1x8x8xf32>
    %511 = vector.shape_cast %510 : vector<1x8x8xf32> to vector<8x8xf32>
    %cst_125 = arith.constant dense<0.000000e+00> : vector<8x128xf32>
    %512 = tpu.matmul %511, %509, %cst_125 {dimension_numbers = #tpu.dot_dimension_numbers<[1], [0], [0], [1], [0, 0, 1, 1], [], []>, precision = #tpu.contract_precision<fp32>} : vector<8x8xf32>, vector<8x128xf32>, vector<8x128xf32> -> vector<8x128xf32>
    %c3_126 = arith.constant 3 : index
    %c0_127 = arith.constant 0 : index
    %c0_128 = arith.constant 0 : index
    %513 = vector.load %arg8[%c3_126, %c0_127, %c0_128] : memref<6x8x1xf32, #tpu.memory_space<vmem>>, vector<1x8x1xf32>
    %514 = vector.shape_cast %513 : vector<1x8x1xf32> to vector<8x1xf32>
    %515 = vector.broadcast %514 : vector<8x1xf32> to vector<8x128xf32>
    %516 = arith.addf %512, %515 : vector<8x128xf32>
    %cst_129 = arith.constant 0.000000e+00 : f32
    %517 = vector.broadcast %cst_129 : f32 to vector<8x128xf32>
    %518 = arith.maximumf %516, %517 : vector<8x128xf32>
    %c0_130 = arith.constant 0 : index
    %c0_131 = arith.constant 0 : index
    %c0_132 = arith.constant 0 : index
    %519 = vector.load %arg16[%c0_130, %c0_131, %c0_132] : memref<1x8x128xf32, #tpu.memory_space<vmem>>, vector<1x8x128xf32>
    %520 = vector.shape_cast %519 : vector<1x8x128xf32> to vector<8x128xf32>
    %521 = vector.shape_cast %518 : vector<8x128xf32> to vector<1x8x128xf32>
    tpu.vector_store %arg16[%c0_130, %c0_131, %c0_132], %521 {strides = array<i32>} : memref<1x8x128xf32, #tpu.memory_space<vmem>>, vector<1x8x128xf32>,
    %c9 = arith.constant 9 : index
    %522 = memref.load %arg1[%c9] : memref<14xf32, #tpu.memory_space<smem>>
    %523 = vector.broadcast %522 : f32 to vector<8x128xf32>
    %524 = arith.mulf %523, %5 : vector<8x128xf32>
    %c10 = arith.constant 10 : index
    %525 = memref.load %arg1[%c10] : memref<14xf32, #tpu.memory_space<smem>>
    %526 = vector.broadcast %525 : f32 to vector<8x128xf32>
    %527 = arith.mulf %526, %133 : vector<8x128xf32>
    %528 = arith.addf %524, %527 : vector<8x128xf32>
    %c11 = arith.constant 11 : index
    %529 = memref.load %arg1[%c11] : memref<14xf32, #tpu.memory_space<smem>>
    %c0_133 = arith.constant 0 : index
    %c0_134 = arith.constant 0 : index
    %530 = vector.load %arg13[%c0_133, %c0_134] : memref<128x128xf32, #tpu.memory_space<vmem>>, vector<128x128xf32>
    %cst_135 = arith.constant dense<0.000000e+00> : vector<8x128xf32>
    %531 = tpu.matmul %518, %530, %cst_135 {dimension_numbers = #tpu.dot_dimension_numbers<[1], [0], [0], [1], [0, 0, 1, 1], [], []>, precision = #tpu.contract_precision<fp32>} : vector<8x128xf32>, vector<128x128xf32>, vector<8x128xf32> -> vector<8x128xf32>
    %532 = vector.broadcast %529 : f32 to vector<8x128xf32>
    %533 = arith.mulf %532, %531 : vector<8x128xf32>
    %534 = arith.addf %528, %533 : vector<8x128xf32>
    %535 = tpu.iota {dimensions = array<i32: 1>} : vector<1x128xi32>
    %c3_i32_136 = arith.constant 3 : i32
    %536 = vector.broadcast %c3_i32_136 : i32 to vector<1x128xi32>
    %537 = arith.andi %535, %536 : vector<1x128xi32>
    %c4_137 = arith.constant 4 : index
    %c0_138 = arith.constant 0 : index
    %c0_139 = arith.constant 0 : index
    %538 = vector.load %arg6[%c4_137, %c0_138, %c0_139] : memref<6x8x9xf32, #tpu.memory_space<vmem>>, vector<1x8x9xf32>
    %539 = vector.shape_cast %538 : vector<1x8x9xf32> to vector<8x9xf32>
    %540 = vector.extract_strided_slice %539 {offsets = [0, 4], sizes = [8, 1], strides = [1, 1]} : vector<8x9xf32> to vector<8x1xf32>
    %541 = vector.broadcast %540 : vector<8x1xf32> to vector<8x128xf32>
    %542 = arith.mulf %534, %541 : vector<8x128xf32>
    %c5_i32_140 = arith.constant 5 : i32
    %543 = tpu.dynamic_rotate %534 by %c5_i32_140 dim 1 : vector<8x128xf32>, i32 -> vector<8x128xf32>
    %c4_i32_141 = arith.constant 4 : i32
    %544 = vector.broadcast %c4_i32_141 : i32 to vector<1x128xi32>
    %545 = arith.cmpi sge, %535, %544 : vector<1x128xi32>
    %c0_i32_142 = arith.constant 0 : i32
    %546 = vector.broadcast %c0_i32_142 : i32 to vector<1x128xi32>
    %547 = arith.cmpi ne, %537, %546 : vector<1x128xi32>
    %548 = arith.andi %545, %547 : vector<1x128xi1>
    %549 = arith.extui %548 : vector<1x128xi1> to vector<1x128xi32>
    %550 = arith.sitofp %549 : vector<1x128xi32> to vector<1x128xf32>
    %551 = vector.broadcast %550 : vector<1x128xf32> to vector<8x128xf32>
    %552 = arith.mulf %543, %551 : vector<8x128xf32>
    %553 = vector.extract_strided_slice %539 {offsets = [0, 0], sizes = [8, 1], strides = [1, 1]} : vector<8x9xf32> to vector<8x1xf32>
    %554 = vector.broadcast %553 : vector<8x1xf32> to vector<8x128xf32>
    %555 = arith.mulf %552, %554 : vector<8x128xf32>
    %556 = arith.addf %542, %555 : vector<8x128xf32>
    %c4_i32_143 = arith.constant 4 : i32
    %557 = tpu.dynamic_rotate %534 by %c4_i32_143 dim 1 : vector<8x128xf32>, i32 -> vector<8x128xf32>
    %c4_i32_144 = arith.constant 4 : i32
    %558 = vector.broadcast %c4_i32_144 : i32 to vector<1x128xi32>
    %559 = arith.cmpi sge, %535, %558 : vector<1x128xi32>
    %560 = arith.extui %559 : vector<1x128xi1> to vector<1x128xi32>
    %561 = arith.sitofp %560 : vector<1x128xi32> to vector<1x128xf32>
    %562 = vector.broadcast %561 : vector<1x128xf32> to vector<8x128xf32>
    %563 = arith.mulf %557, %562 : vector<8x128xf32>
    %564 = vector.extract_strided_slice %539 {offsets = [0, 1], sizes = [8, 1], strides = [1, 1]} : vector<8x9xf32> to vector<8x1xf32>
    %565 = vector.broadcast %564 : vector<8x1xf32> to vector<8x128xf32>
    %566 = arith.mulf %563, %565 : vector<8x128xf32>
    %567 = arith.addf %556, %566 : vector<8x128xf32>
    %c3_i32_145 = arith.constant 3 : i32
    %568 = tpu.dynamic_rotate %534 by %c3_i32_145 dim 1 : vector<8x128xf32>, i32 -> vector<8x128xf32>
    %c4_i32_146 = arith.constant 4 : i32
    %569 = vector.broadcast %c4_i32_146 : i32 to vector<1x128xi32>
    %570 = arith.cmpi sge, %535, %569 : vector<1x128xi32>
    %c3_i32_147 = arith.constant 3 : i32
    %571 = vector.broadcast %c3_i32_147 : i32 to vector<1x128xi32>
    %572 = arith.cmpi ne, %537, %571 : vector<1x128xi32>
    %573 = arith.andi %570, %572 : vector<1x128xi1>
    %574 = arith.extui %573 : vector<1x128xi1> to vector<1x128xi32>
    %575 = arith.sitofp %574 : vector<1x128xi32> to vector<1x128xf32>
    %576 = vector.broadcast %575 : vector<1x128xf32> to vector<8x128xf32>
    %577 = arith.mulf %568, %576 : vector<8x128xf32>
    %578 = vector.extract_strided_slice %539 {offsets = [0, 2], sizes = [8, 1], strides = [1, 1]} : vector<8x9xf32> to vector<8x1xf32>
    %579 = vector.broadcast %578 : vector<8x1xf32> to vector<8x128xf32>
    %580 = arith.mulf %577, %579 : vector<8x128xf32>
    %581 = arith.addf %567, %580 : vector<8x128xf32>
    %c1_i32_148 = arith.constant 1 : i32
    %582 = tpu.dynamic_rotate %534 by %c1_i32_148 dim 1 : vector<8x128xf32>, i32 -> vector<8x128xf32>
    %c0_i32_149 = arith.constant 0 : i32
    %583 = vector.broadcast %c0_i32_149 : i32 to vector<1x128xi32>
    %584 = arith.cmpi ne, %537, %583 : vector<1x128xi32>
    %585 = arith.extui %584 : vector<1x128xi1> to vector<1x128xi32>
    %586 = arith.sitofp %585 : vector<1x128xi32> to vector<1x128xf32>
    %587 = vector.broadcast %586 : vector<1x128xf32> to vector<8x128xf32>
    %588 = arith.mulf %582, %587 : vector<8x128xf32>
    %589 = vector.extract_strided_slice %539 {offsets = [0, 3], sizes = [8, 1], strides = [1, 1]} : vector<8x9xf32> to vector<8x1xf32>
    %590 = vector.broadcast %589 : vector<8x1xf32> to vector<8x128xf32>
    %591 = arith.mulf %588, %590 : vector<8x128xf32>
    %592 = arith.addf %581, %591 : vector<8x128xf32>
    %c127_i32_150 = arith.constant 127 : i32
    %593 = tpu.dynamic_rotate %534 by %c127_i32_150 dim 1 : vector<8x128xf32>, i32 -> vector<8x128xf32>
    %c3_i32_151 = arith.constant 3 : i32
    %594 = vector.broadcast %c3_i32_151 : i32 to vector<1x128xi32>
    %595 = arith.cmpi ne, %537, %594 : vector<1x128xi32>
    %596 = arith.extui %595 : vector<1x128xi1> to vector<1x128xi32>
    %597 = arith.sitofp %596 : vector<1x128xi32> to vector<1x128xf32>
    %598 = vector.broadcast %597 : vector<1x128xf32> to vector<8x128xf32>
    %599 = arith.mulf %593, %598 : vector<8x128xf32>
    %600 = vector.extract_strided_slice %539 {offsets = [0, 5], sizes = [8, 1], strides = [1, 1]} : vector<8x9xf32> to vector<8x1xf32>
    %601 = vector.broadcast %600 : vector<8x1xf32> to vector<8x128xf32>
    %602 = arith.mulf %599, %601 : vector<8x128xf32>
    %603 = arith.addf %592, %602 : vector<8x128xf32>
    %c125_i32_152 = arith.constant 125 : i32
    %604 = tpu.dynamic_rotate %534 by %c125_i32_152 dim 1 : vector<8x128xf32>, i32 -> vector<8x128xf32>
    %c12_i32_153 = arith.constant 12 : i32
    %605 = vector.broadcast %c12_i32_153 : i32 to vector<1x128xi32>
    %606 = arith.cmpi slt, %535, %605 : vector<1x128xi32>
    %c0_i32_154 = arith.constant 0 : i32
    %607 = vector.broadcast %c0_i32_154 : i32 to vector<1x128xi32>
    %608 = arith.cmpi ne, %537, %607 : vector<1x128xi32>
    %609 = arith.andi %606, %608 : vector<1x128xi1>
    %610 = arith.extui %609 : vector<1x128xi1> to vector<1x128xi32>
    %611 = arith.sitofp %610 : vector<1x128xi32> to vector<1x128xf32>
    %612 = vector.broadcast %611 : vector<1x128xf32> to vector<8x128xf32>
    %613 = arith.mulf %604, %612 : vector<8x128xf32>
    %614 = vector.extract_strided_slice %539 {offsets = [0, 6], sizes = [8, 1], strides = [1, 1]} : vector<8x9xf32> to vector<8x1xf32>
    %615 = vector.broadcast %614 : vector<8x1xf32> to vector<8x128xf32>
    %616 = arith.mulf %613, %615 : vector<8x128xf32>
    %617 = arith.addf %603, %616 : vector<8x128xf32>
    %c124_i32_155 = arith.constant 124 : i32
    %618 = tpu.dynamic_rotate %534 by %c124_i32_155 dim 1 : vector<8x128xf32>, i32 -> vector<8x128xf32>
    %c12_i32_156 = arith.constant 12 : i32
    %619 = vector.broadcast %c12_i32_156 : i32 to vector<1x128xi32>
    %620 = arith.cmpi slt, %535, %619 : vector<1x128xi32>
    %621 = arith.extui %620 : vector<1x128xi1> to vector<1x128xi32>
    %622 = arith.sitofp %621 : vector<1x128xi32> to vector<1x128xf32>
    %623 = vector.broadcast %622 : vector<1x128xf32> to vector<8x128xf32>
    %624 = arith.mulf %618, %623 : vector<8x128xf32>
    %625 = vector.extract_strided_slice %539 {offsets = [0, 7], sizes = [8, 1], strides = [1, 1]} : vector<8x9xf32> to vector<8x1xf32>
    %626 = vector.broadcast %625 : vector<8x1xf32> to vector<8x128xf32>
    %627 = arith.mulf %624, %626 : vector<8x128xf32>
    %628 = arith.addf %617, %627 : vector<8x128xf32>
    %c123_i32_157 = arith.constant 123 : i32
    %629 = tpu.dynamic_rotate %534 by %c123_i32_157 dim 1 : vector<8x128xf32>, i32 -> vector<8x128xf32>
    %c12_i32_158 = arith.constant 12 : i32
    %630 = vector.broadcast %c12_i32_158 : i32 to vector<1x128xi32>
    %631 = arith.cmpi slt, %535, %630 : vector<1x128xi32>
    %c3_i32_159 = arith.constant 3 : i32
    %632 = vector.broadcast %c3_i32_159 : i32 to vector<1x128xi32>
    %633 = arith.cmpi ne, %537, %632 : vector<1x128xi32>
    %634 = arith.andi %631, %633 : vector<1x128xi1>
    %635 = arith.extui %634 : vector<1x128xi1> to vector<1x128xi32>
    %636 = arith.sitofp %635 : vector<1x128xi32> to vector<1x128xf32>
    %637 = vector.broadcast %636 : vector<1x128xf32> to vector<8x128xf32>
    %638 = arith.mulf %629, %637 : vector<8x128xf32>
    %639 = vector.extract_strided_slice %539 {offsets = [0, 8], sizes = [8, 1], strides = [1, 1]} : vector<8x9xf32> to vector<8x1xf32>
    %640 = vector.broadcast %639 : vector<8x1xf32> to vector<8x128xf32>
    %641 = arith.mulf %638, %640 : vector<8x128xf32>
    %642 = arith.addf %628, %641 : vector<8x128xf32>
    %c4_160 = arith.constant 4 : index
    %c0_161 = arith.constant 0 : index
    %c0_162 = arith.constant 0 : index
    %643 = vector.load %arg7[%c4_160, %c0_161, %c0_162] : memref<6x8x8xf32, #tpu.memory_space<vmem>>, vector<1x8x8xf32>
    %644 = vector.shape_cast %643 : vector<1x8x8xf32> to vector<8x8xf32>
    %cst_163 = arith.constant dense<0.000000e+00> : vector<8x128xf32>
    %645 = tpu.matmul %644, %642, %cst_163 {dimension_numbers = #tpu.dot_dimension_numbers<[1], [0], [0], [1], [0, 0, 1, 1], [], []>, precision = #tpu.contract_precision<fp32>} : vector<8x8xf32>, vector<8x128xf32>, vector<8x128xf32> -> vector<8x128xf32>
    %c4_164 = arith.constant 4 : index
    %c0_165 = arith.constant 0 : index
    %c0_166 = arith.constant 0 : index
    %646 = vector.load %arg8[%c4_164, %c0_165, %c0_166] : memref<6x8x1xf32, #tpu.memory_space<vmem>>, vector<1x8x1xf32>
    %647 = vector.shape_cast %646 : vector<1x8x1xf32> to vector<8x1xf32>
    %648 = vector.broadcast %647 : vector<8x1xf32> to vector<8x128xf32>
    %649 = arith.addf %645, %648 : vector<8x128xf32>
    %cst_167 = arith.constant 0.000000e+00 : f32
    %650 = vector.broadcast %cst_167 : f32 to vector<8x128xf32>
    %651 = arith.maximumf %649, %650 : vector<8x128xf32>
    %c0_168 = arith.constant 0 : index
    %c0_169 = arith.constant 0 : index
    %c0_170 = arith.constant 0 : index
    %652 = vector.load %arg17[%c0_168, %c0_169, %c0_170] : memref<1x8x128xf32, #tpu.memory_space<vmem>>, vector<1x8x128xf32>
    %653 = vector.shape_cast %652 : vector<1x8x128xf32> to vector<8x128xf32>
    %654 = vector.shape_cast %651 : vector<8x128xf32> to vector<1x8x128xf32>
    tpu.vector_store %arg17[%c0_168, %c0_169, %c0_170], %654 {strides = array<i32>} : memref<1x8x128xf32, #tpu.memory_space<vmem>>, vector<1x8x128xf32>,
    %c12 = arith.constant 12 : index
    %655 = memref.load %arg1[%c12] : memref<14xf32, #tpu.memory_space<smem>>
    %656 = vector.broadcast %655 : f32 to vector<8x128xf32>
    %657 = arith.mulf %656, %7 : vector<8x128xf32>
    %c13 = arith.constant 13 : index
    %658 = memref.load %arg1[%c13] : memref<14xf32, #tpu.memory_space<smem>>
    %c0_171 = arith.constant 0 : index
    %c0_172 = arith.constant 0 : index
    %659 = vector.load %arg14[%c0_171, %c0_172] : memref<128x128xf32, #tpu.memory_space<vmem>>, vector<128x128xf32>
    %cst_173 = arith.constant dense<0.000000e+00> : vector<8x128xf32>
    %660 = tpu.matmul %651, %659, %cst_173 {dimension_numbers = #tpu.dot_dimension_numbers<[1], [0], [0], [1], [0, 0, 1, 1], [], []>, precision = #tpu.contract_precision<fp32>} : vector<8x128xf32>, vector<128x128xf32>, vector<8x128xf32> -> vector<8x128xf32>
    %661 = vector.broadcast %658 : f32 to vector<8x128xf32>
    %662 = arith.mulf %661, %660 : vector<8x128xf32>
    %663 = arith.addf %657, %662 : vector<8x128xf32>
    %664 = tpu.iota {dimensions = array<i32: 1>} : vector<1x128xi32>
    %c1_i32_174 = arith.constant 1 : i32
    %665 = vector.broadcast %c1_i32_174 : i32 to vector<1x128xi32>
    %666 = arith.andi %664, %665 : vector<1x128xi32>
    %c5_175 = arith.constant 5 : index
    %c0_176 = arith.constant 0 : index
    %c0_177 = arith.constant 0 : index
    %667 = vector.load %arg6[%c5_175, %c0_176, %c0_177] : memref<6x8x9xf32, #tpu.memory_space<vmem>>, vector<1x8x9xf32>
    %668 = vector.shape_cast %667 : vector<1x8x9xf32> to vector<8x9xf32>
    %669 = vector.extract_strided_slice %668 {offsets = [0, 4], sizes = [8, 1], strides = [1, 1]} : vector<8x9xf32> to vector<8x1xf32>
    %670 = vector.broadcast %669 : vector<8x1xf32> to vector<8x128xf32>
    %671 = arith.mulf %663, %670 : vector<8x128xf32>
    %c3_i32_178 = arith.constant 3 : i32
    %672 = tpu.dynamic_rotate %663 by %c3_i32_178 dim 1 : vector<8x128xf32>, i32 -> vector<8x128xf32>
    %c2_i32 = arith.constant 2 : i32
    %673 = vector.broadcast %c2_i32 : i32 to vector<1x128xi32>
    %674 = arith.cmpi sge, %664, %673 : vector<1x128xi32>
    %c0_i32_179 = arith.constant 0 : i32
    %675 = vector.broadcast %c0_i32_179 : i32 to vector<1x128xi32>
    %676 = arith.cmpi ne, %666, %675 : vector<1x128xi32>
    %677 = arith.andi %674, %676 : vector<1x128xi1>
    %678 = arith.extui %677 : vector<1x128xi1> to vector<1x128xi32>
    %679 = arith.sitofp %678 : vector<1x128xi32> to vector<1x128xf32>
    %680 = vector.broadcast %679 : vector<1x128xf32> to vector<8x128xf32>
    %681 = arith.mulf %672, %680 : vector<8x128xf32>
    %682 = vector.extract_strided_slice %668 {offsets = [0, 0], sizes = [8, 1], strides = [1, 1]} : vector<8x9xf32> to vector<8x1xf32>
    %683 = vector.broadcast %682 : vector<8x1xf32> to vector<8x128xf32>
    %684 = arith.mulf %681, %683 : vector<8x128xf32>
    %685 = arith.addf %671, %684 : vector<8x128xf32>
    %c2_i32_180 = arith.constant 2 : i32
    %686 = tpu.dynamic_rotate %663 by %c2_i32_180 dim 1 : vector<8x128xf32>, i32 -> vector<8x128xf32>
    %c2_i32_181 = arith.constant 2 : i32
    %687 = vector.broadcast %c2_i32_181 : i32 to vector<1x128xi32>
    %688 = arith.cmpi sge, %664, %687 : vector<1x128xi32>
    %689 = arith.extui %688 : vector<1x128xi1> to vector<1x128xi32>
    %690 = arith.sitofp %689 : vector<1x128xi32> to vector<1x128xf32>
    %691 = vector.broadcast %690 : vector<1x128xf32> to vector<8x128xf32>
    %692 = arith.mulf %686, %691 : vector<8x128xf32>
    %693 = vector.extract_strided_slice %668 {offsets = [0, 1], sizes = [8, 1], strides = [1, 1]} : vector<8x9xf32> to vector<8x1xf32>
    %694 = vector.broadcast %693 : vector<8x1xf32> to vector<8x128xf32>
    %695 = arith.mulf %692, %694 : vector<8x128xf32>
    %696 = arith.addf %685, %695 : vector<8x128xf32>
    %c1_i32_182 = arith.constant 1 : i32
    %697 = tpu.dynamic_rotate %663 by %c1_i32_182 dim 1 : vector<8x128xf32>, i32 -> vector<8x128xf32>
    %c2_i32_183 = arith.constant 2 : i32
    %698 = vector.broadcast %c2_i32_183 : i32 to vector<1x128xi32>
    %699 = arith.cmpi sge, %664, %698 : vector<1x128xi32>
    %c1_i32_184 = arith.constant 1 : i32
    %700 = vector.broadcast %c1_i32_184 : i32 to vector<1x128xi32>
    %701 = arith.cmpi ne, %666, %700 : vector<1x128xi32>
    %702 = arith.andi %699, %701 : vector<1x128xi1>
    %703 = arith.extui %702 : vector<1x128xi1> to vector<1x128xi32>
    %704 = arith.sitofp %703 : vector<1x128xi32> to vector<1x128xf32>
    %705 = vector.broadcast %704 : vector<1x128xf32> to vector<8x128xf32>
    %706 = arith.mulf %697, %705 : vector<8x128xf32>
    %707 = vector.extract_strided_slice %668 {offsets = [0, 2], sizes = [8, 1], strides = [1, 1]} : vector<8x9xf32> to vector<8x1xf32>
    %708 = vector.broadcast %707 : vector<8x1xf32> to vector<8x128xf32>
    %709 = arith.mulf %706, %708 : vector<8x128xf32>
    %710 = arith.addf %696, %709 : vector<8x128xf32>
    %c1_i32_185 = arith.constant 1 : i32
    %711 = tpu.dynamic_rotate %663 by %c1_i32_185 dim 1 : vector<8x128xf32>, i32 -> vector<8x128xf32>
    %c0_i32_186 = arith.constant 0 : i32
    %712 = vector.broadcast %c0_i32_186 : i32 to vector<1x128xi32>
    %713 = arith.cmpi ne, %666, %712 : vector<1x128xi32>
    %714 = arith.extui %713 : vector<1x128xi1> to vector<1x128xi32>
    %715 = arith.sitofp %714 : vector<1x128xi32> to vector<1x128xf32>
    %716 = vector.broadcast %715 : vector<1x128xf32> to vector<8x128xf32>
    %717 = arith.mulf %711, %716 : vector<8x128xf32>
    %718 = vector.extract_strided_slice %668 {offsets = [0, 3], sizes = [8, 1], strides = [1, 1]} : vector<8x9xf32> to vector<8x1xf32>
    %719 = vector.broadcast %718 : vector<8x1xf32> to vector<8x128xf32>
    %720 = arith.mulf %717, %719 : vector<8x128xf32>
    %721 = arith.addf %710, %720 : vector<8x128xf32>
    %c127_i32_187 = arith.constant 127 : i32
    %722 = tpu.dynamic_rotate %663 by %c127_i32_187 dim 1 : vector<8x128xf32>, i32 -> vector<8x128xf32>
    %c1_i32_188 = arith.constant 1 : i32
    %723 = vector.broadcast %c1_i32_188 : i32 to vector<1x128xi32>
    %724 = arith.cmpi ne, %666, %723 : vector<1x128xi32>
    %725 = arith.extui %724 : vector<1x128xi1> to vector<1x128xi32>
    %726 = arith.sitofp %725 : vector<1x128xi32> to vector<1x128xf32>
    %727 = vector.broadcast %726 : vector<1x128xf32> to vector<8x128xf32>
    %728 = arith.mulf %722, %727 : vector<8x128xf32>
    %729 = vector.extract_strided_slice %668 {offsets = [0, 5], sizes = [8, 1], strides = [1, 1]} : vector<8x9xf32> to vector<8x1xf32>
    %730 = vector.broadcast %729 : vector<8x1xf32> to vector<8x128xf32>
    %731 = arith.mulf %728, %730 : vector<8x128xf32>
    %732 = arith.addf %721, %731 : vector<8x128xf32>
    %c127_i32_189 = arith.constant 127 : i32
    %733 = tpu.dynamic_rotate %663 by %c127_i32_189 dim 1 : vector<8x128xf32>, i32 -> vector<8x128xf32>
    %c2_i32_190 = arith.constant 2 : i32
    %734 = vector.broadcast %c2_i32_190 : i32 to vector<1x128xi32>
    %735 = arith.cmpi slt, %664, %734 : vector<1x128xi32>
    %c0_i32_191 = arith.constant 0 : i32
    %736 = vector.broadcast %c0_i32_191 : i32 to vector<1x128xi32>
    %737 = arith.cmpi ne, %666, %736 : vector<1x128xi32>
    %738 = arith.andi %735, %737 : vector<1x128xi1>
    %739 = arith.extui %738 : vector<1x128xi1> to vector<1x128xi32>
    %740 = arith.sitofp %739 : vector<1x128xi32> to vector<1x128xf32>
    %741 = vector.broadcast %740 : vector<1x128xf32> to vector<8x128xf32>
    %742 = arith.mulf %733, %741 : vector<8x128xf32>
    %743 = vector.extract_strided_slice %668 {offsets = [0, 6], sizes = [8, 1], strides = [1, 1]} : vector<8x9xf32> to vector<8x1xf32>
    %744 = vector.broadcast %743 : vector<8x1xf32> to vector<8x128xf32>
    %745 = arith.mulf %742, %744 : vector<8x128xf32>
    %746 = arith.addf %732, %745 : vector<8x128xf32>
    %c126_i32 = arith.constant 126 : i32
    %747 = tpu.dynamic_rotate %663 by %c126_i32 dim 1 : vector<8x128xf32>, i32 -> vector<8x128xf32>
    %c2_i32_192 = arith.constant 2 : i32
    %748 = vector.broadcast %c2_i32_192 : i32 to vector<1x128xi32>
    %749 = arith.cmpi slt, %664, %748 : vector<1x128xi32>
    %750 = arith.extui %749 : vector<1x128xi1> to vector<1x128xi32>
    %751 = arith.sitofp %750 : vector<1x128xi32> to vector<1x128xf32>
    %752 = vector.broadcast %751 : vector<1x128xf32> to vector<8x128xf32>
    %753 = arith.mulf %747, %752 : vector<8x128xf32>
    %754 = vector.extract_strided_slice %668 {offsets = [0, 7], sizes = [8, 1], strides = [1, 1]} : vector<8x9xf32> to vector<8x1xf32>
    %755 = vector.broadcast %754 : vector<8x1xf32> to vector<8x128xf32>
    %756 = arith.mulf %753, %755 : vector<8x128xf32>
    %757 = arith.addf %746, %756 : vector<8x128xf32>
    %c125_i32_193 = arith.constant 125 : i32
    %758 = tpu.dynamic_rotate %663 by %c125_i32_193 dim 1 : vector<8x128xf32>, i32 -> vector<8x128xf32>
    %c2_i32_194 = arith.constant 2 : i32
    %759 = vector.broadcast %c2_i32_194 : i32 to vector<1x128xi32>
    %760 = arith.cmpi slt, %664, %759 : vector<1x128xi32>
    %c1_i32_195 = arith.constant 1 : i32
    %761 = vector.broadcast %c1_i32_195 : i32 to vector<1x128xi32>
    %762 = arith.cmpi ne, %666, %761 : vector<1x128xi32>
    %763 = arith.andi %760, %762 : vector<1x128xi1>
    %764 = arith.extui %763 : vector<1x128xi1> to vector<1x128xi32>
    %765 = arith.sitofp %764 : vector<1x128xi32> to vector<1x128xf32>
    %766 = vector.broadcast %765 : vector<1x128xf32> to vector<8x128xf32>
    %767 = arith.mulf %758, %766 : vector<8x128xf32>
    %768 = vector.extract_strided_slice %668 {offsets = [0, 8], sizes = [8, 1], strides = [1, 1]} : vector<8x9xf32> to vector<8x1xf32>
    %769 = vector.broadcast %768 : vector<8x1xf32> to vector<8x128xf32>
    %770 = arith.mulf %767, %769 : vector<8x128xf32>
    %771 = arith.addf %757, %770 : vector<8x128xf32>
    %c5_196 = arith.constant 5 : index
    %c0_197 = arith.constant 0 : index
    %c0_198 = arith.constant 0 : index
    %772 = vector.load %arg7[%c5_196, %c0_197, %c0_198] : memref<6x8x8xf32, #tpu.memory_space<vmem>>, vector<1x8x8xf32>
    %773 = vector.shape_cast %772 : vector<1x8x8xf32> to vector<8x8xf32>
    %cst_199 = arith.constant dense<0.000000e+00> : vector<8x128xf32>
    %774 = tpu.matmul %773, %771, %cst_199 {dimension_numbers = #tpu.dot_dimension_numbers<[1], [0], [0], [1], [0, 0, 1, 1], [], []>, precision = #tpu.contract_precision<fp32>} : vector<8x8xf32>, vector<8x128xf32>, vector<8x128xf32> -> vector<8x128xf32>
    %c5_200 = arith.constant 5 : index
    %c0_201 = arith.constant 0 : index
    %c0_202 = arith.constant 0 : index
    %775 = vector.load %arg8[%c5_200, %c0_201, %c0_202] : memref<6x8x1xf32, #tpu.memory_space<vmem>>, vector<1x8x1xf32>
    %776 = vector.shape_cast %775 : vector<1x8x1xf32> to vector<8x1xf32>
    %777 = vector.broadcast %776 : vector<8x1xf32> to vector<8x128xf32>
    %778 = arith.addf %774, %777 : vector<8x128xf32>
    %cst_203 = arith.constant 0.000000e+00 : f32
    %779 = vector.broadcast %cst_203 : f32 to vector<8x128xf32>
    %780 = arith.maximumf %778, %779 : vector<8x128xf32>
    %c0_204 = arith.constant 0 : index
    %c0_205 = arith.constant 0 : index
    %c0_206 = arith.constant 0 : index
    %781 = vector.load %arg18[%c0_204, %c0_205, %c0_206] : memref<1x8x128xf32, #tpu.memory_space<vmem>>, vector<1x8x128xf32>
    %782 = vector.shape_cast %781 : vector<1x8x128xf32> to vector<8x128xf32>
    %783 = vector.shape_cast %780 : vector<8x128xf32> to vector<1x8x128xf32>
    tpu.vector_store %arg18[%c0_204, %c0_205, %c0_206], %783 {strides = array<i32>} : memref<1x8x128xf32, #tpu.memory_space<vmem>>, vector<1x8x128xf32>,
    return
  }
  func.func @transform_0(%arg0: i32, %arg1: memref<14xf32, #tpu.memory_space<smem>>) -> (i32, i32, i32) {
    %c0_i32 = arith.constant 0 : i32
    %c0_i32_0 = arith.constant 0 : i32
    %c0_i32_1 = arith.constant 0 : i32
    return %arg0, %c0_i32, %c0_i32_0 : i32, i32, i32
  }
  func.func @transform_1(%arg0: i32, %arg1: memref<14xf32, #tpu.memory_space<smem>>) -> (i32, i32, i32) {
    %c0_i32 = arith.constant 0 : i32
    %c0_i32_0 = arith.constant 0 : i32
    %c0_i32_1 = arith.constant 0 : i32
    return %arg0, %c0_i32, %c0_i32_0 : i32, i32, i32
  }
  func.func @transform_2(%arg0: i32, %arg1: memref<14xf32, #tpu.memory_space<smem>>) -> (i32, i32, i32) {
    %c0_i32 = arith.constant 0 : i32
    %c0_i32_0 = arith.constant 0 : i32
    %c0_i32_1 = arith.constant 0 : i32
    return %arg0, %c0_i32, %c0_i32_0 : i32, i32, i32
  }
  func.func @transform_3(%arg0: i32, %arg1: memref<14xf32, #tpu.memory_space<smem>>) -> (i32, i32, i32) {
    %c0_i32 = arith.constant 0 : i32
    %c0_i32_0 = arith.constant 0 : i32
    %c0_i32_1 = arith.constant 0 : i32
    return %arg0, %c0_i32, %c0_i32_0 : i32, i32, i32
  }
  func.func @transform_4(%arg0: i32, %arg1: memref<14xf32, #tpu.memory_space<smem>>) -> (i32, i32, i32) {
    %c0_i32 = arith.constant 0 : i32
    %c0_i32_0 = arith.constant 0 : i32
    %c0_i32_1 = arith.constant 0 : i32
    %c0_i32_2 = arith.constant 0 : i32
    return %c0_i32, %c0_i32_0, %c0_i32_1 : i32, i32, i32
  }
  func.func @transform_5(%arg0: i32, %arg1: memref<14xf32, #tpu.memory_space<smem>>) -> (i32, i32, i32) {
    %c0_i32 = arith.constant 0 : i32
    %c0_i32_0 = arith.constant 0 : i32
    %c0_i32_1 = arith.constant 0 : i32
    %c0_i32_2 = arith.constant 0 : i32
    return %c0_i32, %c0_i32_0, %c0_i32_1 : i32, i32, i32
  }
  func.func @transform_6(%arg0: i32, %arg1: memref<14xf32, #tpu.memory_space<smem>>) -> (i32, i32, i32) {
    %c0_i32 = arith.constant 0 : i32
    %c0_i32_0 = arith.constant 0 : i32
    %c0_i32_1 = arith.constant 0 : i32
    %c0_i32_2 = arith.constant 0 : i32
    return %c0_i32, %c0_i32_0, %c0_i32_1 : i32, i32, i32
  }
  func.func @transform_7(%arg0: i32, %arg1: memref<14xf32, #tpu.memory_space<smem>>) -> (i32, i32) {
    %c0_i32 = arith.constant 0 : i32
    %c0_i32_0 = arith.constant 0 : i32
    %c0_i32_1 = arith.constant 0 : i32
    return %c0_i32, %c0_i32_0 : i32, i32
  }
  func.func @transform_8(%arg0: i32, %arg1: memref<14xf32, #tpu.memory_space<smem>>) -> (i32, i32) {
    %c0_i32 = arith.constant 0 : i32
    %c0_i32_0 = arith.constant 0 : i32
    %c0_i32_1 = arith.constant 0 : i32
    return %c0_i32, %c0_i32_0 : i32, i32
  }
  func.func @transform_9(%arg0: i32, %arg1: memref<14xf32, #tpu.memory_space<smem>>) -> (i32, i32) {
    %c0_i32 = arith.constant 0 : i32
    %c0_i32_0 = arith.constant 0 : i32
    %c0_i32_1 = arith.constant 0 : i32
    return %c0_i32, %c0_i32_0 : i32, i32
  }
  func.func @transform_10(%arg0: i32, %arg1: memref<14xf32, #tpu.memory_space<smem>>) -> (i32, i32) {
    %c0_i32 = arith.constant 0 : i32
    %c0_i32_0 = arith.constant 0 : i32
    %c0_i32_1 = arith.constant 0 : i32
    return %c0_i32, %c0_i32_0 : i32, i32
  }
  func.func @transform_11(%arg0: i32, %arg1: memref<14xf32, #tpu.memory_space<smem>>) -> (i32, i32) {
    %c0_i32 = arith.constant 0 : i32
    %c0_i32_0 = arith.constant 0 : i32
    %c0_i32_1 = arith.constant 0 : i32
    return %c0_i32, %c0_i32_0 : i32, i32
  }
  func.func @transform_12(%arg0: i32, %arg1: memref<14xf32, #tpu.memory_space<smem>>) -> (i32, i32) {
    %c0_i32 = arith.constant 0 : i32
    %c0_i32_0 = arith.constant 0 : i32
    %c0_i32_1 = arith.constant 0 : i32
    return %c0_i32, %c0_i32_0 : i32, i32
  }
  func.func @transform_13(%arg0: i32, %arg1: memref<14xf32, #tpu.memory_space<smem>>) -> (i32, i32, i32) {
    %c0_i32 = arith.constant 0 : i32
    %c0_i32_0 = arith.constant 0 : i32
    %c0_i32_1 = arith.constant 0 : i32
    return %arg0, %c0_i32, %c0_i32_0 : i32, i32, i32
  }
  func.func @transform_14(%arg0: i32, %arg1: memref<14xf32, #tpu.memory_space<smem>>) -> (i32, i32, i32) {
    %c0_i32 = arith.constant 0 : i32
    %c0_i32_0 = arith.constant 0 : i32
    %c0_i32_1 = arith.constant 0 : i32
    return %arg0, %c0_i32, %c0_i32_0 : i32, i32, i32
  }
  func.func @transform_15(%arg0: i32, %arg1: memref<14xf32, #tpu.memory_space<smem>>) -> (i32, i32, i32) {
    %c0_i32 = arith.constant 0 : i32
    %c0_i32_0 = arith.constant 0 : i32
    %c0_i32_1 = arith.constant 0 : i32
    return %arg0, %c0_i32, %c0_i32_0 : i32, i32, i32
  }
  func.func @transform_16(%arg0: i32, %arg1: memref<14xf32, #tpu.memory_space<smem>>) -> (i32, i32, i32) {
    %c0_i32 = arith.constant 0 : i32
    %c0_i32_0 = arith.constant 0 : i32
    %c0_i32_1 = arith.constant 0 : i32
    return %arg0, %c0_i32, %c0_i32_0 : i32, i32, i32
  }
}

</mosaic_0001>

<llo_original>
// kernel: bifpn_forward.1
$region0: #{bifpn_forward.1}
  #allocation0 [shape = 'u32[]', space=smem, size = 0x4, offset = 0x4, fixed_abs, tag = 'smem constant byte address 0x4 - core index']
  #allocation1 [shape = 'u32[144,128]{1,0:T(1,128)}', space=vmem, size = 0x12000, scoped, tag = 'internal scratch']
  #allocation2 [shape = 's32[1]{0}', space=sflag, size = 0x4, scoped, tag = 'scoped memory for bifpn_forward.1']
  #allocation3 [shape = 'u8[512]{0}', space=smem, size = 0x200, scoped, tag = 'prefetched SMEM operand 0']
  %s0 = inlined_call_operand.vmem [shape: f32[14], index: 0, kind: input, shape index: {}]
  %s1 = inlined_call_operand.vmem [shape: f32[2,8,256], index: 1, kind: input, shape index: {}]
  %s2 = inlined_call_operand.vmem [shape: f32[2,8,128], index: 2, kind: input, shape index: {}]
  %s3 = inlined_call_operand.vmem [shape: f32[2,8,128], index: 3, kind: input, shape index: {}]
  %s4 = inlined_call_operand.vmem [shape: f32[2,8,128], index: 4, kind: input, shape index: {}]
  %s5 = inlined_call_operand.vmem [shape: f32[6,8,9], index: 5, kind: input, shape index: {}]
  %s6 = inlined_call_operand.vmem [shape: f32[6,8,8], index: 6, kind: input, shape index: {}]
  %s7 = inlined_call_operand.vmem [shape: f32[6,8,1], index: 7, kind: input, shape index: {}]
  %s8 = inlined_call_operand.vmem [shape: f32[128,128], index: 8, kind: input, shape index: {}]
  %s9 = inlined_call_operand.vmem [shape: f32[128,128], index: 9, kind: input, shape index: {}]
  %s10 = inlined_call_operand.vmem [shape: f32[128,256], index: 10, kind: input, shape index: {}]
  %s11 = inlined_call_operand.vmem [shape: f32[256,128], index: 11, kind: input, shape index: {}]
  %s12 = inlined_call_operand.vmem [shape: f32[128,128], index: 12, kind: input, shape index: {}]
  %s13 = inlined_call_operand.vmem [shape: f32[128,128], index: 13, kind: input, shape index: {}]
  %s14 = inlined_call_operand.vmem [shape: f32[2,8,256], index: 14, kind: output, shape index: {0}]
  %s15 = inlined_call_operand.vmem [shape: f32[2,8,128], index: 15, kind: output, shape index: {1}]
  %s16 = inlined_call_operand.vmem [shape: f32[2,8,128], index: 16, kind: output, shape index: {2}]
  %s17 = inlined_call_operand.vmem [shape: f32[2,8,128], index: 17, kind: output, shape index: {3}]
  %18 = xla_tuple %s14, %s15, %s16, %s17
  %s19 = sld [smem:[#allocation0]]
  $region109: #{bifpn_forward.1} parent=0
    _
  %s21 = ssub.s32 1, %s19
  %s22 = scalar_select 0, %s21, %s19
  %s23 = sshll.u32 %s0, 4
  %s24 = int_to_ptr.vmem [resolvable:$true] %s23
  %26 = dma.vmem_to_smem %s24, 16, [#allocation3], [#allocation2]
  %27 = dma.done [#allocation2], 16
  %28 = sfence
  loop: start=0, step=1, limit=4
  $region2: #{bifpn_forward.1} parent=0 // loop_pre_header
    _
  $region3: #{bifpn_forward.1} parent=0 // loop_header
    %s30 = sphi 0, %s34
    %p31 = scmp.ge.s32.totalorder %s30, 4
    %s40 = sphi 0, %s42
    %s43 = sphi 0, %s40
    %s44 = sphi 0, %s43
    %s60 = sphi 0, %s44
    %s66 = sphi 0, %s68
    %s69 = sphi 0, %s66
    %s70 = sphi 0, %s69
    %s86 = sphi 0, %s70
    %s92 = sphi 0, %s94
    %s95 = sphi 0, %s92
    %s96 = sphi 0, %s95
    %s112 = sphi 0, %s96
    %s118 = sphi 0, %s120
    %s121 = sphi 0, %s118
    %s122 = sphi 0, %s121
    %s138 = sphi 0, %s122
    %s142 = sphi 0, %s142
    %s144 = sphi 0, %s142
    %s145 = sphi 0, %s144
    %s159 = sphi 0, %s145
    %s163 = sphi 0, %s163
    %s165 = sphi 0, %s163
    %s166 = sphi 0, %s165
    %s180 = sphi 0, %s166
    %s184 = sphi 0, %s184
    %s186 = sphi 0, %s184
    %s187 = sphi 0, %s186
    %s201 = sphi 0, %s187
    %s205 = sphi 0, %s205
    %s207 = sphi 0, %s205
    %s208 = sphi 0, %s207
    %s222 = sphi 0, %s208
    %s226 = sphi 0, %s226
    %s228 = sphi 0, %s226
    %s229 = sphi 0, %s228
    %s243 = sphi 0, %s229
    %s247 = sphi 0, %s247
    %s249 = sphi 0, %s247
    %s250 = sphi 0, %s249
    %s264 = sphi 0, %s250
    %s268 = sphi 0, %s268
    %s270 = sphi 0, %s268
    %s271 = sphi 0, %s270
    %s285 = sphi 0, %s271
    %s289 = sphi 0, %s289
    %s291 = sphi 0, %s289
    %s292 = sphi 0, %s291
    %s306 = sphi 0, %s292
    %s310 = sphi 0, %s310
    %s312 = sphi 0, %s310
    %s313 = sphi 0, %s312
    %s327 = sphi 0, %s313
    %s333 = sphi 0, %s335
    %s336 = sphi 0, %s333
    %s337 = sphi 0, %s336
    %s353 = sphi 0, %s337
    %s359 = sphi 0, %s361
    %s362 = sphi 0, %s359
    %s363 = sphi 0, %s362
    %s379 = sphi 0, %s363
    %s385 = sphi 0, %s387
    %s388 = sphi 0, %s385
    %s389 = sphi 0, %s388
    %s405 = sphi 0, %s389
    %s411 = sphi 0, %s413
    %s414 = sphi 0, %s411
    %s415 = sphi 0, %s414
    %s431 = sphi 0, %s415
  $region4: #{bifpn_forward.1} parent=0 // loop_header_branch
    %33 = sbr.rel (%p31) target = $region8
  $region5: #{bifpn_forward.1} parent=0 // loop_body
    %s35 = ssub.s32 %s30, 1
    %s36 = ssub.s32 %s30, 2
    %s37 = sadd.s32 %s30, 1
    %s38 = ssub.s32 %s30, %s37
    %p39 = scmp.eq.s32.totalorder %s38, 0
    %s41 = sadd.s32 %s40, 1
    %s42 = scalar_select %p39, %s40, %s41
    %p45 = pneg %p39
    %p46 = scmp.eq.s32.totalorder %s30, 1
    %p47 = por %p45, %p46
    %p48 = scmp.ne.s32.totalorder %s40, %s43
    %p49 = scmp.eq.s32.totalorder %s30, 0
    %p50 = por %p48, %p49
    %p51 = scmp.ne.s32.totalorder %s40, %s43
    %p52 = scmp.eq.s32.totalorder %s35, 1
    %p53 = por %p51, %p52
    %p54 = scmp.ne.s32.totalorder %s43, %s44
    %p55 = scmp.eq.s32.totalorder %s35, 0
    %p56 = por %p54, %p55
    %p57 = scmp.ne.s32.totalorder %s43, %s44
    %p58 = scmp.eq.s32.totalorder %s36, 1
    %p59 = por %p57, %p58
    %p61 = scmp.ne.s32.totalorder %s44, %s60
    %p62 = scmp.eq.s32.totalorder %s36, 0
    %p63 = por %p61, %p62
    %s64 = ssub.s32 %s30, %s37
    %p65 = scmp.eq.s32.totalorder %s64, 0
    %s67 = sadd.s32 %s66, 1
    %s68 = scalar_select %p65, %s66, %s67
    %p71 = pneg %p65
    %p72 = scmp.eq.s32.totalorder %s30, 1
    %p73 = por %p71, %p72
    %p74 = scmp.ne.s32.totalorder %s66, %s69
    %p75 = scmp.eq.s32.totalorder %s30, 0
    %p76 = por %p74, %p75
    %p77 = scmp.ne.s32.totalorder %s66, %s69
    %p78 = scmp.eq.s32.totalorder %s35, 1
    %p79 = por %p77, %p78
    %p80 = scmp.ne.s32.totalorder %s69, %s70
    %p81 = scmp.eq.s32.totalorder %s35, 0
    %p82 = por %p80, %p81
    %p83 = scmp.ne.s32.totalorder %s69, %s70
    %p84 = scmp.eq.s32.totalorder %s36, 1
    %p85 = por %p83, %p84
    %p87 = scmp.ne.s32.totalorder %s70, %s86
    %p88 = scmp.eq.s32.totalorder %s36, 0
    %p89 = por %p87, %p88
    %s90 = ssub.s32 %s30, %s37
    %p91 = scmp.eq.s32.totalorder %s90, 0
    %s93 = sadd.s32 %s92, 1
    %s94 = scalar_select %p91, %s92, %s93
    %p97 = pneg %p91
    %p98 = scmp.eq.s32.totalorder %s30, 1
    %p99 = por %p97, %p98
    %p100 = scmp.ne.s32.totalorder %s92, %s95
    %p101 = scmp.eq.s32.totalorder %s30, 0
    %p102 = por %p100, %p101
    %p103 = scmp.ne.s32.totalorder %s92, %s95
    %p104 = scmp.eq.s32.totalorder %s35, 1
    %p105 = por %p103, %p104
    %p106 = scmp.ne.s32.totalorder %s95, %s96
    %p107 = scmp.eq.s32.totalorder %s35, 0
    %p108 = por %p106, %p107
    %p109 = scmp.ne.s32.totalorder %s95, %s96
    %p110 = scmp.eq.s32.totalorder %s36, 1
    %p111 = por %p109, %p110
    %p113 = scmp.ne.s32.totalorder %s96, %s112
    %p114 = scmp.eq.s32.totalorder %s36, 0
    %p115 = por %p113, %p114
    %s116 = ssub.s32 %s30, %s37
    %p117 = scmp.eq.s32.totalorder %s116, 0
    %s119 = sadd.s32 %s118, 1
    %s120 = scalar_select %p117, %s118, %s119
    %p123 = pneg %p117
    %p124 = scmp.eq.s32.totalorder %s30, 1
    %p125 = por %p123, %p124
    %p126 = scmp.ne.s32.totalorder %s118, %s121
    %p127 = scmp.eq.s32.totalorder %s30, 0
    %p128 = por %p126, %p127
    %p129 = scmp.ne.s32.totalorder %s118, %s121
    %p130 = scmp.eq.s32.totalorder %s35, 1
    %p131 = por %p129, %p130
    %p132 = scmp.ne.s32.totalorder %s121, %s122
    %p133 = scmp.eq.s32.totalorder %s35, 0
    %p134 = por %p132, %p133
    %p135 = scmp.ne.s32.totalorder %s121, %s122
    %p136 = scmp.eq.s32.totalorder %s36, 1
    %p137 = por %p135, %p136
    %p139 = scmp.ne.s32.totalorder %s122, %s138
    %p140 = scmp.eq.s32.totalorder %s36, 0
    %p141 = por %p139, %p140
    %s143 = sadd.s32 %s142, 1
    %p146 = scmp.eq.s32.totalorder %s30, 1
    %p147 = scmp.ne.s32.totalorder %s142, %s144
    %p148 = scmp.eq.s32.totalorder %s30, 0
    %p149 = por %p147, %p148
    %p150 = scmp.ne.s32.totalorder %s142, %s144
    %p151 = scmp.eq.s32.totalorder %s35, 1
    %p152 = por %p150, %p151
    %p153 = scmp.ne.s32.totalorder %s144, %s145
    %p154 = scmp.eq.s32.totalorder %s35, 0
    %p155 = por %p153, %p154
    %p156 = scmp.ne.s32.totalorder %s144, %s145
    %p157 = scmp.eq.s32.totalorder %s36, 1
    %p158 = por %p156, %p157
    %p160 = scmp.ne.s32.totalorder %s145, %s159
    %p161 = scmp.eq.s32.totalorder %s36, 0
    %p162 = por %p160, %p161
    %s164 = sadd.s32 %s163, 1
    %p167 = scmp.eq.s32.totalorder %s30, 1
    %p168 = scmp.ne.s32.totalorder %s163, %s165
    %p169 = scmp.eq.s32.totalorder %s30, 0
    %p170 = por %p168, %p169
    %p171 = scmp.ne.s32.totalorder %s163, %s165
    %p172 = scmp.eq.s32.totalorder %s35, 1
    %p173 = por %p171, %p172
    %p174 = scmp.ne.s32.totalorder %s165, %s166
    %p175 = scmp.eq.s32.totalorder %s35, 0
    %p176 = por %p174, %p175
    %p177 = scmp.ne.s32.totalorder %s165, %s166
    %p178 = scmp.eq.s32.totalorder %s36, 1
    %p179 = por %p177, %p178
    %p181 = scmp.ne.s32.totalorder %s166, %s180
    %p182 = scmp.eq.s32.totalorder %s36, 0
    %p183 = por %p181, %p182
    %s185 = sadd.s32 %s184, 1
    %p188 = scmp.eq.s32.totalorder %s30, 1
    %p189 = scmp.ne.s32.totalorder %s184, %s186
    %p190 = scmp.eq.s32.totalorder %s30, 0
    %p191 = por %p189, %p190
    %p192 = scmp.ne.s32.totalorder %s184, %s186
    %p193 = scmp.eq.s32.totalorder %s35, 1
    %p194 = por %p192, %p193
    %p195 = scmp.ne.s32.totalorder %s186, %s187
    %p196 = scmp.eq.s32.totalorder %s35, 0
    %p197 = por %p195, %p196
    %p198 = scmp.ne.s32.totalorder %s186, %s187
    %p199 = scmp.eq.s32.totalorder %s36, 1
    %p200 = por %p198, %p199
    %p202 = scmp.ne.s32.totalorder %s187, %s201
    %p203 = scmp.eq.s32.totalorder %s36, 0
    %p204 = por %p202, %p203
    %s206 = sadd.s32 %s205, 1
    %p209 = scmp.eq.s32.totalorder %s30, 1
    %p210 = scmp.ne.s32.totalorder %s205, %s207
    %p211 = scmp.eq.s32.totalorder %s30, 0
    %p212 = por %p210, %p211
    %p213 = scmp.ne.s32.totalorder %s205, %s207
    %p214 = scmp.eq.s32.totalorder %s35, 1
    %p215 = por %p213, %p214
    %p216 = scmp.ne.s32.totalorder %s207, %s208
    %p217 = scmp.eq.s32.totalorder %s35, 0
    %p218 = por %p216, %p217
    %p219 = scmp.ne.s32.totalorder %s207, %s208
    %p220 = scmp.eq.s32.totalorder %s36, 1
    %p221 = por %p219, %p220
    %p223 = scmp.ne.s32.totalorder %s208, %s222
    %p224 = scmp.eq.s32.totalorder %s36, 0
    %p225 = por %p223, %p224
    %s227 = sadd.s32 %s226, 1
    %p230 = scmp.eq.s32.totalorder %s30, 1
    %p231 = scmp.ne.s32.totalorder %s226, %s228
    %p232 = scmp.eq.s32.totalorder %s30, 0
    %p233 = por %p231, %p232
    %p234 = scmp.ne.s32.totalorder %s226, %s228
    %p235 = scmp.eq.s32.totalorder %s35, 1
    %p236 = por %p234, %p235
    %p237 = scmp.ne.s32.totalorder %s228, %s229
    %p238 = scmp.eq.s32.totalorder %s35, 0
    %p239 = por %p237, %p238
    %p240 = scmp.ne.s32.totalorder %s228, %s229
    %p241 = scmp.eq.s32.totalorder %s36, 1
    %p242 = por %p240, %p241
    %p244 = scmp.ne.s32.totalorder %s229, %s243
    %p245 = scmp.eq.s32.totalorder %s36, 0
    %p246 = por %p244, %p245
    %s248 = sadd.s32 %s247, 1
    %p251 = scmp.eq.s32.totalorder %s30, 1
    %p252 = scmp.ne.s32.totalorder %s247, %s249
    %p253 = scmp.eq.s32.totalorder %s30, 0
    %p254 = por %p252, %p253
    %p255 = scmp.ne.s32.totalorder %s247, %s249
    %p256 = scmp.eq.s32.totalorder %s35, 1
    %p257 = por %p255, %p256
    %p258 = scmp.ne.s32.totalorder %s249, %s250
    %p259 = scmp.eq.s32.totalorder %s35, 0
    %p260 = por %p258, %p259
    %p261 = scmp.ne.s32.totalorder %s249, %s250
    %p262 = scmp.eq.s32.totalorder %s36, 1
    %p263 = por %p261, %p262
    %p265 = scmp.ne.s32.totalorder %s250, %s264
    %p266 = scmp.eq.s32.totalorder %s36, 0
    %p267 = por %p265, %p266
    %s269 = sadd.s32 %s268, 1
    %p272 = scmp.eq.s32.totalorder %s30, 1
    %p273 = scmp.ne.s32.totalorder %s268, %s270
    %p274 = scmp.eq.s32.totalorder %s30, 0
    %p275 = por %p273, %p274
    %p276 = scmp.ne.s32.totalorder %s268, %s270
    %p277 = scmp.eq.s32.totalorder %s35, 1
    %p278 = por %p276, %p277
    %p279 = scmp.ne.s32.totalorder %s270, %s271
    %p280 = scmp.eq.s32.totalorder %s35, 0
    %p281 = por %p279, %p280
    %p282 = scmp.ne.s32.totalorder %s270, %s271
    %p283 = scmp.eq.s32.totalorder %s36, 1
    %p284 = por %p282, %p283
    %p286 = scmp.ne.s32.totalorder %s271, %s285
    %p287 = scmp.eq.s32.totalorder %s36, 0
    %p288 = por %p286, %p287
    %s290 = sadd.s32 %s289, 1
    %p293 = scmp.eq.s32.totalorder %s30, 1
    %p294 = scmp.ne.s32.totalorder %s289, %s291
    %p295 = scmp.eq.s32.totalorder %s30, 0
    %p296 = por %p294, %p295
    %p297 = scmp.ne.s32.totalorder %s289, %s291
    %p298 = scmp.eq.s32.totalorder %s35, 1
    %p299 = por %p297, %p298
    %p300 = scmp.ne.s32.totalorder %s291, %s292
    %p301 = scmp.eq.s32.totalorder %s35, 0
    %p302 = por %p300, %p301
    %p303 = scmp.ne.s32.totalorder %s291, %s292
    %p304 = scmp.eq.s32.totalorder %s36, 1
    %p305 = por %p303, %p304
    %p307 = scmp.ne.s32.totalorder %s292, %s306
    %p308 = scmp.eq.s32.totalorder %s36, 0
    %p309 = por %p307, %p308
    %s311 = sadd.s32 %s310, 1
    %p314 = scmp.eq.s32.totalorder %s30, 1
    %p315 = scmp.ne.s32.totalorder %s310, %s312
    %p316 = scmp.eq.s32.totalorder %s30, 0
    %p317 = por %p315, %p316
    %p318 = scmp.ne.s32.totalorder %s310, %s312
    %p319 = scmp.eq.s32.totalorder %s35, 1
    %p320 = por %p318, %p319
    %p321 = scmp.ne.s32.totalorder %s312, %s313
    %p322 = scmp.eq.s32.totalorder %s35, 0
    %p323 = por %p321, %p322
    %p324 = scmp.ne.s32.totalorder %s312, %s313
    %p325 = scmp.eq.s32.totalorder %s36, 1
    %p326 = por %p324, %p325
    %p328 = scmp.ne.s32.totalorder %s313, %s327
    %p329 = scmp.eq.s32.totalorder %s36, 0
    %p330 = por %p328, %p329
    %s331 = ssub.s32 %s30, %s37
    %p332 = scmp.eq.s32.totalorder %s331, 0
    %s334 = sadd.s32 %s333, 1
    %s335 = scalar_select %p332, %s333, %s334
    %p338 = pneg %p332
    %p339 = scmp.eq.s32.totalorder %s30, 1
    %p340 = por %p338, %p339
    %p341 = scmp.ne.s32.totalorder %s333, %s336
    %p342 = scmp.eq.s32.totalorder %s30, 0
    %p343 = por %p341, %p342
    %p344 = scmp.ne.s32.totalorder %s333, %s336
    %p345 = scmp.eq.s32.totalorder %s35, 1
    %p346 = por %p344, %p345
    %p347 = scmp.ne.s32.totalorder %s336, %s337
    %p348 = scmp.eq.s32.totalorder %s35, 0
    %p349 = por %p347, %p348
    %p350 = scmp.ne.s32.totalorder %s336, %s337
    %p351 = scmp.eq.s32.totalorder %s36, 1
    %p352 = por %p350, %p351
    %p354 = scmp.ne.s32.totalorder %s337, %s353
    %p355 = scmp.eq.s32.totalorder %s36, 0
    %p356 = por %p354, %p355
    %s357 = ssub.s32 %s30, %s37
    %p358 = scmp.eq.s32.totalorder %s357, 0
    %s360 = sadd.s32 %s359, 1
    %s361 = scalar_select %p358, %s359, %s360
    %p364 = pneg %p358
    %p365 = scmp.eq.s32.totalorder %s30, 1
    %p366 = por %p364, %p365
    %p367 = scmp.ne.s32.totalorder %s359, %s362
    %p368 = scmp.eq.s32.totalorder %s30, 0
    %p369 = por %p367, %p368
    %p370 = scmp.ne.s32.totalorder %s359, %s362
    %p371 = scmp.eq.s32.totalorder %s35, 1
    %p372 = por %p370, %p371
    %p373 = scmp.ne.s32.totalorder %s362, %s363
    %p374 = scmp.eq.s32.totalorder %s35, 0
    %p375 = por %p373, %p374
    %p376 = scmp.ne.s32.totalorder %s362, %s363
    %p377 = scmp.eq.s32.totalorder %s36, 1
    %p378 = por %p376, %p377
    %p380 = scmp.ne.s32.totalorder %s363, %s379
    %p381 = scmp.eq.s32.totalorder %s36, 0
    %p382 = por %p380, %p381
    %s383 = ssub.s32 %s30, %s37
    %p384 = scmp.eq.s32.totalorder %s383, 0
    %s386 = sadd.s32 %s385, 1
    %s387 = scalar_select %p384, %s385, %s386
    %p390 = pneg %p384
    %p391 = scmp.eq.s32.totalorder %s30, 1
    %p392 = por %p390, %p391
    %p393 = scmp.ne.s32.totalorder %s385, %s388
    %p394 = scmp.eq.s32.totalorder %s30, 0
    %p395 = por %p393, %p394
    %p396 = scmp.ne.s32.totalorder %s385, %s388
    %p397 = scmp.eq.s32.totalorder %s35, 1
    %p398 = por %p396, %p397
    %p399 = scmp.ne.s32.totalorder %s388, %s389
    %p400 = scmp.eq.s32.totalorder %s35, 0
    %p401 = por %p399, %p400
    %p402 = scmp.ne.s32.totalorder %s388, %s389
    %p403 = scmp.eq.s32.totalorder %s36, 1
    %p404 = por %p402, %p403
    %p406 = scmp.ne.s32.totalorder %s389, %s405
    %p407 = scmp.eq.s32.totalorder %s36, 0
    %p408 = por %p406, %p407
    %s409 = ssub.s32 %s30, %s37
    %p410 = scmp.eq.s32.totalorder %s409, 0
    %s412 = sadd.s32 %s411, 1
    %s413 = scalar_select %p410, %s411, %s412
    %p416 = pneg %p410
    %p417 = scmp.eq.s32.totalorder %s30, 1
    %p418 = por %p416, %p417
    %p419 = scmp.ne.s32.totalorder %s411, %s414
    %p420 = scmp.eq.s32.totalorder %s30, 0
    %p421 = por %p419, %p420
    %p422 = scmp.ne.s32.totalorder %s411, %s414
    %p423 = scmp.eq.s32.totalorder %s35, 1
    %p424 = por %p422, %p423
    %p425 = scmp.ne.s32.totalorder %s414, %s415
    %p426 = scmp.eq.s32.totalorder %s35, 0
    %p427 = por %p425, %p426
    %p428 = scmp.ne.s32.totalorder %s414, %s415
    %p429 = scmp.eq.s32.totalorder %s36, 1
    %p430 = por %p428, %p429
    %p432 = scmp.ne.s32.totalorder %s415, %s431
    %p433 = scmp.eq.s32.totalorder %s36, 0
    %p434 = por %p432, %p433
    %p435 = scmp.le.s32.totalorder 1, %s30
    %p436 = scmp.lt.s32.totalorder %s30, 3
    %p437 = pnand %p435, %p436
    %p438 = pneg %p437
    // Predicated region
    $region9: #{bifpn_forward.1} parent=5 // pred_check
      _
    $region10: #{bifpn_forward.1} parent=5 // pred_check_branch
      %440 = sbr.rel (%p437) target = $region12
    $region11: #{bifpn_forward.1} parent=5 // pred_region
      %s441 = ssub.s32 %s30, 1
      // Predicated region
      $region13: #{bifpn_forward.1} parent=11 // pred_check
        %p442 = pneg %p155
      $region14: #{bifpn_forward.1} parent=11 // pred_check_branch
        %444 = sbr.rel (%p442) target = $region16
      $region15: #{bifpn_forward.1} parent=11 // pred_region
        _
      $region16: #{bifpn_forward.1} parent=11 // pred_fallthru
        _
      // Predicated region
      $region17: #{bifpn_forward.1} parent=11 // pred_check
        %p445 = pneg %p176
      $region18: #{bifpn_forward.1} parent=11 // pred_check_branch
        %447 = sbr.rel (%p445) target = $region20
      $region19: #{bifpn_forward.1} parent=11 // pred_region
        _
      $region20: #{bifpn_forward.1} parent=11 // pred_fallthru
        _
      // Predicated region
      $region21: #{bifpn_forward.1} parent=11 // pred_check
        %p448 = pneg %p197
      $region22: #{bifpn_forward.1} parent=11 // pred_check_branch
        %450 = sbr.rel (%p448) target = $region24
      $region23: #{bifpn_forward.1} parent=11 // pred_region
        _
      $region24: #{bifpn_forward.1} parent=11 // pred_fallthru
        _
      // Predicated region
      $region25: #{bifpn_forward.1} parent=11 // pred_check
        %p451 = pneg %p218
      $region26: #{bifpn_forward.1} parent=11 // pred_check_branch
        %453 = sbr.rel (%p451) target = $region28
      $region27: #{bifpn_forward.1} parent=11 // pred_region
        _
      $region28: #{bifpn_forward.1} parent=11 // pred_fallthru
        _
      // Predicated region
      $region29: #{bifpn_forward.1} parent=11 // pred_check
        %p454 = pneg %p239
      $region30: #{bifpn_forward.1} parent=11 // pred_check_branch
        %456 = sbr.rel (%p454) target = $region32
      $region31: #{bifpn_forward.1} parent=11 // pred_region
        _
      $region32: #{bifpn_forward.1} parent=11 // pred_fallthru
        _
      // Predicated region
      $region33: #{bifpn_forward.1} parent=11 // pred_check
        %p457 = pneg %p260
      $region34: #{bifpn_forward.1} parent=11 // pred_check_branch
        %459 = sbr.rel (%p457) target = $region36
      $region35: #{bifpn_forward.1} parent=11 // pred_region
        _
      $region36: #{bifpn_forward.1} parent=11 // pred_fallthru
        _
      // Predicated region
      $region37: #{bifpn_forward.1} parent=11 // pred_check
        %p460 = pneg %p281
      $region38: #{bifpn_forward.1} parent=11 // pred_check_branch
        %462 = sbr.rel (%p460) target = $region40
      $region39: #{bifpn_forward.1} parent=11 // pred_region
        _
      $region40: #{bifpn_forward.1} parent=11 // pred_fallthru
        _
      // Predicated region
      $region41: #{bifpn_forward.1} parent=11 // pred_check
        %p463 = pneg %p302
      $region42: #{bifpn_forward.1} parent=11 // pred_check_branch
        %465 = sbr.rel (%p463) target = $region44
      $region43: #{bifpn_forward.1} parent=11 // pred_region
        _
      $region44: #{bifpn_forward.1} parent=11 // pred_fallthru
        _
      // Predicated region
      $region45: #{bifpn_forward.1} parent=11 // pred_check
        %p466 = pneg %p323
      $region46: #{bifpn_forward.1} parent=11 // pred_check_branch
        %468 = sbr.rel (%p466) target = $region48
      $region47: #{bifpn_forward.1} parent=11 // pred_region
        _
      $region48: #{bifpn_forward.1} parent=11 // pred_fallthru
        _
    $region12: #{bifpn_forward.1} parent=5 // pred_fallthru
      _
    %p469 = scmp.lt.s32.totalorder %s30, 2
    // Predicated region
    $region49: #{bifpn_forward.1} parent=5 // pred_check
      %p470 = pneg %p469
    $region50: #{bifpn_forward.1} parent=5 // pred_check_branch
      %472 = sbr.rel (%p470) target = $region52
    $region51: #{bifpn_forward.1} parent=5 // pred_region
      // Predicated region
      $region53: #{bifpn_forward.1} parent=51 // pred_check
        %p473 = pneg %p50
      $region54: #{bifpn_forward.1} parent=51 // pred_check_branch
        %475 = sbr.rel (%p473) target = $region56
      $region55: #{bifpn_forward.1} parent=51 // pred_region
        %p476 = scmp.lt.s32.totalorder %s30, 1
        %s477 = scalar_select %p476, %s30, 1
        %s478 = smul.addr %s477, 2
        %s479 = smul.addr %s478, 8
        %s480 = scalar_lea.vmem %s1, %s479
      $region56: #{bifpn_forward.1} parent=51 // pred_fallthru
        _
      // Predicated region
      $region57: #{bifpn_forward.1} parent=51 // pred_check
        %p481 = pneg %p76
      $region58: #{bifpn_forward.1} parent=51 // pred_check_branch
        %483 = sbr.rel (%p481) target = $region60
      $region59: #{bifpn_forward.1} parent=51 // pred_region
        %p484 = scmp.lt.s32.totalorder %s30, 1
        %s485 = scalar_select %p484, %s30, 1
        %s486 = smul.addr %s485, 8
        %s487 = scalar_lea.vmem %s2, %s486
      $region60: #{bifpn_forward.1} parent=51 // pred_fallthru
        _
      // Predicated region
      $region61: #{bifpn_forward.1} parent=51 // pred_check
        %p488 = pneg %p102
      $region62: #{bifpn_forward.1} parent=51 // pred_check_branch
        %490 = sbr.rel (%p488) target = $region64
      $region63: #{bifpn_forward.1} parent=51 // pred_region
        %p491 = scmp.lt.s32.totalorder %s30, 1
        %s492 = scalar_select %p491, %s30, 1
        %s493 = smul.addr %s492, 8
        %s494 = scalar_lea.vmem %s3, %s493
      $region64: #{bifpn_forward.1} parent=51 // pred_fallthru
        _
      // Predicated region
      $region65: #{bifpn_forward.1} parent=51 // pred_check
        %p495 = pneg %p128
      $region66: #{bifpn_forward.1} parent=51 // pred_check_branch
        %497 = sbr.rel (%p495) target = $region68
      $region67: #{bifpn_forward.1} parent=51 // pred_region
        %p498 = scmp.lt.s32.totalorder %s30, 1
        %s499 = scalar_select %p498, %s30, 1
        %s500 = smul.addr %s499, 8
        %s501 = scalar_lea.vmem %s4, %s500
      $region68: #{bifpn_forward.1} parent=51 // pred_fallthru
        _
    $region52: #{bifpn_forward.1} parent=5 // pred_fallthru
      _
    %p502 = scmp.le.s32.totalorder 1, %s30
    %p503 = scmp.lt.s32.totalorder %s30, 3
    %p504 = pnand %p502, %p503
    %p505 = pneg %p504
    // Predicated region
    $region69: #{bifpn_forward.1} parent=5 // pred_check
      _
    $region70: #{bifpn_forward.1} parent=5 // pred_check_branch
      %507 = sbr.rel (%p504) target = $region72
    $region71: #{bifpn_forward.1} parent=5 // pred_region
      %s508 = ssub.s32 %s30, 1
      %p509 = scmp.lt.s32.totalorder %s35, 1
      %s510 = scalar_select %p509, %s35, 1
      %s511 = smul.addr %s510, 2
      %s512 = smul.addr %s511, 8
      %s513 = scalar_lea.vmem %s1, %s512
      %p514 = pneg %p56
      %p515 = pneg %p53
      %p516 = scmp.lt.s32.totalorder %s35, 1
      %s517 = scalar_select %p516, %s35, 1
      %s518 = smul.addr %s517, 8
      %s519 = scalar_lea.vmem %s2, %s518
      %p520 = pneg %p82
      %p521 = pneg %p79
      %p522 = scmp.lt.s32.totalorder %s35, 1
      %s523 = scalar_select %p522, %s35, 1
      %s524 = smul.addr %s523, 8
      %s525 = scalar_lea.vmem %s3, %s524
      %p526 = pneg %p108
      %p527 = pneg %p105
      %p528 = scmp.lt.s32.totalorder %s35, 1
      %s529 = scalar_select %p528, %s35, 1
      %s530 = smul.addr %s529, 8
      %s531 = scalar_lea.vmem %s4, %s530
      %p532 = pneg %p134
      %p533 = pneg %p131
      %p534 = pneg %p155
      %p535 = pneg %p152
      %p536 = pneg %p176
      %p537 = pneg %p173
      %p538 = pneg %p197
      %p539 = pneg %p194
      %p540 = pneg %p218
      %p541 = pneg %p215
      %p542 = pneg %p239
      %p543 = pneg %p236
      %p544 = pneg %p260
      %p545 = pneg %p257
      %p546 = pneg %p281
      %p547 = pneg %p278
      %p548 = pneg %p302
      %p549 = pneg %p299
      %p550 = pneg %p323
      %p551 = pneg %p320
      %p552 = pneg %p349
      %p553 = pneg %p346
      %p554 = scmp.lt.s32.totalorder %s35, 1
      %s555 = scalar_select %p554, %s35, 1
      %s556 = smul.addr %s555, 2
      %s557 = smul.addr %s556, 8
      %s558 = scalar_lea.vmem %s14, %s557
      %p559 = pneg %p375
      %p560 = pneg %p372
      %p561 = scmp.lt.s32.totalorder %s35, 1
      %s562 = scalar_select %p561, %s35, 1
      %s563 = smul.addr %s562, 8
      %s564 = scalar_lea.vmem %s15, %s563
      %p565 = pneg %p401
      %p566 = pneg %p398
      %p567 = scmp.lt.s32.totalorder %s35, 1
      %s568 = scalar_select %p567, %s35, 1
      %s569 = smul.addr %s568, 8
      %s570 = scalar_lea.vmem %s16, %s569
      %p571 = pneg %p427
      %p572 = pneg %p424
      %p573 = scmp.lt.s32.totalorder %s35, 1
      %s574 = scalar_select %p573, %s35, 1
      %s575 = smul.addr %s574, 8
      %s576 = scalar_lea.vmem %s17, %s575
      %p577 = scmp.lt.s32.totalorder %s35, 1
      %s578 = scalar_select %p577, %s35, 1
      %s579 = smul.addr %s578, 2
      %s580 = smul.addr %s579, 8
      %s581 = scalar_lea.vmem %s1, %s580
      %p582 = scmp.lt.s32.totalorder %s35, 1
      %s583 = scalar_select %p582, %s35, 1
      %s584 = smul.addr %s583, 8
      %s585 = scalar_lea.vmem %s2, %s584
      %p586 = scmp.lt.s32.totalorder %s35, 1
      %s587 = scalar_select %p586, %s35, 1
      %s588 = smul.addr %s587, 8
      %s589 = scalar_lea.vmem %s3, %s588
      %p590 = scmp.lt.s32.totalorder %s35, 1
      %s591 = scalar_select %p590, %s35, 1
      %s592 = smul.addr %s591, 8
      %s593 = scalar_lea.vmem %s4, %s592
      %p594 = scmp.lt.s32.totalorder %s35, 1
      %s595 = scalar_select %p594, %s35, 1
      %s596 = smul.addr %s595, 2
      %s597 = smul.addr %s596, 8
      %s598 = scalar_lea.vmem %s14, %s597
      %p599 = scmp.lt.s32.totalorder %s35, 1
      %s600 = scalar_select %p599, %s35, 1
      %s601 = smul.addr %s600, 8
      %s602 = scalar_lea.vmem %s15, %s601
      %p603 = scmp.lt.s32.totalorder %s35, 1
      %s604 = scalar_select %p603, %s35, 1
      %s605 = smul.addr %s604, 8
      %s606 = scalar_lea.vmem %s16, %s605
      %p607 = scmp.lt.s32.totalorder %s35, 1
      %s608 = scalar_select %p607, %s35, 1
      %s609 = smul.addr %s608, 8
      %s610 = scalar_lea.vmem %s17, %s609
      %v611 = vld [vmem:[%s581] sm:$0xff]
      %v612 = vld [vmem:[%s581 + $0x8] sm:$0xff]
      %v613 = vld [vmem:[%s585] sm:$0xff]
      %v614 = vld [vmem:[%s589] sm:$0xff]
      %v615 = vld [vmem:[%s593] sm:$0xff]
      %s616 = sld [smem:[#allocation3]]
      %v617 = vstv %s616
      %v618 = vmul.f32 %v617, %v614
      %s619 = sld [smem:[#allocation3 + $0x1]]
      %v620 = vld [vmem:[%s8] sm:$0xff]
      %v621 = vld [vmem:[%s8 + $0x8] sm:$0xff]
      %v622 = vld [vmem:[%s8 + $0x10] sm:$0xff]
      %v623 = vld [vmem:[%s8 + $0x18] sm:$0xff]
      %v624 = vld [vmem:[%s8 + $0x20] sm:$0xff]
      %v625 = vld [vmem:[%s8 + $0x28] sm:$0xff]
      %v626 = vld [vmem:[%s8 + $0x30] sm:$0xff]
      %v627 = vld [vmem:[%s8 + $0x38] sm:$0xff]
      %v628 = vld [vmem:[%s8 + $0x40] sm:$0xff]
      %v629 = vld [vmem:[%s8 + $0x48] sm:$0xff]
      %v630 = vld [vmem:[%s8 + $0x50] sm:$0xff]
      %v631 = vld [vmem:[%s8 + $0x58] sm:$0xff]
      %v632 = vld [vmem:[%s8 + $0x60] sm:$0xff]
      %v633 = vld [vmem:[%s8 + $0x68] sm:$0xff]
      %v634 = vld [vmem:[%s8 + $0x70] sm:$0xff]
      %v635 = vld [vmem:[%s8 + $0x78] sm:$0xff]
      %636 = vmatprep.subr.mxu0 0.0
      %v637 = vand.u32 %v620, 4294901760
      %638 = vmatpush1.msra.mxu0 %v637
      %639 = vmatprep.subr.mxu0 0.0
      %v640 = vand.u32 %v621, 4294901760
      %641 = vmatpush1.msra.mxu0 %v640
      %642 = vmatprep.subr.mxu0 0.0
      %v643 = vand.u32 %v622, 4294901760
      %644 = vmatpush1.msra.mxu0 %v643
      %645 = vmatprep.subr.mxu0 0.0
      %v646 = vand.u32 %v623, 4294901760
      %647 = vmatpush1.msra.mxu0 %v646
      %648 = vmatprep.subr.mxu0 0.0
      %v649 = vand.u32 %v624, 4294901760
      %650 = vmatpush1.msra.mxu0 %v649
      %651 = vmatprep.subr.mxu0 0.0
      %v652 = vand.u32 %v625, 4294901760
      %653 = vmatpush1.msra.mxu0 %v652
      %654 = vmatprep.subr.mxu0 0.0
      %v655 = vand.u32 %v626, 4294901760
      %656 = vmatpush1.msra.mxu0 %v655
      %657 = vmatprep.subr.mxu0 0.0
      %v658 = vand.u32 %v627, 4294901760
      %659 = vmatpush1.msra.mxu0 %v658
      %660 = vmatprep.subr.mxu0 0.0
      %v661 = vand.u32 %v628, 4294901760
      %662 = vmatpush1.msra.mxu0 %v661
      %663 = vmatprep.subr.mxu0 0.0
      %v664 = vand.u32 %v629, 4294901760
      %665 = vmatpush1.msra.mxu0 %v664
      %666 = vmatprep.subr.mxu0 0.0
      %v667 = vand.u32 %v630, 4294901760
      %668 = vmatpush1.msra.mxu0 %v667
      %669 = vmatprep.subr.mxu0 0.0
      %v670 = vand.u32 %v631, 4294901760
      %671 = vmatpush1.msra.mxu0 %v670
      %672 = vmatprep.subr.mxu0 0.0
      %v673 = vand.u32 %v632, 4294901760
      %674 = vmatpush1.msra.mxu0 %v673
      %675 = vmatprep.subr.mxu0 0.0
      %v676 = vand.u32 %v633, 4294901760
      %677 = vmatpush1.msra.mxu0 %v676
      %678 = vmatprep.subr.mxu0 0.0
      %v679 = vand.u32 %v634, 4294901760
      %680 = vmatpush1.msra.mxu0 %v679
      %681 = vmatprep.subr.mxu0 0.0
      %v682 = vand.u32 %v635, 4294901760
      %683 = vmatpush1.msra.mxu0 %v682
      %684 = vmatprep.subr.mxu0 0.0
      %685 = vmatpush1.msra.mxu0 0.0
      %686 = vmatprep.subr.mxu0 0.0
      %687 = vmatpush1.msra.mxu0 0.0
      %688 = vmatprep.subr.mxu0 0.0
      %689 = vmatpush1.msra.mxu0 0.0
      %690 = vmatprep.subr.mxu0 0.0
      %691 = vmatpush1.msra.mxu0 0.0
      %692 = vmatprep.subr.mxu0 0.0
      %693 = vmatpush1.msra.mxu0 0.0
      %694 = vmatprep.subr.mxu0 0.0
      %695 = vmatpush1.msra.mxu0 0.0
      %696 = vmatprep.subr.mxu0 0.0
      %697 = vmatpush1.msra.mxu0 0.0
      %698 = vmatprep.subr.mxu0 0.0
      %699 = vmatpush1.msra.mxu0 0.0
      %700 = vmatprep.subr.mxu0 0.0
      %701 = vmatpush1.msra.mxu0 0.0
      %702 = vmatprep.subr.mxu0 0.0
      %703 = vmatpush1.msra.mxu0 0.0
      %704 = vmatprep.subr.mxu0 0.0
      %705 = vmatpush1.msra.mxu0 0.0
      %706 = vmatprep.subr.mxu0 0.0
      %707 = vmatpush1.msra.mxu0 0.0
      %708 = vmatprep.subr.mxu0 0.0
      %709 = vmatpush1.msra.mxu0 0.0
      %710 = vmatprep.subr.mxu0 0.0
      %711 = vmatpush1.msra.mxu0 0.0
      %712 = vmatprep.subr.mxu0 0.0
      %713 = vmatpush1.msra.mxu0 0.0
      %714 = vmatprep.subr.mxu0 0.0
      %715 = vmatpush1.msra.mxu0 0.0
      %716 = vmatprep.mubr.f32.mxu0 0.0
      %v717 = vand.u32 %v615, 4294901760
      %v718 = vsub.f32 %v615, %v717
      %v719 = vand.u32 %v718, 4294901760
      %v720 = vsub.f32 %v718, %v719
      %v721 = vand.u32 %v720, 4294901760
      %722 = vmatmul.mubr.f32.gmra.mrb[0].mxu0 %v721
      %v723 = vpop.f32.mrb[0].mxu0
      %v724 = vadd.f32 0.0, %v723
      %v725 = vpop.f32.mrb[0].mxu0
      %726 = vdwg.mxu0
      %727 = vmatprep.subr.mxu0 0.0
      %v728 = vand.u32 %v620, 4294901760
      %v729 = vsub.f32 %v620, %v728
      %v730 = vand.u32 %v729, 4294901760
      %v731 = vsub.f32 %v729, %v730
      %v732 = vand.u32 %v731, 4294901760
      %733 = vmatpush1.msra.mxu0 %v732
      %734 = vmatprep.subr.mxu0 0.0
      %v735 = vand.u32 %v621, 4294901760
      %v736 = vsub.f32 %v621, %v735
      %v737 = vand.u32 %v736, 4294901760
      %v738 = vsub.f32 %v736, %v737
      %v739 = vand.u32 %v738, 4294901760
      %740 = vmatpush1.msra.mxu0 %v739
      %741 = vmatprep.subr.mxu0 0.0
      %v742 = vand.u32 %v622, 4294901760
      %v743 = vsub.f32 %v622, %v742
      %v744 = vand.u32 %v743, 4294901760
      %v745 = vsub.f32 %v743, %v744
      %v746 = vand.u32 %v745, 4294901760
      %747 = vmatpush1.msra.mxu0 %v746
      %748 = vmatprep.subr.mxu0 0.0
      %v749 = vand.u32 %v623, 4294901760
      %v750 = vsub.f32 %v623, %v749
      %v751 = vand.u32 %v750, 4294901760
      %v752 = vsub.f32 %v750, %v751
      %v753 = vand.u32 %v752, 4294901760
      %754 = vmatpush1.msra.mxu0 %v753
      %755 = vmatprep.subr.mxu0 0.0
      %v756 = vand.u32 %v624, 4294901760
      %v757 = vsub.f32 %v624, %v756
      %v758 = vand.u32 %v757, 4294901760
      %v759 = vsub.f32 %v757, %v758
      %v760 = vand.u32 %v759, 4294901760
      %761 = vmatpush1.msra.mxu0 %v760
      %762 = vmatprep.subr.mxu0 0.0
      %v763 = vand.u32 %v625, 4294901760
      %v764 = vsub.f32 %v625, %v763
      %v765 = vand.u32 %v764, 4294901760
      %v766 = vsub.f32 %v764, %v765
      %v767 = vand.u32 %v766, 4294901760
      %768 = vmatpush1.msra.mxu0 %v767
      %769 = vmatprep.subr.mxu0 0.0
      %v770 = vand.u32 %v626, 4294901760
      %v771 = vsub.f32 %v626, %v770
      %v772 = vand.u32 %v771, 4294901760
      %v773 = vsub.f32 %v771, %v772
      %v774 = vand.u32 %v773, 4294901760
      %775 = vmatpush1.msra.mxu0 %v774
      %776 = vmatprep.subr.mxu0 0.0
      %v777 = vand.u32 %v627, 4294901760
      %v778 = vsub.f32 %v627, %v777
      %v779 = vand.u32 %v778, 4294901760
      %v780 = vsub.f32 %v778, %v779
      %v781 = vand.u32 %v780, 4294901760
      %782 = vmatpush1.msra.mxu0 %v781
      %783 = vmatprep.subr.mxu0 0.0
      %v784 = vand.u32 %v628, 4294901760
      %v785 = vsub.f32 %v628, %v784
      %v786 = vand.u32 %v785, 4294901760
      %v787 = vsub.f32 %v785, %v786
      %v788 = vand.u32 %v787, 4294901760
      %789 = vmatpush1.msra.mxu0 %v788
      %790 = vmatprep.subr.mxu0 0.0
      %v791 = vand.u32 %v629, 4294901760
      %v792 = vsub.f32 %v629, %v791
      %v793 = vand.u32 %v792, 4294901760
      %v794 = vsub.f32 %v792, %v793
      %v795 = vand.u32 %v794, 4294901760
      %796 = vmatpush1.msra.mxu0 %v795
      %797 = vmatprep.subr.mxu0 0.0
      %v798 = vand.u32 %v630, 4294901760
      %v799 = vsub.f32 %v630, %v798
      %v800 = vand.u32 %v799, 4294901760
      %v801 = vsub.f32 %v799, %v800
      %v802 = vand.u32 %v801, 4294901760
      %803 = vmatpush1.msra.mxu0 %v802
      %804 = vmatprep.subr.mxu0 0.0
      %v805 = vand.u32 %v631, 4294901760
      %v806 = vsub.f32 %v631, %v805
      %v807 = vand.u32 %v806, 4294901760
      %v808 = vsub.f32 %v806, %v807
      %v809 = vand.u32 %v808, 4294901760
      %810 = vmatpush1.msra.mxu0 %v809
      %811 = vmatprep.subr.mxu0 0.0
      %v812 = vand.u32 %v632, 4294901760
      %v813 = vsub.f32 %v632, %v812
      %v814 = vand.u32 %v813, 4294901760
      %v815 = vsub.f32 %v813, %v814
      %v816 = vand.u32 %v815, 4294901760
      %817 = vmatpush1.msra.mxu0 %v816
      %818 = vmatprep.subr.mxu0 0.0
      %v819 = vand.u32 %v633, 4294901760
      %v820 = vsub.f32 %v633, %v819
      %v821 = vand.u32 %v820, 4294901760
      %v822 = vsub.f32 %v820, %v821
      %v823 = vand.u32 %v822, 4294901760
      %824 = vmatpush1.msra.mxu0 %v823
      %825 = vmatprep.subr.mxu0 0.0
      %v826 = vand.u32 %v634, 4294901760
      %v827 = vsub.f32 %v634, %v826
      %v828 = vand.u32 %v827, 4294901760
      %v829 = vsub.f32 %v827, %v828
      %v830 = vand.u32 %v829, 4294901760
      %831 = vmatpush1.msra.mxu0 %v830
      %832 = vmatprep.subr.mxu0 0.0
      %v833 = vand.u32 %v635, 4294901760
      %v834 = vsub.f32 %v635, %v833
      %v835 = vand.u32 %v834, 4294901760
      %v836 = vsub.f32 %v834, %v835
      %v837 = vand.u32 %v836, 4294901760
      %838 = vmatpush1.msra.mxu0 %v837
      %839 = vmatprep.subr.mxu0 0.0
      %840 = vmatpush1.msra.mxu0 0.0
      %841 = vmatprep.subr.mxu0 0.0
      %842 = vmatpush1.msra.mxu0 0.0
      %843 = vmatprep.subr.mxu0 0.0
      %844 = vmatpush1.msra.mxu0 0.0
      %845 = vmatprep.subr.mxu0 0.0
      %846 = vmatpush1.msra.mxu0 0.0
      %847 = vmatprep.subr.mxu0 0.0
      %848 = vmatpush1.msra.mxu0 0.0
      %849 = vmatprep.subr.mxu0 0.0
      %850 = vmatpush1.msra.mxu0 0.0
      %851 = vmatprep.subr.mxu0 0.0
      %852 = vmatpush1.msra.mxu0 0.0
      %853 = vmatprep.subr.mxu0 0.0
      %854 = vmatpush1.msra.mxu0 0.0
      %855 = vmatprep.subr.mxu0 0.0
      %856 = vmatpush1.msra.mxu0 0.0
      %857 = vmatprep.subr.mxu0 0.0
      %858 = vmatpush1.msra.mxu0 0.0
      %859 = vmatprep.subr.mxu0 0.0
      %860 = vmatpush1.msra.mxu0 0.0
      %861 = vmatprep.subr.mxu0 0.0
      %862 = vmatpush1.msra.mxu0 0.0
      %863 = vmatprep.subr.mxu0 0.0
      %864 = vmatpush1.msra.mxu0 0.0
      %865 = vmatprep.subr.mxu0 0.0
      %866 = vmatpush1.msra.mxu0 0.0
      %867 = vmatprep.subr.mxu0 0.0
      %868 = vmatpush1.msra.mxu0 0.0
      %869 = vmatprep.subr.mxu0 0.0
      %870 = vmatpush1.msra.mxu0 0.0
      %871 = vmatprep.mubr.f32.mxu0 0.0
      %v872 = vand.u32 %v615, 4294901760
      %873 = vmatmul.mubr.f32.gmra.mrb[0].mxu0 %v872
      %v874 = vpop.f32.mrb[0].mxu0
      %v875 = vadd.f32 %v724, %v874
      %v876 = vpop.f32.mrb[0].mxu0
      %877 = vdwg.mxu0
      %878 = vmatprep.subr.mxu0 0.0
      %v879 = vand.u32 %v620, 4294901760
      %v880 = vsub.f32 %v620, %v879
      %881 = vmatpush1.msra.mxu0 %v880
      %882 = vmatprep.subr.mxu0 0.0
      %v883 = vand.u32 %v621, 4294901760
      %v884 = vsub.f32 %v621, %v883
      %885 = vmatpush1.msra.mxu0 %v884
      %886 = vmatprep.subr.mxu0 0.0
      %v887 = vand.u32 %v622, 4294901760
      %v888 = vsub.f32 %v622, %v887
      %889 = vmatpush1.msra.mxu0 %v888
      %890 = vmatprep.subr.mxu0 0.0
      %v891 = vand.u32 %v623, 4294901760
      %v892 = vsub.f32 %v623, %v891
      %893 = vmatpush1.msra.mxu0 %v892
      %894 = vmatprep.subr.mxu0 0.0
      %v895 = vand.u32 %v624, 4294901760
      %v896 = vsub.f32 %v624, %v895
      %897 = vmatpush1.msra.mxu0 %v896
      %898 = vmatprep.subr.mxu0 0.0
      %v899 = vand.u32 %v625, 4294901760
      %v900 = vsub.f32 %v625, %v899
      %901 = vmatpush1.msra.mxu0 %v900
      %902 = vmatprep.subr.mxu0 0.0
      %v903 = vand.u32 %v626, 4294901760
      %v904 = vsub.f32 %v626, %v903
      %905 = vmatpush1.msra.mxu0 %v904
      %906 = vmatprep.subr.mxu0 0.0
      %v907 = vand.u32 %v627, 4294901760
      %v908 = vsub.f32 %v627, %v907
      %909 = vmatpush1.msra.mxu0 %v908
      %910 = vmatprep.subr.mxu0 0.0
      %v911 = vand.u32 %v628, 4294901760
      %v912 = vsub.f32 %v628, %v911
      %913 = vmatpush1.msra.mxu0 %v912
      %914 = vmatprep.subr.mxu0 0.0
      %v915 = vand.u32 %v629, 4294901760
      %v916 = vsub.f32 %v629, %v915
      %917 = vmatpush1.msra.mxu0 %v916
      %918 = vmatprep.subr.mxu0 0.0
      %v919 = vand.u32 %v630, 4294901760
      %v920 = vsub.f32 %v630, %v919
      %921 = vmatpush1.msra.mxu0 %v920
      %922 = vmatprep.subr.mxu0 0.0
      %v923 = vand.u32 %v631, 4294901760
      %v924 = vsub.f32 %v631, %v923
      %925 = vmatpush1.msra.mxu0 %v924
      %926 = vmatprep.subr.mxu0 0.0
      %v927 = vand.u32 %v632, 4294901760
      %v928 = vsub.f32 %v632, %v927
      %929 = vmatpush1.msra.mxu0 %v928
      %930 = vmatprep.subr.mxu0 0.0
      %v931 = vand.u32 %v633, 4294901760
      %v932 = vsub.f32 %v633, %v931
      %933 = vmatpush1.msra.mxu0 %v932
      %934 = vmatprep.subr.mxu0 0.0
      %v935 = vand.u32 %v634, 4294901760
      %v936 = vsub.f32 %v634, %v935
      %937 = vmatpush1.msra.mxu0 %v936
      %938 = vmatprep.subr.mxu0 0.0
      %v939 = vand.u32 %v635, 4294901760
      %v940 = vsub.f32 %v635, %v939
      %941 = vmatpush1.msra.mxu0 %v940
      %942 = vmatprep.subr.mxu0 0.0
      %943 = vmatpush1.msra.mxu0 0.0
      %944 = vmatprep.subr.mxu0 0.0
      %945 = vmatpush1.msra.mxu0 0.0
      %946 = vmatprep.subr.mxu0 0.0
      %947 = vmatpush1.msra.mxu0 0.0
      %948 = vmatprep.subr.mxu0 0.0
      %949 = vmatpush1.msra.mxu0 0.0
      %950 = vmatprep.subr.mxu0 0.0
      %951 = vmatpush1.msra.mxu0 0.0
      %952 = vmatprep.subr.mxu0 0.0
      %953 = vmatpush1.msra.mxu0 0.0
      %954 = vmatprep.subr.mxu0 0.0
      %955 = vmatpush1.msra.mxu0 0.0
      %956 = vmatprep.subr.mxu0 0.0
      %957 = vmatpush1.msra.mxu0 0.0
      %958 = vmatprep.subr.mxu0 0.0
      %959 = vmatpush1.msra.mxu0 0.0
      %960 = vmatprep.subr.mxu0 0.0
      %961 = vmatpush1.msra.mxu0 0.0
      %962 = vmatprep.subr.mxu0 0.0
      %963 = vmatpush1.msra.mxu0 0.0
      %964 = vmatprep.subr.mxu0 0.0
      %965 = vmatpush1.msra.mxu0 0.0
      %966 = vmatprep.subr.mxu0 0.0
      %967 = vmatpush1.msra.mxu0 0.0
      %968 = vmatprep.subr.mxu0 0.0
      %969 = vmatpush1.msra.mxu0 0.0
      %970 = vmatprep.subr.mxu0 0.0
      %971 = vmatpush1.msra.mxu0 0.0
      %972 = vmatprep.subr.mxu0 0.0
      %973 = vmatpush1.msra.mxu0 0.0
      %974 = vmatprep.mubr.f32.mxu0 0.0
      %v975 = vand.u32 %v615, 4294901760
      %v976 = vsub.f32 %v615, %v975
      %977 = vmatmul.mubr.f32.gmra.mrb[0].mxu0 %v976
      %v978 = vpop.f32.mrb[0].mxu0
      %v979 = vadd.f32 %v875, %v978
      %v980 = vpop.f32.mrb[0].mxu0
      %981 = vdwg.mxu0
      %982 = vmatprep.subr.mxu0 0.0
      %v983 = vand.u32 %v620, 4294901760
      %984 = vmatpush1.msra.mxu0 %v983
      %985 = vmatprep.subr.mxu0 0.0
      %v986 = vand.u32 %v621, 4294901760
      %987 = vmatpush1.msra.mxu0 %v986
      %988 = vmatprep.subr.mxu0 0.0
      %v989 = vand.u32 %v622, 4294901760
      %990 = vmatpush1.msra.mxu0 %v989
      %991 = vmatprep.subr.mxu0 0.0
      %v992 = vand.u32 %v623, 4294901760
      %993 = vmatpush1.msra.mxu0 %v992
      %994 = vmatprep.subr.mxu0 0.0
      %v995 = vand.u32 %v624, 4294901760
      %996 = vmatpush1.msra.mxu0 %v995
      %997 = vmatprep.subr.mxu0 0.0
      %v998 = vand.u32 %v625, 4294901760
      %999 = vmatpush1.msra.mxu0 %v998
      %1000 = vmatprep.subr.mxu0 0.0
      %v1001 = vand.u32 %v626, 4294901760
      %1002 = vmatpush1.msra.mxu0 %v1001
      %1003 = vmatprep.subr.mxu0 0.0
      %v1004 = vand.u32 %v627, 4294901760
      %1005 = vmatpush1.msra.mxu0 %v1004
      %1006 = vmatprep.subr.mxu0 0.0
      %v1007 = vand.u32 %v628, 4294901760
      %1008 = vmatpush1.msra.mxu0 %v1007
      %1009 = vmatprep.subr.mxu0 0.0
      %v1010 = vand.u32 %v629, 4294901760
      %1011 = vmatpush1.msra.mxu0 %v1010
      %1012 = vmatprep.subr.mxu0 0.0
      %v1013 = vand.u32 %v630, 4294901760
      %1014 = vmatpush1.msra.mxu0 %v1013
      %1015 = vmatprep.subr.mxu0 0.0
      %v1016 = vand.u32 %v631, 4294901760
      %1017 = vmatpush1.msra.mxu0 %v1016
      %1018 = vmatprep.subr.mxu0 0.0
      %v1019 = vand.u32 %v632, 4294901760
      %1020 = vmatpush1.msra.mxu0 %v1019
      %1021 = vmatprep.subr.mxu0 0.0
      %v1022 = vand.u32 %v633, 4294901760
      %1023 = vmatpush1.msra.mxu0 %v1022
      %1024 = vmatprep.subr.mxu0 0.0
      %v1025 = vand.u32 %v634, 4294901760
      %1026 = vmatpush1.msra.mxu0 %v1025
      %1027 = vmatprep.subr.mxu0 0.0
      %v1028 = vand.u32 %v635, 4294901760
      %1029 = vmatpush1.msra.mxu0 %v1028
      %1030 = vmatprep.subr.mxu0 0.0
      %1031 = vmatpush1.msra.mxu0 0.0
      %1032 = vmatprep.subr.mxu0 0.0
      %1033 = vmatpush1.msra.mxu0 0.0
      %1034 = vmatprep.subr.mxu0 0.0
      %1035 = vmatpush1.msra.mxu0 0.0
      %1036 = vmatprep.subr.mxu0 0.0
      %1037 = vmatpush1.msra.mxu0 0.0
      %1038 = vmatprep.subr.mxu0 0.0
      %1039 = vmatpush1.msra.mxu0 0.0
      %1040 = vmatprep.subr.mxu0 0.0
      %1041 = vmatpush1.msra.mxu0 0.0
      %1042 = vmatprep.subr.mxu0 0.0
      %1043 = vmatpush1.msra.mxu0 0.0
      %1044 = vmatprep.subr.mxu0 0.0
      %1045 = vmatpush1.msra.mxu0 0.0
      %1046 = vmatprep.subr.mxu0 0.0
      %1047 = vmatpush1.msra.mxu0 0.0
      %1048 = vmatprep.subr.mxu0 0.0
      %1049 = vmatpush1.msra.mxu0 0.0
      %1050 = vmatprep.subr.mxu0 0.0
      %1051 = vmatpush1.msra.mxu0 0.0
      %1052 = vmatprep.subr.mxu0 0.0
      %1053 = vmatpush1.msra.mxu0 0.0
      %1054 = vmatprep.subr.mxu0 0.0
      %1055 = vmatpush1.msra.mxu0 0.0
      %1056 = vmatprep.subr.mxu0 0.0
      %1057 = vmatpush1.msra.mxu0 0.0
      %1058 = vmatprep.subr.mxu0 0.0
      %1059 = vmatpush1.msra.mxu0 0.0
      %1060 = vmatprep.subr.mxu0 0.0
      %1061 = vmatpush1.msra.mxu0 0.0
      %1062 = vmatprep.mubr.f32.mxu0 0.0
      %v1063 = vand.u32 %v615, 4294901760
      %v1064 = vsub.f32 %v615, %v1063
      %v1065 = vand.u32 %v1064, 4294901760
      %1066 = vmatmul.mubr.f32.gmra.mrb[0].mxu0 %v1065
      %v1067 = vpop.f32.mrb[0].mxu0
      %v1068 = vadd.f32 %v979, %v1067
      %v1069 = vpop.f32.mrb[0].mxu0
      %1070 = vdwg.mxu0
      %1071 = vmatprep.subr.mxu0 0.0
      %v1072 = vand.u32 %v620, 4294901760
      %v1073 = vsub.f32 %v620, %v1072
      %v1074 = vand.u32 %v1073, 4294901760
      %1075 = vmatpush1.msra.mxu0 %v1074
      %1076 = vmatprep.subr.mxu0 0.0
      %v1077 = vand.u32 %v621, 4294901760
      %v1078 = vsub.f32 %v621, %v1077
      %v1079 = vand.u32 %v1078, 4294901760
      %1080 = vmatpush1.msra.mxu0 %v1079
      %1081 = vmatprep.subr.mxu0 0.0
      %v1082 = vand.u32 %v622, 4294901760
      %v1083 = vsub.f32 %v622, %v1082
      %v1084 = vand.u32 %v1083, 4294901760
      %1085 = vmatpush1.msra.mxu0 %v1084
      %1086 = vmatprep.subr.mxu0 0.0
      %v1087 = vand.u32 %v623, 4294901760
      %v1088 = vsub.f32 %v623, %v1087
      %v1089 = vand.u32 %v1088, 4294901760
      %1090 = vmatpush1.msra.mxu0 %v1089
      %1091 = vmatprep.subr.mxu0 0.0
      %v1092 = vand.u32 %v624, 4294901760
      %v1093 = vsub.f32 %v624, %v1092
      %v1094 = vand.u32 %v1093, 4294901760
      %1095 = vmatpush1.msra.mxu0 %v1094
      %1096 = vmatprep.subr.mxu0 0.0
      %v1097 = vand.u32 %v625, 4294901760
      %v1098 = vsub.f32 %v625, %v1097
      %v1099 = vand.u32 %v1098, 4294901760
      %1100 = vmatpush1.msra.mxu0 %v1099
      %1101 = vmatprep.subr.mxu0 0.0
      %v1102 = vand.u32 %v626, 4294901760
      %v1103 = vsub.f32 %v626, %v1102
      %v1104 = vand.u32 %v1103, 4294901760
      %1105 = vmatpush1.msra.mxu0 %v1104
      %1106 = vmatprep.subr.mxu0 0.0
      %v1107 = vand.u32 %v627, 4294901760
      %v1108 = vsub.f32 %v627, %v1107
      %v1109 = vand.u32 %v1108, 4294901760
      %1110 = vmatpush1.msra.mxu0 %v1109
      %1111 = vmatprep.subr.mxu0 0.0
      %v1112 = vand.u32 %v628, 4294901760
      %v1113 = vsub.f32 %v628, %v1112
      %v1114 = vand.u32 %v1113, 4294901760
      %1115 = vmatpush1.msra.mxu0 %v1114
      %1116 = vmatprep.subr.mxu0 0.0
      %v1117 = vand.u32 %v629, 4294901760
      %v1118 = vsub.f32 %v629, %v1117
      %v1119 = vand.u32 %v1118, 4294901760
      %1120 = vmatpush1.msra.mxu0 %v1119
      %1121 = vmatprep.subr.mxu0 0.0
      %v1122 = vand.u32 %v630, 4294901760
      %v1123 = vsub.f32 %v630, %v1122
      %v1124 = vand.u32 %v1123, 4294901760
      %1125 = vmatpush1.msra.mxu0 %v1124
      %1126 = vmatprep.subr.mxu0 0.0
      %v1127 = vand.u32 %v631, 4294901760
      %v1128 = vsub.f32 %v631, %v1127
      %v1129 = vand.u32 %v1128, 4294901760
      %1130 = vmatpush1.msra.mxu0 %v1129
      %1131 = vmatprep.subr.mxu0 0.0
      %v1132 = vand.u32 %v632, 4294901760
      %v1133 = vsub.f32 %v632, %v1132
      %v1134 = vand.u32 %v1133, 4294901760
      %1135 = vmatpush1.msra.mxu0 %v1134
      %1136 = vmatprep.subr.mxu0 0.0
      %v1137 = vand.u32 %v633, 4294901760
      %v1138 = vsub.f32 %v633, %v1137
      %v1139 = vand.u32 %v1138, 4294901760
      %1140 = vmatpush1.msra.mxu0 %v1139
      %1141 = vmatprep.subr.mxu0 0.0
      %v1142 = vand.u32 %v634, 4294901760
      %v1143 = vsub.f32 %v634, %v1142
      %v1144 = vand.u32 %v1143, 4294901760
      %1145 = vmatpush1.msra.mxu0 %v1144
      %1146 = vmatprep.subr.mxu0 0.0
      %v1147 = vand.u32 %v635, 4294901760
      %v1148 = vsub.f32 %v635, %v1147
      %v1149 = vand.u32 %v1148, 4294901760
      %1150 = vmatpush1.msra.mxu0 %v1149
      %1151 = vmatprep.subr.mxu0 0.0
      %1152 = vmatpush1.msra.mxu0 0.0
      %1153 = vmatprep.subr.mxu0 0.0
      %1154 = vmatpush1.msra.mxu0 0.0
      %1155 = vmatprep.subr.mxu0 0.0
      %1156 = vmatpush1.msra.mxu0 0.0
      %1157 = vmatprep.subr.mxu0 0.0
      %1158 = vmatpush1.msra.mxu0 0.0
      %1159 = vmatprep.subr.mxu0 0.0
      %1160 = vmatpush1.msra.mxu0 0.0
      %1161 = vmatprep.subr.mxu0 0.0
      %1162 = vmatpush1.msra.mxu0 0.0
      %1163 = vmatprep.subr.mxu0 0.0
      %1164 = vmatpush1.msra.mxu0 0.0
      %1165 = vmatprep.subr.mxu0 0.0
      %1166 = vmatpush1.msra.mxu0 0.0
      %1167 = vmatprep.subr.mxu0 0.0
      %1168 = vmatpush1.msra.mxu0 0.0
      %1169 = vmatprep.subr.mxu0 0.0
      %1170 = vmatpush1.msra.mxu0 0.0
      %1171 = vmatprep.subr.mxu0 0.0
      %1172 = vmatpush1.msra.mxu0 0.0
      %1173 = vmatprep.subr.mxu0 0.0
      %1174 = vmatpush1.msra.mxu0 0.0
      %1175 = vmatprep.subr.mxu0 0.0
      %1176 = vmatpush1.msra.mxu0 0.0
      %1177 = vmatprep.subr.mxu0 0.0
      %1178 = vmatpush1.msra.mxu0 0.0
      %1179 = vmatprep.subr.mxu0 0.0
      %1180 = vmatpush1.msra.mxu0 0.0
      %1181 = vmatprep.subr.mxu0 0.0
      %1182 = vmatpush1.msra.mxu0 0.0
      %1183 = vmatprep.mubr.f32.mxu0 0.0
      %v1184 = vand.u32 %v615, 4294901760
      %1185 = vmatmul.mubr.f32.gmra.mrb[0].mxu0 %v1184
      %v1186 = vpop.f32.mrb[0].mxu0
      %v1187 = vadd.f32 %v1068, %v1186
      %v1188 = vpop.f32.mrb[0].mxu0
      %1189 = vdwg.mxu0
      %1190 = vmatprep.subr.mxu0 0.0
      %v1191 = vand.u32 %v620, 4294901760
      %1192 = vmatpush1.msra.mxu0 %v1191
      %1193 = vmatprep.subr.mxu0 0.0
      %v1194 = vand.u32 %v621, 4294901760
      %1195 = vmatpush1.msra.mxu0 %v1194
      %1196 = vmatprep.subr.mxu0 0.0
      %v1197 = vand.u32 %v622, 4294901760
      %1198 = vmatpush1.msra.mxu0 %v1197
      %1199 = vmatprep.subr.mxu0 0.0
      %v1200 = vand.u32 %v623, 4294901760
      %1201 = vmatpush1.msra.mxu0 %v1200
      %1202 = vmatprep.subr.mxu0 0.0
      %v1203 = vand.u32 %v624, 4294901760
      %1204 = vmatpush1.msra.mxu0 %v1203
      %1205 = vmatprep.subr.mxu0 0.0
      %v1206 = vand.u32 %v625, 4294901760
      %1207 = vmatpush1.msra.mxu0 %v1206
      %1208 = vmatprep.subr.mxu0 0.0
      %v1209 = vand.u32 %v626, 4294901760
      %1210 = vmatpush1.msra.mxu0 %v1209
      %1211 = vmatprep.subr.mxu0 0.0
      %v1212 = vand.u32 %v627, 4294901760
      %1213 = vmatpush1.msra.mxu0 %v1212
      %1214 = vmatprep.subr.mxu0 0.0
      %v1215 = vand.u32 %v628, 4294901760
      %1216 = vmatpush1.msra.mxu0 %v1215
      %1217 = vmatprep.subr.mxu0 0.0
      %v1218 = vand.u32 %v629, 4294901760
      %1219 = vmatpush1.msra.mxu0 %v1218
      %1220 = vmatprep.subr.mxu0 0.0
      %v1221 = vand.u32 %v630, 4294901760
      %1222 = vmatpush1.msra.mxu0 %v1221
      %1223 = vmatprep.subr.mxu0 0.0
      %v1224 = vand.u32 %v631, 4294901760
      %1225 = vmatpush1.msra.mxu0 %v1224
      %1226 = vmatprep.subr.mxu0 0.0
      %v1227 = vand.u32 %v632, 4294901760
      %1228 = vmatpush1.msra.mxu0 %v1227
      %1229 = vmatprep.subr.mxu0 0.0
      %v1230 = vand.u32 %v633, 4294901760
      %1231 = vmatpush1.msra.mxu0 %v1230
      %1232 = vmatprep.subr.mxu0 0.0
      %v1233 = vand.u32 %v634, 4294901760
      %1234 = vmatpush1.msra.mxu0 %v1233
      %1235 = vmatprep.subr.mxu0 0.0
      %v1236 = vand.u32 %v635, 4294901760
      %1237 = vmatpush1.msra.mxu0 %v1236
      %1238 = vmatprep.subr.mxu0 0.0
      %1239 = vmatpush1.msra.mxu0 0.0
      %1240 = vmatprep.subr.mxu0 0.0
      %1241 = vmatpush1.msra.mxu0 0.0
      %1242 = vmatprep.subr.mxu0 0.0
      %1243 = vmatpush1.msra.mxu0 0.0
      %1244 = vmatprep.subr.mxu0 0.0
      %1245 = vmatpush1.msra.mxu0 0.0
      %1246 = vmatprep.subr.mxu0 0.0
      %1247 = vmatpush1.msra.mxu0 0.0
      %1248 = vmatprep.subr.mxu0 0.0
      %1249 = vmatpush1.msra.mxu0 0.0
      %1250 = vmatprep.subr.mxu0 0.0
      %1251 = vmatpush1.msra.mxu0 0.0
      %1252 = vmatprep.subr.mxu0 0.0
      %1253 = vmatpush1.msra.mxu0 0.0
      %1254 = vmatprep.subr.mxu0 0.0
      %1255 = vmatpush1.msra.mxu0 0.0
      %1256 = vmatprep.subr.mxu0 0.0
      %1257 = vmatpush1.msra.mxu0 0.0
      %1258 = vmatprep.subr.mxu0 0.0
      %1259 = vmatpush1.msra.mxu0 0.0
      %1260 = vmatprep.subr.mxu0 0.0
      %1261 = vmatpush1.msra.mxu0 0.0
      %1262 = vmatprep.subr.mxu0 0.0
      %1263 = vmatpush1.msra.mxu0 0.0
      %1264 = vmatprep.subr.mxu0 0.0
      %1265 = vmatpush1.msra.mxu0 0.0
      %1266 = vmatprep.subr.mxu0 0.0
      %1267 = vmatpush1.msra.mxu0 0.0
      %1268 = vmatprep.subr.mxu0 0.0
      %1269 = vmatpush1.msra.mxu0 0.0
      %1270 = vmatprep.mubr.f32.mxu0 0.0
      %v1271 = vand.u32 %v615, 4294901760
      %1272 = vmatmul.mubr.f32.gmra.mrb[0].mxu0 %v1271
      %v1273 = vpop.f32.mrb[0].mxu0
      %v1274 = vadd.f32 %v1187, %v1273
      %v1275 = vpop.f32.mrb[0].mxu0
      %1276 = vdwg.mxu0
      %v1277 = vstv %s619
      %v1278 = vmul.f32 %v1277, %v1274
      %v1279 = vadd.f32 %v618, %v1278
      %v1280 = vlaneseq
      %v1281 = vand.u32 %v1280, 127
      %v1282 = vand.u32 %v1281, 3
      %v1283 = vld [vmem:[%s5] sm:$0xff]
      %1285 = vset.pattern.permute.xlu0 4
      %1286 = vperm.xlu0 %1285, %v1283
      %v1287 = vpop.permute.xlu0 %1286
      %v1289 = vmul.f32 %v1279, %v1287
      %1290 = vrot.lane.b32.xlu0 %v1279, 5
      %v1291 = vpop.permute.xlu0 %1290
      %vm1292 = vcmp.ge.s32.totalorder %v1281, 4
      %vm1293 = vcmp.ne.s32.totalorder %v1282, 0
      %vm1294 = vmand %vm1292, %vm1293
      %v1295 = vsel %vm1294, 1, 0
      %v1296 = vcvt.s32.f32 %v1295
      %v1297 = vmul.f32 %v1291, %v1296
      %1298 = vset.pattern.permute.xlu0 0
      %1299 = vperm.xlu0 %1298, %v1283
      %v1300 = vpop.permute.xlu0 %1299
      %v1302 = vmul.f32 %v1297, %v1300
      %v1303 = vadd.f32 %v1289, %v1302
      %1304 = vrot.lane.b32.xlu0 %v1279, 4
      %v1305 = vpop.permute.xlu0 %1304
      %v1306 = vsel %vm1292, 1, 0
      %v1307 = vcvt.s32.f32 %v1306
      %v1308 = vmul.f32 %v1305, %v1307
      %1309 = vset.pattern.permute.xlu0 1
      %1310 = vperm.xlu0 %1309, %v1283
      %v1311 = vpop.permute.xlu0 %1310
      %v1313 = vmul.f32 %v1308, %v1311
      %v1314 = vadd.f32 %v1303, %v1313
      %1315 = vrot.lane.b32.xlu0 %v1279, 3
      %v1316 = vpop.permute.xlu0 %1315
      %vm1317 = vcmp.ne.s32.totalorder %v1282, 3
      %vm1318 = vmand %vm1292, %vm1317
      %v1319 = vsel %vm1318, 1, 0
      %v1320 = vcvt.s32.f32 %v1319
      %v1321 = vmul.f32 %v1316, %v1320
      %1322 = vset.pattern.permute.xlu0 2
      %1323 = vperm.xlu0 %1322, %v1283
      %v1324 = vpop.permute.xlu0 %1323
      %v1326 = vmul.f32 %v1321, %v1324
      %v1327 = vadd.f32 %v1314, %v1326
      %1328 = vrot.lane.b32.xlu0 %v1279, 1
      %v1329 = vpop.permute.xlu0 %1328
      %v1330 = vsel %vm1293, 1, 0
      %v1331 = vcvt.s32.f32 %v1330
      %v1332 = vmul.f32 %v1329, %v1331
      %1333 = vset.pattern.permute.xlu0 3
      %1334 = vperm.xlu0 %1333, %v1283
      %v1335 = vpop.permute.xlu0 %1334
      %v1337 = vmul.f32 %v1332, %v1335
      %v1338 = vadd.f32 %v1327, %v1337
      %1339 = vrot.lane.b32.xlu0 %v1279, 127
      %v1340 = vpop.permute.xlu0 %1339
      %v1341 = vsel %vm1317, 1, 0
      %v1342 = vcvt.s32.f32 %v1341
      %v1343 = vmul.f32 %v1340, %v1342
      %1344 = vset.pattern.permute.xlu0 5
      %1345 = vperm.xlu0 %1344, %v1283
      %v1346 = vpop.permute.xlu0 %1345
      %v1348 = vmul.f32 %v1343, %v1346
      %v1349 = vadd.f32 %v1338, %v1348
      %1350 = vrot.lane.b32.xlu0 %v1279, 125
      %v1351 = vpop.permute.xlu0 %1350
      %vm1352 = vcmp.lt.s32.totalorder %v1281, 12
      %vm1353 = vmand %vm1352, %vm1293
      %v1354 = vsel %vm1353, 1, 0
      %v1355 = vcvt.s32.f32 %v1354
      %v1356 = vmul.f32 %v1351, %v1355
      %1357 = vset.pattern.permute.xlu0 6
      %1358 = vperm.xlu0 %1357, %v1283
      %v1359 = vpop.permute.xlu0 %1358
      %v1361 = vmul.f32 %v1356, %v1359
      %v1362 = vadd.f32 %v1349, %v1361
      %1363 = vrot.lane.b32.xlu0 %v1279, 124
      %v1364 = vpop.permute.xlu0 %1363
      %v1365 = vsel %vm1352, 1, 0
      %v1366 = vcvt.s32.f32 %v1365
      %v1367 = vmul.f32 %v1364, %v1366
      %1368 = vset.pattern.permute.xlu0 7
      %1369 = vperm.xlu0 %1368, %v1283
      %v1370 = vpop.permute.xlu0 %1369
      %v1372 = vmul.f32 %v1367, %v1370
      %v1373 = vadd.f32 %v1362, %v1372
      %1374 = vrot.lane.b32.xlu0 %v1279, 123
      %v1375 = vpop.permute.xlu0 %1374
      %vm1376 = vmand %vm1352, %vm1317
      %v1377 = vsel %vm1376, 1, 0
      %v1378 = vcvt.s32.f32 %v1377
      %v1379 = vmul.f32 %v1375, %v1378
      %1380 = vset.pattern.permute.xlu0 8
      %1381 = vperm.xlu0 %1380, %v1283
      %v1382 = vpop.permute.xlu0 %1381
      %v1384 = vmul.f32 %v1379, %v1382
      %v1385 = vadd.f32 %v1373, %v1384
      %v1386 = vld [vmem:[%s6] sm:$0xff]
      %v1387 = vld [vmem:[%s7] sm:$0xff]
      %1389 = vset.pattern.permute.xlu0 0
      %1390 = vperm.xlu0 %1389, %v1387
      %v1391 = vpop.permute.xlu0 %1390
      %vm1393 = vcmask 64512
      %v1395 = vsel %vm1393, %v1386, 0
      %1397 = vmatprep.subr.mxu0 0.0
      %v1398 = vand.u32 %v1385, 4294901760
      %1399 = vmatpush1.msra.mxu0 %v1398
      %1400 = vmatprep.subr.mxu0 0.0
      %1401 = vmatpush1.msra.mxu0 0.0
      %1402 = vmatprep.subr.mxu0 0.0
      %1403 = vmatpush1.msra.mxu0 0.0
      %1404 = vmatprep.subr.mxu0 0.0
      %1405 = vmatpush1.msra.mxu0 0.0
      %1406 = vmatprep.subr.mxu0 0.0
      %1407 = vmatpush1.msra.mxu0 0.0
      %1408 = vmatprep.subr.mxu0 0.0
      %1409 = vmatpush1.msra.mxu0 0.0
      %1410 = vmatprep.subr.mxu0 0.0
      %1411 = vmatpush1.msra.mxu0 0.0
      %1412 = vmatprep.subr.mxu0 0.0
      %1413 = vmatpush1.msra.mxu0 0.0
      %1414 = vmatprep.subr.mxu0 0.0
      %1415 = vmatpush1.msra.mxu0 0.0
      %1416 = vmatprep.subr.mxu0 0.0
      %1417 = vmatpush1.msra.mxu0 0.0
      %1418 = vmatprep.subr.mxu0 0.0
      %1419 = vmatpush1.msra.mxu0 0.0
      %1420 = vmatprep.subr.mxu0 0.0
      %1421 = vmatpush1.msra.mxu0 0.0
      %1422 = vmatprep.subr.mxu0 0.0
      %1423 = vmatpush1.msra.mxu0 0.0
      %1424 = vmatprep.subr.mxu0 0.0
      %1425 = vmatpush1.msra.mxu0 0.0
      %1426 = vmatprep.subr.mxu0 0.0
      %1427 = vmatpush1.msra.mxu0 0.0
      %1428 = vmatprep.subr.mxu0 0.0
      %1429 = vmatpush1.msra.mxu0 0.0
      %1430 = vmatprep.subr.mxu0 0.0
      %1431 = vmatpush1.msra.mxu0 0.0
      %1432 = vmatprep.subr.mxu0 0.0
      %1433 = vmatpush1.msra.mxu0 0.0
      %1434 = vmatprep.subr.mxu0 0.0
      %1435 = vmatpush1.msra.mxu0 0.0
      %1436 = vmatprep.subr.mxu0 0.0
      %1437 = vmatpush1.msra.mxu0 0.0
      %1438 = vmatprep.subr.mxu0 0.0
      %1439 = vmatpush1.msra.mxu0 0.0
      %1440 = vmatprep.subr.mxu0 0.0
      %1441 = vmatpush1.msra.mxu0 0.0
      %1442 = vmatprep.subr.mxu0 0.0
      %1443 = vmatpush1.msra.mxu0 0.0
      %1444 = vmatprep.subr.mxu0 0.0
      %1445 = vmatpush1.msra.mxu0 0.0
      %1446 = vmatprep.subr.mxu0 0.0
      %1447 = vmatpush1.msra.mxu0 0.0
      %1448 = vmatprep.subr.mxu0 0.0
      %1449 = vmatpush1.msra.mxu0 0.0
      %1450 = vmatprep.subr.mxu0 0.0
      %1451 = vmatpush1.msra.mxu0 0.0
      %1452 = vmatprep.subr.mxu0 0.0
      %1453 = vmatpush1.msra.mxu0 0.0
      %1454 = vmatprep.subr.mxu0 0.0
      %1455 = vmatpush1.msra.mxu0 0.0
      %1456 = vmatprep.subr.mxu0 0.0
      %1457 = vmatpush1.msra.mxu0 0.0
      %1458 = vmatprep.subr.mxu0 0.0
      %1459 = vmatpush1.msra.mxu0 0.0
      %1460 = vmatprep.subr.mxu0 0.0
      %1461 = vmatpush1.msra.mxu0 0.0
      %1462 = vmatprep.mubr.f32.mxu0 0.0
      %v1463 = vand.u32 %v1395, 4294901760
      %v1464 = vsub.f32 %v1395, %v1463
      %v1465 = vand.u32 %v1464, 4294901760
      %v1466 = vsub.f32 %v1464, %v1465
      %v1467 = vand.u32 %v1466, 4294901760
      %1468 = vmatmul.mubr.f32.gmra.mrb[0].mxu0 %v1467
      %v1469 = vpop.f32.mrb[0].mxu0
      %v1470 = vadd.f32 %v1391, %v1469
      %v1471 = vpop.f32.mrb[0].mxu0
      %1472 = vdwg.mxu0
      %1473 = vmatprep.subr.mxu0 0.0
      %v1474 = vand.u32 %v1385, 4294901760
      %v1475 = vsub.f32 %v1385, %v1474
      %v1476 = vand.u32 %v1475, 4294901760
      %v1477 = vsub.f32 %v1475, %v1476
      %v1478 = vand.u32 %v1477, 4294901760
      %1479 = vmatpush1.msra.mxu0 %v1478
      %1480 = vmatprep.subr.mxu0 0.0
      %1481 = vmatpush1.msra.mxu0 0.0
      %1482 = vmatprep.subr.mxu0 0.0
      %1483 = vmatpush1.msra.mxu0 0.0
      %1484 = vmatprep.subr.mxu0 0.0
      %1485 = vmatpush1.msra.mxu0 0.0
      %1486 = vmatprep.subr.mxu0 0.0
      %1487 = vmatpush1.msra.mxu0 0.0
      %1488 = vmatprep.subr.mxu0 0.0
      %1489 = vmatpush1.msra.mxu0 0.0
      %1490 = vmatprep.subr.mxu0 0.0
      %1491 = vmatpush1.msra.mxu0 0.0
      %1492 = vmatprep.subr.mxu0 0.0
      %1493 = vmatpush1.msra.mxu0 0.0
      %1494 = vmatprep.subr.mxu0 0.0
      %1495 = vmatpush1.msra.mxu0 0.0
      %1496 = vmatprep.subr.mxu0 0.0
      %1497 = vmatpush1.msra.mxu0 0.0
      %1498 = vmatprep.subr.mxu0 0.0
      %1499 = vmatpush1.msra.mxu0 0.0
      %1500 = vmatprep.subr.mxu0 0.0
      %1501 = vmatpush1.msra.mxu0 0.0
      %1502 = vmatprep.subr.mxu0 0.0
      %1503 = vmatpush1.msra.mxu0 0.0
      %1504 = vmatprep.subr.mxu0 0.0
      %1505 = vmatpush1.msra.mxu0 0.0
      %1506 = vmatprep.subr.mxu0 0.0
      %1507 = vmatpush1.msra.mxu0 0.0
      %1508 = vmatprep.subr.mxu0 0.0
      %1509 = vmatpush1.msra.mxu0 0.0
      %1510 = vmatprep.subr.mxu0 0.0
      %1511 = vmatpush1.msra.mxu0 0.0
      %1512 = vmatprep.subr.mxu0 0.0
      %1513 = vmatpush1.msra.mxu0 0.0
      %1514 = vmatprep.subr.mxu0 0.0
      %1515 = vmatpush1.msra.mxu0 0.0
      %1516 = vmatprep.subr.mxu0 0.0
      %1517 = vmatpush1.msra.mxu0 0.0
      %1518 = vmatprep.subr.mxu0 0.0
      %1519 = vmatpush1.msra.mxu0 0.0
      %1520 = vmatprep.subr.mxu0 0.0
      %1521 = vmatpush1.msra.mxu0 0.0
      %1522 = vmatprep.subr.mxu0 0.0
      %1523 = vmatpush1.msra.mxu0 0.0
      %1524 = vmatprep.subr.mxu0 0.0
      %1525 = vmatpush1.msra.mxu0 0.0
      %1526 = vmatprep.subr.mxu0 0.0
      %1527 = vmatpush1.msra.mxu0 0.0
      %1528 = vmatprep.subr.mxu0 0.0
      %1529 = vmatpush1.msra.mxu0 0.0
      %1530 = vmatprep.subr.mxu0 0.0
      %1531 = vmatpush1.msra.mxu0 0.0
      %1532 = vmatprep.subr.mxu0 0.0
      %1533 = vmatpush1.msra.mxu0 0.0
      %1534 = vmatprep.subr.mxu0 0.0
      %1535 = vmatpush1.msra.mxu0 0.0
      %1536 = vmatprep.subr.mxu0 0.0
      %1537 = vmatpush1.msra.mxu0 0.0
      %1538 = vmatprep.subr.mxu0 0.0
      %1539 = vmatpush1.msra.mxu0 0.0
      %1540 = vmatprep.subr.mxu0 0.0
      %1541 = vmatpush1.msra.mxu0 0.0
      %1542 = vmatprep.mubr.f32.mxu0 0.0
      %v1543 = vand.u32 %v1395, 4294901760
      %1544 = vmatmul.mubr.f32.gmra.mrb[0].mxu0 %v1543
      %v1545 = vpop.f32.mrb[0].mxu0
      %v1546 = vadd.f32 %v1470, %v1545
      %v1547 = vpop.f32.mrb[0].mxu0
      %1548 = vdwg.mxu0
      %1549 = vmatprep.subr.mxu0 0.0
      %v1550 = vand.u32 %v1385, 4294901760
      %v1551 = vsub.f32 %v1385, %v1550
      %1552 = vmatpush1.msra.mxu0 %v1551
      %1553 = vmatprep.subr.mxu0 0.0
      %1554 = vmatpush1.msra.mxu0 0.0
      %1555 = vmatprep.subr.mxu0 0.0
      %1556 = vmatpush1.msra.mxu0 0.0
      %1557 = vmatprep.subr.mxu0 0.0
      %1558 = vmatpush1.msra.mxu0 0.0
      %1559 = vmatprep.subr.mxu0 0.0
      %1560 = vmatpush1.msra.mxu0 0.0
      %1561 = vmatprep.subr.mxu0 0.0
      %1562 = vmatpush1.msra.mxu0 0.0
      %1563 = vmatprep.subr.mxu0 0.0
      %1564 = vmatpush1.msra.mxu0 0.0
      %1565 = vmatprep.subr.mxu0 0.0
      %1566 = vmatpush1.msra.mxu0 0.0
      %1567 = vmatprep.subr.mxu0 0.0
      %1568 = vmatpush1.msra.mxu0 0.0
      %1569 = vmatprep.subr.mxu0 0.0
      %1570 = vmatpush1.msra.mxu0 0.0
      %1571 = vmatprep.subr.mxu0 0.0
      %1572 = vmatpush1.msra.mxu0 0.0
      %1573 = vmatprep.subr.mxu0 0.0
      %1574 = vmatpush1.msra.mxu0 0.0
      %1575 = vmatprep.subr.mxu0 0.0
      %1576 = vmatpush1.msra.mxu0 0.0
      %1577 = vmatprep.subr.mxu0 0.0
      %1578 = vmatpush1.msra.mxu0 0.0
      %1579 = vmatprep.subr.mxu0 0.0
      %1580 = vmatpush1.msra.mxu0 0.0
      %1581 = vmatprep.subr.mxu0 0.0
      %1582 = vmatpush1.msra.mxu0 0.0
      %1583 = vmatprep.subr.mxu0 0.0
      %1584 = vmatpush1.msra.mxu0 0.0
      %1585 = vmatprep.subr.mxu0 0.0
      %1586 = vmatpush1.msra.mxu0 0.0
      %1587 = vmatprep.subr.mxu0 0.0
      %1588 = vmatpush1.msra.mxu0 0.0
      %1589 = vmatprep.subr.mxu0 0.0
      %1590 = vmatpush1.msra.mxu0 0.0
      %1591 = vmatprep.subr.mxu0 0.0
      %1592 = vmatpush1.msra.mxu0 0.0
      %1593 = vmatprep.subr.mxu0 0.0
      %1594 = vmatpush1.msra.mxu0 0.0
      %1595 = vmatprep.subr.mxu0 0.0
      %1596 = vmatpush1.msra.mxu0 0.0
      %1597 = vmatprep.subr.mxu0 0.0
      %1598 = vmatpush1.msra.mxu0 0.0
      %1599 = vmatprep.subr.mxu0 0.0
      %1600 = vmatpush1.msra.mxu0 0.0
      %1601 = vmatprep.subr.mxu0 0.0
      %1602 = vmatpush1.msra.mxu0 0.0
      %1603 = vmatprep.subr.mxu0 0.0
      %1604 = vmatpush1.msra.mxu0 0.0
      %1605 = vmatprep.subr.mxu0 0.0
      %1606 = vmatpush1.msra.mxu0 0.0
      %1607 = vmatprep.subr.mxu0 0.0
      %1608 = vmatpush1.msra.mxu0 0.0
      %1609 = vmatprep.subr.mxu0 0.0
      %1610 = vmatpush1.msra.mxu0 0.0
      %1611 = vmatprep.subr.mxu0 0.0
      %1612 = vmatpush1.msra.mxu0 0.0
      %1613 = vmatprep.subr.mxu0 0.0
      %1614 = vmatpush1.msra.mxu0 0.0
      %1615 = vmatprep.mubr.f32.mxu0 0.0
      %v1616 = vand.u32 %v1395, 4294901760
      %v1617 = vsub.f32 %v1395, %v1616
      %1618 = vmatmul.mubr.f32.gmra.mrb[0].mxu0 %v1617
      %v1619 = vpop.f32.mrb[0].mxu0
      %v1620 = vadd.f32 %v1546, %v1619
      %v1621 = vpop.f32.mrb[0].mxu0
      %1622 = vdwg.mxu0
      %1623 = vmatprep.subr.mxu0 0.0
      %v1624 = vand.u32 %v1385, 4294901760
      %1625 = vmatpush1.msra.mxu0 %v1624
      %1626 = vmatprep.subr.mxu0 0.0
      %1627 = vmatpush1.msra.mxu0 0.0
      %1628 = vmatprep.subr.mxu0 0.0
      %1629 = vmatpush1.msra.mxu0 0.0
      %1630 = vmatprep.subr.mxu0 0.0
      %1631 = vmatpush1.msra.mxu0 0.0
      %1632 = vmatprep.subr.mxu0 0.0
      %1633 = vmatpush1.msra.mxu0 0.0
      %1634 = vmatprep.subr.mxu0 0.0
      %1635 = vmatpush1.msra.mxu0 0.0
      %1636 = vmatprep.subr.mxu0 0.0
      %1637 = vmatpush1.msra.mxu0 0.0
      %1638 = vmatprep.subr.mxu0 0.0
      %1639 = vmatpush1.msra.mxu0 0.0
      %1640 = vmatprep.subr.mxu0 0.0
      %1641 = vmatpush1.msra.mxu0 0.0
      %1642 = vmatprep.subr.mxu0 0.0
      %1643 = vmatpush1.msra.mxu0 0.0
      %1644 = vmatprep.subr.mxu0 0.0
      %1645 = vmatpush1.msra.mxu0 0.0
      %1646 = vmatprep.subr.mxu0 0.0
      %1647 = vmatpush1.msra.mxu0 0.0
      %1648 = vmatprep.subr.mxu0 0.0
      %1649 = vmatpush1.msra.mxu0 0.0
      %1650 = vmatprep.subr.mxu0 0.0
      %1651 = vmatpush1.msra.mxu0 0.0
      %1652 = vmatprep.subr.mxu0 0.0
      %1653 = vmatpush1.msra.mxu0 0.0
      %1654 = vmatprep.subr.mxu0 0.0
      %1655 = vmatpush1.msra.mxu0 0.0
      %1656 = vmatprep.subr.mxu0 0.0
      %1657 = vmatpush1.msra.mxu0 0.0
      %1658 = vmatprep.subr.mxu0 0.0
      %1659 = vmatpush1.msra.mxu0 0.0
      %1660 = vmatprep.subr.mxu0 0.0
      %1661 = vmatpush1.msra.mxu0 0.0
      %1662 = vmatprep.subr.mxu0 0.0
      %1663 = vmatpush1.msra.mxu0 0.0
      %1664 = vmatprep.subr.mxu0 0.0
      %1665 = vmatpush1.msra.mxu0 0.0
      %1666 = vmatprep.subr.mxu0 0.0
      %1667 = vmatpush1.msra.mxu0 0.0
      %1668 = vmatprep.subr.mxu0 0.0
      %1669 = vmatpush1.msra.mxu0 0.0
      %1670 = vmatprep.subr.mxu0 0.0
      %1671 = vmatpush1.msra.mxu0 0.0
      %1672 = vmatprep.subr.mxu0 0.0
      %1673 = vmatpush1.msra.mxu0 0.0
      %1674 = vmatprep.subr.mxu0 0.0
      %1675 = vmatpush1.msra.mxu0 0.0
      %1676 = vmatprep.subr.mxu0 0.0
      %1677 = vmatpush1.msra.mxu0 0.0
      %1678 = vmatprep.subr.mxu0 0.0
      %1679 = vmatpush1.msra.mxu0 0.0
      %1680 = vmatprep.subr.mxu0 0.0
      %1681 = vmatpush1.msra.mxu0 0.0
      %1682 = vmatprep.subr.mxu0 0.0
      %1683 = vmatpush1.msra.mxu0 0.0
      %1684 = vmatprep.subr.mxu0 0.0
      %1685 = vmatpush1.msra.mxu0 0.0
      %1686 = vmatprep.subr.mxu0 0.0
      %1687 = vmatpush1.msra.mxu0 0.0
      %1688 = vmatprep.mubr.f32.mxu0 0.0
      %v1689 = vand.u32 %v1395, 4294901760
      %v1690 = vsub.f32 %v1395, %v1689
      %v1691 = vand.u32 %v1690, 4294901760
      %1692 = vmatmul.mubr.f32.gmra.mrb[0].mxu0 %v1691
      %v1693 = vpop.f32.mrb[0].mxu0
      %v1694 = vadd.f32 %v1620, %v1693
      %v1695 = vpop.f32.mrb[0].mxu0
      %1696 = vdwg.mxu0
      %1697 = vmatprep.subr.mxu0 0.0
      %v1698 = vand.u32 %v1385, 4294901760
      %v1699 = vsub.f32 %v1385, %v1698
      %v1700 = vand.u32 %v1699, 4294901760
      %1701 = vmatpush1.msra.mxu0 %v1700
      %1702 = vmatprep.subr.mxu0 0.0
      %1703 = vmatpush1.msra.mxu0 0.0
      %1704 = vmatprep.subr.mxu0 0.0
      %1705 = vmatpush1.msra.mxu0 0.0
      %1706 = vmatprep.subr.mxu0 0.0
      %1707 = vmatpush1.msra.mxu0 0.0
      %1708 = vmatprep.subr.mxu0 0.0
      %1709 = vmatpush1.msra.mxu0 0.0
      %1710 = vmatprep.subr.mxu0 0.0
      %1711 = vmatpush1.msra.mxu0 0.0
      %1712 = vmatprep.subr.mxu0 0.0
      %1713 = vmatpush1.msra.mxu0 0.0
      %1714 = vmatprep.subr.mxu0 0.0
      %1715 = vmatpush1.msra.mxu0 0.0
      %1716 = vmatprep.subr.mxu0 0.0
      %1717 = vmatpush1.msra.mxu0 0.0
      %1718 = vmatprep.subr.mxu0 0.0
      %1719 = vmatpush1.msra.mxu0 0.0
      %1720 = vmatprep.subr.mxu0 0.0
      %1721 = vmatpush1.msra.mxu0 0.0
      %1722 = vmatprep.subr.mxu0 0.0
      %1723 = vmatpush1.msra.mxu0 0.0
      %1724 = vmatprep.subr.mxu0 0.0
      %1725 = vmatpush1.msra.mxu0 0.0
      %1726 = vmatprep.subr.mxu0 0.0
      %1727 = vmatpush1.msra.mxu0 0.0
      %1728 = vmatprep.subr.mxu0 0.0
      %1729 = vmatpush1.msra.mxu0 0.0
      %1730 = vmatprep.subr.mxu0 0.0
      %1731 = vmatpush1.msra.mxu0 0.0
      %1732 = vmatprep.subr.mxu0 0.0
      %1733 = vmatpush1.msra.mxu0 0.0
      %1734 = vmatprep.subr.mxu0 0.0
      %1735 = vmatpush1.msra.mxu0 0.0
      %1736 = vmatprep.subr.mxu0 0.0
      %1737 = vmatpush1.msra.mxu0 0.0
      %1738 = vmatprep.subr.mxu0 0.0
      %1739 = vmatpush1.msra.mxu0 0.0
      %1740 = vmatprep.subr.mxu0 0.0
      %1741 = vmatpush1.msra.mxu0 0.0
      %1742 = vmatprep.subr.mxu0 0.0
      %1743 = vmatpush1.msra.mxu0 0.0
      %1744 = vmatprep.subr.mxu0 0.0
      %1745 = vmatpush1.msra.mxu0 0.0
      %1746 = vmatprep.subr.mxu0 0.0
      %1747 = vmatpush1.msra.mxu0 0.0
      %1748 = vmatprep.subr.mxu0 0.0
      %1749 = vmatpush1.msra.mxu0 0.0
      %1750 = vmatprep.subr.mxu0 0.0
      %1751 = vmatpush1.msra.mxu0 0.0
      %1752 = vmatprep.subr.mxu0 0.0
      %1753 = vmatpush1.msra.mxu0 0.0
      %1754 = vmatprep.subr.mxu0 0.0
      %1755 = vmatpush1.msra.mxu0 0.0
      %1756 = vmatprep.subr.mxu0 0.0
      %1757 = vmatpush1.msra.mxu0 0.0
      %1758 = vmatprep.subr.mxu0 0.0
      %1759 = vmatpush1.msra.mxu0 0.0
      %1760 = vmatprep.subr.mxu0 0.0
      %1761 = vmatpush1.msra.mxu0 0.0
      %1762 = vmatprep.subr.mxu0 0.0
      %1763 = vmatpush1.msra.mxu0 0.0
      %1764 = vmatprep.mubr.f32.mxu0 0.0
      %v1765 = vand.u32 %v1395, 4294901760
      %1766 = vmatmul.mubr.f32.gmra.mrb[0].mxu0 %v1765
      %v1767 = vpop.f32.mrb[0].mxu0
      %v1768 = vadd.f32 %v1694, %v1767
      %v1769 = vpop.f32.mrb[0].mxu0
      %1770 = vdwg.mxu0
      %1771 = vmatprep.subr.mxu0 0.0
      %v1772 = vand.u32 %v1385, 4294901760
      %1773 = vmatpush1.msra.mxu0 %v1772
      %1774 = vmatprep.subr.mxu0 0.0
      %1775 = vmatpush1.msra.mxu0 0.0
      %1776 = vmatprep.subr.mxu0 0.0
      %1777 = vmatpush1.msra.mxu0 0.0
      %1778 = vmatprep.subr.mxu0 0.0
      %1779 = vmatpush1.msra.mxu0 0.0
      %1780 = vmatprep.subr.mxu0 0.0
      %1781 = vmatpush1.msra.mxu0 0.0
      %1782 = vmatprep.subr.mxu0 0.0
      %1783 = vmatpush1.msra.mxu0 0.0
      %1784 = vmatprep.subr.mxu0 0.0
      %1785 = vmatpush1.msra.mxu0 0.0
      %1786 = vmatprep.subr.mxu0 0.0
      %1787 = vmatpush1.msra.mxu0 0.0
      %1788 = vmatprep.subr.mxu0 0.0
      %1789 = vmatpush1.msra.mxu0 0.0
      %1790 = vmatprep.subr.mxu0 0.0
      %1791 = vmatpush1.msra.mxu0 0.0
      %1792 = vmatprep.subr.mxu0 0.0
      %1793 = vmatpush1.msra.mxu0 0.0
      %1794 = vmatprep.subr.mxu0 0.0
      %1795 = vmatpush1.msra.mxu0 0.0
      %1796 = vmatprep.subr.mxu0 0.0
      %1797 = vmatpush1.msra.mxu0 0.0
      %1798 = vmatprep.subr.mxu0 0.0
      %1799 = vmatpush1.msra.mxu0 0.0
      %1800 = vmatprep.subr.mxu0 0.0
      %1801 = vmatpush1.msra.mxu0 0.0
      %1802 = vmatprep.subr.mxu0 0.0
      %1803 = vmatpush1.msra.mxu0 0.0
      %1804 = vmatprep.subr.mxu0 0.0
      %1805 = vmatpush1.msra.mxu0 0.0
      %1806 = vmatprep.subr.mxu0 0.0
      %1807 = vmatpush1.msra.mxu0 0.0
      %1808 = vmatprep.subr.mxu0 0.0
      %1809 = vmatpush1.msra.mxu0 0.0
      %1810 = vmatprep.subr.mxu0 0.0
      %1811 = vmatpush1.msra.mxu0 0.0
      %1812 = vmatprep.subr.mxu0 0.0
      %1813 = vmatpush1.msra.mxu0 0.0
      %1814 = vmatprep.subr.mxu0 0.0
      %1815 = vmatpush1.msra.mxu0 0.0
      %1816 = vmatprep.subr.mxu0 0.0
      %1817 = vmatpush1.msra.mxu0 0.0
      %1818 = vmatprep.subr.mxu0 0.0
      %1819 = vmatpush1.msra.mxu0 0.0
      %1820 = vmatprep.subr.mxu0 0.0
      %1821 = vmatpush1.msra.mxu0 0.0
      %1822 = vmatprep.subr.mxu0 0.0
      %1823 = vmatpush1.msra.mxu0 0.0
      %1824 = vmatprep.subr.mxu0 0.0
      %1825 = vmatpush1.msra.mxu0 0.0
      %1826 = vmatprep.subr.mxu0 0.0
      %1827 = vmatpush1.msra.mxu0 0.0
      %1828 = vmatprep.subr.mxu0 0.0
      %1829 = vmatpush1.msra.mxu0 0.0
      %1830 = vmatprep.subr.mxu0 0.0
      %1831 = vmatpush1.msra.mxu0 0.0
      %1832 = vmatprep.subr.mxu0 0.0
      %1833 = vmatpush1.msra.mxu0 0.0
      %1834 = vmatprep.subr.mxu0 0.0
      %1835 = vmatpush1.msra.mxu0 0.0
      %1836 = vmatprep.mubr.f32.mxu0 0.0
      %v1837 = vand.u32 %v1395, 4294901760
      %1838 = vmatmul.mubr.f32.gmra.mrb[0].mxu0 %v1837
      %v1839 = vpop.f32.mrb[0].mxu0
      %v1840 = vadd.f32 %v1768, %v1839
      %v1841 = vpop.f32.mrb[0].mxu0
      %1842 = vdwg.mxu0
      %v1843 = vmax.f32 %v1840, 0.0
      %s1844 = sld [smem:[#allocation3 + $0x2]]
      %v1845 = vstv %s1844
      %v1846 = vmul.f32 %v1845, %v613
      %s1847 = sld [smem:[#allocation3 + $0x3]]
      %v1848 = vld [vmem:[%s9] sm:$0xff]
      %v1849 = vld [vmem:[%s9 + $0x8] sm:$0xff]
      %v1850 = vld [vmem:[%s9 + $0x10] sm:$0xff]
      %v1851 = vld [vmem:[%s9 + $0x18] sm:$0xff]
      %v1852 = vld [vmem:[%s9 + $0x20] sm:$0xff]
      %v1853 = vld [vmem:[%s9 + $0x28] sm:$0xff]
      %v1854 = vld [vmem:[%s9 + $0x30] sm:$0xff]
      %v1855 = vld [vmem:[%s9 + $0x38] sm:$0xff]
      %v1856 = vld [vmem:[%s9 + $0x40] sm:$0xff]
      %v1857 = vld [vmem:[%s9 + $0x48] sm:$0xff]
      %v1858 = vld [vmem:[%s9 + $0x50] sm:$0xff]
      %v1859 = vld [vmem:[%s9 + $0x58] sm:$0xff]
      %v1860 = vld [vmem:[%s9 + $0x60] sm:$0xff]
      %v1861 = vld [vmem:[%s9 + $0x68] sm:$0xff]
      %v1862 = vld [vmem:[%s9 + $0x70] sm:$0xff]
      %v1863 = vld [vmem:[%s9 + $0x78] sm:$0xff]
      %1864 = vmatprep.subr.mxu0 0.0
      %v1865 = vand.u32 %v1848, 4294901760
      %1866 = vmatpush1.msra.mxu0 %v1865
      %1867 = vmatprep.subr.mxu0 0.0
      %v1868 = vand.u32 %v1849, 4294901760
      %1869 = vmatpush1.msra.mxu0 %v1868
      %1870 = vmatprep.subr.mxu0 0.0
      %v1871 = vand.u32 %v1850, 4294901760
      %1872 = vmatpush1.msra.mxu0 %v1871
      %1873 = vmatprep.subr.mxu0 0.0
      %v1874 = vand.u32 %v1851, 4294901760
      %1875 = vmatpush1.msra.mxu0 %v1874
      %1876 = vmatprep.subr.mxu0 0.0
      %v1877 = vand.u32 %v1852, 4294901760
      %1878 = vmatpush1.msra.mxu0 %v1877
      %1879 = vmatprep.subr.mxu0 0.0
      %v1880 = vand.u32 %v1853, 4294901760
      %1881 = vmatpush1.msra.mxu0 %v1880
      %1882 = vmatprep.subr.mxu0 0.0
      %v1883 = vand.u32 %v1854, 4294901760
      %1884 = vmatpush1.msra.mxu0 %v1883
      %1885 = vmatprep.subr.mxu0 0.0
      %v1886 = vand.u32 %v1855, 4294901760
      %1887 = vmatpush1.msra.mxu0 %v1886
      %1888 = vmatprep.subr.mxu0 0.0
      %v1889 = vand.u32 %v1856, 4294901760
      %1890 = vmatpush1.msra.mxu0 %v1889
      %1891 = vmatprep.subr.mxu0 0.0
      %v1892 = vand.u32 %v1857, 4294901760
      %1893 = vmatpush1.msra.mxu0 %v1892
      %1894 = vmatprep.subr.mxu0 0.0
      %v1895 = vand.u32 %v1858, 4294901760
      %1896 = vmatpush1.msra.mxu0 %v1895
      %1897 = vmatprep.subr.mxu0 0.0
      %v1898 = vand.u32 %v1859, 4294901760
      %1899 = vmatpush1.msra.mxu0 %v1898
      %1900 = vmatprep.subr.mxu0 0.0
      %v1901 = vand.u32 %v1860, 4294901760
      %1902 = vmatpush1.msra.mxu0 %v1901
      %1903 = vmatprep.subr.mxu0 0.0
      %v1904 = vand.u32 %v1861, 4294901760
      %1905 = vmatpush1.msra.mxu0 %v1904
      %1906 = vmatprep.subr.mxu0 0.0
      %v1907 = vand.u32 %v1862, 4294901760
      %1908 = vmatpush1.msra.mxu0 %v1907
      %1909 = vmatprep.subr.mxu0 0.0
      %v1910 = vand.u32 %v1863, 4294901760
      %1911 = vmatpush1.msra.mxu0 %v1910
      %1912 = vmatprep.subr.mxu0 0.0
      %1913 = vmatpush1.msra.mxu0 0.0
      %1914 = vmatprep.subr.mxu0 0.0
      %1915 = vmatpush1.msra.mxu0 0.0
      %1916 = vmatprep.subr.mxu0 0.0
      %1917 = vmatpush1.msra.mxu0 0.0
      %1918 = vmatprep.subr.mxu0 0.0
      %1919 = vmatpush1.msra.mxu0 0.0
      %1920 = vmatprep.subr.mxu0 0.0
      %1921 = vmatpush1.msra.mxu0 0.0
      %1922 = vmatprep.subr.mxu0 0.0
      %1923 = vmatpush1.msra.mxu0 0.0
      %1924 = vmatprep.subr.mxu0 0.0
      %1925 = vmatpush1.msra.mxu0 0.0
      %1926 = vmatprep.subr.mxu0 0.0
      %1927 = vmatpush1.msra.mxu0 0.0
      %1928 = vmatprep.subr.mxu0 0.0
      %1929 = vmatpush1.msra.mxu0 0.0
      %1930 = vmatprep.subr.mxu0 0.0
      %1931 = vmatpush1.msra.mxu0 0.0
      %1932 = vmatprep.subr.mxu0 0.0
      %1933 = vmatpush1.msra.mxu0 0.0
      %1934 = vmatprep.subr.mxu0 0.0
      %1935 = vmatpush1.msra.mxu0 0.0
      %1936 = vmatprep.subr.mxu0 0.0
      %1937 = vmatpush1.msra.mxu0 0.0
      %1938 = vmatprep.subr.mxu0 0.0
      %1939 = vmatpush1.msra.mxu0 0.0
      %1940 = vmatprep.subr.mxu0 0.0
      %1941 = vmatpush1.msra.mxu0 0.0
      %1942 = vmatprep.subr.mxu0 0.0
      %1943 = vmatpush1.msra.mxu0 0.0
      %1944 = vmatprep.mubr.f32.mxu0 0.0
      %v1945 = vand.u32 %v1843, 4294901760
      %v1946 = vsub.f32 %v1843, %v1945
      %v1947 = vand.u32 %v1946, 4294901760
      %v1948 = vsub.f32 %v1946, %v1947
      %v1949 = vand.u32 %v1948, 4294901760
      %1950 = vmatmul.mubr.f32.gmra.mrb[0].mxu0 %v1949
      %v1951 = vpop.f32.mrb[0].mxu0
      %v1952 = vadd.f32 0.0, %v1951
      %v1953 = vpop.f32.mrb[0].mxu0
      %1954 = vdwg.mxu0
      %1955 = vmatprep.subr.mxu0 0.0
      %v1956 = vand.u32 %v1848, 4294901760
      %v1957 = vsub.f32 %v1848, %v1956
      %v1958 = vand.u32 %v1957, 4294901760
      %v1959 = vsub.f32 %v1957, %v1958
      %v1960 = vand.u32 %v1959, 4294901760
      %1961 = vmatpush1.msra.mxu0 %v1960
      %1962 = vmatprep.subr.mxu0 0.0
      %v1963 = vand.u32 %v1849, 4294901760
      %v1964 = vsub.f32 %v1849, %v1963
      %v1965 = vand.u32 %v1964, 4294901760
      %v1966 = vsub.f32 %v1964, %v1965
      %v1967 = vand.u32 %v1966, 4294901760
      %1968 = vmatpush1.msra.mxu0 %v1967
      %1969 = vmatprep.subr.mxu0 0.0
      %v1970 = vand.u32 %v1850, 4294901760
      %v1971 = vsub.f32 %v1850, %v1970
      %v1972 = vand.u32 %v1971, 4294901760
      %v1973 = vsub.f32 %v1971, %v1972
      %v1974 = vand.u32 %v1973, 4294901760
      %1975 = vmatpush1.msra.mxu0 %v1974
      %1976 = vmatprep.subr.mxu0 0.0
      %v1977 = vand.u32 %v1851, 4294901760
      %v1978 = vsub.f32 %v1851, %v1977
      %v1979 = vand.u32 %v1978, 4294901760
      %v1980 = vsub.f32 %v1978, %v1979
      %v1981 = vand.u32 %v1980, 4294901760
      %1982 = vmatpush1.msra.mxu0 %v1981
      %1983 = vmatprep.subr.mxu0 0.0
      %v1984 = vand.u32 %v1852, 4294901760
      %v1985 = vsub.f32 %v1852, %v1984
      %v1986 = vand.u32 %v1985, 4294901760
      %v1987 = vsub.f32 %v1985, %v1986
      %v1988 = vand.u32 %v1987, 4294901760
      %1989 = vmatpush1.msra.mxu0 %v1988
      %1990 = vmatprep.subr.mxu0 0.0
      %v1991 = vand.u32 %v1853, 4294901760
      %v1992 = vsub.f32 %v1853, %v1991
      %v1993 = vand.u32 %v1992, 4294901760
      %v1994 = vsub.f32 %v1992, %v1993
      %v1995 = vand.u32 %v1994, 4294901760
      %1996 = vmatpush1.msra.mxu0 %v1995
      %1997 = vmatprep.subr.mxu0 0.0
      %v1998 = vand.u32 %v1854, 4294901760
      %v1999 = vsub.f32 %v1854, %v1998
      %v2000 = vand.u32 %v1999, 4294901760
      %v2001 = vsub.f32 %v1999, %v2000
      %v2002 = vand.u32 %v2001, 4294901760
      %2003 = vmatpush1.msra.mxu0 %v2002
      %2004 = vmatprep.subr.mxu0 0.0
      %v2005 = vand.u32 %v1855, 4294901760
      %v2006 = vsub.f32 %v1855, %v2005
      %v2007 = vand.u32 %v2006, 4294901760
      %v2008 = vsub.f32 %v2006, %v2007
      %v2009 = vand.u32 %v2008, 4294901760
      %2010 = vmatpush1.msra.mxu0 %v2009
      %2011 = vmatprep.subr.mxu0 0.0
      %v2012 = vand.u32 %v1856, 4294901760
      %v2013 = vsub.f32 %v1856, %v2012
      %v2014 = vand.u32 %v2013, 4294901760
      %v2015 = vsub.f32 %v2013, %v2014
      %v2016 = vand.u32 %v2015, 4294901760
      %2017 = vmatpush1.msra.mxu0 %v2016
      %2018 = vmatprep.subr.mxu0 0.0
      %v2019 = vand.u32 %v1857, 4294901760
      %v2020 = vsub.f32 %v1857, %v2019
      %v2021 = vand.u32 %v2020, 4294901760
      %v2022 = vsub.f32 %v2020, %v2021
      %v2023 = vand.u32 %v2022, 4294901760
      %2024 = vmatpush1.msra.mxu0 %v2023
      %2025 = vmatprep.subr.mxu0 0.0
      %v2026 = vand.u32 %v1858, 4294901760
      %v2027 = vsub.f32 %v1858, %v2026
      %v2028 = vand.u32 %v2027, 4294901760
      %v2029 = vsub.f32 %v2027, %v2028
      %v2030 = vand.u32 %v2029, 4294901760
      %2031 = vmatpush1.msra.mxu0 %v2030
      %2032 = vmatprep.subr.mxu0 0.0
      %v2033 = vand.u32 %v1859, 4294901760
      %v2034 = vsub.f32 %v1859, %v2033
      %v2035 = vand.u32 %v2034, 4294901760
      %v2036 = vsub.f32 %v2034, %v2035
      %v2037 = vand.u32 %v2036, 4294901760
      %2038 = vmatpush1.msra.mxu0 %v2037
      %2039 = vmatprep.subr.mxu0 0.0
      %v2040 = vand.u32 %v1860, 4294901760
      %v2041 = vsub.f32 %v1860, %v2040
      %v2042 = vand.u32 %v2041, 4294901760
      %v2043 = vsub.f32 %v2041, %v2042
      %v2044 = vand.u32 %v2043, 4294901760
      %2045 = vmatpush1.msra.mxu0 %v2044
      %2046 = vmatprep.subr.mxu0 0.0
      %v2047 = vand.u32 %v1861, 4294901760
      %v2048 = vsub.f32 %v1861, %v2047
      %v2049 = vand.u32 %v2048, 4294901760
      %v2050 = vsub.f32 %v2048, %v2049
      %v2051 = vand.u32 %v2050, 4294901760
      %2052 = vmatpush1.msra.mxu0 %v2051
      %2053 = vmatprep.subr.mxu0 0.0
      %v2054 = vand.u32 %v1862, 4294901760
      %v2055 = vsub.f32 %v1862, %v2054
      %v2056 = vand.u32 %v2055, 4294901760
      %v2057 = vsub.f32 %v2055, %v2056
      %v2058 = vand.u32 %v2057, 4294901760
      %2059 = vmatpush1.msra.mxu0 %v2058
      %2060 = vmatprep.subr.mxu0 0.0
      %v2061 = vand.u32 %v1863, 4294901760
      %v2062 = vsub.f32 %v1863, %v2061
      %v2063 = vand.u32 %v2062, 4294901760
      %v2064 = vsub.f32 %v2062, %v2063
      %v2065 = vand.u32 %v2064, 4294901760
      %2066 = vmatpush1.msra.mxu0 %v2065
      %2067 = vmatprep.subr.mxu0 0.0
      %2068 = vmatpush1.msra.mxu0 0.0
      %2069 = vmatprep.subr.mxu0 0.0
      %2070 = vmatpush1.msra.mxu0 0.0
      %2071 = vmatprep.subr.mxu0 0.0
      %2072 = vmatpush1.msra.mxu0 0.0
      %2073 = vmatprep.subr.mxu0 0.0
      %2074 = vmatpush1.msra.mxu0 0.0
      %2075 = vmatprep.subr.mxu0 0.0
      %2076 = vmatpush1.msra.mxu0 0.0
      %2077 = vmatprep.subr.mxu0 0.0
      %2078 = vmatpush1.msra.mxu0 0.0
      %2079 = vmatprep.subr.mxu0 0.0
      %2080 = vmatpush1.msra.mxu0 0.0
      %2081 = vmatprep.subr.mxu0 0.0
      %2082 = vmatpush1.msra.mxu0 0.0
      %2083 = vmatprep.subr.mxu0 0.0
      %2084 = vmatpush1.msra.mxu0 0.0
      %2085 = vmatprep.subr.mxu0 0.0
      %2086 = vmatpush1.msra.mxu0 0.0
      %2087 = vmatprep.subr.mxu0 0.0
      %2088 = vmatpush1.msra.mxu0 0.0
      %2089 = vmatprep.subr.mxu0 0.0
      %2090 = vmatpush1.msra.mxu0 0.0
      %2091 = vmatprep.subr.mxu0 0.0
      %2092 = vmatpush1.msra.mxu0 0.0
      %2093 = vmatprep.subr.mxu0 0.0
      %2094 = vmatpush1.msra.mxu0 0.0
      %2095 = vmatprep.subr.mxu0 0.0
      %2096 = vmatpush1.msra.mxu0 0.0
      %2097 = vmatprep.subr.mxu0 0.0
      %2098 = vmatpush1.msra.mxu0 0.0
      %2099 = vmatprep.mubr.f32.mxu0 0.0
      %v2100 = vand.u32 %v1843, 4294901760
      %2101 = vmatmul.mubr.f32.gmra.mrb[0].mxu0 %v2100
      %v2102 = vpop.f32.mrb[0].mxu0
      %v2103 = vadd.f32 %v1952, %v2102
      %v2104 = vpop.f32.mrb[0].mxu0
      %2105 = vdwg.mxu0
      %2106 = vmatprep.subr.mxu0 0.0
      %v2107 = vand.u32 %v1848, 4294901760
      %v2108 = vsub.f32 %v1848, %v2107
      %2109 = vmatpush1.msra.mxu0 %v2108
      %2110 = vmatprep.subr.mxu0 0.0
      %v2111 = vand.u32 %v1849, 4294901760
      %v2112 = vsub.f32 %v1849, %v2111
      %2113 = vmatpush1.msra.mxu0 %v2112
      %2114 = vmatprep.subr.mxu0 0.0
      %v2115 = vand.u32 %v1850, 4294901760
      %v2116 = vsub.f32 %v1850, %v2115
      %2117 = vmatpush1.msra.mxu0 %v2116
      %2118 = vmatprep.subr.mxu0 0.0
      %v2119 = vand.u32 %v1851, 4294901760
      %v2120 = vsub.f32 %v1851, %v2119
      %2121 = vmatpush1.msra.mxu0 %v2120
      %2122 = vmatprep.subr.mxu0 0.0
      %v2123 = vand.u32 %v1852, 4294901760
      %v2124 = vsub.f32 %v1852, %v2123
      %2125 = vmatpush1.msra.mxu0 %v2124
      %2126 = vmatprep.subr.mxu0 0.0
      %v2127 = vand.u32 %v1853, 4294901760
      %v2128 = vsub.f32 %v1853, %v2127
      %2129 = vmatpush1.msra.mxu0 %v2128
      %2130 = vmatprep.subr.mxu0 0.0
      %v2131 = vand.u32 %v1854, 4294901760
      %v2132 = vsub.f32 %v1854, %v2131
      %2133 = vmatpush1.msra.mxu0 %v2132
      %2134 = vmatprep.subr.mxu0 0.0
      %v2135 = vand.u32 %v1855, 4294901760
      %v2136 = vsub.f32 %v1855, %v2135
      %2137 = vmatpush1.msra.mxu0 %v2136
      %2138 = vmatprep.subr.mxu0 0.0
      %v2139 = vand.u32 %v1856, 4294901760
      %v2140 = vsub.f32 %v1856, %v2139
      %2141 = vmatpush1.msra.mxu0 %v2140
      %2142 = vmatprep.subr.mxu0 0.0
      %v2143 = vand.u32 %v1857, 4294901760
      %v2144 = vsub.f32 %v1857, %v2143
      %2145 = vmatpush1.msra.mxu0 %v2144
      %2146 = vmatprep.subr.mxu0 0.0
      %v2147 = vand.u32 %v1858, 4294901760
      %v2148 = vsub.f32 %v1858, %v2147
      %2149 = vmatpush1.msra.mxu0 %v2148
      %2150 = vmatprep.subr.mxu0 0.0
      %v2151 = vand.u32 %v1859, 4294901760
      %v2152 = vsub.f32 %v1859, %v2151
      %2153 = vmatpush1.msra.mxu0 %v2152
      %2154 = vmatprep.subr.mxu0 0.0
      %v2155 = vand.u32 %v1860, 4294901760
      %v2156 = vsub.f32 %v1860, %v2155
      %2157 = vmatpush1.msra.mxu0 %v2156
      %2158 = vmatprep.subr.mxu0 0.0
      %v2159 = vand.u32 %v1861, 4294901760
      %v2160 = vsub.f32 %v1861, %v2159
      %2161 = vmatpush1.msra.mxu0 %v2160
      %2162 = vmatprep.subr.mxu0 0.0
      %v2163 = vand.u32 %v1862, 4294901760
      %v2164 = vsub.f32 %v1862, %v2163
      %2165 = vmatpush1.msra.mxu0 %v2164
      %2166 = vmatprep.subr.mxu0 0.0
      %v2167 = vand.u32 %v1863, 4294901760
      %v2168 = vsub.f32 %v1863, %v2167
      %2169 = vmatpush1.msra.mxu0 %v2168
      %2170 = vmatprep.subr.mxu0 0.0
      %2171 = vmatpush1.msra.mxu0 0.0
      %2172 = vmatprep.subr.mxu0 0.0
      %2173 = vmatpush1.msra.mxu0 0.0
      %2174 = vmatprep.subr.mxu0 0.0
      %2175 = vmatpush1.msra.mxu0 0.0
      %2176 = vmatprep.subr.mxu0 0.0
      %2177 = vmatpush1.msra.mxu0 0.0
      %2178 = vmatprep.subr.mxu0 0.0
      %2179 = vmatpush1.msra.mxu0 0.0
      %2180 = vmatprep.subr.mxu0 0.0
      %2181 = vmatpush1.msra.mxu0 0.0
      %2182 = vmatprep.subr.mxu0 0.0
      %2183 = vmatpush1.msra.mxu0 0.0
      %2184 = vmatprep.subr.mxu0 0.0
      %2185 = vmatpush1.msra.mxu0 0.0
      %2186 = vmatprep.subr.mxu0 0.0
      %2187 = vmatpush1.msra.mxu0 0.0
      %2188 = vmatprep.subr.mxu0 0.0
      %2189 = vmatpush1.msra.mxu0 0.0
      %2190 = vmatprep.subr.mxu0 0.0
      %2191 = vmatpush1.msra.mxu0 0.0
      %2192 = vmatprep.subr.mxu0 0.0
      %2193 = vmatpush1.msra.mxu0 0.0
      %2194 = vmatprep.subr.mxu0 0.0
      %2195 = vmatpush1.msra.mxu0 0.0
      %2196 = vmatprep.subr.mxu0 0.0
      %2197 = vmatpush1.msra.mxu0 0.0
      %2198 = vmatprep.subr.mxu0 0.0
      %2199 = vmatpush1.msra.mxu0 0.0
      %2200 = vmatprep.subr.mxu0 0.0
      %2201 = vmatpush1.msra.mxu0 0.0
      %2202 = vmatprep.mubr.f32.mxu0 0.0
      %v2203 = vand.u32 %v1843, 4294901760
      %v2204 = vsub.f32 %v1843, %v2203
      %2205 = vmatmul.mubr.f32.gmra.mrb[0].mxu0 %v2204
      %v2206 = vpop.f32.mrb[0].mxu0
      %v2207 = vadd.f32 %v2103, %v2206
      %v2208 = vpop.f32.mrb[0].mxu0
      %2209 = vdwg.mxu0
      %2210 = vmatprep.subr.mxu0 0.0
      %v2211 = vand.u32 %v1848, 4294901760
      %2212 = vmatpush1.msra.mxu0 %v2211
      %2213 = vmatprep.subr.mxu0 0.0
      %v2214 = vand.u32 %v1849, 4294901760
      %2215 = vmatpush1.msra.mxu0 %v2214
      %2216 = vmatprep.subr.mxu0 0.0
      %v2217 = vand.u32 %v1850, 4294901760
      %2218 = vmatpush1.msra.mxu0 %v2217
      %2219 = vmatprep.subr.mxu0 0.0
      %v2220 = vand.u32 %v1851, 4294901760
      %2221 = vmatpush1.msra.mxu0 %v2220
      %2222 = vmatprep.subr.mxu0 0.0
      %v2223 = vand.u32 %v1852, 4294901760
      %2224 = vmatpush1.msra.mxu0 %v2223
      %2225 = vmatprep.subr.mxu0 0.0
      %v2226 = vand.u32 %v1853, 4294901760
      %2227 = vmatpush1.msra.mxu0 %v2226
      %2228 = vmatprep.subr.mxu0 0.0
      %v2229 = vand.u32 %v1854, 4294901760
      %2230 = vmatpush1.msra.mxu0 %v2229
      %2231 = vmatprep.subr.mxu0 0.0
      %v2232 = vand.u32 %v1855, 4294901760
      %2233 = vmatpush1.msra.mxu0 %v2232
      %2234 = vmatprep.subr.mxu0 0.0
      %v2235 = vand.u32 %v1856, 4294901760
      %2236 = vmatpush1.msra.mxu0 %v2235
      %2237 = vmatprep.subr.mxu0 0.0
      %v2238 = vand.u32 %v1857, 4294901760
      %2239 = vmatpush1.msra.mxu0 %v2238
      %2240 = vmatprep.subr.mxu0 0.0
      %v2241 = vand.u32 %v1858, 4294901760
      %2242 = vmatpush1.msra.mxu0 %v2241
      %2243 = vmatprep.subr.mxu0 0.0
      %v2244 = vand.u32 %v1859, 4294901760
      %2245 = vmatpush1.msra.mxu0 %v2244
      %2246 = vmatprep.subr.mxu0 0.0
      %v2247 = vand.u32 %v1860, 4294901760
      %2248 = vmatpush1.msra.mxu0 %v2247
      %2249 = vmatprep.subr.mxu0 0.0
      %v2250 = vand.u32 %v1861, 4294901760
      %2251 = vmatpush1.msra.mxu0 %v2250
      %2252 = vmatprep.subr.mxu0 0.0
      %v2253 = vand.u32 %v1862, 4294901760
      %2254 = vmatpush1.msra.mxu0 %v2253
      %2255 = vmatprep.subr.mxu0 0.0
      %v2256 = vand.u32 %v1863, 4294901760
      %2257 = vmatpush1.msra.mxu0 %v2256
      %2258 = vmatprep.subr.mxu0 0.0
      %2259 = vmatpush1.msra.mxu0 0.0
      %2260 = vmatprep.subr.mxu0 0.0
      %2261 = vmatpush1.msra.mxu0 0.0
      %2262 = vmatprep.subr.mxu0 0.0
      %2263 = vmatpush1.msra.mxu0 0.0
      %2264 = vmatprep.subr.mxu0 0.0
      %2265 = vmatpush1.msra.mxu0 0.0
      %2266 = vmatprep.subr.mxu0 0.0
      %2267 = vmatpush1.msra.mxu0 0.0
      %2268 = vmatprep.subr.mxu0 0.0
      %2269 = vmatpush1.msra.mxu0 0.0
      %2270 = vmatprep.subr.mxu0 0.0
      %2271 = vmatpush1.msra.mxu0 0.0
      %2272 = vmatprep.subr.mxu0 0.0
      %2273 = vmatpush1.msra.mxu0 0.0
      %2274 = vmatprep.subr.mxu0 0.0
      %2275 = vmatpush1.msra.mxu0 0.0
      %2276 = vmatprep.subr.mxu0 0.0
      %2277 = vmatpush1.msra.mxu0 0.0
      %2278 = vmatprep.subr.mxu0 0.0
      %2279 = vmatpush1.msra.mxu0 0.0
      %2280 = vmatprep.subr.mxu0 0.0
      %2281 = vmatpush1.msra.mxu0 0.0
      %2282 = vmatprep.subr.mxu0 0.0
      %2283 = vmatpush1.msra.mxu0 0.0
      %2284 = vmatprep.subr.mxu0 0.0
      %2285 = vmatpush1.msra.mxu0 0.0
      %2286 = vmatprep.subr.mxu0 0.0
      %2287 = vmatpush1.msra.mxu0 0.0
      %2288 = vmatprep.subr.mxu0 0.0
      %2289 = vmatpush1.msra.mxu0 0.0
      %2290 = vmatprep.mubr.f32.mxu0 0.0
      %v2291 = vand.u32 %v1843, 4294901760
      %v2292 = vsub.f32 %v1843, %v2291
      %v2293 = vand.u32 %v2292, 4294901760
      %2294 = vmatmul.mubr.f32.gmra.mrb[0].mxu0 %v2293
      %v2295 = vpop.f32.mrb[0].mxu0
      %v2296 = vadd.f32 %v2207, %v2295
      %v2297 = vpop.f32.mrb[0].mxu0
      %2298 = vdwg.mxu0
      %2299 = vmatprep.subr.mxu0 0.0
      %v2300 = vand.u32 %v1848, 4294901760
      %v2301 = vsub.f32 %v1848, %v2300
      %v2302 = vand.u32 %v2301, 4294901760
      %2303 = vmatpush1.msra.mxu0 %v2302
      %2304 = vmatprep.subr.mxu0 0.0
      %v2305 = vand.u32 %v1849, 4294901760
      %v2306 = vsub.f32 %v1849, %v2305
      %v2307 = vand.u32 %v2306, 4294901760
      %2308 = vmatpush1.msra.mxu0 %v2307
      %2309 = vmatprep.subr.mxu0 0.0
      %v2310 = vand.u32 %v1850, 4294901760
      %v2311 = vsub.f32 %v1850, %v2310
      %v2312 = vand.u32 %v2311, 4294901760
      %2313 = vmatpush1.msra.mxu0 %v2312
      %2314 = vmatprep.subr.mxu0 0.0
      %v2315 = vand.u32 %v1851, 4294901760
      %v2316 = vsub.f32 %v1851, %v2315
      %v2317 = vand.u32 %v2316, 4294901760
      %2318 = vmatpush1.msra.mxu0 %v2317
      %2319 = vmatprep.subr.mxu0 0.0
      %v2320 = vand.u32 %v1852, 4294901760
      %v2321 = vsub.f32 %v1852, %v2320
      %v2322 = vand.u32 %v2321, 4294901760
      %2323 = vmatpush1.msra.mxu0 %v2322
      %2324 = vmatprep.subr.mxu0 0.0
      %v2325 = vand.u32 %v1853, 4294901760
      %v2326 = vsub.f32 %v1853, %v2325
      %v2327 = vand.u32 %v2326, 4294901760
      %2328 = vmatpush1.msra.mxu0 %v2327
      %2329 = vmatprep.subr.mxu0 0.0
      %v2330 = vand.u32 %v1854, 4294901760
      %v2331 = vsub.f32 %v1854, %v2330
      %v2332 = vand.u32 %v2331, 4294901760
      %2333 = vmatpush1.msra.mxu0 %v2332
      %2334 = vmatprep.subr.mxu0 0.0
      %v2335 = vand.u32 %v1855, 4294901760
      %v2336 = vsub.f32 %v1855, %v2335
      %v2337 = vand.u32 %v2336, 4294901760
      %2338 = vmatpush1.msra.mxu0 %v2337
      %2339 = vmatprep.subr.mxu0 0.0
      %v2340 = vand.u32 %v1856, 4294901760
      %v2341 = vsub.f32 %v1856, %v2340
      %v2342 = vand.u32 %v2341, 4294901760
      %2343 = vmatpush1.msra.mxu0 %v2342
      %2344 = vmatprep.subr.mxu0 0.0
      %v2345 = vand.u32 %v1857, 4294901760
      %v2346 = vsub.f32 %v1857, %v2345
      %v2347 = vand.u32 %v2346, 4294901760
      %2348 = vmatpush1.msra.mxu0 %v2347
      %2349 = vmatprep.subr.mxu0 0.0
      %v2350 = vand.u32 %v1858, 4294901760
      %v2351 = vsub.f32 %v1858, %v2350
      %v2352 = vand.u32 %v2351, 4294901760
      %2353 = vmatpush1.msra.mxu0 %v2352
      %2354 = vmatprep.subr.mxu0 0.0
      %v2355 = vand.u32 %v1859, 4294901760
      %v2356 = vsub.f32 %v1859, %v2355
      %v2357 = vand.u32 %v2356, 4294901760
      %2358 = vmatpush1.msra.mxu0 %v2357
      %2359 = vmatprep.subr.mxu0 0.0
      %v2360 = vand.u32 %v1860, 4294901760
      %v2361 = vsub.f32 %v1860, %v2360
      %v2362 = vand.u32 %v2361, 4294901760
      %2363 = vmatpush1.msra.mxu0 %v2362
      %2364 = vmatprep.subr.mxu0 0.0
      %v2365 = vand.u32 %v1861, 4294901760
      %v2366 = vsub.f32 %v1861, %v2365
      %v2367 = vand.u32 %v2366, 4294901760
      %2368 = vmatpush1.msra.mxu0 %v2367
      %2369 = vmatprep.subr.mxu0 0.0
      %v2370 = vand.u32 %v1862, 4294901760
      %v2371 = vsub.f32 %v1862, %v2370
      %v2372 = vand.u32 %v2371, 4294901760
      %2373 = vmatpush1.msra.mxu0 %v2372
      %2374 = vmatprep.subr.mxu0 0.0
      %v2375 = vand.u32 %v1863, 4294901760
      %v2376 = vsub.f32 %v1863, %v2375
      %v2377 = vand.u32 %v2376, 4294901760
      %2378 = vmatpush1.msra.mxu0 %v2377
      %2379 = vmatprep.subr.mxu0 0.0
      %2380 = vmatpush1.msra.mxu0 0.0
      %2381 = vmatprep.subr.mxu0 0.0
      %2382 = vmatpush1.msra.mxu0 0.0
      %2383 = vmatprep.subr.mxu0 0.0
      %2384 = vmatpush1.msra.mxu0 0.0
      %2385 = vmatprep.subr.mxu0 0.0
      %2386 = vmatpush1.msra.mxu0 0.0
      %2387 = vmatprep.subr.mxu0 0.0
      %2388 = vmatpush1.msra.mxu0 0.0
      %2389 = vmatprep.subr.mxu0 0.0
      %2390 = vmatpush1.msra.mxu0 0.0
      %2391 = vmatprep.subr.mxu0 0.0
      %2392 = vmatpush1.msra.mxu0 0.0
      %2393 = vmatprep.subr.mxu0 0.0
      %2394 = vmatpush1.msra.mxu0 0.0
      %2395 = vmatprep.subr.mxu0 0.0
      %2396 = vmatpush1.msra.mxu0 0.0
      %2397 = vmatprep.subr.mxu0 0.0
      %2398 = vmatpush1.msra.mxu0 0.0
      %2399 = vmatprep.subr.mxu0 0.0
      %2400 = vmatpush1.msra.mxu0 0.0
      %2401 = vmatprep.subr.mxu0 0.0
      %2402 = vmatpush1.msra.mxu0 0.0
      %2403 = vmatprep.subr.mxu0 0.0
      %2404 = vmatpush1.msra.mxu0 0.0
      %2405 = vmatprep.subr.mxu0 0.0
      %2406 = vmatpush1.msra.mxu0 0.0
      %2407 = vmatprep.subr.mxu0 0.0
      %2408 = vmatpush1.msra.mxu0 0.0
      %2409 = vmatprep.subr.mxu0 0.0
      %2410 = vmatpush1.msra.mxu0 0.0
      %2411 = vmatprep.mubr.f32.mxu0 0.0
      %v2412 = vand.u32 %v1843, 4294901760
      %2413 = vmatmul.mubr.f32.gmra.mrb[0].mxu0 %v2412
      %v2414 = vpop.f32.mrb[0].mxu0
      %v2415 = vadd.f32 %v2296, %v2414
      %v2416 = vpop.f32.mrb[0].mxu0
      %2417 = vdwg.mxu0
      %2418 = vmatprep.subr.mxu0 0.0
      %v2419 = vand.u32 %v1848, 4294901760
      %2420 = vmatpush1.msra.mxu0 %v2419
      %2421 = vmatprep.subr.mxu0 0.0
      %v2422 = vand.u32 %v1849, 4294901760
      %2423 = vmatpush1.msra.mxu0 %v2422
      %2424 = vmatprep.subr.mxu0 0.0
      %v2425 = vand.u32 %v1850, 4294901760
      %2426 = vmatpush1.msra.mxu0 %v2425
      %2427 = vmatprep.subr.mxu0 0.0
      %v2428 = vand.u32 %v1851, 4294901760
      %2429 = vmatpush1.msra.mxu0 %v2428
      %2430 = vmatprep.subr.mxu0 0.0
      %v2431 = vand.u32 %v1852, 4294901760
      %2432 = vmatpush1.msra.mxu0 %v2431
      %2433 = vmatprep.subr.mxu0 0.0
      %v2434 = vand.u32 %v1853, 4294901760
      %2435 = vmatpush1.msra.mxu0 %v2434
      %2436 = vmatprep.subr.mxu0 0.0
      %v2437 = vand.u32 %v1854, 4294901760
      %2438 = vmatpush1.msra.mxu0 %v2437
      %2439 = vmatprep.subr.mxu0 0.0
      %v2440 = vand.u32 %v1855, 4294901760
      %2441 = vmatpush1.msra.mxu0 %v2440
      %2442 = vmatprep.subr.mxu0 0.0
      %v2443 = vand.u32 %v1856, 4294901760
      %2444 = vmatpush1.msra.mxu0 %v2443
      %2445 = vmatprep.subr.mxu0 0.0
      %v2446 = vand.u32 %v1857, 4294901760
      %2447 = vmatpush1.msra.mxu0 %v2446
      %2448 = vmatprep.subr.mxu0 0.0
      %v2449 = vand.u32 %v1858, 4294901760
      %2450 = vmatpush1.msra.mxu0 %v2449
      %2451 = vmatprep.subr.mxu0 0.0
      %v2452 = vand.u32 %v1859, 4294901760
      %2453 = vmatpush1.msra.mxu0 %v2452
      %2454 = vmatprep.subr.mxu0 0.0
      %v2455 = vand.u32 %v1860, 4294901760
      %2456 = vmatpush1.msra.mxu0 %v2455
      %2457 = vmatprep.subr.mxu0 0.0
      %v2458 = vand.u32 %v1861, 4294901760
      %2459 = vmatpush1.msra.mxu0 %v2458
      %2460 = vmatprep.subr.mxu0 0.0
      %v2461 = vand.u32 %v1862, 4294901760
      %2462 = vmatpush1.msra.mxu0 %v2461
      %2463 = vmatprep.subr.mxu0 0.0
      %v2464 = vand.u32 %v1863, 4294901760
      %2465 = vmatpush1.msra.mxu0 %v2464
      %2466 = vmatprep.subr.mxu0 0.0
      %2467 = vmatpush1.msra.mxu0 0.0
      %2468 = vmatprep.subr.mxu0 0.0
      %2469 = vmatpush1.msra.mxu0 0.0
      %2470 = vmatprep.subr.mxu0 0.0
      %2471 = vmatpush1.msra.mxu0 0.0
      %2472 = vmatprep.subr.mxu0 0.0
      %2473 = vmatpush1.msra.mxu0 0.0
      %2474 = vmatprep.subr.mxu0 0.0
      %2475 = vmatpush1.msra.mxu0 0.0
      %2476 = vmatprep.subr.mxu0 0.0
      %2477 = vmatpush1.msra.mxu0 0.0
      %2478 = vmatprep.subr.mxu0 0.0
      %2479 = vmatpush1.msra.mxu0 0.0
      %2480 = vmatprep.subr.mxu0 0.0
      %2481 = vmatpush1.msra.mxu0 0.0
      %2482 = vmatprep.subr.mxu0 0.0
      %2483 = vmatpush1.msra.mxu0 0.0
      %2484 = vmatprep.subr.mxu0 0.0
      %2485 = vmatpush1.msra.mxu0 0.0
      %2486 = vmatprep.subr.mxu0 0.0
      %2487 = vmatpush1.msra.mxu0 0.0
      %2488 = vmatprep.subr.mxu0 0.0
      %2489 = vmatpush1.msra.mxu0 0.0
      %2490 = vmatprep.subr.mxu0 0.0
      %2491 = vmatpush1.msra.mxu0 0.0
      %2492 = vmatprep.subr.mxu0 0.0
      %2493 = vmatpush1.msra.mxu0 0.0
      %2494 = vmatprep.subr.mxu0 0.0
      %2495 = vmatpush1.msra.mxu0 0.0
      %2496 = vmatprep.subr.mxu0 0.0
      %2497 = vmatpush1.msra.mxu0 0.0
      %2498 = vmatprep.mubr.f32.mxu0 0.0
      %v2499 = vand.u32 %v1843, 4294901760
      %2500 = vmatmul.mubr.f32.gmra.mrb[0].mxu0 %v2499
      %v2501 = vpop.f32.mrb[0].mxu0
      %v2502 = vadd.f32 %v2415, %v2501
      %v2503 = vpop.f32.mrb[0].mxu0
      %2504 = vdwg.mxu0
      %v2505 = vstv %s1847
      %v2506 = vmul.f32 %v2505, %v2502
      %v2507 = vadd.f32 %v1846, %v2506
      %v2508 = vand.u32 %v1281, 7
      %s2509 = scalar_lea.vmem %s5, 8
      %v2510 = vld [vmem:[%s2509] sm:$0xff]
      %2512 = vset.pattern.permute.xlu0 4
      %2513 = vperm.xlu0 %2512, %v2510
      %v2514 = vpop.permute.xlu0 %2513
      %v2516 = vmul.f32 %v2507, %v2514
      %2517 = vrot.lane.b32.xlu0 %v2507, 9
      %v2518 = vpop.permute.xlu0 %2517
      %vm2519 = vcmp.ge.s32.totalorder %v1281, 8
      %vm2520 = vcmp.ne.s32.totalorder %v2508, 0
      %vm2521 = vmand %vm2519, %vm2520
      %v2522 = vsel %vm2521, 1, 0
      %v2523 = vcvt.s32.f32 %v2522
      %v2524 = vmul.f32 %v2518, %v2523
      %2525 = vset.pattern.permute.xlu0 0
      %2526 = vperm.xlu0 %2525, %v2510
      %v2527 = vpop.permute.xlu0 %2526
      %v2529 = vmul.f32 %v2524, %v2527
      %v2530 = vadd.f32 %v2516, %v2529
      %2531 = vrot.lane.b32.xlu0 %v2507, 8
      %v2532 = vpop.permute.xlu0 %2531
      %v2533 = vsel %vm2519, 1, 0
      %v2534 = vcvt.s32.f32 %v2533
      %v2535 = vmul.f32 %v2532, %v2534
      %2536 = vset.pattern.permute.xlu0 1
      %2537 = vperm.xlu0 %2536, %v2510
      %v2538 = vpop.permute.xlu0 %2537
      %v2540 = vmul.f32 %v2535, %v2538
      %v2541 = vadd.f32 %v2530, %v2540
      %2542 = vrot.lane.b32.xlu0 %v2507, 7
      %v2543 = vpop.permute.xlu0 %2542
      %vm2544 = vcmp.ne.s32.totalorder %v2508, 7
      %vm2545 = vmand %vm2519, %vm2544
      %v2546 = vsel %vm2545, 1, 0
      %v2547 = vcvt.s32.f32 %v2546
      %v2548 = vmul.f32 %v2543, %v2547
      %2549 = vset.pattern.permute.xlu0 2
      %2550 = vperm.xlu0 %2549, %v2510
      %v2551 = vpop.permute.xlu0 %2550
      %v2553 = vmul.f32 %v2548, %v2551
      %v2554 = vadd.f32 %v2541, %v2553
      %2555 = vrot.lane.b32.xlu0 %v2507, 1
      %v2556 = vpop.permute.xlu0 %2555
      %v2557 = vsel %vm2520, 1, 0
      %v2558 = vcvt.s32.f32 %v2557
      %v2559 = vmul.f32 %v2556, %v2558
      %2560 = vset.pattern.permute.xlu0 3
      %2561 = vperm.xlu0 %2560, %v2510
      %v2562 = vpop.permute.xlu0 %2561
      %v2564 = vmul.f32 %v2559, %v2562
      %v2565 = vadd.f32 %v2554, %v2564
      %2566 = vrot.lane.b32.xlu0 %v2507, 127
      %v2567 = vpop.permute.xlu0 %2566
      %v2568 = vsel %vm2544, 1, 0
      %v2569 = vcvt.s32.f32 %v2568
      %v2570 = vmul.f32 %v2567, %v2569
      %2571 = vset.pattern.permute.xlu0 5
      %2572 = vperm.xlu0 %2571, %v2510
      %v2573 = vpop.permute.xlu0 %2572
      %v2575 = vmul.f32 %v2570, %v2573
      %v2576 = vadd.f32 %v2565, %v2575
      %2577 = vrot.lane.b32.xlu0 %v2507, 121
      %v2578 = vpop.permute.xlu0 %2577
      %vm2579 = vcmp.lt.s32.totalorder %v1281, 56
      %vm2580 = vmand %vm2579, %vm2520
      %v2581 = vsel %vm2580, 1, 0
      %v2582 = vcvt.s32.f32 %v2581
      %v2583 = vmul.f32 %v2578, %v2582
      %2584 = vset.pattern.permute.xlu0 6
      %2585 = vperm.xlu0 %2584, %v2510
      %v2586 = vpop.permute.xlu0 %2585
      %v2588 = vmul.f32 %v2583, %v2586
      %v2589 = vadd.f32 %v2576, %v2588
      %2590 = vrot.lane.b32.xlu0 %v2507, 120
      %v2591 = vpop.permute.xlu0 %2590
      %v2592 = vsel %vm2579, 1, 0
      %v2593 = vcvt.s32.f32 %v2592
      %v2594 = vmul.f32 %v2591, %v2593
      %2595 = vset.pattern.permute.xlu0 7
      %2596 = vperm.xlu0 %2595, %v2510
      %v2597 = vpop.permute.xlu0 %2596
      %v2599 = vmul.f32 %v2594, %v2597
      %v2600 = vadd.f32 %v2589, %v2599
      %2601 = vrot.lane.b32.xlu0 %v2507, 119
      %v2602 = vpop.permute.xlu0 %2601
      %vm2603 = vmand %vm2579, %vm2544
      %v2604 = vsel %vm2603, 1, 0
      %v2605 = vcvt.s32.f32 %v2604
      %v2606 = vmul.f32 %v2602, %v2605
      %2607 = vset.pattern.permute.xlu0 8
      %2608 = vperm.xlu0 %2607, %v2510
      %v2609 = vpop.permute.xlu0 %2608
      %v2611 = vmul.f32 %v2606, %v2609
      %v2612 = vadd.f32 %v2600, %v2611
      %s2613 = scalar_lea.vmem %s6, 8
      %v2614 = vld [vmem:[%s2613] sm:$0xff]
      %s2615 = scalar_lea.vmem %s7, 8
      %v2616 = vld [vmem:[%s2615] sm:$0xff]
      %2618 = vset.pattern.permute.xlu0 0
      %2619 = vperm.xlu0 %2618, %v2616
      %v2620 = vpop.permute.xlu0 %2619
      %v2623 = vsel %vm1393, %v2614, 0
      %2625 = vmatprep.subr.mxu0 0.0
      %v2626 = vand.u32 %v2612, 4294901760
      %2627 = vmatpush1.msra.mxu0 %v2626
      %2628 = vmatprep.subr.mxu0 0.0
      %2629 = vmatpush1.msra.mxu0 0.0
      %2630 = vmatprep.subr.mxu0 0.0
      %2631 = vmatpush1.msra.mxu0 0.0
      %2632 = vmatprep.subr.mxu0 0.0
      %2633 = vmatpush1.msra.mxu0 0.0
      %2634 = vmatprep.subr.mxu0 0.0
      %2635 = vmatpush1.msra.mxu0 0.0
      %2636 = vmatprep.subr.mxu0 0.0
      %2637 = vmatpush1.msra.mxu0 0.0
      %2638 = vmatprep.subr.mxu0 0.0
      %2639 = vmatpush1.msra.mxu0 0.0
      %2640 = vmatprep.subr.mxu0 0.0
      %2641 = vmatpush1.msra.mxu0 0.0
      %2642 = vmatprep.subr.mxu0 0.0
      %2643 = vmatpush1.msra.mxu0 0.0
      %2644 = vmatprep.subr.mxu0 0.0
      %2645 = vmatpush1.msra.mxu0 0.0
      %2646 = vmatprep.subr.mxu0 0.0
      %2647 = vmatpush1.msra.mxu0 0.0
      %2648 = vmatprep.subr.mxu0 0.0
      %2649 = vmatpush1.msra.mxu0 0.0
      %2650 = vmatprep.subr.mxu0 0.0
      %2651 = vmatpush1.msra.mxu0 0.0
      %2652 = vmatprep.subr.mxu0 0.0
      %2653 = vmatpush1.msra.mxu0 0.0
      %2654 = vmatprep.subr.mxu0 0.0
      %2655 = vmatpush1.msra.mxu0 0.0
      %2656 = vmatprep.subr.mxu0 0.0
      %2657 = vmatpush1.msra.mxu0 0.0
      %2658 = vmatprep.subr.mxu0 0.0
      %2659 = vmatpush1.msra.mxu0 0.0
      %2660 = vmatprep.subr.mxu0 0.0
      %2661 = vmatpush1.msra.mxu0 0.0
      %2662 = vmatprep.subr.mxu0 0.0
      %2663 = vmatpush1.msra.mxu0 0.0
      %2664 = vmatprep.subr.mxu0 0.0
      %2665 = vmatpush1.msra.mxu0 0.0
      %2666 = vmatprep.subr.mxu0 0.0
      %2667 = vmatpush1.msra.mxu0 0.0
      %2668 = vmatprep.subr.mxu0 0.0
      %2669 = vmatpush1.msra.mxu0 0.0
      %2670 = vmatprep.subr.mxu0 0.0
      %2671 = vmatpush1.msra.mxu0 0.0
      %2672 = vmatprep.subr.mxu0 0.0
      %2673 = vmatpush1.msra.mxu0 0.0
      %2674 = vmatprep.subr.mxu0 0.0
      %2675 = vmatpush1.msra.mxu0 0.0
      %2676 = vmatprep.subr.mxu0 0.0
      %2677 = vmatpush1.msra.mxu0 0.0
      %2678 = vmatprep.subr.mxu0 0.0
      %2679 = vmatpush1.msra.mxu0 0.0
      %2680 = vmatprep.subr.mxu0 0.0
      %2681 = vmatpush1.msra.mxu0 0.0
      %2682 = vmatprep.subr.mxu0 0.0
      %2683 = vmatpush1.msra.mxu0 0.0
      %2684 = vmatprep.subr.mxu0 0.0
      %2685 = vmatpush1.msra.mxu0 0.0
      %2686 = vmatprep.subr.mxu0 0.0
      %2687 = vmatpush1.msra.mxu0 0.0
      %2688 = vmatprep.subr.mxu0 0.0
      %2689 = vmatpush1.msra.mxu0 0.0
      %2690 = vmatprep.mubr.f32.mxu0 0.0
      %v2691 = vand.u32 %v2623, 4294901760
      %v2692 = vsub.f32 %v2623, %v2691
      %v2693 = vand.u32 %v2692, 4294901760
      %v2694 = vsub.f32 %v2692, %v2693
      %v2695 = vand.u32 %v2694, 4294901760
      %2696 = vmatmul.mubr.f32.gmra.mrb[0].mxu0 %v2695
      %v2697 = vpop.f32.mrb[0].mxu0
      %v2698 = vadd.f32 %v2620, %v2697
      %v2699 = vpop.f32.mrb[0].mxu0
      %2700 = vdwg.mxu0
      %2701 = vmatprep.subr.mxu0 0.0
      %v2702 = vand.u32 %v2612, 4294901760
      %v2703 = vsub.f32 %v2612, %v2702
      %v2704 = vand.u32 %v2703, 4294901760
      %v2705 = vsub.f32 %v2703, %v2704
      %v2706 = vand.u32 %v2705, 4294901760
      %2707 = vmatpush1.msra.mxu0 %v2706
      %2708 = vmatprep.subr.mxu0 0.0
      %2709 = vmatpush1.msra.mxu0 0.0
      %2710 = vmatprep.subr.mxu0 0.0
      %2711 = vmatpush1.msra.mxu0 0.0
      %2712 = vmatprep.subr.mxu0 0.0
      %2713 = vmatpush1.msra.mxu0 0.0
      %2714 = vmatprep.subr.mxu0 0.0
      %2715 = vmatpush1.msra.mxu0 0.0
      %2716 = vmatprep.subr.mxu0 0.0
      %2717 = vmatpush1.msra.mxu0 0.0
      %2718 = vmatprep.subr.mxu0 0.0
      %2719 = vmatpush1.msra.mxu0 0.0
      %2720 = vmatprep.subr.mxu0 0.0
      %2721 = vmatpush1.msra.mxu0 0.0
      %2722 = vmatprep.subr.mxu0 0.0
      %2723 = vmatpush1.msra.mxu0 0.0
      %2724 = vmatprep.subr.mxu0 0.0
      %2725 = vmatpush1.msra.mxu0 0.0
      %2726 = vmatprep.subr.mxu0 0.0
      %2727 = vmatpush1.msra.mxu0 0.0
      %2728 = vmatprep.subr.mxu0 0.0
      %2729 = vmatpush1.msra.mxu0 0.0
      %2730 = vmatprep.subr.mxu0 0.0
      %2731 = vmatpush1.msra.mxu0 0.0
      %2732 = vmatprep.subr.mxu0 0.0
      %2733 = vmatpush1.msra.mxu0 0.0
      %2734 = vmatprep.subr.mxu0 0.0
      %2735 = vmatpush1.msra.mxu0 0.0
      %2736 = vmatprep.subr.mxu0 0.0
      %2737 = vmatpush1.msra.mxu0 0.0
      %2738 = vmatprep.subr.mxu0 0.0
      %2739 = vmatpush1.msra.mxu0 0.0
      %2740 = vmatprep.subr.mxu0 0.0
      %2741 = vmatpush1.msra.mxu0 0.0
      %2742 = vmatprep.subr.mxu0 0.0
      %2743 = vmatpush1.msra.mxu0 0.0
      %2744 = vmatprep.subr.mxu0 0.0
      %2745 = vmatpush1.msra.mxu0 0.0
      %2746 = vmatprep.subr.mxu0 0.0
      %2747 = vmatpush1.msra.mxu0 0.0
      %2748 = vmatprep.subr.mxu0 0.0
      %2749 = vmatpush1.msra.mxu0 0.0
      %2750 = vmatprep.subr.mxu0 0.0
      %2751 = vmatpush1.msra.mxu0 0.0
      %2752 = vmatprep.subr.mxu0 0.0
      %2753 = vmatpush1.msra.mxu0 0.0
      %2754 = vmatprep.subr.mxu0 0.0
      %2755 = vmatpush1.msra.mxu0 0.0
      %2756 = vmatprep.subr.mxu0 0.0
      %2757 = vmatpush1.msra.mxu0 0.0
      %2758 = vmatprep.subr.mxu0 0.0
      %2759 = vmatpush1.msra.mxu0 0.0
      %2760 = vmatprep.subr.mxu0 0.0
      %2761 = vmatpush1.msra.mxu0 0.0
      %2762 = vmatprep.subr.mxu0 0.0
      %2763 = vmatpush1.msra.mxu0 0.0
      %2764 = vmatprep.subr.mxu0 0.0
      %2765 = vmatpush1.msra.mxu0 0.0
      %2766 = vmatprep.subr.mxu0 0.0
      %2767 = vmatpush1.msra.mxu0 0.0
      %2768 = vmatprep.subr.mxu0 0.0
      %2769 = vmatpush1.msra.mxu0 0.0
      %2770 = vmatprep.mubr.f32.mxu0 0.0
      %v2771 = vand.u32 %v2623, 4294901760
      %2772 = vmatmul.mubr.f32.gmra.mrb[0].mxu0 %v2771
      %v2773 = vpop.f32.mrb[0].mxu0
      %v2774 = vadd.f32 %v2698, %v2773
      %v2775 = vpop.f32.mrb[0].mxu0
      %2776 = vdwg.mxu0
      %2777 = vmatprep.subr.mxu0 0.0
      %v2778 = vand.u32 %v2612, 4294901760
      %v2779 = vsub.f32 %v2612, %v2778
      %2780 = vmatpush1.msra.mxu0 %v2779
      %2781 = vmatprep.subr.mxu0 0.0
      %2782 = vmatpush1.msra.mxu0 0.0
      %2783 = vmatprep.subr.mxu0 0.0
      %2784 = vmatpush1.msra.mxu0 0.0
      %2785 = vmatprep.subr.mxu0 0.0
      %2786 = vmatpush1.msra.mxu0 0.0
      %2787 = vmatprep.subr.mxu0 0.0
      %2788 = vmatpush1.msra.mxu0 0.0
      %2789 = vmatprep.subr.mxu0 0.0
      %2790 = vmatpush1.msra.mxu0 0.0
      %2791 = vmatprep.subr.mxu0 0.0
      %2792 = vmatpush1.msra.mxu0 0.0
      %2793 = vmatprep.subr.mxu0 0.0
      %2794 = vmatpush1.msra.mxu0 0.0
      %2795 = vmatprep.subr.mxu0 0.0
      %2796 = vmatpush1.msra.mxu0 0.0
      %2797 = vmatprep.subr.mxu0 0.0
      %2798 = vmatpush1.msra.mxu0 0.0
      %2799 = vmatprep.subr.mxu0 0.0
      %2800 = vmatpush1.msra.mxu0 0.0
      %2801 = vmatprep.subr.mxu0 0.0
      %2802 = vmatpush1.msra.mxu0 0.0
      %2803 = vmatprep.subr.mxu0 0.0
      %2804 = vmatpush1.msra.mxu0 0.0
      %2805 = vmatprep.subr.mxu0 0.0
      %2806 = vmatpush1.msra.mxu0 0.0
      %2807 = vmatprep.subr.mxu0 0.0
      %2808 = vmatpush1.msra.mxu0 0.0
      %2809 = vmatprep.subr.mxu0 0.0
      %2810 = vmatpush1.msra.mxu0 0.0
      %2811 = vmatprep.subr.mxu0 0.0
      %2812 = vmatpush1.msra.mxu0 0.0
      %2813 = vmatprep.subr.mxu0 0.0
      %2814 = vmatpush1.msra.mxu0 0.0
      %2815 = vmatprep.subr.mxu0 0.0
      %2816 = vmatpush1.msra.mxu0 0.0
      %2817 = vmatprep.subr.mxu0 0.0
      %2818 = vmatpush1.msra.mxu0 0.0
      %2819 = vmatprep.subr.mxu0 0.0
      %2820 = vmatpush1.msra.mxu0 0.0
      %2821 = vmatprep.subr.mxu0 0.0
      %2822 = vmatpush1.msra.mxu0 0.0
      %2823 = vmatprep.subr.mxu0 0.0
      %2824 = vmatpush1.msra.mxu0 0.0
      %2825 = vmatprep.subr.mxu0 0.0
      %2826 = vmatpush1.msra.mxu0 0.0
      %2827 = vmatprep.subr.mxu0 0.0
      %2828 = vmatpush1.msra.mxu0 0.0
      %2829 = vmatprep.subr.mxu0 0.0
      %2830 = vmatpush1.msra.mxu0 0.0
      %2831 = vmatprep.subr.mxu0 0.0
      %2832 = vmatpush1.msra.mxu0 0.0
      %2833 = vmatprep.subr.mxu0 0.0
      %2834 = vmatpush1.msra.mxu0 0.0
      %2835 = vmatprep.subr.mxu0 0.0
      %2836 = vmatpush1.msra.mxu0 0.0
      %2837 = vmatprep.subr.mxu0 0.0
      %2838 = vmatpush1.msra.mxu0 0.0
      %2839 = vmatprep.subr.mxu0 0.0
      %2840 = vmatpush1.msra.mxu0 0.0
      %2841 = vmatprep.subr.mxu0 0.0
      %2842 = vmatpush1.msra.mxu0 0.0
      %2843 = vmatprep.mubr.f32.mxu0 0.0
      %v2844 = vand.u32 %v2623, 4294901760
      %v2845 = vsub.f32 %v2623, %v2844
      %2846 = vmatmul.mubr.f32.gmra.mrb[0].mxu0 %v2845
      %v2847 = vpop.f32.mrb[0].mxu0
      %v2848 = vadd.f32 %v2774, %v2847
      %v2849 = vpop.f32.mrb[0].mxu0
      %2850 = vdwg.mxu0
      %2851 = vmatprep.subr.mxu0 0.0
      %v2852 = vand.u32 %v2612, 4294901760
      %2853 = vmatpush1.msra.mxu0 %v2852
      %2854 = vmatprep.subr.mxu0 0.0
      %2855 = vmatpush1.msra.mxu0 0.0
      %2856 = vmatprep.subr.mxu0 0.0
      %2857 = vmatpush1.msra.mxu0 0.0
      %2858 = vmatprep.subr.mxu0 0.0
      %2859 = vmatpush1.msra.mxu0 0.0
      %2860 = vmatprep.subr.mxu0 0.0
      %2861 = vmatpush1.msra.mxu0 0.0
      %2862 = vmatprep.subr.mxu0 0.0
      %2863 = vmatpush1.msra.mxu0 0.0
      %2864 = vmatprep.subr.mxu0 0.0
      %2865 = vmatpush1.msra.mxu0 0.0
      %2866 = vmatprep.subr.mxu0 0.0
      %2867 = vmatpush1.msra.mxu0 0.0
      %2868 = vmatprep.subr.mxu0 0.0
      %2869 = vmatpush1.msra.mxu0 0.0
      %2870 = vmatprep.subr.mxu0 0.0
      %2871 = vmatpush1.msra.mxu0 0.0
      %2872 = vmatprep.subr.mxu0 0.0
      %2873 = vmatpush1.msra.mxu0 0.0
      %2874 = vmatprep.subr.mxu0 0.0
      %2875 = vmatpush1.msra.mxu0 0.0
      %2876 = vmatprep.subr.mxu0 0.0
      %2877 = vmatpush1.msra.mxu0 0.0
      %2878 = vmatprep.subr.mxu0 0.0
      %2879 = vmatpush1.msra.mxu0 0.0
      %2880 = vmatprep.subr.mxu0 0.0
      %2881 = vmatpush1.msra.mxu0 0.0
      %2882 = vmatprep.subr.mxu0 0.0
      %2883 = vmatpush1.msra.mxu0 0.0
      %2884 = vmatprep.subr.mxu0 0.0
      %2885 = vmatpush1.msra.mxu0 0.0
      %2886 = vmatprep.subr.mxu0 0.0
      %2887 = vmatpush1.msra.mxu0 0.0
      %2888 = vmatprep.subr.mxu0 0.0
      %2889 = vmatpush1.msra.mxu0 0.0
      %2890 = vmatprep.subr.mxu0 0.0
      %2891 = vmatpush1.msra.mxu0 0.0
      %2892 = vmatprep.subr.mxu0 0.0
      %2893 = vmatpush1.msra.mxu0 0.0
      %2894 = vmatprep.subr.mxu0 0.0
      %2895 = vmatpush1.msra.mxu0 0.0
      %2896 = vmatprep.subr.mxu0 0.0
      %2897 = vmatpush1.msra.mxu0 0.0
      %2898 = vmatprep.subr.mxu0 0.0
      %2899 = vmatpush1.msra.mxu0 0.0
      %2900 = vmatprep.subr.mxu0 0.0
      %2901 = vmatpush1.msra.mxu0 0.0
      %2902 = vmatprep.subr.mxu0 0.0
      %2903 = vmatpush1.msra.mxu0 0.0
      %2904 = vmatprep.subr.mxu0 0.0
      %2905 = vmatpush1.msra.mxu0 0.0
      %2906 = vmatprep.subr.mxu0 0.0
      %2907 = vmatpush1.msra.mxu0 0.0
      %2908 = vmatprep.subr.mxu0 0.0
      %2909 = vmatpush1.msra.mxu0 0.0
      %2910 = vmatprep.subr.mxu0 0.0
      %2911 = vmatpush1.msra.mxu0 0.0
      %2912 = vmatprep.subr.mxu0 0.0
      %2913 = vmatpush1.msra.mxu0 0.0
      %2914 = vmatprep.subr.mxu0 0.0
      %2915 = vmatpush1.msra.mxu0 0.0
      %2916 = vmatprep.mubr.f32.mxu0 0.0
      %v2917 = vand.u32 %v2623, 4294901760
      %v2918 = vsub.f32 %v2623, %v2917
      %v2919 = vand.u32 %v2918, 4294901760
      %2920 = vmatmul.mubr.f32.gmra.mrb[0].mxu0 %v2919
      %v2921 = vpop.f32.mrb[0].mxu0
      %v2922 = vadd.f32 %v2848, %v2921
      %v2923 = vpop.f32.mrb[0].mxu0
      %2924 = vdwg.mxu0
      %2925 = vmatprep.subr.mxu0 0.0
      %v2926 = vand.u32 %v2612, 4294901760
      %v2927 = vsub.f32 %v2612, %v2926
      %v2928 = vand.u32 %v2927, 4294901760
      %2929 = vmatpush1.msra.mxu0 %v2928
      %2930 = vmatprep.subr.mxu0 0.0
      %2931 = vmatpush1.msra.mxu0 0.0
      %2932 = vmatprep.subr.mxu0 0.0
      %2933 = vmatpush1.msra.mxu0 0.0
      %2934 = vmatprep.subr.mxu0 0.0
      %2935 = vmatpush1.msra.mxu0 0.0
      %2936 = vmatprep.subr.mxu0 0.0
      %2937 = vmatpush1.msra.mxu0 0.0
      %2938 = vmatprep.subr.mxu0 0.0
      %2939 = vmatpush1.msra.mxu0 0.0
      %2940 = vmatprep.subr.mxu0 0.0
      %2941 = vmatpush1.msra.mxu0 0.0
      %2942 = vmatprep.subr.mxu0 0.0
      %2943 = vmatpush1.msra.mxu0 0.0
      %2944 = vmatprep.subr.mxu0 0.0
      %2945 = vmatpush1.msra.mxu0 0.0
      %2946 = vmatprep.subr.mxu0 0.0
      %2947 = vmatpush1.msra.mxu0 0.0
      %2948 = vmatprep.subr.mxu0 0.0
      %2949 = vmatpush1.msra.mxu0 0.0
      %2950 = vmatprep.subr.mxu0 0.0
      %2951 = vmatpush1.msra.mxu0 0.0
      %2952 = vmatprep.subr.mxu0 0.0
      %2953 = vmatpush1.msra.mxu0 0.0
      %2954 = vmatprep.subr.mxu0 0.0
      %2955 = vmatpush1.msra.mxu0 0.0
      %2956 = vmatprep.subr.mxu0 0.0
      %2957 = vmatpush1.msra.mxu0 0.0
      %2958 = vmatprep.subr.mxu0 0.0
      %2959 = vmatpush1.msra.mxu0 0.0
      %2960 = vmatprep.subr.mxu0 0.0
      %2961 = vmatpush1.msra.mxu0 0.0
      %2962 = vmatprep.subr.mxu0 0.0
      %2963 = vmatpush1.msra.mxu0 0.0
      %2964 = vmatprep.subr.mxu0 0.0
      %2965 = vmatpush1.msra.mxu0 0.0
      %2966 = vmatprep.subr.mxu0 0.0
      %2967 = vmatpush1.msra.mxu0 0.0
      %2968 = vmatprep.subr.mxu0 0.0
      %2969 = vmatpush1.msra.mxu0 0.0
      %2970 = vmatprep.subr.mxu0 0.0
      %2971 = vmatpush1.msra.mxu0 0.0
      %2972 = vmatprep.subr.mxu0 0.0
      %2973 = vmatpush1.msra.mxu0 0.0
      %2974 = vmatprep.subr.mxu0 0.0
      %2975 = vmatpush1.msra.mxu0 0.0
      %2976 = vmatprep.subr.mxu0 0.0
      %2977 = vmatpush1.msra.mxu0 0.0
      %2978 = vmatprep.subr.mxu0 0.0
      %2979 = vmatpush1.msra.mxu0 0.0
      %2980 = vmatprep.subr.mxu0 0.0
      %2981 = vmatpush1.msra.mxu0 0.0
      %2982 = vmatprep.subr.mxu0 0.0
      %2983 = vmatpush1.msra.mxu0 0.0
      %2984 = vmatprep.subr.mxu0 0.0
      %2985 = vmatpush1.msra.mxu0 0.0
      %2986 = vmatprep.subr.mxu0 0.0
      %2987 = vmatpush1.msra.mxu0 0.0
      %2988 = vmatprep.subr.mxu0 0.0
      %2989 = vmatpush1.msra.mxu0 0.0
      %2990 = vmatprep.subr.mxu0 0.0
      %2991 = vmatpush1.msra.mxu0 0.0
      %2992 = vmatprep.mubr.f32.mxu0 0.0
      %v2993 = vand.u32 %v2623, 4294901760
      %2994 = vmatmul.mubr.f32.gmra.mrb[0].mxu0 %v2993
      %v2995 = vpop.f32.mrb[0].mxu0
      %v2996 = vadd.f32 %v2922, %v2995
      %v2997 = vpop.f32.mrb[0].mxu0
      %2998 = vdwg.mxu0
      %2999 = vmatprep.subr.mxu0 0.0
      %v3000 = vand.u32 %v2612, 4294901760
      %3001 = vmatpush1.msra.mxu0 %v3000
      %3002 = vmatprep.subr.mxu0 0.0
      %3003 = vmatpush1.msra.mxu0 0.0
      %3004 = vmatprep.subr.mxu0 0.0
      %3005 = vmatpush1.msra.mxu0 0.0
      %3006 = vmatprep.subr.mxu0 0.0
      %3007 = vmatpush1.msra.mxu0 0.0
      %3008 = vmatprep.subr.mxu0 0.0
      %3009 = vmatpush1.msra.mxu0 0.0
      %3010 = vmatprep.subr.mxu0 0.0
      %3011 = vmatpush1.msra.mxu0 0.0
      %3012 = vmatprep.subr.mxu0 0.0
      %3013 = vmatpush1.msra.mxu0 0.0
      %3014 = vmatprep.subr.mxu0 0.0
      %3015 = vmatpush1.msra.mxu0 0.0
      %3016 = vmatprep.subr.mxu0 0.0
      %3017 = vmatpush1.msra.mxu0 0.0
      %3018 = vmatprep.subr.mxu0 0.0
      %3019 = vmatpush1.msra.mxu0 0.0
      %3020 = vmatprep.subr.mxu0 0.0
      %3021 = vmatpush1.msra.mxu0 0.0
      %3022 = vmatprep.subr.mxu0 0.0
      %3023 = vmatpush1.msra.mxu0 0.0
      %3024 = vmatprep.subr.mxu0 0.0
      %3025 = vmatpush1.msra.mxu0 0.0
      %3026 = vmatprep.subr.mxu0 0.0
      %3027 = vmatpush1.msra.mxu0 0.0
      %3028 = vmatprep.subr.mxu0 0.0
      %3029 = vmatpush1.msra.mxu0 0.0
      %3030 = vmatprep.subr.mxu0 0.0
      %3031 = vmatpush1.msra.mxu0 0.0
      %3032 = vmatprep.subr.mxu0 0.0
      %3033 = vmatpush1.msra.mxu0 0.0
      %3034 = vmatprep.subr.mxu0 0.0
      %3035 = vmatpush1.msra.mxu0 0.0
      %3036 = vmatprep.subr.mxu0 0.0
      %3037 = vmatpush1.msra.mxu0 0.0
      %3038 = vmatprep.subr.mxu0 0.0
      %3039 = vmatpush1.msra.mxu0 0.0
      %3040 = vmatprep.subr.mxu0 0.0
      %3041 = vmatpush1.msra.mxu0 0.0
      %3042 = vmatprep.subr.mxu0 0.0
      %3043 = vmatpush1.msra.mxu0 0.0
      %3044 = vmatprep.subr.mxu0 0.0
      %3045 = vmatpush1.msra.mxu0 0.0
      %3046 = vmatprep.subr.mxu0 0.0
      %3047 = vmatpush1.msra.mxu0 0.0
      %3048 = vmatprep.subr.mxu0 0.0
      %3049 = vmatpush1.msra.mxu0 0.0
      %3050 = vmatprep.subr.mxu0 0.0
      %3051 = vmatpush1.msra.mxu0 0.0
      %3052 = vmatprep.subr.mxu0 0.0
      %3053 = vmatpush1.msra.mxu0 0.0
      %3054 = vmatprep.subr.mxu0 0.0
      %3055 = vmatpush1.msra.mxu0 0.0
      %3056 = vmatprep.subr.mxu0 0.0
      %3057 = vmatpush1.msra.mxu0 0.0
      %3058 = vmatprep.subr.mxu0 0.0
      %3059 = vmatpush1.msra.mxu0 0.0
      %3060 = vmatprep.subr.mxu0 0.0
      %3061 = vmatpush1.msra.mxu0 0.0
      %3062 = vmatprep.subr.mxu0 0.0
      %3063 = vmatpush1.msra.mxu0 0.0
      %3064 = vmatprep.mubr.f32.mxu0 0.0
      %v3065 = vand.u32 %v2623, 4294901760
      %3066 = vmatmul.mubr.f32.gmra.mrb[0].mxu0 %v3065
      %v3067 = vpop.f32.mrb[0].mxu0
      %v3068 = vadd.f32 %v2996, %v3067
      %v3069 = vpop.f32.mrb[0].mxu0
      %3070 = vdwg.mxu0
      %v3071 = vmax.f32 %v3068, 0.0
      %s3072 = sld [smem:[#allocation3 + $0x4]]
      %v3073 = vstv %s3072
      %v3074 = vmul.f32 %v3073, %v611
      %v3075 = vmul.f32 %v3073, %v612
      %s3076 = sld [smem:[#allocation3 + $0x5]]
      %v3077 = vld [vmem:[%s10] sm:$0xff]
      %v3078 = vld [vmem:[%s10 + $0x8] sm:$0xff]
      %v3079 = vld [vmem:[%s10 + $0x10] sm:$0xff]
      %v3080 = vld [vmem:[%s10 + $0x18] sm:$0xff]
      %v3081 = vld [vmem:[%s10 + $0x20] sm:$0xff]
      %v3082 = vld [vmem:[%s10 + $0x28] sm:$0xff]
      %v3083 = vld [vmem:[%s10 + $0x30] sm:$0xff]
      %v3084 = vld [vmem:[%s10 + $0x38] sm:$0xff]
      %v3085 = vld [vmem:[%s10 + $0x40] sm:$0xff]
      %v3086 = vld [vmem:[%s10 + $0x48] sm:$0xff]
      %v3087 = vld [vmem:[%s10 + $0x50] sm:$0xff]
      %v3088 = vld [vmem:[%s10 + $0x58] sm:$0xff]
      %v3089 = vld [vmem:[%s10 + $0x60] sm:$0xff]
      %v3090 = vld [vmem:[%s10 + $0x68] sm:$0xff]
      %v3091 = vld [vmem:[%s10 + $0x70] sm:$0xff]
      %v3092 = vld [vmem:[%s10 + $0x78] sm:$0xff]
      %v3093 = vld [vmem:[%s10 + $0x80] sm:$0xff]
      %v3094 = vld [vmem:[%s10 + $0x88] sm:$0xff]
      %v3095 = vld [vmem:[%s10 + $0x90] sm:$0xff]
      %v3096 = vld [vmem:[%s10 + $0x98] sm:$0xff]
      %v3097 = vld [vmem:[%s10 + $0xa0] sm:$0xff]
      %v3098 = vld [vmem:[%s10 + $0xa8] sm:$0xff]
      %v3099 = vld [vmem:[%s10 + $0xb0] sm:$0xff]
      %v3100 = vld [vmem:[%s10 + $0xb8] sm:$0xff]
      %v3101 = vld [vmem:[%s10 + $0xc0] sm:$0xff]
      %v3102 = vld [vmem:[%s10 + $0xc8] sm:$0xff]
      %v3103 = vld [vmem:[%s10 + $0xd0] sm:$0xff]
      %v3104 = vld [vmem:[%s10 + $0xd8] sm:$0xff]
      %v3105 = vld [vmem:[%s10 + $0xe0] sm:$0xff]
      %v3106 = vld [vmem:[%s10 + $0xe8] sm:$0xff]
      %v3107 = vld [vmem:[%s10 + $0xf0] sm:$0xff]
      %v3108 = vld [vmem:[%s10 + $0xf8] sm:$0xff]
      %v3109 = vand.u32 %v3078, 4294901760
      %3110 = vmatprep.subr.mxu0 %v3109
      %v3111 = vand.u32 %v3077, 4294901760
      %3112 = vmatpush1.msra.mxu0 %v3111
      %v3113 = vand.u32 %v3080, 4294901760
      %3114 = vmatprep.subr.mxu0 %v3113
      %v3115 = vand.u32 %v3079, 4294901760
      %3116 = vmatpush1.msra.mxu0 %v3115
      %v3117 = vand.u32 %v3082, 4294901760
      %3118 = vmatprep.subr.mxu0 %v3117
      %v3119 = vand.u32 %v3081, 4294901760
      %3120 = vmatpush1.msra.mxu0 %v3119
      %v3121 = vand.u32 %v3084, 4294901760
      %3122 = vmatprep.subr.mxu0 %v3121
      %v3123 = vand.u32 %v3083, 4294901760
      %3124 = vmatpush1.msra.mxu0 %v3123
      %v3125 = vand.u32 %v3086, 4294901760
      %3126 = vmatprep.subr.mxu0 %v3125
      %v3127 = vand.u32 %v3085, 4294901760
      %3128 = vmatpush1.msra.mxu0 %v3127
      %v3129 = vand.u32 %v3088, 4294901760
      %3130 = vmatprep.subr.mxu0 %v3129
      %v3131 = vand.u32 %v3087, 4294901760
      %3132 = vmatpush1.msra.mxu0 %v3131
      %v3133 = vand.u32 %v3090, 4294901760
      %3134 = vmatprep.subr.mxu0 %v3133
      %v3135 = vand.u32 %v3089, 4294901760
      %3136 = vmatpush1.msra.mxu0 %v3135
      %v3137 = vand.u32 %v3092, 4294901760
      %3138 = vmatprep.subr.mxu0 %v3137
      %v3139 = vand.u32 %v3091, 4294901760
      %3140 = vmatpush1.msra.mxu0 %v3139
      %v3141 = vand.u32 %v3094, 4294901760
      %3142 = vmatprep.subr.mxu0 %v3141
      %v3143 = vand.u32 %v3093, 4294901760
      %3144 = vmatpush1.msra.mxu0 %v3143
      %v3145 = vand.u32 %v3096, 4294901760
      %3146 = vmatprep.subr.mxu0 %v3145
      %v3147 = vand.u32 %v3095, 4294901760
      %3148 = vmatpush1.msra.mxu0 %v3147
      %v3149 = vand.u32 %v3098, 4294901760
      %3150 = vmatprep.subr.mxu0 %v3149
      %v3151 = vand.u32 %v3097, 4294901760
      %3152 = vmatpush1.msra.mxu0 %v3151
      %v3153 = vand.u32 %v3100, 4294901760
      %3154 = vmatprep.subr.mxu0 %v3153
      %v3155 = vand.u32 %v3099, 4294901760
      %3156 = vmatpush1.msra.mxu0 %v3155
      %v3157 = vand.u32 %v3102, 4294901760
      %3158 = vmatprep.subr.mxu0 %v3157
      %v3159 = vand.u32 %v3101, 4294901760
      %3160 = vmatpush1.msra.mxu0 %v3159
      %v3161 = vand.u32 %v3104, 4294901760
      %3162 = vmatprep.subr.mxu0 %v3161
      %v3163 = vand.u32 %v3103, 4294901760
      %3164 = vmatpush1.msra.mxu0 %v3163
      %v3165 = vand.u32 %v3106, 4294901760
      %3166 = vmatprep.subr.mxu0 %v3165
      %v3167 = vand.u32 %v3105, 4294901760
      %3168 = vmatpush1.msra.mxu0 %v3167
      %v3169 = vand.u32 %v3108, 4294901760
      %3170 = vmatprep.subr.mxu0 %v3169
      %v3171 = vand.u32 %v3107, 4294901760
      %3172 = vmatpush1.msra.mxu0 %v3171
      %3173 = vmatprep.subr.mxu0 0.0
      %3174 = vmatpush1.msra.mxu0 0.0
      %3175 = vmatprep.subr.mxu0 0.0
      %3176 = vmatpush1.msra.mxu0 0.0
      %3177 = vmatprep.subr.mxu0 0.0
      %3178 = vmatpush1.msra.mxu0 0.0
      %3179 = vmatprep.subr.mxu0 0.0
      %3180 = vmatpush1.msra.mxu0 0.0
      %3181 = vmatprep.subr.mxu0 0.0
      %3182 = vmatpush1.msra.mxu0 0.0
      %3183 = vmatprep.subr.mxu0 0.0
      %3184 = vmatpush1.msra.mxu0 0.0
      %3185 = vmatprep.subr.mxu0 0.0
      %3186 = vmatpush1.msra.mxu0 0.0
      %3187 = vmatprep.subr.mxu0 0.0
      %3188 = vmatpush1.msra.mxu0 0.0
      %3189 = vmatprep.subr.mxu0 0.0
      %3190 = vmatpush1.msra.mxu0 0.0
      %3191 = vmatprep.subr.mxu0 0.0
      %3192 = vmatpush1.msra.mxu0 0.0
      %3193 = vmatprep.subr.mxu0 0.0
      %3194 = vmatpush1.msra.mxu0 0.0
      %3195 = vmatprep.subr.mxu0 0.0
      %3196 = vmatpush1.msra.mxu0 0.0
      %3197 = vmatprep.subr.mxu0 0.0
      %3198 = vmatpush1.msra.mxu0 0.0
      %3199 = vmatprep.subr.mxu0 0.0
      %3200 = vmatpush1.msra.mxu0 0.0
      %3201 = vmatprep.subr.mxu0 0.0
      %3202 = vmatpush1.msra.mxu0 0.0
      %3203 = vmatprep.subr.mxu0 0.0
      %3204 = vmatpush1.msra.mxu0 0.0
      %3205 = vmatprep.mubr.f32.mxu0 0.0
      %v3206 = vand.u32 %v3071, 4294901760
      %v3207 = vsub.f32 %v3071, %v3206
      %v3208 = vand.u32 %v3207, 4294901760
      %v3209 = vsub.f32 %v3207, %v3208
      %v3210 = vand.u32 %v3209, 4294901760
      %3211 = vmatmul.mubr.f32.gmra.mrb[0].mxu0 %v3210
      %v3212 = vpop.f32.mrb[0].mxu0
      %v3213 = vadd.f32 0.0, %v3212
      %v3214 = vpop.f32.mrb[0].mxu0
      %v3215 = vadd.f32 0.0, %v3214
      %3216 = vdwg.mxu0
      %v3217 = vand.u32 %v3078, 4294901760
      %v3218 = vsub.f32 %v3078, %v3217
      %v3219 = vand.u32 %v3218, 4294901760
      %v3220 = vsub.f32 %v3218, %v3219
      %v3221 = vand.u32 %v3220, 4294901760
      %3222 = vmatprep.subr.mxu0 %v3221
      %v3223 = vand.u32 %v3077, 4294901760
      %v3224 = vsub.f32 %v3077, %v3223
      %v3225 = vand.u32 %v3224, 4294901760
      %v3226 = vsub.f32 %v3224, %v3225
      %v3227 = vand.u32 %v3226, 4294901760
      %3228 = vmatpush1.msra.mxu0 %v3227
      %v3229 = vand.u32 %v3080, 4294901760
      %v3230 = vsub.f32 %v3080, %v3229
      %v3231 = vand.u32 %v3230, 4294901760
      %v3232 = vsub.f32 %v3230, %v3231
      %v3233 = vand.u32 %v3232, 4294901760
      %3234 = vmatprep.subr.mxu0 %v3233
      %v3235 = vand.u32 %v3079, 4294901760
      %v3236 = vsub.f32 %v3079, %v3235
      %v3237 = vand.u32 %v3236, 4294901760
      %v3238 = vsub.f32 %v3236, %v3237
      %v3239 = vand.u32 %v3238, 4294901760
      %3240 = vmatpush1.msra.mxu0 %v3239
      %v3241 = vand.u32 %v3082, 4294901760
      %v3242 = vsub.f32 %v3082, %v3241
      %v3243 = vand.u32 %v3242, 4294901760
      %v3244 = vsub.f32 %v3242, %v3243
      %v3245 = vand.u32 %v3244, 4294901760
      %3246 = vmatprep.subr.mxu0 %v3245
      %v3247 = vand.u32 %v3081, 4294901760
      %v3248 = vsub.f32 %v3081, %v3247
      %v3249 = vand.u32 %v3248, 4294901760
      %v3250 = vsub.f32 %v3248, %v3249
      %v3251 = vand.u32 %v3250, 4294901760
      %3252 = vmatpush1.msra.mxu0 %v3251
      %v3253 = vand.u32 %v3084, 4294901760
      %v3254 = vsub.f32 %v3084, %v3253
      %v3255 = vand.u32 %v3254, 4294901760
      %v3256 = vsub.f32 %v3254, %v3255
      %v3257 = vand.u32 %v3256, 4294901760
      %3258 = vmatprep.subr.mxu0 %v3257
      %v3259 = vand.u32 %v3083, 4294901760
      %v3260 = vsub.f32 %v3083, %v3259
      %v3261 = vand.u32 %v3260, 4294901760
      %v3262 = vsub.f32 %v3260, %v3261
      %v3263 = vand.u32 %v3262, 4294901760
      %3264 = vmatpush1.msra.mxu0 %v3263
      %v3265 = vand.u32 %v3086, 4294901760
      %v3266 = vsub.f32 %v3086, %v3265
      %v3267 = vand.u32 %v3266, 4294901760
      %v3268 = vsub.f32 %v3266, %v3267
      %v3269 = vand.u32 %v3268, 4294901760
      %3270 = vmatprep.subr.mxu0 %v3269
      %v3271 = vand.u32 %v3085, 4294901760
      %v3272 = vsub.f32 %v3085, %v3271
      %v3273 = vand.u32 %v3272, 4294901760
      %v3274 = vsub.f32 %v3272, %v3273
      %v3275 = vand.u32 %v3274, 4294901760
      %3276 = vmatpush1.msra.mxu0 %v3275
      %v3277 = vand.u32 %v3088, 4294901760
      %v3278 = vsub.f32 %v3088, %v3277
      %v3279 = vand.u32 %v3278, 4294901760
      %v3280 = vsub.f32 %v3278, %v3279
      %v3281 = vand.u32 %v3280, 4294901760
      %3282 = vmatprep.subr.mxu0 %v3281
      %v3283 = vand.u32 %v3087, 4294901760
      %v3284 = vsub.f32 %v3087, %v3283
      %v3285 = vand.u32 %v3284, 4294901760
      %v3286 = vsub.f32 %v3284, %v3285
      %v3287 = vand.u32 %v3286, 4294901760
      %3288 = vmatpush1.msra.mxu0 %v3287
      %v3289 = vand.u32 %v3090, 4294901760
      %v3290 = vsub.f32 %v3090, %v3289
      %v3291 = vand.u32 %v3290, 4294901760
      %v3292 = vsub.f32 %v3290, %v3291
      %v3293 = vand.u32 %v3292, 4294901760
      %3294 = vmatprep.subr.mxu0 %v3293
      %v3295 = vand.u32 %v3089, 4294901760
      %v3296 = vsub.f32 %v3089, %v3295
      %v3297 = vand.u32 %v3296, 4294901760
      %v3298 = vsub.f32 %v3296, %v3297
      %v3299 = vand.u32 %v3298, 4294901760
      %3300 = vmatpush1.msra.mxu0 %v3299
      %v3301 = vand.u32 %v3092, 4294901760
      %v3302 = vsub.f32 %v3092, %v3301
      %v3303 = vand.u32 %v3302, 4294901760
      %v3304 = vsub.f32 %v3302, %v3303
      %v3305 = vand.u32 %v3304, 4294901760
      %3306 = vmatprep.subr.mxu0 %v3305
      %v3307 = vand.u32 %v3091, 4294901760
      %v3308 = vsub.f32 %v3091, %v3307
      %v3309 = vand.u32 %v3308, 4294901760
      %v3310 = vsub.f32 %v3308, %v3309
      %v3311 = vand.u32 %v3310, 4294901760
      %3312 = vmatpush1.msra.mxu0 %v3311
      %v3313 = vand.u32 %v3094, 4294901760
      %v3314 = vsub.f32 %v3094, %v3313
      %v3315 = vand.u32 %v3314, 4294901760
      %v3316 = vsub.f32 %v3314, %v3315
      %v3317 = vand.u32 %v3316, 4294901760
      %3318 = vmatprep.subr.mxu0 %v3317
      %v3319 = vand.u32 %v3093, 4294901760
      %v3320 = vsub.f32 %v3093, %v3319
      %v3321 = vand.u32 %v3320, 4294901760
      %v3322 = vsub.f32 %v3320, %v3321
      %v3323 = vand.u32 %v3322, 4294901760
      %3324 = vmatpush1.msra.mxu0 %v3323
      %v3325 = vand.u32 %v3096, 4294901760
      %v3326 = vsub.f32 %v3096, %v3325
      %v3327 = vand.u32 %v3326, 4294901760
      %v3328 = vsub.f32 %v3326, %v3327
      %v3329 = vand.u32 %v3328, 4294901760
      %3330 = vmatprep.subr.mxu0 %v3329
      %v3331 = vand.u32 %v3095, 4294901760
      %v3332 = vsub.f32 %v3095, %v3331
      %v3333 = vand.u32 %v3332, 4294901760
      %v3334 = vsub.f32 %v3332, %v3333
      %v3335 = vand.u32 %v3334, 4294901760
      %3336 = vmatpush1.msra.mxu0 %v3335
      %v3337 = vand.u32 %v3098, 4294901760
      %v3338 = vsub.f32 %v3098, %v3337
      %v3339 = vand.u32 %v3338, 4294901760
      %v3340 = vsub.f32 %v3338, %v3339
      %v3341 = vand.u32 %v3340, 4294901760
      %3342 = vmatprep.subr.mxu0 %v3341
      %v3343 = vand.u32 %v3097, 4294901760
      %v3344 = vsub.f32 %v3097, %v3343
      %v3345 = vand.u32 %v3344, 4294901760
      %v3346 = vsub.f32 %v3344, %v3345
      %v3347 = vand.u32 %v3346, 4294901760
      %3348 = vmatpush1.msra.mxu0 %v3347
      %v3349 = vand.u32 %v3100, 4294901760
      %v3350 = vsub.f32 %v3100, %v3349
      %v3351 = vand.u32 %v3350, 4294901760
      %v3352 = vsub.f32 %v3350, %v3351
      %v3353 = vand.u32 %v3352, 4294901760
      %3354 = vmatprep.subr.mxu0 %v3353
      %v3355 = vand.u32 %v3099, 4294901760
      %v3356 = vsub.f32 %v3099, %v3355
      %v3357 = vand.u32 %v3356, 4294901760
      %v3358 = vsub.f32 %v3356, %v3357
      %v3359 = vand.u32 %v3358, 4294901760
      %3360 = vmatpush1.msra.mxu0 %v3359
      %v3361 = vand.u32 %v3102, 4294901760
      %v3362 = vsub.f32 %v3102, %v3361
      %v3363 = vand.u32 %v3362, 4294901760
      %v3364 = vsub.f32 %v3362, %v3363
      %v3365 = vand.u32 %v3364, 4294901760
      %3366 = vmatprep.subr.mxu0 %v3365
      %v3367 = vand.u32 %v3101, 4294901760
      %v3368 = vsub.f32 %v3101, %v3367
      %v3369 = vand.u32 %v3368, 4294901760
      %v3370 = vsub.f32 %v3368, %v3369
      %v3371 = vand.u32 %v3370, 4294901760
      %3372 = vmatpush1.msra.mxu0 %v3371
      %v3373 = vand.u32 %v3104, 4294901760
      %v3374 = vsub.f32 %v3104, %v3373
      %v3375 = vand.u32 %v3374, 4294901760
      %v3376 = vsub.f32 %v3374, %v3375
      %v3377 = vand.u32 %v3376, 4294901760
      %3378 = vmatprep.subr.mxu0 %v3377
      %v3379 = vand.u32 %v3103, 4294901760
      %v3380 = vsub.f32 %v3103, %v3379
      %v3381 = vand.u32 %v3380, 4294901760
      %v3382 = vsub.f32 %v3380, %v3381
      %v3383 = vand.u32 %v3382, 4294901760
      %3384 = vmatpush1.msra.mxu0 %v3383
      %v3385 = vand.u32 %v3106, 4294901760
      %v3386 = vsub.f32 %v3106, %v3385
      %v3387 = vand.u32 %v3386, 4294901760
      %v3388 = vsub.f32 %v3386, %v3387
      %v3389 = vand.u32 %v3388, 4294901760
      %3390 = vmatprep.subr.mxu0 %v3389
      %v3391 = vand.u32 %v3105, 4294901760
      %v3392 = vsub.f32 %v3105, %v3391
      %v3393 = vand.u32 %v3392, 4294901760
      %v3394 = vsub.f32 %v3392, %v3393
      %v3395 = vand.u32 %v3394, 4294901760
      %3396 = vmatpush1.msra.mxu0 %v3395
      %v3397 = vand.u32 %v3108, 4294901760
      %v3398 = vsub.f32 %v3108, %v3397
      %v3399 = vand.u32 %v3398, 4294901760
      %v3400 = vsub.f32 %v3398, %v3399
      %v3401 = vand.u32 %v3400, 4294901760
      %3402 = vmatprep.subr.mxu0 %v3401
      %v3403 = vand.u32 %v3107, 4294901760
      %v3404 = vsub.f32 %v3107, %v3403
      %v3405 = vand.u32 %v3404, 4294901760
      %v3406 = vsub.f32 %v3404, %v3405
      %v3407 = vand.u32 %v3406, 4294901760
      %3408 = vmatpush1.msra.mxu0 %v3407
      %3409 = vmatprep.subr.mxu0 0.0
      %3410 = vmatpush1.msra.mxu0 0.0
      %3411 = vmatprep.subr.mxu0 0.0
      %3412 = vmatpush1.msra.mxu0 0.0
      %3413 = vmatprep.subr.mxu0 0.0
      %3414 = vmatpush1.msra.mxu0 0.0
      %3415 = vmatprep.subr.mxu0 0.0
      %3416 = vmatpush1.msra.mxu0 0.0
      %3417 = vmatprep.subr.mxu0 0.0
      %3418 = vmatpush1.msra.mxu0 0.0
      %3419 = vmatprep.subr.mxu0 0.0
      %3420 = vmatpush1.msra.mxu0 0.0
      %3421 = vmatprep.subr.mxu0 0.0
      %3422 = vmatpush1.msra.mxu0 0.0
      %3423 = vmatprep.subr.mxu0 0.0
      %3424 = vmatpush1.msra.mxu0 0.0
      %3425 = vmatprep.subr.mxu0 0.0
      %3426 = vmatpush1.msra.mxu0 0.0
      %3427 = vmatprep.subr.mxu0 0.0
      %3428 = vmatpush1.msra.mxu0 0.0
      %3429 = vmatprep.subr.mxu0 0.0
      %3430 = vmatpush1.msra.mxu0 0.0
      %3431 = vmatprep.subr.mxu0 0.0
      %3432 = vmatpush1.msra.mxu0 0.0
      %3433 = vmatprep.subr.mxu0 0.0
      %3434 = vmatpush1.msra.mxu0 0.0
      %3435 = vmatprep.subr.mxu0 0.0
      %3436 = vmatpush1.msra.mxu0 0.0
      %3437 = vmatprep.subr.mxu0 0.0
      %3438 = vmatpush1.msra.mxu0 0.0
      %3439 = vmatprep.subr.mxu0 0.0
      %3440 = vmatpush1.msra.mxu0 0.0
      %3441 = vmatprep.mubr.f32.mxu0 0.0
      %v3442 = vand.u32 %v3071, 4294901760
      %3443 = vmatmul.mubr.f32.gmra.mrb[0].mxu0 %v3442
      %v3444 = vpop.f32.mrb[0].mxu0
      %v3445 = vadd.f32 %v3213, %v3444
      %v3446 = vpop.f32.mrb[0].mxu0
      %v3447 = vadd.f32 %v3215, %v3446
      %3448 = vdwg.mxu0
      %v3449 = vand.u32 %v3078, 4294901760
      %v3450 = vsub.f32 %v3078, %v3449
      %3451 = vmatprep.subr.mxu0 %v3450
      %v3452 = vand.u32 %v3077, 4294901760
      %v3453 = vsub.f32 %v3077, %v3452
      %3454 = vmatpush1.msra.mxu0 %v3453
      %v3455 = vand.u32 %v3080, 4294901760
      %v3456 = vsub.f32 %v3080, %v3455
      %3457 = vmatprep.subr.mxu0 %v3456
      %v3458 = vand.u32 %v3079, 4294901760
      %v3459 = vsub.f32 %v3079, %v3458
      %3460 = vmatpush1.msra.mxu0 %v3459
      %v3461 = vand.u32 %v3082, 4294901760
      %v3462 = vsub.f32 %v3082, %v3461
      %3463 = vmatprep.subr.mxu0 %v3462
      %v3464 = vand.u32 %v3081, 4294901760
      %v3465 = vsub.f32 %v3081, %v3464
      %3466 = vmatpush1.msra.mxu0 %v3465
      %v3467 = vand.u32 %v3084, 4294901760
      %v3468 = vsub.f32 %v3084, %v3467
      %3469 = vmatprep.subr.mxu0 %v3468
      %v3470 = vand.u32 %v3083, 4294901760
      %v3471 = vsub.f32 %v3083, %v3470
      %3472 = vmatpush1.msra.mxu0 %v3471
      %v3473 = vand.u32 %v3086, 4294901760
      %v3474 = vsub.f32 %v3086, %v3473
      %3475 = vmatprep.subr.mxu0 %v3474
      %v3476 = vand.u32 %v3085, 4294901760
      %v3477 = vsub.f32 %v3085, %v3476
      %3478 = vmatpush1.msra.mxu0 %v3477
      %v3479 = vand.u32 %v3088, 4294901760
      %v3480 = vsub.f32 %v3088, %v3479
      %3481 = vmatprep.subr.mxu0 %v3480
      %v3482 = vand.u32 %v3087, 4294901760
      %v3483 = vsub.f32 %v3087, %v3482
      %3484 = vmatpush1.msra.mxu0 %v3483
      %v3485 = vand.u32 %v3090, 4294901760
      %v3486 = vsub.f32 %v3090, %v3485
      %3487 = vmatprep.subr.mxu0 %v3486
      %v3488 = vand.u32 %v3089, 4294901760
      %v3489 = vsub.f32 %v3089, %v3488
      %3490 = vmatpush1.msra.mxu0 %v3489
      %v3491 = vand.u32 %v3092, 4294901760
      %v3492 = vsub.f32 %v3092, %v3491
      %3493 = vmatprep.subr.mxu0 %v3492
      %v3494 = vand.u32 %v3091, 4294901760
      %v3495 = vsub.f32 %v3091, %v3494
      %3496 = vmatpush1.msra.mxu0 %v3495
      %v3497 = vand.u32 %v3094, 4294901760
      %v3498 = vsub.f32 %v3094, %v3497
      %3499 = vmatprep.subr.mxu0 %v3498
      %v3500 = vand.u32 %v3093, 4294901760
      %v3501 = vsub.f32 %v3093, %v3500
      %3502 = vmatpush1.msra.mxu0 %v3501
      %v3503 = vand.u32 %v3096, 4294901760
      %v3504 = vsub.f32 %v3096, %v3503
      %3505 = vmatprep.subr.mxu0 %v3504
      %v3506 = vand.u32 %v3095, 4294901760
      %v3507 = vsub.f32 %v3095, %v3506
      %3508 = vmatpush1.msra.mxu0 %v3507
      %v3509 = vand.u32 %v3098, 4294901760
      %v3510 = vsub.f32 %v3098, %v3509
      %3511 = vmatprep.subr.mxu0 %v3510
      %v3512 = vand.u32 %v3097, 4294901760
      %v3513 = vsub.f32 %v3097, %v3512
      %3514 = vmatpush1.msra.mxu0 %v3513
      %v3515 = vand.u32 %v3100, 4294901760
      %v3516 = vsub.f32 %v3100, %v3515
      %3517 = vmatprep.subr.mxu0 %v3516
      %v3518 = vand.u32 %v3099, 4294901760
      %v3519 = vsub.f32 %v3099, %v3518
      %3520 = vmatpush1.msra.mxu0 %v3519
      %v3521 = vand.u32 %v3102, 4294901760
      %v3522 = vsub.f32 %v3102, %v3521
      %3523 = vmatprep.subr.mxu0 %v3522
      %v3524 = vand.u32 %v3101, 4294901760
      %v3525 = vsub.f32 %v3101, %v3524
      %3526 = vmatpush1.msra.mxu0 %v3525
      %v3527 = vand.u32 %v3104, 4294901760
      %v3528 = vsub.f32 %v3104, %v3527
      %3529 = vmatprep.subr.mxu0 %v3528
      %v3530 = vand.u32 %v3103, 4294901760
      %v3531 = vsub.f32 %v3103, %v3530
      %3532 = vmatpush1.msra.mxu0 %v3531
      %v3533 = vand.u32 %v3106, 4294901760
      %v3534 = vsub.f32 %v3106, %v3533
      %3535 = vmatprep.subr.mxu0 %v3534
      %v3536 = vand.u32 %v3105, 4294901760
      %v3537 = vsub.f32 %v3105, %v3536
      %3538 = vmatpush1.msra.mxu0 %v3537
      %v3539 = vand.u32 %v3108, 4294901760
      %v3540 = vsub.f32 %v3108, %v3539
      %3541 = vmatprep.subr.mxu0 %v3540
      %v3542 = vand.u32 %v3107, 4294901760
      %v3543 = vsub.f32 %v3107, %v3542
      %3544 = vmatpush1.msra.mxu0 %v3543
      %3545 = vmatprep.subr.mxu0 0.0
      %3546 = vmatpush1.msra.mxu0 0.0
      %3547 = vmatprep.subr.mxu0 0.0
      %3548 = vmatpush1.msra.mxu0 0.0
      %3549 = vmatprep.subr.mxu0 0.0
      %3550 = vmatpush1.msra.mxu0 0.0
      %3551 = vmatprep.subr.mxu0 0.0
      %3552 = vmatpush1.msra.mxu0 0.0
      %3553 = vmatprep.subr.mxu0 0.0
      %3554 = vmatpush1.msra.mxu0 0.0
      %3555 = vmatprep.subr.mxu0 0.0
      %3556 = vmatpush1.msra.mxu0 0.0
      %3557 = vmatprep.subr.mxu0 0.0
      %3558 = vmatpush1.msra.mxu0 0.0
      %3559 = vmatprep.subr.mxu0 0.0
      %3560 = vmatpush1.msra.mxu0 0.0
      %3561 = vmatprep.subr.mxu0 0.0
      %3562 = vmatpush1.msra.mxu0 0.0
      %3563 = vmatprep.subr.mxu0 0.0
      %3564 = vmatpush1.msra.mxu0 0.0
      %3565 = vmatprep.subr.mxu0 0.0
      %3566 = vmatpush1.msra.mxu0 0.0
      %3567 = vmatprep.subr.mxu0 0.0
      %3568 = vmatpush1.msra.mxu0 0.0
      %3569 = vmatprep.subr.mxu0 0.0
      %3570 = vmatpush1.msra.mxu0 0.0
      %3571 = vmatprep.subr.mxu0 0.0
      %3572 = vmatpush1.msra.mxu0 0.0
      %3573 = vmatprep.subr.mxu0 0.0
      %3574 = vmatpush1.msra.mxu0 0.0
      %3575 = vmatprep.subr.mxu0 0.0
      %3576 = vmatpush1.msra.mxu0 0.0
      %3577 = vmatprep.mubr.f32.mxu0 0.0
      %v3578 = vand.u32 %v3071, 4294901760
      %v3579 = vsub.f32 %v3071, %v3578
      %3580 = vmatmul.mubr.f32.gmra.mrb[0].mxu0 %v3579
      %v3581 = vpop.f32.mrb[0].mxu0
      %v3582 = vadd.f32 %v3445, %v3581
      %v3583 = vpop.f32.mrb[0].mxu0
      %v3584 = vadd.f32 %v3447, %v3583
      %3585 = vdwg.mxu0
      %v3586 = vand.u32 %v3078, 4294901760
      %3587 = vmatprep.subr.mxu0 %v3586
      %v3588 = vand.u32 %v3077, 4294901760
      %3589 = vmatpush1.msra.mxu0 %v3588
      %v3590 = vand.u32 %v3080, 4294901760
      %3591 = vmatprep.subr.mxu0 %v3590
      %v3592 = vand.u32 %v3079, 4294901760
      %3593 = vmatpush1.msra.mxu0 %v3592
      %v3594 = vand.u32 %v3082, 4294901760
      %3595 = vmatprep.subr.mxu0 %v3594
      %v3596 = vand.u32 %v3081, 4294901760
      %3597 = vmatpush1.msra.mxu0 %v3596
      %v3598 = vand.u32 %v3084, 4294901760
      %3599 = vmatprep.subr.mxu0 %v3598
      %v3600 = vand.u32 %v3083, 4294901760
      %3601 = vmatpush1.msra.mxu0 %v3600
      %v3602 = vand.u32 %v3086, 4294901760
      %3603 = vmatprep.subr.mxu0 %v3602
      %v3604 = vand.u32 %v3085, 4294901760
      %3605 = vmatpush1.msra.mxu0 %v3604
      %v3606 = vand.u32 %v3088, 4294901760
      %3607 = vmatprep.subr.mxu0 %v3606
      %v3608 = vand.u32 %v3087, 4294901760
      %3609 = vmatpush1.msra.mxu0 %v3608
      %v3610 = vand.u32 %v3090, 4294901760
      %3611 = vmatprep.subr.mxu0 %v3610
      %v3612 = vand.u32 %v3089, 4294901760
      %3613 = vmatpush1.msra.mxu0 %v3612
      %v3614 = vand.u32 %v3092, 4294901760
      %3615 = vmatprep.subr.mxu0 %v3614
      %v3616 = vand.u32 %v3091, 4294901760
      %3617 = vmatpush1.msra.mxu0 %v3616
      %v3618 = vand.u32 %v3094, 4294901760
      %3619 = vmatprep.subr.mxu0 %v3618
      %v3620 = vand.u32 %v3093, 4294901760
      %3621 = vmatpush1.msra.mxu0 %v3620
      %v3622 = vand.u32 %v3096, 4294901760
      %3623 = vmatprep.subr.mxu0 %v3622
      %v3624 = vand.u32 %v3095, 4294901760
      %3625 = vmatpush1.msra.mxu0 %v3624
      %v3626 = vand.u32 %v3098, 4294901760
      %3627 = vmatprep.subr.mxu0 %v3626
      %v3628 = vand.u32 %v3097, 4294901760
      %3629 = vmatpush1.msra.mxu0 %v3628
      %v3630 = vand.u32 %v3100, 4294901760
      %3631 = vmatprep.subr.mxu0 %v3630
      %v3632 = vand.u32 %v3099, 4294901760
      %3633 = vmatpush1.msra.mxu0 %v3632
      %v3634 = vand.u32 %v3102, 4294901760
      %3635 = vmatprep.subr.mxu0 %v3634
      %v3636 = vand.u32 %v3101, 4294901760
      %3637 = vmatpush1.msra.mxu0 %v3636
      %v3638 = vand.u32 %v3104, 4294901760
      %3639 = vmatprep.subr.mxu0 %v3638
      %v3640 = vand.u32 %v3103, 4294901760
      %3641 = vmatpush1.msra.mxu0 %v3640
      %v3642 = vand.u32 %v3106, 4294901760
      %3643 = vmatprep.subr.mxu0 %v3642
      %v3644 = vand.u32 %v3105, 4294901760
      %3645 = vmatpush1.msra.mxu0 %v3644
      %v3646 = vand.u32 %v3108, 4294901760
      %3647 = vmatprep.subr.mxu0 %v3646
      %v3648 = vand.u32 %v3107, 4294901760
      %3649 = vmatpush1.msra.mxu0 %v3648
      %3650 = vmatprep.subr.mxu0 0.0
      %3651 = vmatpush1.msra.mxu0 0.0
      %3652 = vmatprep.subr.mxu0 0.0
      %3653 = vmatpush1.msra.mxu0 0.0
      %3654 = vmatprep.subr.mxu0 0.0
      %3655 = vmatpush1.msra.mxu0 0.0
      %3656 = vmatprep.subr.mxu0 0.0
      %3657 = vmatpush1.msra.mxu0 0.0
      %3658 = vmatprep.subr.mxu0 0.0
      %3659 = vmatpush1.msra.mxu0 0.0
      %3660 = vmatprep.subr.mxu0 0.0
      %3661 = vmatpush1.msra.mxu0 0.0
      %3662 = vmatprep.subr.mxu0 0.0
      %3663 = vmatpush1.msra.mxu0 0.0
      %3664 = vmatprep.subr.mxu0 0.0
      %3665 = vmatpush1.msra.mxu0 0.0
      %3666 = vmatprep.subr.mxu0 0.0
      %3667 = vmatpush1.msra.mxu0 0.0
      %3668 = vmatprep.subr.mxu0 0.0
      %3669 = vmatpush1.msra.mxu0 0.0
      %3670 = vmatprep.subr.mxu0 0.0
      %3671 = vmatpush1.msra.mxu0 0.0
      %3672 = vmatprep.subr.mxu0 0.0
      %3673 = vmatpush1.msra.mxu0 0.0
      %3674 = vmatprep.subr.mxu0 0.0
      %3675 = vmatpush1.msra.mxu0 0.0
      %3676 = vmatprep.subr.mxu0 0.0
      %3677 = vmatpush1.msra.mxu0 0.0
      %3678 = vmatprep.subr.mxu0 0.0
      %3679 = vmatpush1.msra.mxu0 0.0
      %3680 = vmatprep.subr.mxu0 0.0
      %3681 = vmatpush1.msra.mxu0 0.0
      %3682 = vmatprep.mubr.f32.mxu0 0.0
      %v3683 = vand.u32 %v3071, 4294901760
      %v3684 = vsub.f32 %v3071, %v3683
      %v3685 = vand.u32 %v3684, 4294901760
      %3686 = vmatmul.mubr.f32.gmra.mrb[0].mxu0 %v3685
      %v3687 = vpop.f32.mrb[0].mxu0
      %v3688 = vadd.f32 %v3582, %v3687
      %v3689 = vpop.f32.mrb[0].mxu0
      %v3690 = vadd.f32 %v3584, %v3689
      %3691 = vdwg.mxu0
      %v3692 = vand.u32 %v3078, 4294901760
      %v3693 = vsub.f32 %v3078, %v3692
      %v3694 = vand.u32 %v3693, 4294901760
      %3695 = vmatprep.subr.mxu0 %v3694
      %v3696 = vand.u32 %v3077, 4294901760
      %v3697 = vsub.f32 %v3077, %v3696
      %v3698 = vand.u32 %v3697, 4294901760
      %3699 = vmatpush1.msra.mxu0 %v3698
      %v3700 = vand.u32 %v3080, 4294901760
      %v3701 = vsub.f32 %v3080, %v3700
      %v3702 = vand.u32 %v3701, 4294901760
      %3703 = vmatprep.subr.mxu0 %v3702
      %v3704 = vand.u32 %v3079, 4294901760
      %v3705 = vsub.f32 %v3079, %v3704
      %v3706 = vand.u32 %v3705, 4294901760
      %3707 = vmatpush1.msra.mxu0 %v3706
      %v3708 = vand.u32 %v3082, 4294901760
      %v3709 = vsub.f32 %v3082, %v3708
      %v3710 = vand.u32 %v3709, 4294901760
      %3711 = vmatprep.subr.mxu0 %v3710
      %v3712 = vand.u32 %v3081, 4294901760
      %v3713 = vsub.f32 %v3081, %v3712
      %v3714 = vand.u32 %v3713, 4294901760
      %3715 = vmatpush1.msra.mxu0 %v3714
      %v3716 = vand.u32 %v3084, 4294901760
      %v3717 = vsub.f32 %v3084, %v3716
      %v3718 = vand.u32 %v3717, 4294901760
      %3719 = vmatprep.subr.mxu0 %v3718
      %v3720 = vand.u32 %v3083, 4294901760
      %v3721 = vsub.f32 %v3083, %v3720
      %v3722 = vand.u32 %v3721, 4294901760
      %3723 = vmatpush1.msra.mxu0 %v3722
      %v3724 = vand.u32 %v3086, 4294901760
      %v3725 = vsub.f32 %v3086, %v3724
      %v3726 = vand.u32 %v3725, 4294901760
      %3727 = vmatprep.subr.mxu0 %v3726
      %v3728 = vand.u32 %v3085, 4294901760
      %v3729 = vsub.f32 %v3085, %v3728
      %v3730 = vand.u32 %v3729, 4294901760
      %3731 = vmatpush1.msra.mxu0 %v3730
      %v3732 = vand.u32 %v3088, 4294901760
      %v3733 = vsub.f32 %v3088, %v3732
      %v3734 = vand.u32 %v3733, 4294901760
      %3735 = vmatprep.subr.mxu0 %v3734
      %v3736 = vand.u32 %v3087, 4294901760
      %v3737 = vsub.f32 %v3087, %v3736
      %v3738 = vand.u32 %v3737, 4294901760
      %3739 = vmatpush1.msra.mxu0 %v3738
      %v3740 = vand.u32 %v3090, 4294901760
      %v3741 = vsub.f32 %v3090, %v3740
      %v3742 = vand.u32 %v3741, 4294901760
      %3743 = vmatprep.subr.mxu0 %v3742
      %v3744 = vand.u32 %v3089, 4294901760
      %v3745 = vsub.f32 %v3089, %v3744
      %v3746 = vand.u32 %v3745, 4294901760
      %3747 = vmatpush1.msra.mxu0 %v3746
      %v3748 = vand.u32 %v3092, 4294901760
      %v3749 = vsub.f32 %v3092, %v3748
      %v3750 = vand.u32 %v3749, 4294901760
      %3751 = vmatprep.subr.mxu0 %v3750
      %v3752 = vand.u32 %v3091, 4294901760
      %v3753 = vsub.f32 %v3091, %v3752
      %v3754 = vand.u32 %v3753, 4294901760
      %3755 = vmatpush1.msra.mxu0 %v3754
      %v3756 = vand.u32 %v3094, 4294901760
      %v3757 = vsub.f32 %v3094, %v3756
      %v3758 = vand.u32 %v3757, 4294901760
      %3759 = vmatprep.subr.mxu0 %v3758
      %v3760 = vand.u32 %v3093, 4294901760
      %v3761 = vsub.f32 %v3093, %v3760
      %v3762 = vand.u32 %v3761, 4294901760
      %3763 = vmatpush1.msra.mxu0 %v3762
      %v3764 = vand.u32 %v3096, 4294901760
      %v3765 = vsub.f32 %v3096, %v3764
      %v3766 = vand.u32 %v3765, 4294901760
      %3767 = vmatprep.subr.mxu0 %v3766
      %v3768 = vand.u32 %v3095, 4294901760
      %v3769 = vsub.f32 %v3095, %v3768
      %v3770 = vand.u32 %v3769, 4294901760
      %3771 = vmatpush1.msra.mxu0 %v3770
      %v3772 = vand.u32 %v3098, 4294901760
      %v3773 = vsub.f32 %v3098, %v3772
      %v3774 = vand.u32 %v3773, 4294901760
      %3775 = vmatprep.subr.mxu0 %v3774
      %v3776 = vand.u32 %v3097, 4294901760
      %v3777 = vsub.f32 %v3097, %v3776
      %v3778 = vand.u32 %v3777, 4294901760
      %3779 = vmatpush1.msra.mxu0 %v3778
      %v3780 = vand.u32 %v3100, 4294901760
      %v3781 = vsub.f32 %v3100, %v3780
      %v3782 = vand.u32 %v3781, 4294901760
      %3783 = vmatprep.subr.mxu0 %v3782
      %v3784 = vand.u32 %v3099, 4294901760
      %v3785 = vsub.f32 %v3099, %v3784
      %v3786 = vand.u32 %v3785, 4294901760
      %3787 = vmatpush1.msra.mxu0 %v3786
      %v3788 = vand.u32 %v3102, 4294901760
      %v3789 = vsub.f32 %v3102, %v3788
      %v3790 = vand.u32 %v3789, 4294901760
      %3791 = vmatprep.subr.mxu0 %v3790
      %v3792 = vand.u32 %v3101, 4294901760
      %v3793 = vsub.f32 %v3101, %v3792
      %v3794 = vand.u32 %v3793, 4294901760
      %3795 = vmatpush1.msra.mxu0 %v3794
      %v3796 = vand.u32 %v3104, 4294901760
      %v3797 = vsub.f32 %v3104, %v3796
      %v3798 = vand.u32 %v3797, 4294901760
      %3799 = vmatprep.subr.mxu0 %v3798
      %v3800 = vand.u32 %v3103, 4294901760
      %v3801 = vsub.f32 %v3103, %v3800
      %v3802 = vand.u32 %v3801, 4294901760
      %3803 = vmatpush1.msra.mxu0 %v3802
      %v3804 = vand.u32 %v3106, 4294901760
      %v3805 = vsub.f32 %v3106, %v3804
      %v3806 = vand.u32 %v3805, 4294901760
      %3807 = vmatprep.subr.mxu0 %v3806
      %v3808 = vand.u32 %v3105, 4294901760
      %v3809 = vsub.f32 %v3105, %v3808
      %v3810 = vand.u32 %v3809, 4294901760
      %3811 = vmatpush1.msra.mxu0 %v3810
      %v3812 = vand.u32 %v3108, 4294901760
      %v3813 = vsub.f32 %v3108, %v3812
      %v3814 = vand.u32 %v3813, 4294901760
      %3815 = vmatprep.subr.mxu0 %v3814
      %v3816 = vand.u32 %v3107, 4294901760
      %v3817 = vsub.f32 %v3107, %v3816
      %v3818 = vand.u32 %v3817, 4294901760
      %3819 = vmatpush1.msra.mxu0 %v3818
      %3820 = vmatprep.subr.mxu0 0.0
      %3821 = vmatpush1.msra.mxu0 0.0
      %3822 = vmatprep.subr.mxu0 0.0
      %3823 = vmatpush1.msra.mxu0 0.0
      %3824 = vmatprep.subr.mxu0 0.0
      %3825 = vmatpush1.msra.mxu0 0.0
      %3826 = vmatprep.subr.mxu0 0.0
      %3827 = vmatpush1.msra.mxu0 0.0
      %3828 = vmatprep.subr.mxu0 0.0
      %3829 = vmatpush1.msra.mxu0 0.0
      %3830 = vmatprep.subr.mxu0 0.0
      %3831 = vmatpush1.msra.mxu0 0.0
      %3832 = vmatprep.subr.mxu0 0.0
      %3833 = vmatpush1.msra.mxu0 0.0
      %3834 = vmatprep.subr.mxu0 0.0
      %3835 = vmatpush1.msra.mxu0 0.0
      %3836 = vmatprep.subr.mxu0 0.0
      %3837 = vmatpush1.msra.mxu0 0.0
      %3838 = vmatprep.subr.mxu0 0.0
      %3839 = vmatpush1.msra.mxu0 0.0
      %3840 = vmatprep.subr.mxu0 0.0
      %3841 = vmatpush1.msra.mxu0 0.0
      %3842 = vmatprep.subr.mxu0 0.0
      %3843 = vmatpush1.msra.mxu0 0.0
      %3844 = vmatprep.subr.mxu0 0.0
      %3845 = vmatpush1.msra.mxu0 0.0
      %3846 = vmatprep.subr.mxu0 0.0
      %3847 = vmatpush1.msra.mxu0 0.0
      %3848 = vmatprep.subr.mxu0 0.0
      %3849 = vmatpush1.msra.mxu0 0.0
      %3850 = vmatprep.subr.mxu0 0.0
      %3851 = vmatpush1.msra.mxu0 0.0
      %3852 = vmatprep.mubr.f32.mxu0 0.0
      %v3853 = vand.u32 %v3071, 4294901760
      %3854 = vmatmul.mubr.f32.gmra.mrb[0].mxu0 %v3853
      %v3855 = vpop.f32.mrb[0].mxu0
      %v3856 = vadd.f32 %v3688, %v3855
      %v3857 = vpop.f32.mrb[0].mxu0
      %v3858 = vadd.f32 %v3690, %v3857
      %3859 = vdwg.mxu0
      %v3860 = vand.u32 %v3078, 4294901760
      %3861 = vmatprep.subr.mxu0 %v3860
      %v3862 = vand.u32 %v3077, 4294901760
      %3863 = vmatpush1.msra.mxu0 %v3862
      %v3864 = vand.u32 %v3080, 4294901760
      %3865 = vmatprep.subr.mxu0 %v3864
      %v3866 = vand.u32 %v3079, 4294901760
      %3867 = vmatpush1.msra.mxu0 %v3866
      %v3868 = vand.u32 %v3082, 4294901760
      %3869 = vmatprep.subr.mxu0 %v3868
      %v3870 = vand.u32 %v3081, 4294901760
      %3871 = vmatpush1.msra.mxu0 %v3870
      %v3872 = vand.u32 %v3084, 4294901760
      %3873 = vmatprep.subr.mxu0 %v3872
      %v3874 = vand.u32 %v3083, 4294901760
      %3875 = vmatpush1.msra.mxu0 %v3874
      %v3876 = vand.u32 %v3086, 4294901760
      %3877 = vmatprep.subr.mxu0 %v3876
      %v3878 = vand.u32 %v3085, 4294901760
      %3879 = vmatpush1.msra.mxu0 %v3878
      %v3880 = vand.u32 %v3088, 4294901760
      %3881 = vmatprep.subr.mxu0 %v3880
      %v3882 = vand.u32 %v3087, 4294901760
      %3883 = vmatpush1.msra.mxu0 %v3882
      %v3884 = vand.u32 %v3090, 4294901760
      %3885 = vmatprep.subr.mxu0 %v3884
      %v3886 = vand.u32 %v3089, 4294901760
      %3887 = vmatpush1.msra.mxu0 %v3886
      %v3888 = vand.u32 %v3092, 4294901760
      %3889 = vmatprep.subr.mxu0 %v3888
      %v3890 = vand.u32 %v3091, 4294901760
      %3891 = vmatpush1.msra.mxu0 %v3890
      %v3892 = vand.u32 %v3094, 4294901760
      %3893 = vmatprep.subr.mxu0 %v3892
      %v3894 = vand.u32 %v3093, 4294901760
      %3895 = vmatpush1.msra.mxu0 %v3894
      %v3896 = vand.u32 %v3096, 4294901760
      %3897 = vmatprep.subr.mxu0 %v3896
      %v3898 = vand.u32 %v3095, 4294901760
      %3899 = vmatpush1.msra.mxu0 %v3898
      %v3900 = vand.u32 %v3098, 4294901760
      %3901 = vmatprep.subr.mxu0 %v3900
      %v3902 = vand.u32 %v3097, 4294901760
      %3903 = vmatpush1.msra.mxu0 %v3902
      %v3904 = vand.u32 %v3100, 4294901760
      %3905 = vmatprep.subr.mxu0 %v3904
      %v3906 = vand.u32 %v3099, 4294901760
      %3907 = vmatpush1.msra.mxu0 %v3906
      %v3908 = vand.u32 %v3102, 4294901760
      %3909 = vmatprep.subr.mxu0 %v3908
      %v3910 = vand.u32 %v3101, 4294901760
      %3911 = vmatpush1.msra.mxu0 %v3910
      %v3912 = vand.u32 %v3104, 4294901760
      %3913 = vmatprep.subr.mxu0 %v3912
      %v3914 = vand.u32 %v3103, 4294901760
      %3915 = vmatpush1.msra.mxu0 %v3914
      %v3916 = vand.u32 %v3106, 4294901760
      %3917 = vmatprep.subr.mxu0 %v3916
      %v3918 = vand.u32 %v3105, 4294901760
      %3919 = vmatpush1.msra.mxu0 %v3918
      %v3920 = vand.u32 %v3108, 4294901760
      %3921 = vmatprep.subr.mxu0 %v3920
      %v3922 = vand.u32 %v3107, 4294901760
      %3923 = vmatpush1.msra.mxu0 %v3922
      %3924 = vmatprep.subr.mxu0 0.0
      %3925 = vmatpush1.msra.mxu0 0.0
      %3926 = vmatprep.subr.mxu0 0.0
      %3927 = vmatpush1.msra.mxu0 0.0
      %3928 = vmatprep.subr.mxu0 0.0
      %3929 = vmatpush1.msra.mxu0 0.0
      %3930 = vmatprep.subr.mxu0 0.0
      %3931 = vmatpush1.msra.mxu0 0.0
      %3932 = vmatprep.subr.mxu0 0.0
      %3933 = vmatpush1.msra.mxu0 0.0
      %3934 = vmatprep.subr.mxu0 0.0
      %3935 = vmatpush1.msra.mxu0 0.0
      %3936 = vmatprep.subr.mxu0 0.0
      %3937 = vmatpush1.msra.mxu0 0.0
      %3938 = vmatprep.subr.mxu0 0.0
      %3939 = vmatpush1.msra.mxu0 0.0
      %3940 = vmatprep.subr.mxu0 0.0
      %3941 = vmatpush1.msra.mxu0 0.0
      %3942 = vmatprep.subr.mxu0 0.0
      %3943 = vmatpush1.msra.mxu0 0.0
      %3944 = vmatprep.subr.mxu0 0.0
      %3945 = vmatpush1.msra.mxu0 0.0
      %3946 = vmatprep.subr.mxu0 0.0
      %3947 = vmatpush1.msra.mxu0 0.0
      %3948 = vmatprep.subr.mxu0 0.0
      %3949 = vmatpush1.msra.mxu0 0.0
      %3950 = vmatprep.subr.mxu0 0.0
      %3951 = vmatpush1.msra.mxu0 0.0
      %3952 = vmatprep.subr.mxu0 0.0
      %3953 = vmatpush1.msra.mxu0 0.0
      %3954 = vmatprep.subr.mxu0 0.0
      %3955 = vmatpush1.msra.mxu0 0.0
      %3956 = vmatprep.mubr.f32.mxu0 0.0
      %v3957 = vand.u32 %v3071, 4294901760
      %3958 = vmatmul.mubr.f32.gmra.mrb[0].mxu0 %v3957
      %v3959 = vpop.f32.mrb[0].mxu0
      %v3960 = vadd.f32 %v3856, %v3959
      %v3961 = vpop.f32.mrb[0].mxu0
      %v3962 = vadd.f32 %v3858, %v3961
      %3963 = vdwg.mxu0
      %v3964 = vstv %s3076
      %v3965 = vmul.f32 %v3964, %v3960
      %v3966 = vmul.f32 %v3964, %v3962
      %v3967 = vadd.f32 %v3074, %v3965
      %v3968 = vadd.f32 %v3075, %v3966
      %v3969 = vadd.s32 %v1281, 128
      %v3970 = vand.u32 %v1281, 15
      %v3971 = vand.u32 %v3969, 15
      %s3972 = scalar_lea.vmem %s5, 16
      %v3973 = vld [vmem:[%s3972] sm:$0xff]
      %3975 = vset.pattern.permute.xlu0 4
      %3976 = vperm.xlu0 %3975, %v3973
      %v3977 = vpop.permute.xlu0 %3976
      %v3979 = vmul.f32 %v3967, %v3977
      %v3980 = vmul.f32 %v3968, %v3977
      %3981 = vrot.lane.b32.xlu0 %v3967, 17
      %v3982 = vpop.permute.xlu0 %3981
      %3983 = vrot.lane.b32.xlu0 %v3968, 17
      %v3984 = vpop.permute.xlu0 %3983
      %vm3985 = vcmp.lt.s32.totalorder %v1281, 17
      %v3986 = vsel %vm3985, %v3982, %v3984
      %v3987 = vsel %vm3985, %v3984, %v3982
      %vm3988 = vcmp.ge.s32.totalorder %v1281, 16
      %vm3989 = vcmp.ge.s32.totalorder %v3969, 16
      %vm3990 = vcmp.ne.s32.totalorder %v3970, 0
      %vm3991 = vcmp.ne.s32.totalorder %v3971, 0
      %vm3992 = vmand %vm3988, %vm3990
      %vm3993 = vmand %vm3989, %vm3991
      %v3994 = vsel %vm3992, 1, 0
      %v3995 = vsel %vm3993, 1, 0
      %v3996 = vcvt.s32.f32 %v3994
      %v3997 = vcvt.s32.f32 %v3995
      %v3998 = vmul.f32 %v3987, %v3996
      %v3999 = vmul.f32 %v3986, %v3997
      %4000 = vset.pattern.permute.xlu0 0
      %4001 = vperm.xlu0 %4000, %v3973
      %v4002 = vpop.permute.xlu0 %4001
      %v4004 = vmul.f32 %v3998, %v4002
      %v4005 = vmul.f32 %v3999, %v4002
      %v4006 = vadd.f32 %v3979, %v4004
      %v4007 = vadd.f32 %v3980, %v4005
      %4008 = vrot.lane.b32.xlu0 %v3967, 16
      %v4009 = vpop.permute.xlu0 %4008
      %4010 = vrot.lane.b32.xlu0 %v3968, 16
      %v4011 = vpop.permute.xlu0 %4010
      %vm4012 = vcmp.lt.s32.totalorder %v1281, 16
      %v4013 = vsel %vm4012, %v4009, %v4011
      %v4014 = vsel %vm4012, %v4011, %v4009
      %v4015 = vsel %vm3988, 1, 0
      %v4016 = vsel %vm3989, 1, 0
      %v4017 = vcvt.s32.f32 %v4015
      %v4018 = vcvt.s32.f32 %v4016
      %v4019 = vmul.f32 %v4014, %v4017
      %v4020 = vmul.f32 %v4013, %v4018
      %4021 = vset.pattern.permute.xlu0 1
      %4022 = vperm.xlu0 %4021, %v3973
      %v4023 = vpop.permute.xlu0 %4022
      %v4025 = vmul.f32 %v4019, %v4023
      %v4026 = vmul.f32 %v4020, %v4023
      %v4027 = vadd.f32 %v4006, %v4025
      %v4028 = vadd.f32 %v4007, %v4026
      %4029 = vrot.lane.b32.xlu0 %v3967, 15
      %v4030 = vpop.permute.xlu0 %4029
      %4031 = vrot.lane.b32.xlu0 %v3968, 15
      %v4032 = vpop.permute.xlu0 %4031
      %vm4033 = vcmp.lt.s32.totalorder %v1281, 15
      %v4034 = vsel %vm4033, %v4030, %v4032
      %v4035 = vsel %vm4033, %v4032, %v4030
      %vm4036 = vcmp.ne.s32.totalorder %v3970, 15
      %vm4037 = vcmp.ne.s32.totalorder %v3971, 15
      %vm4038 = vmand %vm3988, %vm4036
      %vm4039 = vmand %vm3989, %vm4037
      %v4040 = vsel %vm4038, 1, 0
      %v4041 = vsel %vm4039, 1, 0
      %v4042 = vcvt.s32.f32 %v4040
      %v4043 = vcvt.s32.f32 %v4041
      %v4044 = vmul.f32 %v4035, %v4042
      %v4045 = vmul.f32 %v4034, %v4043
      %4046 = vset.pattern.permute.xlu0 2
      %4047 = vperm.xlu0 %4046, %v3973
      %v4048 = vpop.permute.xlu0 %4047
      %v4050 = vmul.f32 %v4044, %v4048
      %v4051 = vmul.f32 %v4045, %v4048
      %v4052 = vadd.f32 %v4027, %v4050
      %v4053 = vadd.f32 %v4028, %v4051
      %4054 = vrot.lane.b32.xlu0 %v3967, 1
      %v4055 = vpop.permute.xlu0 %4054
      %4056 = vrot.lane.b32.xlu0 %v3968, 1
      %v4057 = vpop.permute.xlu0 %4056
      %vm4058 = vcmp.lt.s32.totalorder %v1281, 1
      %v4059 = vsel %vm4058, %v4055, %v4057
      %v4060 = vsel %vm4058, %v4057, %v4055
      %v4061 = vsel %vm3990, 1, 0
      %v4062 = vsel %vm3991, 1, 0
      %v4063 = vcvt.s32.f32 %v4061
      %v4064 = vcvt.s32.f32 %v4062
      %v4065 = vmul.f32 %v4060, %v4063
      %v4066 = vmul.f32 %v4059, %v4064
      %4067 = vset.pattern.permute.xlu0 3
      %4068 = vperm.xlu0 %4067, %v3973
      %v4069 = vpop.permute.xlu0 %4068
      %v4071 = vmul.f32 %v4065, %v4069
      %v4072 = vmul.f32 %v4066, %v4069
      %v4073 = vadd.f32 %v4052, %v4071
      %v4074 = vadd.f32 %v4053, %v4072
      %4075 = vrot.lane.b32.xlu0 %v3967, 127
      %v4076 = vpop.permute.xlu0 %4075
      %4077 = vrot.lane.b32.xlu0 %v3968, 127
      %v4078 = vpop.permute.xlu0 %4077
      %vm4079 = vcmp.lt.s32.totalorder %v1281, 127
      %v4080 = vsel %vm4079, %v4076, %v4078
      %v4081 = vsel %vm4079, %v4078, %v4076
      %v4082 = vsel %vm4036, 1, 0
      %v4083 = vsel %vm4037, 1, 0
      %v4084 = vcvt.s32.f32 %v4082
      %v4085 = vcvt.s32.f32 %v4083
      %v4086 = vmul.f32 %v4080, %v4084
      %v4087 = vmul.f32 %v4081, %v4085
      %4088 = vset.pattern.permute.xlu0 5
      %4089 = vperm.xlu0 %4088, %v3973
      %v4090 = vpop.permute.xlu0 %4089
      %v4092 = vmul.f32 %v4086, %v4090
      %v4093 = vmul.f32 %v4087, %v4090
      %v4094 = vadd.f32 %v4073, %v4092
      %v4095 = vadd.f32 %v4074, %v4093
      %4096 = vrot.lane.b32.xlu0 %v3967, 113
      %v4097 = vpop.permute.xlu0 %4096
      %4098 = vrot.lane.b32.xlu0 %v3968, 113
      %v4099 = vpop.permute.xlu0 %4098
      %vm4100 = vcmp.lt.s32.totalorder %v1281, 113
      %v4101 = vsel %vm4100, %v4097, %v4099
      %v4102 = vsel %vm4100, %v4099, %v4097
      %vm4103 = vcmp.lt.s32.totalorder %v1281, 240
      %vm4104 = vcmp.lt.s32.totalorder %v3969, 240
      %vm4105 = vmand %vm4103, %vm3990
      %vm4106 = vmand %vm4104, %vm3991
      %v4107 = vsel %vm4105, 1, 0
      %v4108 = vsel %vm4106, 1, 0
      %v4109 = vcvt.s32.f32 %v4107
      %v4110 = vcvt.s32.f32 %v4108
      %v4111 = vmul.f32 %v4101, %v4109
      %v4112 = vmul.f32 %v4102, %v4110
      %4113 = vset.pattern.permute.xlu0 6
      %4114 = vperm.xlu0 %4113, %v3973
      %v4115 = vpop.permute.xlu0 %4114
      %v4117 = vmul.f32 %v4111, %v4115
      %v4118 = vmul.f32 %v4112, %v4115
      %v4119 = vadd.f32 %v4094, %v4117
      %v4120 = vadd.f32 %v4095, %v4118
      %4121 = vrot.lane.b32.xlu0 %v3967, 112
      %v4122 = vpop.permute.xlu0 %4121
      %4123 = vrot.lane.b32.xlu0 %v3968, 112
      %v4124 = vpop.permute.xlu0 %4123
      %vm4125 = vcmp.lt.s32.totalorder %v1281, 112
      %v4126 = vsel %vm4125, %v4122, %v4124
      %v4127 = vsel %vm4125, %v4124, %v4122
      %v4128 = vsel %vm4103, 1, 0
      %v4129 = vsel %vm4104, 1, 0
      %v4130 = vcvt.s32.f32 %v4128
      %v4131 = vcvt.s32.f32 %v4129
      %v4132 = vmul.f32 %v4126, %v4130
      %v4133 = vmul.f32 %v4127, %v4131
      %4134 = vset.pattern.permute.xlu0 7
      %4135 = vperm.xlu0 %4134, %v3973
      %v4136 = vpop.permute.xlu0 %4135
      %v4138 = vmul.f32 %v4132, %v4136
      %v4139 = vmul.f32 %v4133, %v4136
      %v4140 = vadd.f32 %v4119, %v4138
      %v4141 = vadd.f32 %v4120, %v4139
      %4142 = vrot.lane.b32.xlu0 %v3967, 111
      %v4143 = vpop.permute.xlu0 %4142
      %4144 = vrot.lane.b32.xlu0 %v3968, 111
      %v4145 = vpop.permute.xlu0 %4144
      %vm4146 = vcmp.lt.s32.totalorder %v1281, 111
      %v4147 = vsel %vm4146, %v4143, %v4145
      %v4148 = vsel %vm4146, %v4145, %v4143
      %vm4149 = vmand %vm4103, %vm4036
      %vm4150 = vmand %vm4104, %vm4037
      %v4151 = vsel %vm4149, 1, 0
      %v4152 = vsel %vm4150, 1, 0
      %v4153 = vcvt.s32.f32 %v4151
      %v4154 = vcvt.s32.f32 %v4152
      %v4155 = vmul.f32 %v4147, %v4153
      %v4156 = vmul.f32 %v4148, %v4154
      %4157 = vset.pattern.permute.xlu0 8
      %4158 = vperm.xlu0 %4157, %v3973
      %v4159 = vpop.permute.xlu0 %4158
      %v4161 = vmul.f32 %v4155, %v4159
      %v4162 = vmul.f32 %v4156, %v4159
      %v4163 = vadd.f32 %v4140, %v4161
      %v4164 = vadd.f32 %v4141, %v4162
      %s4165 = scalar_lea.vmem %s6, 16
      %v4166 = vld [vmem:[%s4165] sm:$0xff]
      %s4167 = scalar_lea.vmem %s7, 16
      %v4168 = vld [vmem:[%s4167] sm:$0xff]
      %4170 = vset.pattern.permute.xlu0 0
      %4171 = vperm.xlu0 %4170, %v4168
      %v4172 = vpop.permute.xlu0 %4171
      %v4175 = vsel %vm1393, %v4166, 0
      %v4177 = vand.u32 %v4164, 4294901760
      %4178 = vmatprep.subr.mxu0 %v4177
      %v4179 = vand.u32 %v4163, 4294901760
      %4180 = vmatpush1.msra.mxu0 %v4179
      %4181 = vmatprep.subr.mxu0 0.0
      %4182 = vmatpush1.msra.mxu0 0.0
      %4183 = vmatprep.subr.mxu0 0.0
      %4184 = vmatpush1.msra.mxu0 0.0
      %4185 = vmatprep.subr.mxu0 0.0
      %4186 = vmatpush1.msra.mxu0 0.0
      %4187 = vmatprep.subr.mxu0 0.0
      %4188 = vmatpush1.msra.mxu0 0.0
      %4189 = vmatprep.subr.mxu0 0.0
      %4190 = vmatpush1.msra.mxu0 0.0
      %4191 = vmatprep.subr.mxu0 0.0
      %4192 = vmatpush1.msra.mxu0 0.0
      %4193 = vmatprep.subr.mxu0 0.0
      %4194 = vmatpush1.msra.mxu0 0.0
      %4195 = vmatprep.subr.mxu0 0.0
      %4196 = vmatpush1.msra.mxu0 0.0
      %4197 = vmatprep.subr.mxu0 0.0
      %4198 = vmatpush1.msra.mxu0 0.0
      %4199 = vmatprep.subr.mxu0 0.0
      %4200 = vmatpush1.msra.mxu0 0.0
      %4201 = vmatprep.subr.mxu0 0.0
      %4202 = vmatpush1.msra.mxu0 0.0
      %4203 = vmatprep.subr.mxu0 0.0
      %4204 = vmatpush1.msra.mxu0 0.0
      %4205 = vmatprep.subr.mxu0 0.0
      %4206 = vmatpush1.msra.mxu0 0.0
      %4207 = vmatprep.subr.mxu0 0.0
      %4208 = vmatpush1.msra.mxu0 0.0
      %4209 = vmatprep.subr.mxu0 0.0
      %4210 = vmatpush1.msra.mxu0 0.0
      %4211 = vmatprep.subr.mxu0 0.0
      %4212 = vmatpush1.msra.mxu0 0.0
      %4213 = vmatprep.subr.mxu0 0.0
      %4214 = vmatpush1.msra.mxu0 0.0
      %4215 = vmatprep.subr.mxu0 0.0
      %4216 = vmatpush1.msra.mxu0 0.0
      %4217 = vmatprep.subr.mxu0 0.0
      %4218 = vmatpush1.msra.mxu0 0.0
      %4219 = vmatprep.subr.mxu0 0.0
      %4220 = vmatpush1.msra.mxu0 0.0
      %4221 = vmatprep.subr.mxu0 0.0
      %4222 = vmatpush1.msra.mxu0 0.0
      %4223 = vmatprep.subr.mxu0 0.0
      %4224 = vmatpush1.msra.mxu0 0.0
      %4225 = vmatprep.subr.mxu0 0.0
      %4226 = vmatpush1.msra.mxu0 0.0
      %4227 = vmatprep.subr.mxu0 0.0
      %4228 = vmatpush1.msra.mxu0 0.0
      %4229 = vmatprep.subr.mxu0 0.0
      %4230 = vmatpush1.msra.mxu0 0.0
      %4231 = vmatprep.subr.mxu0 0.0
      %4232 = vmatpush1.msra.mxu0 0.0
      %4233 = vmatprep.subr.mxu0 0.0
      %4234 = vmatpush1.msra.mxu0 0.0
      %4235 = vmatprep.subr.mxu0 0.0
      %4236 = vmatpush1.msra.mxu0 0.0
      %4237 = vmatprep.subr.mxu0 0.0
      %4238 = vmatpush1.msra.mxu0 0.0
      %4239 = vmatprep.subr.mxu0 0.0
      %4240 = vmatpush1.msra.mxu0 0.0
      %4241 = vmatprep.subr.mxu0 0.0
      %4242 = vmatpush1.msra.mxu0 0.0
      %4243 = vmatprep.mubr.f32.mxu0 0.0
      %v4244 = vand.u32 %v4175, 4294901760
      %v4245 = vsub.f32 %v4175, %v4244
      %v4246 = vand.u32 %v4245, 4294901760
      %v4247 = vsub.f32 %v4245, %v4246
      %v4248 = vand.u32 %v4247, 4294901760
      %4249 = vmatmul.mubr.f32.gmra.mrb[0].mxu0 %v4248
      %v4250 = vpop.f32.mrb[0].mxu0
      %v4251 = vadd.f32 %v4172, %v4250
      %v4252 = vpop.f32.mrb[0].mxu0
      %v4253 = vadd.f32 %v4172, %v4252
      %4254 = vdwg.mxu0
      %v4255 = vand.u32 %v4164, 4294901760
      %v4256 = vsub.f32 %v4164, %v4255
      %v4257 = vand.u32 %v4256, 4294901760
      %v4258 = vsub.f32 %v4256, %v4257
      %v4259 = vand.u32 %v4258, 4294901760
      %4260 = vmatprep.subr.mxu0 %v4259
      %v4261 = vand.u32 %v4163, 4294901760
      %v4262 = vsub.f32 %v4163, %v4261
      %v4263 = vand.u32 %v4262, 4294901760
      %v4264 = vsub.f32 %v4262, %v4263
      %v4265 = vand.u32 %v4264, 4294901760
      %4266 = vmatpush1.msra.mxu0 %v4265
      %4267 = vmatprep.subr.mxu0 0.0
      %4268 = vmatpush1.msra.mxu0 0.0
      %4269 = vmatprep.subr.mxu0 0.0
      %4270 = vmatpush1.msra.mxu0 0.0
      %4271 = vmatprep.subr.mxu0 0.0
      %4272 = vmatpush1.msra.mxu0 0.0
      %4273 = vmatprep.subr.mxu0 0.0
      %4274 = vmatpush1.msra.mxu0 0.0
      %4275 = vmatprep.subr.mxu0 0.0
      %4276 = vmatpush1.msra.mxu0 0.0
      %4277 = vmatprep.subr.mxu0 0.0
      %4278 = vmatpush1.msra.mxu0 0.0
      %4279 = vmatprep.subr.mxu0 0.0
      %4280 = vmatpush1.msra.mxu0 0.0
      %4281 = vmatprep.subr.mxu0 0.0
      %4282 = vmatpush1.msra.mxu0 0.0
      %4283 = vmatprep.subr.mxu0 0.0
      %4284 = vmatpush1.msra.mxu0 0.0
      %4285 = vmatprep.subr.mxu0 0.0
      %4286 = vmatpush1.msra.mxu0 0.0
      %4287 = vmatprep.subr.mxu0 0.0
      %4288 = vmatpush1.msra.mxu0 0.0
      %4289 = vmatprep.subr.mxu0 0.0
      %4290 = vmatpush1.msra.mxu0 0.0
      %4291 = vmatprep.subr.mxu0 0.0
      %4292 = vmatpush1.msra.mxu0 0.0
      %4293 = vmatprep.subr.mxu0 0.0
      %4294 = vmatpush1.msra.mxu0 0.0
      %4295 = vmatprep.subr.mxu0 0.0
      %4296 = vmatpush1.msra.mxu0 0.0
      %4297 = vmatprep.subr.mxu0 0.0
      %4298 = vmatpush1.msra.mxu0 0.0
      %4299 = vmatprep.subr.mxu0 0.0
      %4300 = vmatpush1.msra.mxu0 0.0
      %4301 = vmatprep.subr.mxu0 0.0
      %4302 = vmatpush1.msra.mxu0 0.0
      %4303 = vmatprep.subr.mxu0 0.0
      %4304 = vmatpush1.msra.mxu0 0.0
      %4305 = vmatprep.subr.mxu0 0.0
      %4306 = vmatpush1.msra.mxu0 0.0
      %4307 = vmatprep.subr.mxu0 0.0
      %4308 = vmatpush1.msra.mxu0 0.0
      %4309 = vmatprep.subr.mxu0 0.0
      %4310 = vmatpush1.msra.mxu0 0.0
      %4311 = vmatprep.subr.mxu0 0.0
      %4312 = vmatpush1.msra.mxu0 0.0
      %4313 = vmatprep.subr.mxu0 0.0
      %4314 = vmatpush1.msra.mxu0 0.0
      %4315 = vmatprep.subr.mxu0 0.0
      %4316 = vmatpush1.msra.mxu0 0.0
      %4317 = vmatprep.subr.mxu0 0.0
      %4318 = vmatpush1.msra.mxu0 0.0
      %4319 = vmatprep.subr.mxu0 0.0
      %4320 = vmatpush1.msra.mxu0 0.0
      %4321 = vmatprep.subr.mxu0 0.0
      %4322 = vmatpush1.msra.mxu0 0.0
      %4323 = vmatprep.subr.mxu0 0.0
      %4324 = vmatpush1.msra.mxu0 0.0
      %4325 = vmatprep.subr.mxu0 0.0
      %4326 = vmatpush1.msra.mxu0 0.0
      %4327 = vmatprep.subr.mxu0 0.0
      %4328 = vmatpush1.msra.mxu0 0.0
      %4329 = vmatprep.mubr.f32.mxu0 0.0
      %v4330 = vand.u32 %v4175, 4294901760
      %4331 = vmatmul.mubr.f32.gmra.mrb[0].mxu0 %v4330
      %v4332 = vpop.f32.mrb[0].mxu0
      %v4333 = vadd.f32 %v4251, %v4332
      %v4334 = vpop.f32.mrb[0].mxu0
      %v4335 = vadd.f32 %v4253, %v4334
      %4336 = vdwg.mxu0
      %v4337 = vand.u32 %v4164, 4294901760
      %v4338 = vsub.f32 %v4164, %v4337
      %4339 = vmatprep.subr.mxu0 %v4338
      %v4340 = vand.u32 %v4163, 4294901760
      %v4341 = vsub.f32 %v4163, %v4340
      %4342 = vmatpush1.msra.mxu0 %v4341
      %4343 = vmatprep.subr.mxu0 0.0
      %4344 = vmatpush1.msra.mxu0 0.0
      %4345 = vmatprep.subr.mxu0 0.0
      %4346 = vmatpush1.msra.mxu0 0.0
      %4347 = vmatprep.subr.mxu0 0.0
      %4348 = vmatpush1.msra.mxu0 0.0
      %4349 = vmatprep.subr.mxu0 0.0
      %4350 = vmatpush1.msra.mxu0 0.0
      %4351 = vmatprep.subr.mxu0 0.0
      %4352 = vmatpush1.msra.mxu0 0.0
      %4353 = vmatprep.subr.mxu0 0.0
      %4354 = vmatpush1.msra.mxu0 0.0
      %4355 = vmatprep.subr.mxu0 0.0
      %4356 = vmatpush1.msra.mxu0 0.0
      %4357 = vmatprep.subr.mxu0 0.0
      %4358 = vmatpush1.msra.mxu0 0.0
      %4359 = vmatprep.subr.mxu0 0.0
      %4360 = vmatpush1.msra.mxu0 0.0
      %4361 = vmatprep.subr.mxu0 0.0
      %4362 = vmatpush1.msra.mxu0 0.0
      %4363 = vmatprep.subr.mxu0 0.0
      %4364 = vmatpush1.msra.mxu0 0.0
      %4365 = vmatprep.subr.mxu0 0.0
      %4366 = vmatpush1.msra.mxu0 0.0
      %4367 = vmatprep.subr.mxu0 0.0
      %4368 = vmatpush1.msra.mxu0 0.0
      %4369 = vmatprep.subr.mxu0 0.0
      %4370 = vmatpush1.msra.mxu0 0.0
      %4371 = vmatprep.subr.mxu0 0.0
      %4372 = vmatpush1.msra.mxu0 0.0
      %4373 = vmatprep.subr.mxu0 0.0
      %4374 = vmatpush1.msra.mxu0 0.0
      %4375 = vmatprep.subr.mxu0 0.0
      %4376 = vmatpush1.msra.mxu0 0.0
      %4377 = vmatprep.subr.mxu0 0.0
      %4378 = vmatpush1.msra.mxu0 0.0
      %4379 = vmatprep.subr.mxu0 0.0
      %4380 = vmatpush1.msra.mxu0 0.0
      %4381 = vmatprep.subr.mxu0 0.0
      %4382 = vmatpush1.msra.mxu0 0.0
      %4383 = vmatprep.subr.mxu0 0.0
      %4384 = vmatpush1.msra.mxu0 0.0
      %4385 = vmatprep.subr.mxu0 0.0
      %4386 = vmatpush1.msra.mxu0 0.0
      %4387 = vmatprep.subr.mxu0 0.0
      %4388 = vmatpush1.msra.mxu0 0.0
      %4389 = vmatprep.subr.mxu0 0.0
      %4390 = vmatpush1.msra.mxu0 0.0
      %4391 = vmatprep.subr.mxu0 0.0
      %4392 = vmatpush1.msra.mxu0 0.0
      %4393 = vmatprep.subr.mxu0 0.0
      %4394 = vmatpush1.msra.mxu0 0.0
      %4395 = vmatprep.subr.mxu0 0.0
      %4396 = vmatpush1.msra.mxu0 0.0
      %4397 = vmatprep.subr.mxu0 0.0
      %4398 = vmatpush1.msra.mxu0 0.0
      %4399 = vmatprep.subr.mxu0 0.0
      %4400 = vmatpush1.msra.mxu0 0.0
      %4401 = vmatprep.subr.mxu0 0.0
      %4402 = vmatpush1.msra.mxu0 0.0
      %4403 = vmatprep.subr.mxu0 0.0
      %4404 = vmatpush1.msra.mxu0 0.0
      %4405 = vmatprep.mubr.f32.mxu0 0.0
      %v4406 = vand.u32 %v4175, 4294901760
      %v4407 = vsub.f32 %v4175, %v4406
      %4408 = vmatmul.mubr.f32.gmra.mrb[0].mxu0 %v4407
      %v4409 = vpop.f32.mrb[0].mxu0
      %v4410 = vadd.f32 %v4333, %v4409
      %v4411 = vpop.f32.mrb[0].mxu0
      %v4412 = vadd.f32 %v4335, %v4411
      %4413 = vdwg.mxu0
      %v4414 = vand.u32 %v4164, 4294901760
      %4415 = vmatprep.subr.mxu0 %v4414
      %v4416 = vand.u32 %v4163, 4294901760
      %4417 = vmatpush1.msra.mxu0 %v4416
      %4418 = vmatprep.subr.mxu0 0.0
      %4419 = vmatpush1.msra.mxu0 0.0
      %4420 = vmatprep.subr.mxu0 0.0
      %4421 = vmatpush1.msra.mxu0 0.0
      %4422 = vmatprep.subr.mxu0 0.0
      %4423 = vmatpush1.msra.mxu0 0.0
      %4424 = vmatprep.subr.mxu0 0.0
      %4425 = vmatpush1.msra.mxu0 0.0
      %4426 = vmatprep.subr.mxu0 0.0
      %4427 = vmatpush1.msra.mxu0 0.0
      %4428 = vmatprep.subr.mxu0 0.0
      %4429 = vmatpush1.msra.mxu0 0.0
      %4430 = vmatprep.subr.mxu0 0.0
      %4431 = vmatpush1.msra.mxu0 0.0
      %4432 = vmatprep.subr.mxu0 0.0
      %4433 = vmatpush1.msra.mxu0 0.0
      %4434 = vmatprep.subr.mxu0 0.0
      %4435 = vmatpush1.msra.mxu0 0.0
      %4436 = vmatprep.subr.mxu0 0.0
      %4437 = vmatpush1.msra.mxu0 0.0
      %4438 = vmatprep.subr.mxu0 0.0
      %4439 = vmatpush1.msra.mxu0 0.0
      %4440 = vmatprep.subr.mxu0 0.0
      %4441 = vmatpush1.msra.mxu0 0.0
      %4442 = vmatprep.subr.mxu0 0.0
      %4443 = vmatpush1.msra.mxu0 0.0
      %4444 = vmatprep.subr.mxu0 0.0
      %4445 = vmatpush1.msra.mxu0 0.0
      %4446 = vmatprep.subr.mxu0 0.0
      %4447 = vmatpush1.msra.mxu0 0.0
      %4448 = vmatprep.subr.mxu0 0.0
      %4449 = vmatpush1.msra.mxu0 0.0
      %4450 = vmatprep.subr.mxu0 0.0
      %4451 = vmatpush1.msra.mxu0 0.0
      %4452 = vmatprep.subr.mxu0 0.0
      %4453 = vmatpush1.msra.mxu0 0.0
      %4454 = vmatprep.subr.mxu0 0.0
      %4455 = vmatpush1.msra.mxu0 0.0
      %4456 = vmatprep.subr.mxu0 0.0
      %4457 = vmatpush1.msra.mxu0 0.0
      %4458 = vmatprep.subr.mxu0 0.0
      %4459 = vmatpush1.msra.mxu0 0.0
      %4460 = vmatprep.subr.mxu0 0.0
      %4461 = vmatpush1.msra.mxu0 0.0
      %4462 = vmatprep.subr.mxu0 0.0
      %4463 = vmatpush1.msra.mxu0 0.0
      %4464 = vmatprep.subr.mxu0 0.0
      %4465 = vmatpush1.msra.mxu0 0.0
      %4466 = vmatprep.subr.mxu0 0.0
      %4467 = vmatpush1.msra.mxu0 0.0
      %4468 = vmatprep.subr.mxu0 0.0
      %4469 = vmatpush1.msra.mxu0 0.0
      %4470 = vmatprep.subr.mxu0 0.0
      %4471 = vmatpush1.msra.mxu0 0.0
      %4472 = vmatprep.subr.mxu0 0.0
      %4473 = vmatpush1.msra.mxu0 0.0
      %4474 = vmatprep.subr.mxu0 0.0
      %4475 = vmatpush1.msra.mxu0 0.0
      %4476 = vmatprep.subr.mxu0 0.0
      %4477 = vmatpush1.msra.mxu0 0.0
      %4478 = vmatprep.subr.mxu0 0.0
      %4479 = vmatpush1.msra.mxu0 0.0
      %4480 = vmatprep.mubr.f32.mxu0 0.0
      %v4481 = vand.u32 %v4175, 4294901760
      %v4482 = vsub.f32 %v4175, %v4481
      %v4483 = vand.u32 %v4482, 4294901760
      %4484 = vmatmul.mubr.f32.gmra.mrb[0].mxu0 %v4483
      %v4485 = vpop.f32.mrb[0].mxu0
      %v4486 = vadd.f32 %v4410, %v4485
      %v4487 = vpop.f32.mrb[0].mxu0
      %v4488 = vadd.f32 %v4412, %v4487
      %4489 = vdwg.mxu0
      %v4490 = vand.u32 %v4164, 4294901760
      %v4491 = vsub.f32 %v4164, %v4490
      %v4492 = vand.u32 %v4491, 4294901760
      %4493 = vmatprep.subr.mxu0 %v4492
      %v4494 = vand.u32 %v4163, 4294901760
      %v4495 = vsub.f32 %v4163, %v4494
      %v4496 = vand.u32 %v4495, 4294901760
      %4497 = vmatpush1.msra.mxu0 %v4496
      %4498 = vmatprep.subr.mxu0 0.0
      %4499 = vmatpush1.msra.mxu0 0.0
      %4500 = vmatprep.subr.mxu0 0.0
      %4501 = vmatpush1.msra.mxu0 0.0
      %4502 = vmatprep.subr.mxu0 0.0
      %4503 = vmatpush1.msra.mxu0 0.0
      %4504 = vmatprep.subr.mxu0 0.0
      %4505 = vmatpush1.msra.mxu0 0.0
      %4506 = vmatprep.subr.mxu0 0.0
      %4507 = vmatpush1.msra.mxu0 0.0
      %4508 = vmatprep.subr.mxu0 0.0
      %4509 = vmatpush1.msra.mxu0 0.0
      %4510 = vmatprep.subr.mxu0 0.0
      %4511 = vmatpush1.msra.mxu0 0.0
      %4512 = vmatprep.subr.mxu0 0.0
      %4513 = vmatpush1.msra.mxu0 0.0
      %4514 = vmatprep.subr.mxu0 0.0
      %4515 = vmatpush1.msra.mxu0 0.0
      %4516 = vmatprep.subr.mxu0 0.0
      %4517 = vmatpush1.msra.mxu0 0.0
      %4518 = vmatprep.subr.mxu0 0.0
      %4519 = vmatpush1.msra.mxu0 0.0
      %4520 = vmatprep.subr.mxu0 0.0
      %4521 = vmatpush1.msra.mxu0 0.0
      %4522 = vmatprep.subr.mxu0 0.0
      %4523 = vmatpush1.msra.mxu0 0.0
      %4524 = vmatprep.subr.mxu0 0.0
      %4525 = vmatpush1.msra.mxu0 0.0
      %4526 = vmatprep.subr.mxu0 0.0
      %4527 = vmatpush1.msra.mxu0 0.0
      %4528 = vmatprep.subr.mxu0 0.0
      %4529 = vmatpush1.msra.mxu0 0.0
      %4530 = vmatprep.subr.mxu0 0.0
      %4531 = vmatpush1.msra.mxu0 0.0
      %4532 = vmatprep.subr.mxu0 0.0
      %4533 = vmatpush1.msra.mxu0 0.0
      %4534 = vmatprep.subr.mxu0 0.0
      %4535 = vmatpush1.msra.mxu0 0.0
      %4536 = vmatprep.subr.mxu0 0.0
      %4537 = vmatpush1.msra.mxu0 0.0
      %4538 = vmatprep.subr.mxu0 0.0
      %4539 = vmatpush1.msra.mxu0 0.0
      %4540 = vmatprep.subr.mxu0 0.0
      %4541 = vmatpush1.msra.mxu0 0.0
      %4542 = vmatprep.subr.mxu0 0.0
      %4543 = vmatpush1.msra.mxu0 0.0
      %4544 = vmatprep.subr.mxu0 0.0
      %4545 = vmatpush1.msra.mxu0 0.0
      %4546 = vmatprep.subr.mxu0 0.0
      %4547 = vmatpush1.msra.mxu0 0.0
      %4548 = vmatprep.subr.mxu0 0.0
      %4549 = vmatpush1.msra.mxu0 0.0
      %4550 = vmatprep.subr.mxu0 0.0
      %4551 = vmatpush1.msra.mxu0 0.0
      %4552 = vmatprep.subr.mxu0 0.0
      %4553 = vmatpush1.msra.mxu0 0.0
      %4554 = vmatprep.subr.mxu0 0.0
      %4555 = vmatpush1.msra.mxu0 0.0
      %4556 = vmatprep.subr.mxu0 0.0
      %4557 = vmatpush1.msra.mxu0 0.0
      %4558 = vmatprep.subr.mxu0 0.0
      %4559 = vmatpush1.msra.mxu0 0.0
      %4560 = vmatprep.mubr.f32.mxu0 0.0
      %v4561 = vand.u32 %v4175, 4294901760
      %4562 = vmatmul.mubr.f32.gmra.mrb[0].mxu0 %v4561
      %v4563 = vpop.f32.mrb[0].mxu0
      %v4564 = vadd.f32 %v4486, %v4563
      %v4565 = vpop.f32.mrb[0].mxu0
      %v4566 = vadd.f32 %v4488, %v4565
      %4567 = vdwg.mxu0
      %v4568 = vand.u32 %v4164, 4294901760
      %4569 = vmatprep.subr.mxu0 %v4568
      %v4570 = vand.u32 %v4163, 4294901760
      %4571 = vmatpush1.msra.mxu0 %v4570
      %4572 = vmatprep.subr.mxu0 0.0
      %4573 = vmatpush1.msra.mxu0 0.0
      %4574 = vmatprep.subr.mxu0 0.0
      %4575 = vmatpush1.msra.mxu0 0.0
      %4576 = vmatprep.subr.mxu0 0.0
      %4577 = vmatpush1.msra.mxu0 0.0
      %4578 = vmatprep.subr.mxu0 0.0
      %4579 = vmatpush1.msra.mxu0 0.0
      %4580 = vmatprep.subr.mxu0 0.0
      %4581 = vmatpush1.msra.mxu0 0.0
      %4582 = vmatprep.subr.mxu0 0.0
      %4583 = vmatpush1.msra.mxu0 0.0
      %4584 = vmatprep.subr.mxu0 0.0
      %4585 = vmatpush1.msra.mxu0 0.0
      %4586 = vmatprep.subr.mxu0 0.0
      %4587 = vmatpush1.msra.mxu0 0.0
      %4588 = vmatprep.subr.mxu0 0.0
      %4589 = vmatpush1.msra.mxu0 0.0
      %4590 = vmatprep.subr.mxu0 0.0
      %4591 = vmatpush1.msra.mxu0 0.0
      %4592 = vmatprep.subr.mxu0 0.0
      %4593 = vmatpush1.msra.mxu0 0.0
      %4594 = vmatprep.subr.mxu0 0.0
      %4595 = vmatpush1.msra.mxu0 0.0
      %4596 = vmatprep.subr.mxu0 0.0
      %4597 = vmatpush1.msra.mxu0 0.0
      %4598 = vmatprep.subr.mxu0 0.0
      %4599 = vmatpush1.msra.mxu0 0.0
      %4600 = vmatprep.subr.mxu0 0.0
      %4601 = vmatpush1.msra.mxu0 0.0
      %4602 = vmatprep.subr.mxu0 0.0
      %4603 = vmatpush1.msra.mxu0 0.0
      %4604 = vmatprep.subr.mxu0 0.0
      %4605 = vmatpush1.msra.mxu0 0.0
      %4606 = vmatprep.subr.mxu0 0.0
      %4607 = vmatpush1.msra.mxu0 0.0
      %4608 = vmatprep.subr.mxu0 0.0
      %4609 = vmatpush1.msra.mxu0 0.0
      %4610 = vmatprep.subr.mxu0 0.0
      %4611 = vmatpush1.msra.mxu0 0.0
      %4612 = vmatprep.subr.mxu0 0.0
      %4613 = vmatpush1.msra.mxu0 0.0
      %4614 = vmatprep.subr.mxu0 0.0
      %4615 = vmatpush1.msra.mxu0 0.0
      %4616 = vmatprep.subr.mxu0 0.0
      %4617 = vmatpush1.msra.mxu0 0.0
      %4618 = vmatprep.subr.mxu0 0.0
      %4619 = vmatpush1.msra.mxu0 0.0
      %4620 = vmatprep.subr.mxu0 0.0
      %4621 = vmatpush1.msra.mxu0 0.0
      %4622 = vmatprep.subr.mxu0 0.0
      %4623 = vmatpush1.msra.mxu0 0.0
      %4624 = vmatprep.subr.mxu0 0.0
      %4625 = vmatpush1.msra.mxu0 0.0
      %4626 = vmatprep.subr.mxu0 0.0
      %4627 = vmatpush1.msra.mxu0 0.0
      %4628 = vmatprep.subr.mxu0 0.0
      %4629 = vmatpush1.msra.mxu0 0.0
      %4630 = vmatprep.subr.mxu0 0.0
      %4631 = vmatpush1.msra.mxu0 0.0
      %4632 = vmatprep.subr.mxu0 0.0
      %4633 = vmatpush1.msra.mxu0 0.0
      %4634 = vmatprep.mubr.f32.mxu0 0.0
      %v4635 = vand.u32 %v4175, 4294901760
      %4636 = vmatmul.mubr.f32.gmra.mrb[0].mxu0 %v4635
      %v4637 = vpop.f32.mrb[0].mxu0
      %v4638 = vadd.f32 %v4564, %v4637
      %v4639 = vpop.f32.mrb[0].mxu0
      %v4640 = vadd.f32 %v4566, %v4639
      %4641 = vdwg.mxu0
      %v4642 = vmax.f32 %v4638, 0.0
      %v4643 = vmax.f32 %v4640, 0.0
      %4644 = vst [vmem:[%s598] sm:$0xff] %v4642
      %4645 = vst [vmem:[%s598 + $0x8] sm:$0xff] %v4643
      %s4646 = sld [smem:[#allocation3 + $0x6]]
      %v4647 = vstv %s4646
      %v4648 = vmul.f32 %v4647, %v613
      %s4649 = sld [smem:[#allocation3 + $0x7]]
      %v4650 = vstv %s4649
      %v4651 = vmul.f32 %v4650, %v3071
      %v4652 = vadd.f32 %v4648, %v4651
      %s4653 = sld [smem:[#allocation3 + $0x8]]
      %v4654 = vld [vmem:[%s11] sm:$0xff]
      %v4655 = vld [vmem:[%s11 + $0x8] sm:$0xff]
      %v4656 = vld [vmem:[%s11 + $0x10] sm:$0xff]
      %v4657 = vld [vmem:[%s11 + $0x18] sm:$0xff]
      %v4658 = vld [vmem:[%s11 + $0x20] sm:$0xff]
      %v4659 = vld [vmem:[%s11 + $0x28] sm:$0xff]
      %v4660 = vld [vmem:[%s11 + $0x30] sm:$0xff]
      %v4661 = vld [vmem:[%s11 + $0x38] sm:$0xff]
      %v4662 = vld [vmem:[%s11 + $0x40] sm:$0xff]
      %v4663 = vld [vmem:[%s11 + $0x48] sm:$0xff]
      %v4664 = vld [vmem:[%s11 + $0x50] sm:$0xff]
      %v4665 = vld [vmem:[%s11 + $0x58] sm:$0xff]
      %v4666 = vld [vmem:[%s11 + $0x60] sm:$0xff]
      %v4667 = vld [vmem:[%s11 + $0x68] sm:$0xff]
      %v4668 = vld [vmem:[%s11 + $0x70] sm:$0xff]
      %v4669 = vld [vmem:[%s11 + $0x78] sm:$0xff]
      %v4670 = vld [vmem:[%s11 + $0x80] sm:$0xff]
      %v4671 = vld [vmem:[%s11 + $0x88] sm:$0xff]
      %v4672 = vld [vmem:[%s11 + $0x90] sm:$0xff]
      %v4673 = vld [vmem:[%s11 + $0x98] sm:$0xff]
      %v4674 = vld [vmem:[%s11 + $0xa0] sm:$0xff]
      %v4675 = vld [vmem:[%s11 + $0xa8] sm:$0xff]
      %v4676 = vld [vmem:[%s11 + $0xb0] sm:$0xff]
      %v4677 = vld [vmem:[%s11 + $0xb8] sm:$0xff]
      %v4678 = vld [vmem:[%s11 + $0xc0] sm:$0xff]
      %v4679 = vld [vmem:[%s11 + $0xc8] sm:$0xff]
      %v4680 = vld [vmem:[%s11 + $0xd0] sm:$0xff]
      %v4681 = vld [vmem:[%s11 + $0xd8] sm:$0xff]
      %v4682 = vld [vmem:[%s11 + $0xe0] sm:$0xff]
      %v4683 = vld [vmem:[%s11 + $0xe8] sm:$0xff]
      %v4684 = vld [vmem:[%s11 + $0xf0] sm:$0xff]
      %v4685 = vld [vmem:[%s11 + $0xf8] sm:$0xff]
      %4686 = vmatprep.subr.mxu0 0.0
      %v4687 = vand.u32 %v4654, 4294901760
      %4688 = vmatpush1.msra.mxu0 %v4687
      %4689 = vmatprep.subr.mxu0 0.0
      %v4690 = vand.u32 %v4655, 4294901760
      %4691 = vmatpush1.msra.mxu0 %v4690
      %4692 = vmatprep.subr.mxu0 0.0
      %v4693 = vand.u32 %v4656, 4294901760
      %4694 = vmatpush1.msra.mxu0 %v4693
      %4695 = vmatprep.subr.mxu0 0.0
      %v4696 = vand.u32 %v4657, 4294901760
      %4697 = vmatpush1.msra.mxu0 %v4696
      %4698 = vmatprep.subr.mxu0 0.0
      %v4699 = vand.u32 %v4658, 4294901760
      %4700 = vmatpush1.msra.mxu0 %v4699
      %4701 = vmatprep.subr.mxu0 0.0
      %v4702 = vand.u32 %v4659, 4294901760
      %4703 = vmatpush1.msra.mxu0 %v4702
      %4704 = vmatprep.subr.mxu0 0.0
      %v4705 = vand.u32 %v4660, 4294901760
      %4706 = vmatpush1.msra.mxu0 %v4705
      %4707 = vmatprep.subr.mxu0 0.0
      %v4708 = vand.u32 %v4661, 4294901760
      %4709 = vmatpush1.msra.mxu0 %v4708
      %4710 = vmatprep.subr.mxu0 0.0
      %v4711 = vand.u32 %v4662, 4294901760
      %4712 = vmatpush1.msra.mxu0 %v4711
      %4713 = vmatprep.subr.mxu0 0.0
      %v4714 = vand.u32 %v4663, 4294901760
      %4715 = vmatpush1.msra.mxu0 %v4714
      %4716 = vmatprep.subr.mxu0 0.0
      %v4717 = vand.u32 %v4664, 4294901760
      %4718 = vmatpush1.msra.mxu0 %v4717
      %4719 = vmatprep.subr.mxu0 0.0
      %v4720 = vand.u32 %v4665, 4294901760
      %4721 = vmatpush1.msra.mxu0 %v4720
      %4722 = vmatprep.subr.mxu0 0.0
      %v4723 = vand.u32 %v4666, 4294901760
      %4724 = vmatpush1.msra.mxu0 %v4723
      %4725 = vmatprep.subr.mxu0 0.0
      %v4726 = vand.u32 %v4667, 4294901760
      %4727 = vmatpush1.msra.mxu0 %v4726
      %4728 = vmatprep.subr.mxu0 0.0
      %v4729 = vand.u32 %v4668, 4294901760
      %4730 = vmatpush1.msra.mxu0 %v4729
      %4731 = vmatprep.subr.mxu0 0.0
      %v4732 = vand.u32 %v4669, 4294901760
      %4733 = vmatpush1.msra.mxu0 %v4732
      %4734 = vmatprep.subr.mxu0 0.0
      %v4735 = vand.u32 %v4670, 4294901760
      %4736 = vmatpush1.msra.mxu0 %v4735
      %4737 = vmatprep.subr.mxu0 0.0
      %v4738 = vand.u32 %v4671, 4294901760
      %4739 = vmatpush1.msra.mxu0 %v4738
      %4740 = vmatprep.subr.mxu0 0.0
      %v4741 = vand.u32 %v4672, 4294901760
      %4742 = vmatpush1.msra.mxu0 %v4741
      %4743 = vmatprep.subr.mxu0 0.0
      %v4744 = vand.u32 %v4673, 4294901760
      %4745 = vmatpush1.msra.mxu0 %v4744
      %4746 = vmatprep.subr.mxu0 0.0
      %v4747 = vand.u32 %v4674, 4294901760
      %4748 = vmatpush1.msra.mxu0 %v4747
      %4749 = vmatprep.subr.mxu0 0.0
      %v4750 = vand.u32 %v4675, 4294901760
      %4751 = vmatpush1.msra.mxu0 %v4750
      %4752 = vmatprep.subr.mxu0 0.0
      %v4753 = vand.u32 %v4676, 4294901760
      %4754 = vmatpush1.msra.mxu0 %v4753
      %4755 = vmatprep.subr.mxu0 0.0
      %v4756 = vand.u32 %v4677, 4294901760
      %4757 = vmatpush1.msra.mxu0 %v4756
      %4758 = vmatprep.subr.mxu0 0.0
      %v4759 = vand.u32 %v4678, 4294901760
      %4760 = vmatpush1.msra.mxu0 %v4759
      %4761 = vmatprep.subr.mxu0 0.0
      %v4762 = vand.u32 %v4679, 4294901760
      %4763 = vmatpush1.msra.mxu0 %v4762
      %4764 = vmatprep.subr.mxu0 0.0
      %v4765 = vand.u32 %v4680, 4294901760
      %4766 = vmatpush1.msra.mxu0 %v4765
      %4767 = vmatprep.subr.mxu0 0.0
      %v4768 = vand.u32 %v4681, 4294901760
      %4769 = vmatpush1.msra.mxu0 %v4768
      %4770 = vmatprep.subr.mxu0 0.0
      %v4771 = vand.u32 %v4682, 4294901760
      %4772 = vmatpush1.msra.mxu0 %v4771
      %4773 = vmatprep.subr.mxu0 0.0
      %v4774 = vand.u32 %v4683, 4294901760
      %4775 = vmatpush1.msra.mxu0 %v4774
      %4776 = vmatprep.subr.mxu0 0.0
      %v4777 = vand.u32 %v4684, 4294901760
      %4778 = vmatpush1.msra.mxu0 %v4777
      %4779 = vmatprep.subr.mxu0 0.0
      %v4780 = vand.u32 %v4685, 4294901760
      %4781 = vmatpush1.msra.mxu0 %v4780
      %v4782 = vand.u32 %v4643, 4294901760
      %v4783 = vsub.f32 %v4643, %v4782
      %v4784 = vand.u32 %v4783, 4294901760
      %v4785 = vsub.f32 %v4783, %v4784
      %v4786 = vand.u32 %v4785, 4294901760
      %4787 = vmatprep.mubr.f32.mxu0 %v4786
      %v4788 = vand.u32 %v4642, 4294901760
      %v4789 = vsub.f32 %v4642, %v4788
      %v4790 = vand.u32 %v4789, 4294901760
      %v4791 = vsub.f32 %v4789, %v4790
      %v4792 = vand.u32 %v4791, 4294901760
      %4793 = vmatmul.mubr.f32.gmra.mrb[0].mxu0 %v4792
      %v4794 = vpop.f32.mrb[0].mxu0
      %v4795 = vadd.f32 0.0, %v4794
      %v4796 = vpop.f32.mrb[0].mxu0
      %4797 = vdwg.mxu0
      %4798 = vmatprep.subr.mxu0 0.0
      %v4799 = vand.u32 %v4654, 4294901760
      %v4800 = vsub.f32 %v4654, %v4799
      %v4801 = vand.u32 %v4800, 4294901760
      %v4802 = vsub.f32 %v4800, %v4801
      %v4803 = vand.u32 %v4802, 4294901760
      %4804 = vmatpush1.msra.mxu0 %v4803
      %4805 = vmatprep.subr.mxu0 0.0
      %v4806 = vand.u32 %v4655, 4294901760
      %v4807 = vsub.f32 %v4655, %v4806
      %v4808 = vand.u32 %v4807, 4294901760
      %v4809 = vsub.f32 %v4807, %v4808
      %v4810 = vand.u32 %v4809, 4294901760
      %4811 = vmatpush1.msra.mxu0 %v4810
      %4812 = vmatprep.subr.mxu0 0.0
      %v4813 = vand.u32 %v4656, 4294901760
      %v4814 = vsub.f32 %v4656, %v4813
      %v4815 = vand.u32 %v4814, 4294901760
      %v4816 = vsub.f32 %v4814, %v4815
      %v4817 = vand.u32 %v4816, 4294901760
      %4818 = vmatpush1.msra.mxu0 %v4817
      %4819 = vmatprep.subr.mxu0 0.0
      %v4820 = vand.u32 %v4657, 4294901760
      %v4821 = vsub.f32 %v4657, %v4820
      %v4822 = vand.u32 %v4821, 4294901760
      %v4823 = vsub.f32 %v4821, %v4822
      %v4824 = vand.u32 %v4823, 4294901760
      %4825 = vmatpush1.msra.mxu0 %v4824
      %4826 = vmatprep.subr.mxu0 0.0
      %v4827 = vand.u32 %v4658, 4294901760
      %v4828 = vsub.f32 %v4658, %v4827
      %v4829 = vand.u32 %v4828, 4294901760
      %v4830 = vsub.f32 %v4828, %v4829
      %v4831 = vand.u32 %v4830, 4294901760
      %4832 = vmatpush1.msra.mxu0 %v4831
      %4833 = vmatprep.subr.mxu0 0.0
      %v4834 = vand.u32 %v4659, 4294901760
      %v4835 = vsub.f32 %v4659, %v4834
      %v4836 = vand.u32 %v4835, 4294901760
      %v4837 = vsub.f32 %v4835, %v4836
      %v4838 = vand.u32 %v4837, 4294901760
      %4839 = vmatpush1.msra.mxu0 %v4838
      %4840 = vmatprep.subr.mxu0 0.0
      %v4841 = vand.u32 %v4660, 4294901760
      %v4842 = vsub.f32 %v4660, %v4841
      %v4843 = vand.u32 %v4842, 4294901760
      %v4844 = vsub.f32 %v4842, %v4843
      %v4845 = vand.u32 %v4844, 4294901760
      %4846 = vmatpush1.msra.mxu0 %v4845
      %4847 = vmatprep.subr.mxu0 0.0
      %v4848 = vand.u32 %v4661, 4294901760
      %v4849 = vsub.f32 %v4661, %v4848
      %v4850 = vand.u32 %v4849, 4294901760
      %v4851 = vsub.f32 %v4849, %v4850
      %v4852 = vand.u32 %v4851, 4294901760
      %4853 = vmatpush1.msra.mxu0 %v4852
      %4854 = vmatprep.subr.mxu0 0.0
      %v4855 = vand.u32 %v4662, 4294901760
      %v4856 = vsub.f32 %v4662, %v4855
      %v4857 = vand.u32 %v4856, 4294901760
      %v4858 = vsub.f32 %v4856, %v4857
      %v4859 = vand.u32 %v4858, 4294901760
      %4860 = vmatpush1.msra.mxu0 %v4859
      %4861 = vmatprep.subr.mxu0 0.0
      %v4862 = vand.u32 %v4663, 4294901760
      %v4863 = vsub.f32 %v4663, %v4862
      %v4864 = vand.u32 %v4863, 4294901760
      %v4865 = vsub.f32 %v4863, %v4864
      %v4866 = vand.u32 %v4865, 4294901760
      %4867 = vmatpush1.msra.mxu0 %v4866
      %4868 = vmatprep.subr.mxu0 0.0
      %v4869 = vand.u32 %v4664, 4294901760
      %v4870 = vsub.f32 %v4664, %v4869
      %v4871 = vand.u32 %v4870, 4294901760
      %v4872 = vsub.f32 %v4870, %v4871
      %v4873 = vand.u32 %v4872, 4294901760
      %4874 = vmatpush1.msra.mxu0 %v4873
      %4875 = vmatprep.subr.mxu0 0.0
      %v4876 = vand.u32 %v4665, 4294901760
      %v4877 = vsub.f32 %v4665, %v4876
      %v4878 = vand.u32 %v4877, 4294901760
      %v4879 = vsub.f32 %v4877, %v4878
      %v4880 = vand.u32 %v4879, 4294901760
      %4881 = vmatpush1.msra.mxu0 %v4880
      %4882 = vmatprep.subr.mxu0 0.0
      %v4883 = vand.u32 %v4666, 4294901760
      %v4884 = vsub.f32 %v4666, %v4883
      %v4885 = vand.u32 %v4884, 4294901760
      %v4886 = vsub.f32 %v4884, %v4885
      %v4887 = vand.u32 %v4886, 4294901760
      %4888 = vmatpush1.msra.mxu0 %v4887
      %4889 = vmatprep.subr.mxu0 0.0
      %v4890 = vand.u32 %v4667, 4294901760
      %v4891 = vsub.f32 %v4667, %v4890
      %v4892 = vand.u32 %v4891, 4294901760
      %v4893 = vsub.f32 %v4891, %v4892
      %v4894 = vand.u32 %v4893, 4294901760
      %4895 = vmatpush1.msra.mxu0 %v4894
      %4896 = vmatprep.subr.mxu0 0.0
      %v4897 = vand.u32 %v4668, 4294901760
      %v4898 = vsub.f32 %v4668, %v4897
      %v4899 = vand.u32 %v4898, 4294901760
      %v4900 = vsub.f32 %v4898, %v4899
      %v4901 = vand.u32 %v4900, 4294901760
      %4902 = vmatpush1.msra.mxu0 %v4901
      %4903 = vmatprep.subr.mxu0 0.0
      %v4904 = vand.u32 %v4669, 4294901760
      %v4905 = vsub.f32 %v4669, %v4904
      %v4906 = vand.u32 %v4905, 4294901760
      %v4907 = vsub.f32 %v4905, %v4906
      %v4908 = vand.u32 %v4907, 4294901760
      %4909 = vmatpush1.msra.mxu0 %v4908
      %4910 = vmatprep.subr.mxu0 0.0
      %v4911 = vand.u32 %v4670, 4294901760
      %v4912 = vsub.f32 %v4670, %v4911
      %v4913 = vand.u32 %v4912, 4294901760
      %v4914 = vsub.f32 %v4912, %v4913
      %v4915 = vand.u32 %v4914, 4294901760
      %4916 = vmatpush1.msra.mxu0 %v4915
      %4917 = vmatprep.subr.mxu0 0.0
      %v4918 = vand.u32 %v4671, 4294901760
      %v4919 = vsub.f32 %v4671, %v4918
      %v4920 = vand.u32 %v4919, 4294901760
      %v4921 = vsub.f32 %v4919, %v4920
      %v4922 = vand.u32 %v4921, 4294901760
      %4923 = vmatpush1.msra.mxu0 %v4922
      %4924 = vmatprep.subr.mxu0 0.0
      %v4925 = vand.u32 %v4672, 4294901760
      %v4926 = vsub.f32 %v4672, %v4925
      %v4927 = vand.u32 %v4926, 4294901760
      %v4928 = vsub.f32 %v4926, %v4927
      %v4929 = vand.u32 %v4928, 4294901760
      %4930 = vmatpush1.msra.mxu0 %v4929
      %4931 = vmatprep.subr.mxu0 0.0
      %v4932 = vand.u32 %v4673, 4294901760
      %v4933 = vsub.f32 %v4673, %v4932
      %v4934 = vand.u32 %v4933, 4294901760
      %v4935 = vsub.f32 %v4933, %v4934
      %v4936 = vand.u32 %v4935, 4294901760
      %4937 = vmatpush1.msra.mxu0 %v4936
      %4938 = vmatprep.subr.mxu0 0.0
      %v4939 = vand.u32 %v4674, 4294901760
      %v4940 = vsub.f32 %v4674, %v4939
      %v4941 = vand.u32 %v4940, 4294901760
      %v4942 = vsub.f32 %v4940, %v4941
      %v4943 = vand.u32 %v4942, 4294901760
      %4944 = vmatpush1.msra.mxu0 %v4943
      %4945 = vmatprep.subr.mxu0 0.0
      %v4946 = vand.u32 %v4675, 4294901760
      %v4947 = vsub.f32 %v4675, %v4946
      %v4948 = vand.u32 %v4947, 4294901760
      %v4949 = vsub.f32 %v4947, %v4948
      %v4950 = vand.u32 %v4949, 4294901760
      %4951 = vmatpush1.msra.mxu0 %v4950
      %4952 = vmatprep.subr.mxu0 0.0
      %v4953 = vand.u32 %v4676, 4294901760
      %v4954 = vsub.f32 %v4676, %v4953
      %v4955 = vand.u32 %v4954, 4294901760
      %v4956 = vsub.f32 %v4954, %v4955
      %v4957 = vand.u32 %v4956, 4294901760
      %4958 = vmatpush1.msra.mxu0 %v4957
      %4959 = vmatprep.subr.mxu0 0.0
      %v4960 = vand.u32 %v4677, 4294901760
      %v4961 = vsub.f32 %v4677, %v4960
      %v4962 = vand.u32 %v4961, 4294901760
      %v4963 = vsub.f32 %v4961, %v4962
      %v4964 = vand.u32 %v4963, 4294901760
      %4965 = vmatpush1.msra.mxu0 %v4964
      %4966 = vmatprep.subr.mxu0 0.0
      %v4967 = vand.u32 %v4678, 4294901760
      %v4968 = vsub.f32 %v4678, %v4967
      %v4969 = vand.u32 %v4968, 4294901760
      %v4970 = vsub.f32 %v4968, %v4969
      %v4971 = vand.u32 %v4970, 4294901760
      %4972 = vmatpush1.msra.mxu0 %v4971
      %4973 = vmatprep.subr.mxu0 0.0
      %v4974 = vand.u32 %v4679, 4294901760
      %v4975 = vsub.f32 %v4679, %v4974
      %v4976 = vand.u32 %v4975, 4294901760
      %v4977 = vsub.f32 %v4975, %v4976
      %v4978 = vand.u32 %v4977, 4294901760
      %4979 = vmatpush1.msra.mxu0 %v4978
      %4980 = vmatprep.subr.mxu0 0.0
      %v4981 = vand.u32 %v4680, 4294901760
      %v4982 = vsub.f32 %v4680, %v4981
      %v4983 = vand.u32 %v4982, 4294901760
      %v4984 = vsub.f32 %v4982, %v4983
      %v4985 = vand.u32 %v4984, 4294901760
      %4986 = vmatpush1.msra.mxu0 %v4985
      %4987 = vmatprep.subr.mxu0 0.0
      %v4988 = vand.u32 %v4681, 4294901760
      %v4989 = vsub.f32 %v4681, %v4988
      %v4990 = vand.u32 %v4989, 4294901760
      %v4991 = vsub.f32 %v4989, %v4990
      %v4992 = vand.u32 %v4991, 4294901760
      %4993 = vmatpush1.msra.mxu0 %v4992
      %4994 = vmatprep.subr.mxu0 0.0
      %v4995 = vand.u32 %v4682, 4294901760
      %v4996 = vsub.f32 %v4682, %v4995
      %v4997 = vand.u32 %v4996, 4294901760
      %v4998 = vsub.f32 %v4996, %v4997
      %v4999 = vand.u32 %v4998, 4294901760
      %5000 = vmatpush1.msra.mxu0 %v4999
      %5001 = vmatprep.subr.mxu0 0.0
      %v5002 = vand.u32 %v4683, 4294901760
      %v5003 = vsub.f32 %v4683, %v5002
      %v5004 = vand.u32 %v5003, 4294901760
      %v5005 = vsub.f32 %v5003, %v5004
      %v5006 = vand.u32 %v5005, 4294901760
      %5007 = vmatpush1.msra.mxu0 %v5006
      %5008 = vmatprep.subr.mxu0 0.0
      %v5009 = vand.u32 %v4684, 4294901760
      %v5010 = vsub.f32 %v4684, %v5009
      %v5011 = vand.u32 %v5010, 4294901760
      %v5012 = vsub.f32 %v5010, %v5011
      %v5013 = vand.u32 %v5012, 4294901760
      %5014 = vmatpush1.msra.mxu0 %v5013
      %5015 = vmatprep.subr.mxu0 0.0
      %v5016 = vand.u32 %v4685, 4294901760
      %v5017 = vsub.f32 %v4685, %v5016
      %v5018 = vand.u32 %v5017, 4294901760
      %v5019 = vsub.f32 %v5017, %v5018
      %v5020 = vand.u32 %v5019, 4294901760
      %5021 = vmatpush1.msra.mxu0 %v5020
      %v5022 = vand.u32 %v4643, 4294901760
      %5023 = vmatprep.mubr.f32.mxu0 %v5022
      %v5024 = vand.u32 %v4642, 4294901760
      %5025 = vmatmul.mubr.f32.gmra.mrb[0].mxu0 %v5024
      %v5026 = vpop.f32.mrb[0].mxu0
      %v5027 = vadd.f32 %v4795, %v5026
      %v5028 = vpop.f32.mrb[0].mxu0
      %5029 = vdwg.mxu0
      %5030 = vmatprep.subr.mxu0 0.0
      %v5031 = vand.u32 %v4654, 4294901760
      %v5032 = vsub.f32 %v4654, %v5031
      %5033 = vmatpush1.msra.mxu0 %v5032
      %5034 = vmatprep.subr.mxu0 0.0
      %v5035 = vand.u32 %v4655, 4294901760
      %v5036 = vsub.f32 %v4655, %v5035
      %5037 = vmatpush1.msra.mxu0 %v5036
      %5038 = vmatprep.subr.mxu0 0.0
      %v5039 = vand.u32 %v4656, 4294901760
      %v5040 = vsub.f32 %v4656, %v5039
      %5041 = vmatpush1.msra.mxu0 %v5040
      %5042 = vmatprep.subr.mxu0 0.0
      %v5043 = vand.u32 %v4657, 4294901760
      %v5044 = vsub.f32 %v4657, %v5043
      %5045 = vmatpush1.msra.mxu0 %v5044
      %5046 = vmatprep.subr.mxu0 0.0
      %v5047 = vand.u32 %v4658, 4294901760
      %v5048 = vsub.f32 %v4658, %v5047
      %5049 = vmatpush1.msra.mxu0 %v5048
      %5050 = vmatprep.subr.mxu0 0.0
      %v5051 = vand.u32 %v4659, 4294901760
      %v5052 = vsub.f32 %v4659, %v5051
      %5053 = vmatpush1.msra.mxu0 %v5052
      %5054 = vmatprep.subr.mxu0 0.0
      %v5055 = vand.u32 %v4660, 4294901760
      %v5056 = vsub.f32 %v4660, %v5055
      %5057 = vmatpush1.msra.mxu0 %v5056
      %5058 = vmatprep.subr.mxu0 0.0
      %v5059 = vand.u32 %v4661, 4294901760
      %v5060 = vsub.f32 %v4661, %v5059
      %5061 = vmatpush1.msra.mxu0 %v5060
      %5062 = vmatprep.subr.mxu0 0.0
      %v5063 = vand.u32 %v4662, 4294901760
      %v5064 = vsub.f32 %v4662, %v5063
      %5065 = vmatpush1.msra.mxu0 %v5064
      %5066 = vmatprep.subr.mxu0 0.0
      %v5067 = vand.u32 %v4663, 4294901760
      %v5068 = vsub.f32 %v4663, %v5067
      %5069 = vmatpush1.msra.mxu0 %v5068
      %5070 = vmatprep.subr.mxu0 0.0
      %v5071 = vand.u32 %v4664, 4294901760
      %v5072 = vsub.f32 %v4664, %v5071
      %5073 = vmatpush1.msra.mxu0 %v5072
      %5074 = vmatprep.subr.mxu0 0.0
      %v5075 = vand.u32 %v4665, 4294901760
      %v5076 = vsub.f32 %v4665, %v5075
      %5077 = vmatpush1.msra.mxu0 %v5076
      %5078 = vmatprep.subr.mxu0 0.0
      %v5079 = vand.u32 %v4666, 4294901760
      %v5080 = vsub.f32 %v4666, %v5079
      %5081 = vmatpush1.msra.mxu0 %v5080
      %5082 = vmatprep.subr.mxu0 0.0
      %v5083 = vand.u32 %v4667, 4294901760
      %v5084 = vsub.f32 %v4667, %v5083
      %5085 = vmatpush1.msra.mxu0 %v5084
      %5086 = vmatprep.subr.mxu0 0.0
      %v5087 = vand.u32 %v4668, 4294901760
      %v5088 = vsub.f32 %v4668, %v5087
      %5089 = vmatpush1.msra.mxu0 %v5088
      %5090 = vmatprep.subr.mxu0 0.0
      %v5091 = vand.u32 %v4669, 4294901760
      %v5092 = vsub.f32 %v4669, %v5091
      %5093 = vmatpush1.msra.mxu0 %v5092
      %5094 = vmatprep.subr.mxu0 0.0
      %v5095 = vand.u32 %v4670, 4294901760
      %v5096 = vsub.f32 %v4670, %v5095
      %5097 = vmatpush1.msra.mxu0 %v5096
      %5098 = vmatprep.subr.mxu0 0.0
      %v5099 = vand.u32 %v4671, 4294901760
      %v5100 = vsub.f32 %v4671, %v5099
      %5101 = vmatpush1.msra.mxu0 %v5100
      %5102 = vmatprep.subr.mxu0 0.0
      %v5103 = vand.u32 %v4672, 4294901760
      %v5104 = vsub.f32 %v4672, %v5103
      %5105 = vmatpush1.msra.mxu0 %v5104
      %5106 = vmatprep.subr.mxu0 0.0
      %v5107 = vand.u32 %v4673, 4294901760
      %v5108 = vsub.f32 %v4673, %v5107
      %5109 = vmatpush1.msra.mxu0 %v5108
      %5110 = vmatprep.subr.mxu0 0.0
      %v5111 = vand.u32 %v4674, 4294901760
      %v5112 = vsub.f32 %v4674, %v5111
      %5113 = vmatpush1.msra.mxu0 %v5112
      %5114 = vmatprep.subr.mxu0 0.0
      %v5115 = vand.u32 %v4675, 4294901760
      %v5116 = vsub.f32 %v4675, %v5115
      %5117 = vmatpush1.msra.mxu0 %v5116
      %5118 = vmatprep.subr.mxu0 0.0
      %v5119 = vand.u32 %v4676, 4294901760
      %v5120 = vsub.f32 %v4676, %v5119
      %5121 = vmatpush1.msra.mxu0 %v5120
      %5122 = vmatprep.subr.mxu0 0.0
      %v5123 = vand.u32 %v4677, 4294901760
      %v5124 = vsub.f32 %v4677, %v5123
      %5125 = vmatpush1.msra.mxu0 %v5124
      %5126 = vmatprep.subr.mxu0 0.0
      %v5127 = vand.u32 %v4678, 4294901760
      %v5128 = vsub.f32 %v4678, %v5127
      %5129 = vmatpush1.msra.mxu0 %v5128
      %5130 = vmatprep.subr.mxu0 0.0
      %v5131 = vand.u32 %v4679, 4294901760
      %v5132 = vsub.f32 %v4679, %v5131
      %5133 = vmatpush1.msra.mxu0 %v5132
      %5134 = vmatprep.subr.mxu0 0.0
      %v5135 = vand.u32 %v4680, 4294901760
      %v5136 = vsub.f32 %v4680, %v5135
      %5137 = vmatpush1.msra.mxu0 %v5136
      %5138 = vmatprep.subr.mxu0 0.0
      %v5139 = vand.u32 %v4681, 4294901760
      %v5140 = vsub.f32 %v4681, %v5139
      %5141 = vmatpush1.msra.mxu0 %v5140
      %5142 = vmatprep.subr.mxu0 0.0
      %v5143 = vand.u32 %v4682, 4294901760
      %v5144 = vsub.f32 %v4682, %v5143
      %5145 = vmatpush1.msra.mxu0 %v5144
      %5146 = vmatprep.subr.mxu0 0.0
      %v5147 = vand.u32 %v4683, 4294901760
      %v5148 = vsub.f32 %v4683, %v5147
      %5149 = vmatpush1.msra.mxu0 %v5148
      %5150 = vmatprep.subr.mxu0 0.0
      %v5151 = vand.u32 %v4684, 4294901760
      %v5152 = vsub.f32 %v4684, %v5151
      %5153 = vmatpush1.msra.mxu0 %v5152
      %5154 = vmatprep.subr.mxu0 0.0
      %v5155 = vand.u32 %v4685, 4294901760
      %v5156 = vsub.f32 %v4685, %v5155
      %5157 = vmatpush1.msra.mxu0 %v5156
      %v5158 = vand.u32 %v4643, 4294901760
      %v5159 = vsub.f32 %v4643, %v5158
      %5160 = vmatprep.mubr.f32.mxu0 %v5159
      %v5161 = vand.u32 %v4642, 4294901760
      %v5162 = vsub.f32 %v4642, %v5161
      %5163 = vmatmul.mubr.f32.gmra.mrb[0].mxu0 %v5162
      %v5164 = vpop.f32.mrb[0].mxu0
      %v5165 = vadd.f32 %v5027, %v5164
      %v5166 = vpop.f32.mrb[0].mxu0
      %5167 = vdwg.mxu0
      %5168 = vmatprep.subr.mxu0 0.0
      %v5169 = vand.u32 %v4654, 4294901760
      %5170 = vmatpush1.msra.mxu0 %v5169
      %5171 = vmatprep.subr.mxu0 0.0
      %v5172 = vand.u32 %v4655, 4294901760
      %5173 = vmatpush1.msra.mxu0 %v5172
      %5174 = vmatprep.subr.mxu0 0.0
      %v5175 = vand.u32 %v4656, 4294901760
      %5176 = vmatpush1.msra.mxu0 %v5175
      %5177 = vmatprep.subr.mxu0 0.0
      %v5178 = vand.u32 %v4657, 4294901760
      %5179 = vmatpush1.msra.mxu0 %v5178
      %5180 = vmatprep.subr.mxu0 0.0
      %v5181 = vand.u32 %v4658, 4294901760
      %5182 = vmatpush1.msra.mxu0 %v5181
      %5183 = vmatprep.subr.mxu0 0.0
      %v5184 = vand.u32 %v4659, 4294901760
      %5185 = vmatpush1.msra.mxu0 %v5184
      %5186 = vmatprep.subr.mxu0 0.0
      %v5187 = vand.u32 %v4660, 4294901760
      %5188 = vmatpush1.msra.mxu0 %v5187
      %5189 = vmatprep.subr.mxu0 0.0
      %v5190 = vand.u32 %v4661, 4294901760
      %5191 = vmatpush1.msra.mxu0 %v5190
      %5192 = vmatprep.subr.mxu0 0.0
      %v5193 = vand.u32 %v4662, 4294901760
      %5194 = vmatpush1.msra.mxu0 %v5193
      %5195 = vmatprep.subr.mxu0 0.0
      %v5196 = vand.u32 %v4663, 4294901760
      %5197 = vmatpush1.msra.mxu0 %v5196
      %5198 = vmatprep.subr.mxu0 0.0
      %v5199 = vand.u32 %v4664, 4294901760
      %5200 = vmatpush1.msra.mxu0 %v5199
      %5201 = vmatprep.subr.mxu0 0.0
      %v5202 = vand.u32 %v4665, 4294901760
      %5203 = vmatpush1.msra.mxu0 %v5202
      %5204 = vmatprep.subr.mxu0 0.0
      %v5205 = vand.u32 %v4666, 4294901760
      %5206 = vmatpush1.msra.mxu0 %v5205
      %5207 = vmatprep.subr.mxu0 0.0
      %v5208 = vand.u32 %v4667, 4294901760
      %5209 = vmatpush1.msra.mxu0 %v5208
      %5210 = vmatprep.subr.mxu0 0.0
      %v5211 = vand.u32 %v4668, 4294901760
      %5212 = vmatpush1.msra.mxu0 %v5211
      %5213 = vmatprep.subr.mxu0 0.0
      %v5214 = vand.u32 %v4669, 4294901760
      %5215 = vmatpush1.msra.mxu0 %v5214
      %5216 = vmatprep.subr.mxu0 0.0
      %v5217 = vand.u32 %v4670, 4294901760
      %5218 = vmatpush1.msra.mxu0 %v5217
      %5219 = vmatprep.subr.mxu0 0.0
      %v5220 = vand.u32 %v4671, 4294901760
      %5221 = vmatpush1.msra.mxu0 %v5220
      %5222 = vmatprep.subr.mxu0 0.0
      %v5223 = vand.u32 %v4672, 4294901760
      %5224 = vmatpush1.msra.mxu0 %v5223
      %5225 = vmatprep.subr.mxu0 0.0
      %v5226 = vand.u32 %v4673, 4294901760
      %5227 = vmatpush1.msra.mxu0 %v5226
      %5228 = vmatprep.subr.mxu0 0.0
      %v5229 = vand.u32 %v4674, 4294901760
      %5230 = vmatpush1.msra.mxu0 %v5229
      %5231 = vmatprep.subr.mxu0 0.0
      %v5232 = vand.u32 %v4675, 4294901760
      %5233 = vmatpush1.msra.mxu0 %v5232
      %5234 = vmatprep.subr.mxu0 0.0
      %v5235 = vand.u32 %v4676, 4294901760
      %5236 = vmatpush1.msra.mxu0 %v5235
      %5237 = vmatprep.subr.mxu0 0.0
      %v5238 = vand.u32 %v4677, 4294901760
      %5239 = vmatpush1.msra.mxu0 %v5238
      %5240 = vmatprep.subr.mxu0 0.0
      %v5241 = vand.u32 %v4678, 4294901760
      %5242 = vmatpush1.msra.mxu0 %v5241
      %5243 = vmatprep.subr.mxu0 0.0
      %v5244 = vand.u32 %v4679, 4294901760
      %5245 = vmatpush1.msra.mxu0 %v5244
      %5246 = vmatprep.subr.mxu0 0.0
      %v5247 = vand.u32 %v4680, 4294901760
      %5248 = vmatpush1.msra.mxu0 %v5247
      %5249 = vmatprep.subr.mxu0 0.0
      %v5250 = vand.u32 %v4681, 4294901760
      %5251 = vmatpush1.msra.mxu0 %v5250
      %5252 = vmatprep.subr.mxu0 0.0
      %v5253 = vand.u32 %v4682, 4294901760
      %5254 = vmatpush1.msra.mxu0 %v5253
      %5255 = vmatprep.subr.mxu0 0.0
      %v5256 = vand.u32 %v4683, 4294901760
      %5257 = vmatpush1.msra.mxu0 %v5256
      %5258 = vmatprep.subr.mxu0 0.0
      %v5259 = vand.u32 %v4684, 4294901760
      %5260 = vmatpush1.msra.mxu0 %v5259
      %5261 = vmatprep.subr.mxu0 0.0
      %v5262 = vand.u32 %v4685, 4294901760
      %5263 = vmatpush1.msra.mxu0 %v5262
      %v5264 = vand.u32 %v4643, 4294901760
      %v5265 = vsub.f32 %v4643, %v5264
      %v5266 = vand.u32 %v5265, 4294901760
      %5267 = vmatprep.mubr.f32.mxu0 %v5266
      %v5268 = vand.u32 %v4642, 4294901760
      %v5269 = vsub.f32 %v4642, %v5268
      %v5270 = vand.u32 %v5269, 4294901760
      %5271 = vmatmul.mubr.f32.gmra.mrb[0].mxu0 %v5270
      %v5272 = vpop.f32.mrb[0].mxu0
      %v5273 = vadd.f32 %v5165, %v5272
      %v5274 = vpop.f32.mrb[0].mxu0
      %5275 = vdwg.mxu0
      %5276 = vmatprep.subr.mxu0 0.0
      %v5277 = vand.u32 %v4654, 4294901760
      %v5278 = vsub.f32 %v4654, %v5277
      %v5279 = vand.u32 %v5278, 4294901760
      %5280 = vmatpush1.msra.mxu0 %v5279
      %5281 = vmatprep.subr.mxu0 0.0
      %v5282 = vand.u32 %v4655, 4294901760
      %v5283 = vsub.f32 %v4655, %v5282
      %v5284 = vand.u32 %v5283, 4294901760
      %5285 = vmatpush1.msra.mxu0 %v5284
      %5286 = vmatprep.subr.mxu0 0.0
      %v5287 = vand.u32 %v4656, 4294901760
      %v5288 = vsub.f32 %v4656, %v5287
      %v5289 = vand.u32 %v5288, 4294901760
      %5290 = vmatpush1.msra.mxu0 %v5289
      %5291 = vmatprep.subr.mxu0 0.0
      %v5292 = vand.u32 %v4657, 4294901760
      %v5293 = vsub.f32 %v4657, %v5292
      %v5294 = vand.u32 %v5293, 4294901760
      %5295 = vmatpush1.msra.mxu0 %v5294
      %5296 = vmatprep.subr.mxu0 0.0
      %v5297 = vand.u32 %v4658, 4294901760
      %v5298 = vsub.f32 %v4658, %v5297
      %v5299 = vand.u32 %v5298, 4294901760
      %5300 = vmatpush1.msra.mxu0 %v5299
      %5301 = vmatprep.subr.mxu0 0.0
      %v5302 = vand.u32 %v4659, 4294901760
      %v5303 = vsub.f32 %v4659, %v5302
      %v5304 = vand.u32 %v5303, 4294901760
      %5305 = vmatpush1.msra.mxu0 %v5304
      %5306 = vmatprep.subr.mxu0 0.0
      %v5307 = vand.u32 %v4660, 4294901760
      %v5308 = vsub.f32 %v4660, %v5307
      %v5309 = vand.u32 %v5308, 4294901760
      %5310 = vmatpush1.msra.mxu0 %v5309
      %5311 = vmatprep.subr.mxu0 0.0
      %v5312 = vand.u32 %v4661, 4294901760
      %v5313 = vsub.f32 %v4661, %v5312
      %v5314 = vand.u32 %v5313, 4294901760
      %5315 = vmatpush1.msra.mxu0 %v5314
      %5316 = vmatprep.subr.mxu0 0.0
      %v5317 = vand.u32 %v4662, 4294901760
      %v5318 = vsub.f32 %v4662, %v5317
      %v5319 = vand.u32 %v5318, 4294901760
      %5320 = vmatpush1.msra.mxu0 %v5319
      %5321 = vmatprep.subr.mxu0 0.0
      %v5322 = vand.u32 %v4663, 4294901760
      %v5323 = vsub.f32 %v4663, %v5322
      %v5324 = vand.u32 %v5323, 4294901760
      %5325 = vmatpush1.msra.mxu0 %v5324
      %5326 = vmatprep.subr.mxu0 0.0
      %v5327 = vand.u32 %v4664, 4294901760
      %v5328 = vsub.f32 %v4664, %v5327
      %v5329 = vand.u32 %v5328, 4294901760
      %5330 = vmatpush1.msra.mxu0 %v5329
      %5331 = vmatprep.subr.mxu0 0.0
      %v5332 = vand.u32 %v4665, 4294901760
      %v5333 = vsub.f32 %v4665, %v5332
      %v5334 = vand.u32 %v5333, 4294901760
      %5335 = vmatpush1.msra.mxu0 %v5334
      %5336 = vmatprep.subr.mxu0 0.0
      %v5337 = vand.u32 %v4666, 4294901760
      %v5338 = vsub.f32 %v4666, %v5337
      %v5339 = vand.u32 %v5338, 4294901760
      %5340 = vmatpush1.msra.mxu0 %v5339
      %5341 = vmatprep.subr.mxu0 0.0
      %v5342 = vand.u32 %v4667, 4294901760
      %v5343 = vsub.f32 %v4667, %v5342
      %v5344 = vand.u32 %v5343, 4294901760
      %5345 = vmatpush1.msra.mxu0 %v5344
      %5346 = vmatprep.subr.mxu0 0.0
      %v5347 = vand.u32 %v4668, 4294901760
      %v5348 = vsub.f32 %v4668, %v5347
      %v5349 = vand.u32 %v5348, 4294901760
      %5350 = vmatpush1.msra.mxu0 %v5349
      %5351 = vmatprep.subr.mxu0 0.0
      %v5352 = vand.u32 %v4669, 4294901760
      %v5353 = vsub.f32 %v4669, %v5352
      %v5354 = vand.u32 %v5353, 4294901760
      %5355 = vmatpush1.msra.mxu0 %v5354
      %5356 = vmatprep.subr.mxu0 0.0
      %v5357 = vand.u32 %v4670, 4294901760
      %v5358 = vsub.f32 %v4670, %v5357
      %v5359 = vand.u32 %v5358, 4294901760
      %5360 = vmatpush1.msra.mxu0 %v5359
      %5361 = vmatprep.subr.mxu0 0.0
      %v5362 = vand.u32 %v4671, 4294901760
      %v5363 = vsub.f32 %v4671, %v5362
      %v5364 = vand.u32 %v5363, 4294901760
      %5365 = vmatpush1.msra.mxu0 %v5364
      %5366 = vmatprep.subr.mxu0 0.0
      %v5367 = vand.u32 %v4672, 4294901760
      %v5368 = vsub.f32 %v4672, %v5367
      %v5369 = vand.u32 %v5368, 4294901760
      %5370 = vmatpush1.msra.mxu0 %v5369
      %5371 = vmatprep.subr.mxu0 0.0
      %v5372 = vand.u32 %v4673, 4294901760
      %v5373 = vsub.f32 %v4673, %v5372
      %v5374 = vand.u32 %v5373, 4294901760
      %5375 = vmatpush1.msra.mxu0 %v5374
      %5376 = vmatprep.subr.mxu0 0.0
      %v5377 = vand.u32 %v4674, 4294901760
      %v5378 = vsub.f32 %v4674, %v5377
      %v5379 = vand.u32 %v5378, 4294901760
      %5380 = vmatpush1.msra.mxu0 %v5379
      %5381 = vmatprep.subr.mxu0 0.0
      %v5382 = vand.u32 %v4675, 4294901760
      %v5383 = vsub.f32 %v4675, %v5382
      %v5384 = vand.u32 %v5383, 4294901760
      %5385 = vmatpush1.msra.mxu0 %v5384
      %5386 = vmatprep.subr.mxu0 0.0
      %v5387 = vand.u32 %v4676, 4294901760
      %v5388 = vsub.f32 %v4676, %v5387
      %v5389 = vand.u32 %v5388, 4294901760
      %5390 = vmatpush1.msra.mxu0 %v5389
      %5391 = vmatprep.subr.mxu0 0.0
      %v5392 = vand.u32 %v4677, 4294901760
      %v5393 = vsub.f32 %v4677, %v5392
      %v5394 = vand.u32 %v5393, 4294901760
      %5395 = vmatpush1.msra.mxu0 %v5394
      %5396 = vmatprep.subr.mxu0 0.0
      %v5397 = vand.u32 %v4678, 4294901760
      %v5398 = vsub.f32 %v4678, %v5397
      %v5399 = vand.u32 %v5398, 4294901760
      %5400 = vmatpush1.msra.mxu0 %v5399
      %5401 = vmatprep.subr.mxu0 0.0
      %v5402 = vand.u32 %v4679, 4294901760
      %v5403 = vsub.f32 %v4679, %v5402
      %v5404 = vand.u32 %v5403, 4294901760
      %5405 = vmatpush1.msra.mxu0 %v5404
      %5406 = vmatprep.subr.mxu0 0.0
      %v5407 = vand.u32 %v4680, 4294901760
      %v5408 = vsub.f32 %v4680, %v5407
      %v5409 = vand.u32 %v5408, 4294901760
      %5410 = vmatpush1.msra.mxu0 %v5409
      %5411 = vmatprep.subr.mxu0 0.0
      %v5412 = vand.u32 %v4681, 4294901760
      %v5413 = vsub.f32 %v4681, %v5412
      %v5414 = vand.u32 %v5413, 4294901760
      %5415 = vmatpush1.msra.mxu0 %v5414
      %5416 = vmatprep.subr.mxu0 0.0
      %v5417 = vand.u32 %v4682, 4294901760
      %v5418 = vsub.f32 %v4682, %v5417
      %v5419 = vand.u32 %v5418, 4294901760
      %5420 = vmatpush1.msra.mxu0 %v5419
      %5421 = vmatprep.subr.mxu0 0.0
      %v5422 = vand.u32 %v4683, 4294901760
      %v5423 = vsub.f32 %v4683, %v5422
      %v5424 = vand.u32 %v5423, 4294901760
      %5425 = vmatpush1.msra.mxu0 %v5424
      %5426 = vmatprep.subr.mxu0 0.0
      %v5427 = vand.u32 %v4684, 4294901760
      %v5428 = vsub.f32 %v4684, %v5427
      %v5429 = vand.u32 %v5428, 4294901760
      %5430 = vmatpush1.msra.mxu0 %v5429
      %5431 = vmatprep.subr.mxu0 0.0
      %v5432 = vand.u32 %v4685, 4294901760
      %v5433 = vsub.f32 %v4685, %v5432
      %v5434 = vand.u32 %v5433, 4294901760
      %5435 = vmatpush1.msra.mxu0 %v5434
      %v5436 = vand.u32 %v4643, 4294901760
      %5437 = vmatprep.mubr.f32.mxu0 %v5436
      %v5438 = vand.u32 %v4642, 4294901760
      %5439 = vmatmul.mubr.f32.gmra.mrb[0].mxu0 %v5438
      %v5440 = vpop.f32.mrb[0].mxu0
      %v5441 = vadd.f32 %v5273, %v5440
      %v5442 = vpop.f32.mrb[0].mxu0
      %5443 = vdwg.mxu0
      %5444 = vmatprep.subr.mxu0 0.0
      %v5445 = vand.u32 %v4654, 4294901760
      %5446 = vmatpush1.msra.mxu0 %v5445
      %5447 = vmatprep.subr.mxu0 0.0
      %v5448 = vand.u32 %v4655, 4294901760
      %5449 = vmatpush1.msra.mxu0 %v5448
      %5450 = vmatprep.subr.mxu0 0.0
      %v5451 = vand.u32 %v4656, 4294901760
      %5452 = vmatpush1.msra.mxu0 %v5451
      %5453 = vmatprep.subr.mxu0 0.0
      %v5454 = vand.u32 %v4657, 4294901760
      %5455 = vmatpush1.msra.mxu0 %v5454
      %5456 = vmatprep.subr.mxu0 0.0
      %v5457 = vand.u32 %v4658, 4294901760
      %5458 = vmatpush1.msra.mxu0 %v5457
      %5459 = vmatprep.subr.mxu0 0.0
      %v5460 = vand.u32 %v4659, 4294901760
      %5461 = vmatpush1.msra.mxu0 %v5460
      %5462 = vmatprep.subr.mxu0 0.0
      %v5463 = vand.u32 %v4660, 4294901760
      %5464 = vmatpush1.msra.mxu0 %v5463
      %5465 = vmatprep.subr.mxu0 0.0
      %v5466 = vand.u32 %v4661, 4294901760
      %5467 = vmatpush1.msra.mxu0 %v5466
      %5468 = vmatprep.subr.mxu0 0.0
      %v5469 = vand.u32 %v4662, 4294901760
      %5470 = vmatpush1.msra.mxu0 %v5469
      %5471 = vmatprep.subr.mxu0 0.0
      %v5472 = vand.u32 %v4663, 4294901760
      %5473 = vmatpush1.msra.mxu0 %v5472
      %5474 = vmatprep.subr.mxu0 0.0
      %v5475 = vand.u32 %v4664, 4294901760
      %5476 = vmatpush1.msra.mxu0 %v5475
      %5477 = vmatprep.subr.mxu0 0.0
      %v5478 = vand.u32 %v4665, 4294901760
      %5479 = vmatpush1.msra.mxu0 %v5478
      %5480 = vmatprep.subr.mxu0 0.0
      %v5481 = vand.u32 %v4666, 4294901760
      %5482 = vmatpush1.msra.mxu0 %v5481
      %5483 = vmatprep.subr.mxu0 0.0
      %v5484 = vand.u32 %v4667, 4294901760
      %5485 = vmatpush1.msra.mxu0 %v5484
      %5486 = vmatprep.subr.mxu0 0.0
      %v5487 = vand.u32 %v4668, 4294901760
      %5488 = vmatpush1.msra.mxu0 %v5487
      %5489 = vmatprep.subr.mxu0 0.0
      %v5490 = vand.u32 %v4669, 4294901760
      %5491 = vmatpush1.msra.mxu0 %v5490
      %5492 = vmatprep.subr.mxu0 0.0
      %v5493 = vand.u32 %v4670, 4294901760
      %5494 = vmatpush1.msra.mxu0 %v5493
      %5495 = vmatprep.subr.mxu0 0.0
      %v5496 = vand.u32 %v4671, 4294901760
      %5497 = vmatpush1.msra.mxu0 %v5496
      %5498 = vmatprep.subr.mxu0 0.0
      %v5499 = vand.u32 %v4672, 4294901760
      %5500 = vmatpush1.msra.mxu0 %v5499
      %5501 = vmatprep.subr.mxu0 0.0
      %v5502 = vand.u32 %v4673, 4294901760
      %5503 = vmatpush1.msra.mxu0 %v5502
      %5504 = vmatprep.subr.mxu0 0.0
      %v5505 = vand.u32 %v4674, 4294901760
      %5506 = vmatpush1.msra.mxu0 %v5505
      %5507 = vmatprep.subr.mxu0 0.0
      %v5508 = vand.u32 %v4675, 4294901760
      %5509 = vmatpush1.msra.mxu0 %v5508
      %5510 = vmatprep.subr.mxu0 0.0
      %v5511 = vand.u32 %v4676, 4294901760
      %5512 = vmatpush1.msra.mxu0 %v5511
      %5513 = vmatprep.subr.mxu0 0.0
      %v5514 = vand.u32 %v4677, 4294901760
      %5515 = vmatpush1.msra.mxu0 %v5514
      %5516 = vmatprep.subr.mxu0 0.0
      %v5517 = vand.u32 %v4678, 4294901760
      %5518 = vmatpush1.msra.mxu0 %v5517
      %5519 = vmatprep.subr.mxu0 0.0
      %v5520 = vand.u32 %v4679, 4294901760
      %5521 = vmatpush1.msra.mxu0 %v5520
      %5522 = vmatprep.subr.mxu0 0.0
      %v5523 = vand.u32 %v4680, 4294901760
      %5524 = vmatpush1.msra.mxu0 %v5523
      %5525 = vmatprep.subr.mxu0 0.0
      %v5526 = vand.u32 %v4681, 4294901760
      %5527 = vmatpush1.msra.mxu0 %v5526
      %5528 = vmatprep.subr.mxu0 0.0
      %v5529 = vand.u32 %v4682, 4294901760
      %5530 = vmatpush1.msra.mxu0 %v5529
      %5531 = vmatprep.subr.mxu0 0.0
      %v5532 = vand.u32 %v4683, 4294901760
      %5533 = vmatpush1.msra.mxu0 %v5532
      %5534 = vmatprep.subr.mxu0 0.0
      %v5535 = vand.u32 %v4684, 4294901760
      %5536 = vmatpush1.msra.mxu0 %v5535
      %5537 = vmatprep.subr.mxu0 0.0
      %v5538 = vand.u32 %v4685, 4294901760
      %5539 = vmatpush1.msra.mxu0 %v5538
      %v5540 = vand.u32 %v4643, 4294901760
      %5541 = vmatprep.mubr.f32.mxu0 %v5540
      %v5542 = vand.u32 %v4642, 4294901760
      %5543 = vmatmul.mubr.f32.gmra.mrb[0].mxu0 %v5542
      %v5544 = vpop.f32.mrb[0].mxu0
      %v5545 = vadd.f32 %v5441, %v5544
      %v5546 = vpop.f32.mrb[0].mxu0
      %5547 = vdwg.mxu0
      %v5548 = vstv %s4653
      %v5549 = vmul.f32 %v5548, %v5545
      %v5550 = vadd.f32 %v4652, %v5549
      %s5551 = scalar_lea.vmem %s5, 24
      %v5552 = vld [vmem:[%s5551] sm:$0xff]
      %5554 = vset.pattern.permute.xlu0 4
      %5555 = vperm.xlu0 %5554, %v5552
      %v5556 = vpop.permute.xlu0 %5555
      %v5558 = vmul.f32 %v5550, %v5556
      %5559 = vrot.lane.b32.xlu0 %v5550, 9
      %v5560 = vpop.permute.xlu0 %5559
      %v5561 = vmul.f32 %v5560, %v2523
      %5562 = vset.pattern.permute.xlu0 0
      %5563 = vperm.xlu0 %5562, %v5552
      %v5564 = vpop.permute.xlu0 %5563
      %v5566 = vmul.f32 %v5561, %v5564
      %v5567 = vadd.f32 %v5558, %v5566
      %5568 = vrot.lane.b32.xlu0 %v5550, 8
      %v5569 = vpop.permute.xlu0 %5568
      %v5570 = vmul.f32 %v5569, %v2534
      %5571 = vset.pattern.permute.xlu0 1
      %5572 = vperm.xlu0 %5571, %v5552
      %v5573 = vpop.permute.xlu0 %5572
      %v5575 = vmul.f32 %v5570, %v5573
      %v5576 = vadd.f32 %v5567, %v5575
      %5577 = vrot.lane.b32.xlu0 %v5550, 7
      %v5578 = vpop.permute.xlu0 %5577
      %v5579 = vmul.f32 %v5578, %v2547
      %5580 = vset.pattern.permute.xlu0 2
      %5581 = vperm.xlu0 %5580, %v5552
      %v5582 = vpop.permute.xlu0 %5581
      %v5584 = vmul.f32 %v5579, %v5582
      %v5585 = vadd.f32 %v5576, %v5584
      %5586 = vrot.lane.b32.xlu0 %v5550, 1
      %v5587 = vpop.permute.xlu0 %5586
      %v5588 = vmul.f32 %v5587, %v2558
      %5589 = vset.pattern.permute.xlu0 3
      %5590 = vperm.xlu0 %5589, %v5552
      %v5591 = vpop.permute.xlu0 %5590
      %v5593 = vmul.f32 %v5588, %v5591
      %v5594 = vadd.f32 %v5585, %v5593
      %5595 = vrot.lane.b32.xlu0 %v5550, 127
      %v5596 = vpop.permute.xlu0 %5595
      %v5597 = vmul.f32 %v5596, %v2569
      %5598 = vset.pattern.permute.xlu0 5
      %5599 = vperm.xlu0 %5598, %v5552
      %v5600 = vpop.permute.xlu0 %5599
      %v5602 = vmul.f32 %v5597, %v5600
      %v5603 = vadd.f32 %v5594, %v5602
      %5604 = vrot.lane.b32.xlu0 %v5550, 121
      %v5605 = vpop.permute.xlu0 %5604
      %v5606 = vmul.f32 %v5605, %v2582
      %5607 = vset.pattern.permute.xlu0 6
      %5608 = vperm.xlu0 %5607, %v5552
      %v5609 = vpop.permute.xlu0 %5608
      %v5611 = vmul.f32 %v5606, %v5609
      %v5612 = vadd.f32 %v5603, %v5611
      %5613 = vrot.lane.b32.xlu0 %v5550, 120
      %v5614 = vpop.permute.xlu0 %5613
      %v5615 = vmul.f32 %v5614, %v2593
      %5616 = vset.pattern.permute.xlu0 7
      %5617 = vperm.xlu0 %5616, %v5552
      %v5618 = vpop.permute.xlu0 %5617
      %v5620 = vmul.f32 %v5615, %v5618
      %v5621 = vadd.f32 %v5612, %v5620
      %5622 = vrot.lane.b32.xlu0 %v5550, 119
      %v5623 = vpop.permute.xlu0 %5622
      %v5624 = vmul.f32 %v5623, %v2605
      %5625 = vset.pattern.permute.xlu0 8
      %5626 = vperm.xlu0 %5625, %v5552
      %v5627 = vpop.permute.xlu0 %5626
      %v5629 = vmul.f32 %v5624, %v5627
      %v5630 = vadd.f32 %v5621, %v5629
      %s5631 = scalar_lea.vmem %s6, 24
      %v5632 = vld [vmem:[%s5631] sm:$0xff]
      %s5633 = scalar_lea.vmem %s7, 24
      %v5634 = vld [vmem:[%s5633] sm:$0xff]
      %5636 = vset.pattern.permute.xlu0 0
      %5637 = vperm.xlu0 %5636, %v5634
      %v5638 = vpop.permute.xlu0 %5637
      %v5641 = vsel %vm1393, %v5632, 0
      %5643 = vmatprep.subr.mxu0 0.0
      %v5644 = vand.u32 %v5630, 4294901760
      %5645 = vmatpush1.msra.mxu0 %v5644
      %5646 = vmatprep.subr.mxu0 0.0
      %5647 = vmatpush1.msra.mxu0 0.0
      %5648 = vmatprep.subr.mxu0 0.0
      %5649 = vmatpush1.msra.mxu0 0.0
      %5650 = vmatprep.subr.mxu0 0.0
      %5651 = vmatpush1.msra.mxu0 0.0
      %5652 = vmatprep.subr.mxu0 0.0
      %5653 = vmatpush1.msra.mxu0 0.0
      %5654 = vmatprep.subr.mxu0 0.0
      %5655 = vmatpush1.msra.mxu0 0.0
      %5656 = vmatprep.subr.mxu0 0.0
      %5657 = vmatpush1.msra.mxu0 0.0
      %5658 = vmatprep.subr.mxu0 0.0
      %5659 = vmatpush1.msra.mxu0 0.0
      %5660 = vmatprep.subr.mxu0 0.0
      %5661 = vmatpush1.msra.mxu0 0.0
      %5662 = vmatprep.subr.mxu0 0.0
      %5663 = vmatpush1.msra.mxu0 0.0
      %5664 = vmatprep.subr.mxu0 0.0
      %5665 = vmatpush1.msra.mxu0 0.0
      %5666 = vmatprep.subr.mxu0 0.0
      %5667 = vmatpush1.msra.mxu0 0.0
      %5668 = vmatprep.subr.mxu0 0.0
      %5669 = vmatpush1.msra.mxu0 0.0
      %5670 = vmatprep.subr.mxu0 0.0
      %5671 = vmatpush1.msra.mxu0 0.0
      %5672 = vmatprep.subr.mxu0 0.0
      %5673 = vmatpush1.msra.mxu0 0.0
      %5674 = vmatprep.subr.mxu0 0.0
      %5675 = vmatpush1.msra.mxu0 0.0
      %5676 = vmatprep.subr.mxu0 0.0
      %5677 = vmatpush1.msra.mxu0 0.0
      %5678 = vmatprep.subr.mxu0 0.0
      %5679 = vmatpush1.msra.mxu0 0.0
      %5680 = vmatprep.subr.mxu0 0.0
      %5681 = vmatpush1.msra.mxu0 0.0
      %5682 = vmatprep.subr.mxu0 0.0
      %5683 = vmatpush1.msra.mxu0 0.0
      %5684 = vmatprep.subr.mxu0 0.0
      %5685 = vmatpush1.msra.mxu0 0.0
      %5686 = vmatprep.subr.mxu0 0.0
      %5687 = vmatpush1.msra.mxu0 0.0
      %5688 = vmatprep.subr.mxu0 0.0
      %5689 = vmatpush1.msra.mxu0 0.0
      %5690 = vmatprep.subr.mxu0 0.0
      %5691 = vmatpush1.msra.mxu0 0.0
      %5692 = vmatprep.subr.mxu0 0.0
      %5693 = vmatpush1.msra.mxu0 0.0
      %5694 = vmatprep.subr.mxu0 0.0
      %5695 = vmatpush1.msra.mxu0 0.0
      %5696 = vmatprep.subr.mxu0 0.0
      %5697 = vmatpush1.msra.mxu0 0.0
      %5698 = vmatprep.subr.mxu0 0.0
      %5699 = vmatpush1.msra.mxu0 0.0
      %5700 = vmatprep.subr.mxu0 0.0
      %5701 = vmatpush1.msra.mxu0 0.0
      %5702 = vmatprep.subr.mxu0 0.0
      %5703 = vmatpush1.msra.mxu0 0.0
      %5704 = vmatprep.subr.mxu0 0.0
      %5705 = vmatpush1.msra.mxu0 0.0
      %5706 = vmatprep.subr.mxu0 0.0
      %5707 = vmatpush1.msra.mxu0 0.0
      %5708 = vmatprep.mubr.f32.mxu0 0.0
      %v5709 = vand.u32 %v5641, 4294901760
      %v5710 = vsub.f32 %v5641, %v5709
      %v5711 = vand.u32 %v5710, 4294901760
      %v5712 = vsub.f32 %v5710, %v5711
      %v5713 = vand.u32 %v5712, 4294901760
      %5714 = vmatmul.mubr.f32.gmra.mrb[0].mxu0 %v5713
      %v5715 = vpop.f32.mrb[0].mxu0
      %v5716 = vadd.f32 %v5638, %v5715
      %v5717 = vpop.f32.mrb[0].mxu0
      %5718 = vdwg.mxu0
      %5719 = vmatprep.subr.mxu0 0.0
      %v5720 = vand.u32 %v5630, 4294901760
      %v5721 = vsub.f32 %v5630, %v5720
      %v5722 = vand.u32 %v5721, 4294901760
      %v5723 = vsub.f32 %v5721, %v5722
      %v5724 = vand.u32 %v5723, 4294901760
      %5725 = vmatpush1.msra.mxu0 %v5724
      %5726 = vmatprep.subr.mxu0 0.0
      %5727 = vmatpush1.msra.mxu0 0.0
      %5728 = vmatprep.subr.mxu0 0.0
      %5729 = vmatpush1.msra.mxu0 0.0
      %5730 = vmatprep.subr.mxu0 0.0
      %5731 = vmatpush1.msra.mxu0 0.0
      %5732 = vmatprep.subr.mxu0 0.0
      %5733 = vmatpush1.msra.mxu0 0.0
      %5734 = vmatprep.subr.mxu0 0.0
      %5735 = vmatpush1.msra.mxu0 0.0
      %5736 = vmatprep.subr.mxu0 0.0
      %5737 = vmatpush1.msra.mxu0 0.0
      %5738 = vmatprep.subr.mxu0 0.0
      %5739 = vmatpush1.msra.mxu0 0.0
      %5740 = vmatprep.subr.mxu0 0.0
      %5741 = vmatpush1.msra.mxu0 0.0
      %5742 = vmatprep.subr.mxu0 0.0
      %5743 = vmatpush1.msra.mxu0 0.0
      %5744 = vmatprep.subr.mxu0 0.0
      %5745 = vmatpush1.msra.mxu0 0.0
      %5746 = vmatprep.subr.mxu0 0.0
      %5747 = vmatpush1.msra.mxu0 0.0
      %5748 = vmatprep.subr.mxu0 0.0
      %5749 = vmatpush1.msra.mxu0 0.0
      %5750 = vmatprep.subr.mxu0 0.0
      %5751 = vmatpush1.msra.mxu0 0.0
      %5752 = vmatprep.subr.mxu0 0.0
      %5753 = vmatpush1.msra.mxu0 0.0
      %5754 = vmatprep.subr.mxu0 0.0
      %5755 = vmatpush1.msra.mxu0 0.0
      %5756 = vmatprep.subr.mxu0 0.0
      %5757 = vmatpush1.msra.mxu0 0.0
      %5758 = vmatprep.subr.mxu0 0.0
      %5759 = vmatpush1.msra.mxu0 0.0
      %5760 = vmatprep.subr.mxu0 0.0
      %5761 = vmatpush1.msra.mxu0 0.0
      %5762 = vmatprep.subr.mxu0 0.0
      %5763 = vmatpush1.msra.mxu0 0.0
      %5764 = vmatprep.subr.mxu0 0.0
      %5765 = vmatpush1.msra.mxu0 0.0
      %5766 = vmatprep.subr.mxu0 0.0
      %5767 = vmatpush1.msra.mxu0 0.0
      %5768 = vmatprep.subr.mxu0 0.0
      %5769 = vmatpush1.msra.mxu0 0.0
      %5770 = vmatprep.subr.mxu0 0.0
      %5771 = vmatpush1.msra.mxu0 0.0
      %5772 = vmatprep.subr.mxu0 0.0
      %5773 = vmatpush1.msra.mxu0 0.0
      %5774 = vmatprep.subr.mxu0 0.0
      %5775 = vmatpush1.msra.mxu0 0.0
      %5776 = vmatprep.subr.mxu0 0.0
      %5777 = vmatpush1.msra.mxu0 0.0
      %5778 = vmatprep.subr.mxu0 0.0
      %5779 = vmatpush1.msra.mxu0 0.0
      %5780 = vmatprep.subr.mxu0 0.0
      %5781 = vmatpush1.msra.mxu0 0.0
      %5782 = vmatprep.subr.mxu0 0.0
      %5783 = vmatpush1.msra.mxu0 0.0
      %5784 = vmatprep.subr.mxu0 0.0
      %5785 = vmatpush1.msra.mxu0 0.0
      %5786 = vmatprep.subr.mxu0 0.0
      %5787 = vmatpush1.msra.mxu0 0.0
      %5788 = vmatprep.mubr.f32.mxu0 0.0
      %v5789 = vand.u32 %v5641, 4294901760
      %5790 = vmatmul.mubr.f32.gmra.mrb[0].mxu0 %v5789
      %v5791 = vpop.f32.mrb[0].mxu0
      %v5792 = vadd.f32 %v5716, %v5791
      %v5793 = vpop.f32.mrb[0].mxu0
      %5794 = vdwg.mxu0
      %5795 = vmatprep.subr.mxu0 0.0
      %v5796 = vand.u32 %v5630, 4294901760
      %v5797 = vsub.f32 %v5630, %v5796
      %5798 = vmatpush1.msra.mxu0 %v5797
      %5799 = vmatprep.subr.mxu0 0.0
      %5800 = vmatpush1.msra.mxu0 0.0
      %5801 = vmatprep.subr.mxu0 0.0
      %5802 = vmatpush1.msra.mxu0 0.0
      %5803 = vmatprep.subr.mxu0 0.0
      %5804 = vmatpush1.msra.mxu0 0.0
      %5805 = vmatprep.subr.mxu0 0.0
      %5806 = vmatpush1.msra.mxu0 0.0
      %5807 = vmatprep.subr.mxu0 0.0
      %5808 = vmatpush1.msra.mxu0 0.0
      %5809 = vmatprep.subr.mxu0 0.0
      %5810 = vmatpush1.msra.mxu0 0.0
      %5811 = vmatprep.subr.mxu0 0.0
      %5812 = vmatpush1.msra.mxu0 0.0
      %5813 = vmatprep.subr.mxu0 0.0
      %5814 = vmatpush1.msra.mxu0 0.0
      %5815 = vmatprep.subr.mxu0 0.0
      %5816 = vmatpush1.msra.mxu0 0.0
      %5817 = vmatprep.subr.mxu0 0.0
      %5818 = vmatpush1.msra.mxu0 0.0
      %5819 = vmatprep.subr.mxu0 0.0
      %5820 = vmatpush1.msra.mxu0 0.0
      %5821 = vmatprep.subr.mxu0 0.0
      %5822 = vmatpush1.msra.mxu0 0.0
      %5823 = vmatprep.subr.mxu0 0.0
      %5824 = vmatpush1.msra.mxu0 0.0
      %5825 = vmatprep.subr.mxu0 0.0
      %5826 = vmatpush1.msra.mxu0 0.0
      %5827 = vmatprep.subr.mxu0 0.0
      %5828 = vmatpush1.msra.mxu0 0.0
      %5829 = vmatprep.subr.mxu0 0.0
      %5830 = vmatpush1.msra.mxu0 0.0
      %5831 = vmatprep.subr.mxu0 0.0
      %5832 = vmatpush1.msra.mxu0 0.0
      %5833 = vmatprep.subr.mxu0 0.0
      %5834 = vmatpush1.msra.mxu0 0.0
      %5835 = vmatprep.subr.mxu0 0.0
      %5836 = vmatpush1.msra.mxu0 0.0
      %5837 = vmatprep.subr.mxu0 0.0
      %5838 = vmatpush1.msra.mxu0 0.0
      %5839 = vmatprep.subr.mxu0 0.0
      %5840 = vmatpush1.msra.mxu0 0.0
      %5841 = vmatprep.subr.mxu0 0.0
      %5842 = vmatpush1.msra.mxu0 0.0
      %5843 = vmatprep.subr.mxu0 0.0
      %5844 = vmatpush1.msra.mxu0 0.0
      %5845 = vmatprep.subr.mxu0 0.0
      %5846 = vmatpush1.msra.mxu0 0.0
      %5847 = vmatprep.subr.mxu0 0.0
      %5848 = vmatpush1.msra.mxu0 0.0
      %5849 = vmatprep.subr.mxu0 0.0
      %5850 = vmatpush1.msra.mxu0 0.0
      %5851 = vmatprep.subr.mxu0 0.0
      %5852 = vmatpush1.msra.mxu0 0.0
      %5853 = vmatprep.subr.mxu0 0.0
      %5854 = vmatpush1.msra.mxu0 0.0
      %5855 = vmatprep.subr.mxu0 0.0
      %5856 = vmatpush1.msra.mxu0 0.0
      %5857 = vmatprep.subr.mxu0 0.0
      %5858 = vmatpush1.msra.mxu0 0.0
      %5859 = vmatprep.subr.mxu0 0.0
      %5860 = vmatpush1.msra.mxu0 0.0
      %5861 = vmatprep.mubr.f32.mxu0 0.0
      %v5862 = vand.u32 %v5641, 4294901760
      %v5863 = vsub.f32 %v5641, %v5862
      %5864 = vmatmul.mubr.f32.gmra.mrb[0].mxu0 %v5863
      %v5865 = vpop.f32.mrb[0].mxu0
      %v5866 = vadd.f32 %v5792, %v5865
      %v5867 = vpop.f32.mrb[0].mxu0
      %5868 = vdwg.mxu0
      %5869 = vmatprep.subr.mxu0 0.0
      %v5870 = vand.u32 %v5630, 4294901760
      %5871 = vmatpush1.msra.mxu0 %v5870
      %5872 = vmatprep.subr.mxu0 0.0
      %5873 = vmatpush1.msra.mxu0 0.0
      %5874 = vmatprep.subr.mxu0 0.0
      %5875 = vmatpush1.msra.mxu0 0.0
      %5876 = vmatprep.subr.mxu0 0.0
      %5877 = vmatpush1.msra.mxu0 0.0
      %5878 = vmatprep.subr.mxu0 0.0
      %5879 = vmatpush1.msra.mxu0 0.0
      %5880 = vmatprep.subr.mxu0 0.0
      %5881 = vmatpush1.msra.mxu0 0.0
      %5882 = vmatprep.subr.mxu0 0.0
      %5883 = vmatpush1.msra.mxu0 0.0
      %5884 = vmatprep.subr.mxu0 0.0
      %5885 = vmatpush1.msra.mxu0 0.0
      %5886 = vmatprep.subr.mxu0 0.0
      %5887 = vmatpush1.msra.mxu0 0.0
      %5888 = vmatprep.subr.mxu0 0.0
      %5889 = vmatpush1.msra.mxu0 0.0
      %5890 = vmatprep.subr.mxu0 0.0
      %5891 = vmatpush1.msra.mxu0 0.0
      %5892 = vmatprep.subr.mxu0 0.0
      %5893 = vmatpush1.msra.mxu0 0.0
      %5894 = vmatprep.subr.mxu0 0.0
      %5895 = vmatpush1.msra.mxu0 0.0
      %5896 = vmatprep.subr.mxu0 0.0
      %5897 = vmatpush1.msra.mxu0 0.0
      %5898 = vmatprep.subr.mxu0 0.0
      %5899 = vmatpush1.msra.mxu0 0.0
      %5900 = vmatprep.subr.mxu0 0.0
      %5901 = vmatpush1.msra.mxu0 0.0
      %5902 = vmatprep.subr.mxu0 0.0
      %5903 = vmatpush1.msra.mxu0 0.0
      %5904 = vmatprep.subr.mxu0 0.0
      %5905 = vmatpush1.msra.mxu0 0.0
      %5906 = vmatprep.subr.mxu0 0.0
      %5907 = vmatpush1.msra.mxu0 0.0
      %5908 = vmatprep.subr.mxu0 0.0
      %5909 = vmatpush1.msra.mxu0 0.0
      %5910 = vmatprep.subr.mxu0 0.0
      %5911 = vmatpush1.msra.mxu0 0.0
      %5912 = vmatprep.subr.mxu0 0.0
      %5913 = vmatpush1.msra.mxu0 0.0
      %5914 = vmatprep.subr.mxu0 0.0
      %5915 = vmatpush1.msra.mxu0 0.0
      %5916 = vmatprep.subr.mxu0 0.0
      %5917 = vmatpush1.msra.mxu0 0.0
      %5918 = vmatprep.subr.mxu0 0.0
      %5919 = vmatpush1.msra.mxu0 0.0
      %5920 = vmatprep.subr.mxu0 0.0
      %5921 = vmatpush1.msra.mxu0 0.0
      %5922 = vmatprep.subr.mxu0 0.0
      %5923 = vmatpush1.msra.mxu0 0.0
      %5924 = vmatprep.subr.mxu0 0.0
      %5925 = vmatpush1.msra.mxu0 0.0
      %5926 = vmatprep.subr.mxu0 0.0
      %5927 = vmatpush1.msra.mxu0 0.0
      %5928 = vmatprep.subr.mxu0 0.0
      %5929 = vmatpush1.msra.mxu0 0.0
      %5930 = vmatprep.subr.mxu0 0.0
      %5931 = vmatpush1.msra.mxu0 0.0
      %5932 = vmatprep.subr.mxu0 0.0
      %5933 = vmatpush1.msra.mxu0 0.0
      %5934 = vmatprep.mubr.f32.mxu0 0.0
      %v5935 = vand.u32 %v5641, 4294901760
      %v5936 = vsub.f32 %v5641, %v5935
      %v5937 = vand.u32 %v5936, 4294901760
      %5938 = vmatmul.mubr.f32.gmra.mrb[0].mxu0 %v5937
      %v5939 = vpop.f32.mrb[0].mxu0
      %v5940 = vadd.f32 %v5866, %v5939
      %v5941 = vpop.f32.mrb[0].mxu0
      %5942 = vdwg.mxu0
      %5943 = vmatprep.subr.mxu0 0.0
      %v5944 = vand.u32 %v5630, 4294901760
      %v5945 = vsub.f32 %v5630, %v5944
      %v5946 = vand.u32 %v5945, 4294901760
      %5947 = vmatpush1.msra.mxu0 %v5946
      %5948 = vmatprep.subr.mxu0 0.0
      %5949 = vmatpush1.msra.mxu0 0.0
      %5950 = vmatprep.subr.mxu0 0.0
      %5951 = vmatpush1.msra.mxu0 0.0
      %5952 = vmatprep.subr.mxu0 0.0
      %5953 = vmatpush1.msra.mxu0 0.0
      %5954 = vmatprep.subr.mxu0 0.0
      %5955 = vmatpush1.msra.mxu0 0.0
      %5956 = vmatprep.subr.mxu0 0.0
      %5957 = vmatpush1.msra.mxu0 0.0
      %5958 = vmatprep.subr.mxu0 0.0
      %5959 = vmatpush1.msra.mxu0 0.0
      %5960 = vmatprep.subr.mxu0 0.0
      %5961 = vmatpush1.msra.mxu0 0.0
      %5962 = vmatprep.subr.mxu0 0.0
      %5963 = vmatpush1.msra.mxu0 0.0
      %5964 = vmatprep.subr.mxu0 0.0
      %5965 = vmatpush1.msra.mxu0 0.0
      %5966 = vmatprep.subr.mxu0 0.0
      %5967 = vmatpush1.msra.mxu0 0.0
      %5968 = vmatprep.subr.mxu0 0.0
      %5969 = vmatpush1.msra.mxu0 0.0
      %5970 = vmatprep.subr.mxu0 0.0
      %5971 = vmatpush1.msra.mxu0 0.0
      %5972 = vmatprep.subr.mxu0 0.0
      %5973 = vmatpush1.msra.mxu0 0.0
      %5974 = vmatprep.subr.mxu0 0.0
      %5975 = vmatpush1.msra.mxu0 0.0
      %5976 = vmatprep.subr.mxu0 0.0
      %5977 = vmatpush1.msra.mxu0 0.0
      %5978 = vmatprep.subr.mxu0 0.0
      %5979 = vmatpush1.msra.mxu0 0.0
      %5980 = vmatprep.subr.mxu0 0.0
      %5981 = vmatpush1.msra.mxu0 0.0
      %5982 = vmatprep.subr.mxu0 0.0
      %5983 = vmatpush1.msra.mxu0 0.0
      %5984 = vmatprep.subr.mxu0 0.0
      %5985 = vmatpush1.msra.mxu0 0.0
      %5986 = vmatprep.subr.mxu0 0.0
      %5987 = vmatpush1.msra.mxu0 0.0
      %5988 = vmatprep.subr.mxu0 0.0
      %5989 = vmatpush1.msra.mxu0 0.0
      %5990 = vmatprep.subr.mxu0 0.0
      %5991 = vmatpush1.msra.mxu0 0.0
      %5992 = vmatprep.subr.mxu0 0.0
      %5993 = vmatpush1.msra.mxu0 0.0
      %5994 = vmatprep.subr.mxu0 0.0
      %5995 = vmatpush1.msra.mxu0 0.0
      %5996 = vmatprep.subr.mxu0 0.0
      %5997 = vmatpush1.msra.mxu0 0.0
      %5998 = vmatprep.subr.mxu0 0.0
      %5999 = vmatpush1.msra.mxu0 0.0
      %6000 = vmatprep.subr.mxu0 0.0
      %6001 = vmatpush1.msra.mxu0 0.0
      %6002 = vmatprep.subr.mxu0 0.0
      %6003 = vmatpush1.msra.mxu0 0.0
      %6004 = vmatprep.subr.mxu0 0.0
      %6005 = vmatpush1.msra.mxu0 0.0
      %6006 = vmatprep.subr.mxu0 0.0
      %6007 = vmatpush1.msra.mxu0 0.0
      %6008 = vmatprep.subr.mxu0 0.0
      %6009 = vmatpush1.msra.mxu0 0.0
      %6010 = vmatprep.mubr.f32.mxu0 0.0
      %v6011 = vand.u32 %v5641, 4294901760
      %6012 = vmatmul.mubr.f32.gmra.mrb[0].mxu0 %v6011
      %v6013 = vpop.f32.mrb[0].mxu0
      %v6014 = vadd.f32 %v5940, %v6013
      %v6015 = vpop.f32.mrb[0].mxu0
      %6016 = vdwg.mxu0
      %6017 = vmatprep.subr.mxu0 0.0
      %v6018 = vand.u32 %v5630, 4294901760
      %6019 = vmatpush1.msra.mxu0 %v6018
      %6020 = vmatprep.subr.mxu0 0.0
      %6021 = vmatpush1.msra.mxu0 0.0
      %6022 = vmatprep.subr.mxu0 0.0
      %6023 = vmatpush1.msra.mxu0 0.0
      %6024 = vmatprep.subr.mxu0 0.0
      %6025 = vmatpush1.msra.mxu0 0.0
      %6026 = vmatprep.subr.mxu0 0.0
      %6027 = vmatpush1.msra.mxu0 0.0
      %6028 = vmatprep.subr.mxu0 0.0
      %6029 = vmatpush1.msra.mxu0 0.0
      %6030 = vmatprep.subr.mxu0 0.0
      %6031 = vmatpush1.msra.mxu0 0.0
      %6032 = vmatprep.subr.mxu0 0.0
      %6033 = vmatpush1.msra.mxu0 0.0
      %6034 = vmatprep.subr.mxu0 0.0
      %6035 = vmatpush1.msra.mxu0 0.0
      %6036 = vmatprep.subr.mxu0 0.0
      %6037 = vmatpush1.msra.mxu0 0.0
      %6038 = vmatprep.subr.mxu0 0.0
      %6039 = vmatpush1.msra.mxu0 0.0
      %6040 = vmatprep.subr.mxu0 0.0
      %6041 = vmatpush1.msra.mxu0 0.0
      %6042 = vmatprep.subr.mxu0 0.0
      %6043 = vmatpush1.msra.mxu0 0.0
      %6044 = vmatprep.subr.mxu0 0.0
      %6045 = vmatpush1.msra.mxu0 0.0
      %6046 = vmatprep.subr.mxu0 0.0
      %6047 = vmatpush1.msra.mxu0 0.0
      %6048 = vmatprep.subr.mxu0 0.0
      %6049 = vmatpush1.msra.mxu0 0.0
      %6050 = vmatprep.subr.mxu0 0.0
      %6051 = vmatpush1.msra.mxu0 0.0
      %6052 = vmatprep.subr.mxu0 0.0
      %6053 = vmatpush1.msra.mxu0 0.0
      %6054 = vmatprep.subr.mxu0 0.0
      %6055 = vmatpush1.msra.mxu0 0.0
      %6056 = vmatprep.subr.mxu0 0.0
      %6057 = vmatpush1.msra.mxu0 0.0
      %6058 = vmatprep.subr.mxu0 0.0
      %6059 = vmatpush1.msra.mxu0 0.0
      %6060 = vmatprep.subr.mxu0 0.0
      %6061 = vmatpush1.msra.mxu0 0.0
      %6062 = vmatprep.subr.mxu0 0.0
      %6063 = vmatpush1.msra.mxu0 0.0
      %6064 = vmatprep.subr.mxu0 0.0
      %6065 = vmatpush1.msra.mxu0 0.0
      %6066 = vmatprep.subr.mxu0 0.0
      %6067 = vmatpush1.msra.mxu0 0.0
      %6068 = vmatprep.subr.mxu0 0.0
      %6069 = vmatpush1.msra.mxu0 0.0
      %6070 = vmatprep.subr.mxu0 0.0
      %6071 = vmatpush1.msra.mxu0 0.0
      %6072 = vmatprep.subr.mxu0 0.0
      %6073 = vmatpush1.msra.mxu0 0.0
      %6074 = vmatprep.subr.mxu0 0.0
      %6075 = vmatpush1.msra.mxu0 0.0
      %6076 = vmatprep.subr.mxu0 0.0
      %6077 = vmatpush1.msra.mxu0 0.0
      %6078 = vmatprep.subr.mxu0 0.0
      %6079 = vmatpush1.msra.mxu0 0.0
      %6080 = vmatprep.subr.mxu0 0.0
      %6081 = vmatpush1.msra.mxu0 0.0
      %6082 = vmatprep.mubr.f32.mxu0 0.0
      %v6083 = vand.u32 %v5641, 4294901760
      %6084 = vmatmul.mubr.f32.gmra.mrb[0].mxu0 %v6083
      %v6085 = vpop.f32.mrb[0].mxu0
      %v6086 = vadd.f32 %v6014, %v6085
      %v6087 = vpop.f32.mrb[0].mxu0
      %6088 = vdwg.mxu0
      %v6089 = vmax.f32 %v6086, 0.0
      %6090 = vst [vmem:[%s602] sm:$0xff] %v6089
      %s6091 = sld [smem:[#allocation3 + $0x9]]
      %v6092 = vstv %s6091
      %v6093 = vmul.f32 %v6092, %v614
      %s6094 = sld [smem:[#allocation3 + $0xa]]
      %v6095 = vstv %s6094
      %v6096 = vmul.f32 %v6095, %v1843
      %v6097 = vadd.f32 %v6093, %v6096
      %s6098 = sld [smem:[#allocation3 + $0xb]]
      %v6099 = vld [vmem:[%s12] sm:$0xff]
      %v6100 = vld [vmem:[%s12 + $0x8] sm:$0xff]
      %v6101 = vld [vmem:[%s12 + $0x10] sm:$0xff]
      %v6102 = vld [vmem:[%s12 + $0x18] sm:$0xff]
      %v6103 = vld [vmem:[%s12 + $0x20] sm:$0xff]
      %v6104 = vld [vmem:[%s12 + $0x28] sm:$0xff]
      %v6105 = vld [vmem:[%s12 + $0x30] sm:$0xff]
      %v6106 = vld [vmem:[%s12 + $0x38] sm:$0xff]
      %v6107 = vld [vmem:[%s12 + $0x40] sm:$0xff]
      %v6108 = vld [vmem:[%s12 + $0x48] sm:$0xff]
      %v6109 = vld [vmem:[%s12 + $0x50] sm:$0xff]
      %v6110 = vld [vmem:[%s12 + $0x58] sm:$0xff]
      %v6111 = vld [vmem:[%s12 + $0x60] sm:$0xff]
      %v6112 = vld [vmem:[%s12 + $0x68] sm:$0xff]
      %v6113 = vld [vmem:[%s12 + $0x70] sm:$0xff]
      %v6114 = vld [vmem:[%s12 + $0x78] sm:$0xff]
      %6115 = vmatprep.subr.mxu0 0.0
      %v6116 = vand.u32 %v6099, 4294901760
      %6117 = vmatpush1.msra.mxu0 %v6116
      %6118 = vmatprep.subr.mxu0 0.0
      %v6119 = vand.u32 %v6100, 4294901760
      %6120 = vmatpush1.msra.mxu0 %v6119
      %6121 = vmatprep.subr.mxu0 0.0
      %v6122 = vand.u32 %v6101, 4294901760
      %6123 = vmatpush1.msra.mxu0 %v6122
      %6124 = vmatprep.subr.mxu0 0.0
      %v6125 = vand.u32 %v6102, 4294901760
      %6126 = vmatpush1.msra.mxu0 %v6125
      %6127 = vmatprep.subr.mxu0 0.0
      %v6128 = vand.u32 %v6103, 4294901760
      %6129 = vmatpush1.msra.mxu0 %v6128
      %6130 = vmatprep.subr.mxu0 0.0
      %v6131 = vand.u32 %v6104, 4294901760
      %6132 = vmatpush1.msra.mxu0 %v6131
      %6133 = vmatprep.subr.mxu0 0.0
      %v6134 = vand.u32 %v6105, 4294901760
      %6135 = vmatpush1.msra.mxu0 %v6134
      %6136 = vmatprep.subr.mxu0 0.0
      %v6137 = vand.u32 %v6106, 4294901760
      %6138 = vmatpush1.msra.mxu0 %v6137
      %6139 = vmatprep.subr.mxu0 0.0
      %v6140 = vand.u32 %v6107, 4294901760
      %6141 = vmatpush1.msra.mxu0 %v6140
      %6142 = vmatprep.subr.mxu0 0.0
      %v6143 = vand.u32 %v6108, 4294901760
      %6144 = vmatpush1.msra.mxu0 %v6143
      %6145 = vmatprep.subr.mxu0 0.0
      %v6146 = vand.u32 %v6109, 4294901760
      %6147 = vmatpush1.msra.mxu0 %v6146
      %6148 = vmatprep.subr.mxu0 0.0
      %v6149 = vand.u32 %v6110, 4294901760
      %6150 = vmatpush1.msra.mxu0 %v6149
      %6151 = vmatprep.subr.mxu0 0.0
      %v6152 = vand.u32 %v6111, 4294901760
      %6153 = vmatpush1.msra.mxu0 %v6152
      %6154 = vmatprep.subr.mxu0 0.0
      %v6155 = vand.u32 %v6112, 4294901760
      %6156 = vmatpush1.msra.mxu0 %v6155
      %6157 = vmatprep.subr.mxu0 0.0
      %v6158 = vand.u32 %v6113, 4294901760
      %6159 = vmatpush1.msra.mxu0 %v6158
      %6160 = vmatprep.subr.mxu0 0.0
      %v6161 = vand.u32 %v6114, 4294901760
      %6162 = vmatpush1.msra.mxu0 %v6161
      %6163 = vmatprep.subr.mxu0 0.0
      %6164 = vmatpush1.msra.mxu0 0.0
      %6165 = vmatprep.subr.mxu0 0.0
      %6166 = vmatpush1.msra.mxu0 0.0
      %6167 = vmatprep.subr.mxu0 0.0
      %6168 = vmatpush1.msra.mxu0 0.0
      %6169 = vmatprep.subr.mxu0 0.0
      %6170 = vmatpush1.msra.mxu0 0.0
      %6171 = vmatprep.subr.mxu0 0.0
      %6172 = vmatpush1.msra.mxu0 0.0
      %6173 = vmatprep.subr.mxu0 0.0
      %6174 = vmatpush1.msra.mxu0 0.0
      %6175 = vmatprep.subr.mxu0 0.0
      %6176 = vmatpush1.msra.mxu0 0.0
      %6177 = vmatprep.subr.mxu0 0.0
      %6178 = vmatpush1.msra.mxu0 0.0
      %6179 = vmatprep.subr.mxu0 0.0
      %6180 = vmatpush1.msra.mxu0 0.0
      %6181 = vmatprep.subr.mxu0 0.0
      %6182 = vmatpush1.msra.mxu0 0.0
      %6183 = vmatprep.subr.mxu0 0.0
      %6184 = vmatpush1.msra.mxu0 0.0
      %6185 = vmatprep.subr.mxu0 0.0
      %6186 = vmatpush1.msra.mxu0 0.0
      %6187 = vmatprep.subr.mxu0 0.0
      %6188 = vmatpush1.msra.mxu0 0.0
      %6189 = vmatprep.subr.mxu0 0.0
      %6190 = vmatpush1.msra.mxu0 0.0
      %6191 = vmatprep.subr.mxu0 0.0
      %6192 = vmatpush1.msra.mxu0 0.0
      %6193 = vmatprep.subr.mxu0 0.0
      %6194 = vmatpush1.msra.mxu0 0.0
      %6195 = vmatprep.mubr.f32.mxu0 0.0
      %v6196 = vand.u32 %v6089, 4294901760
      %v6197 = vsub.f32 %v6089, %v6196
      %v6198 = vand.u32 %v6197, 4294901760
      %v6199 = vsub.f32 %v6197, %v6198
      %v6200 = vand.u32 %v6199, 4294901760
      %6201 = vmatmul.mubr.f32.gmra.mrb[0].mxu0 %v6200
      %v6202 = vpop.f32.mrb[0].mxu0
      %v6203 = vadd.f32 0.0, %v6202
      %v6204 = vpop.f32.mrb[0].mxu0
      %6205 = vdwg.mxu0
      %6206 = vmatprep.subr.mxu0 0.0
      %v6207 = vand.u32 %v6099, 4294901760
      %v6208 = vsub.f32 %v6099, %v6207
      %v6209 = vand.u32 %v6208, 4294901760
      %v6210 = vsub.f32 %v6208, %v6209
      %v6211 = vand.u32 %v6210, 4294901760
      %6212 = vmatpush1.msra.mxu0 %v6211
      %6213 = vmatprep.subr.mxu0 0.0
      %v6214 = vand.u32 %v6100, 4294901760
      %v6215 = vsub.f32 %v6100, %v6214
      %v6216 = vand.u32 %v6215, 4294901760
      %v6217 = vsub.f32 %v6215, %v6216
      %v6218 = vand.u32 %v6217, 4294901760
      %6219 = vmatpush1.msra.mxu0 %v6218
      %6220 = vmatprep.subr.mxu0 0.0
      %v6221 = vand.u32 %v6101, 4294901760
      %v6222 = vsub.f32 %v6101, %v6221
      %v6223 = vand.u32 %v6222, 4294901760
      %v6224 = vsub.f32 %v6222, %v6223
      %v6225 = vand.u32 %v6224, 4294901760
      %6226 = vmatpush1.msra.mxu0 %v6225
      %6227 = vmatprep.subr.mxu0 0.0
      %v6228 = vand.u32 %v6102, 4294901760
      %v6229 = vsub.f32 %v6102, %v6228
      %v6230 = vand.u32 %v6229, 4294901760
      %v6231 = vsub.f32 %v6229, %v6230
      %v6232 = vand.u32 %v6231, 4294901760
      %6233 = vmatpush1.msra.mxu0 %v6232
      %6234 = vmatprep.subr.mxu0 0.0
      %v6235 = vand.u32 %v6103, 4294901760
      %v6236 = vsub.f32 %v6103, %v6235
      %v6237 = vand.u32 %v6236, 4294901760
      %v6238 = vsub.f32 %v6236, %v6237
      %v6239 = vand.u32 %v6238, 4294901760
      %6240 = vmatpush1.msra.mxu0 %v6239
      %6241 = vmatprep.subr.mxu0 0.0
      %v6242 = vand.u32 %v6104, 4294901760
      %v6243 = vsub.f32 %v6104, %v6242
      %v6244 = vand.u32 %v6243, 4294901760
      %v6245 = vsub.f32 %v6243, %v6244
      %v6246 = vand.u32 %v6245, 4294901760
      %6247 = vmatpush1.msra.mxu0 %v6246
      %6248 = vmatprep.subr.mxu0 0.0
      %v6249 = vand.u32 %v6105, 4294901760
      %v6250 = vsub.f32 %v6105, %v6249
      %v6251 = vand.u32 %v6250, 4294901760
      %v6252 = vsub.f32 %v6250, %v6251
      %v6253 = vand.u32 %v6252, 4294901760
      %6254 = vmatpush1.msra.mxu0 %v6253
      %6255 = vmatprep.subr.mxu0 0.0
      %v6256 = vand.u32 %v6106, 4294901760
      %v6257 = vsub.f32 %v6106, %v6256
      %v6258 = vand.u32 %v6257, 4294901760
      %v6259 = vsub.f32 %v6257, %v6258
      %v6260 = vand.u32 %v6259, 4294901760
      %6261 = vmatpush1.msra.mxu0 %v6260
      %6262 = vmatprep.subr.mxu0 0.0
      %v6263 = vand.u32 %v6107, 4294901760
      %v6264 = vsub.f32 %v6107, %v6263
      %v6265 = vand.u32 %v6264, 4294901760
      %v6266 = vsub.f32 %v6264, %v6265
      %v6267 = vand.u32 %v6266, 4294901760
      %6268 = vmatpush1.msra.mxu0 %v6267
      %6269 = vmatprep.subr.mxu0 0.0
      %v6270 = vand.u32 %v6108, 4294901760
      %v6271 = vsub.f32 %v6108, %v6270
      %v6272 = vand.u32 %v6271, 4294901760
      %v6273 = vsub.f32 %v6271, %v6272
      %v6274 = vand.u32 %v6273, 4294901760
      %6275 = vmatpush1.msra.mxu0 %v6274
      %6276 = vmatprep.subr.mxu0 0.0
      %v6277 = vand.u32 %v6109, 4294901760
      %v6278 = vsub.f32 %v6109, %v6277
      %v6279 = vand.u32 %v6278, 4294901760
      %v6280 = vsub.f32 %v6278, %v6279
      %v6281 = vand.u32 %v6280, 4294901760
      %6282 = vmatpush1.msra.mxu0 %v6281
      %6283 = vmatprep.subr.mxu0 0.0
      %v6284 = vand.u32 %v6110, 4294901760
      %v6285 = vsub.f32 %v6110, %v6284
      %v6286 = vand.u32 %v6285, 4294901760
      %v6287 = vsub.f32 %v6285, %v6286
      %v6288 = vand.u32 %v6287, 4294901760
      %6289 = vmatpush1.msra.mxu0 %v6288
      %6290 = vmatprep.subr.mxu0 0.0
      %v6291 = vand.u32 %v6111, 4294901760
      %v6292 = vsub.f32 %v6111, %v6291
      %v6293 = vand.u32 %v6292, 4294901760
      %v6294 = vsub.f32 %v6292, %v6293
      %v6295 = vand.u32 %v6294, 4294901760
      %6296 = vmatpush1.msra.mxu0 %v6295
      %6297 = vmatprep.subr.mxu0 0.0
      %v6298 = vand.u32 %v6112, 4294901760
      %v6299 = vsub.f32 %v6112, %v6298
      %v6300 = vand.u32 %v6299, 4294901760
      %v6301 = vsub.f32 %v6299, %v6300
      %v6302 = vand.u32 %v6301, 4294901760
      %6303 = vmatpush1.msra.mxu0 %v6302
      %6304 = vmatprep.subr.mxu0 0.0
      %v6305 = vand.u32 %v6113, 4294901760
      %v6306 = vsub.f32 %v6113, %v6305
      %v6307 = vand.u32 %v6306, 4294901760
      %v6308 = vsub.f32 %v6306, %v6307
      %v6309 = vand.u32 %v6308, 4294901760
      %6310 = vmatpush1.msra.mxu0 %v6309
      %6311 = vmatprep.subr.mxu0 0.0
      %v6312 = vand.u32 %v6114, 4294901760
      %v6313 = vsub.f32 %v6114, %v6312
      %v6314 = vand.u32 %v6313, 4294901760
      %v6315 = vsub.f32 %v6313, %v6314
      %v6316 = vand.u32 %v6315, 4294901760
      %6317 = vmatpush1.msra.mxu0 %v6316
      %6318 = vmatprep.subr.mxu0 0.0
      %6319 = vmatpush1.msra.mxu0 0.0
      %6320 = vmatprep.subr.mxu0 0.0
      %6321 = vmatpush1.msra.mxu0 0.0
      %6322 = vmatprep.subr.mxu0 0.0
      %6323 = vmatpush1.msra.mxu0 0.0
      %6324 = vmatprep.subr.mxu0 0.0
      %6325 = vmatpush1.msra.mxu0 0.0
      %6326 = vmatprep.subr.mxu0 0.0
      %6327 = vmatpush1.msra.mxu0 0.0
      %6328 = vmatprep.subr.mxu0 0.0
      %6329 = vmatpush1.msra.mxu0 0.0
      %6330 = vmatprep.subr.mxu0 0.0
      %6331 = vmatpush1.msra.mxu0 0.0
      %6332 = vmatprep.subr.mxu0 0.0
      %6333 = vmatpush1.msra.mxu0 0.0
      %6334 = vmatprep.subr.mxu0 0.0
      %6335 = vmatpush1.msra.mxu0 0.0
      %6336 = vmatprep.subr.mxu0 0.0
      %6337 = vmatpush1.msra.mxu0 0.0
      %6338 = vmatprep.subr.mxu0 0.0
      %6339 = vmatpush1.msra.mxu0 0.0
      %6340 = vmatprep.subr.mxu0 0.0
      %6341 = vmatpush1.msra.mxu0 0.0
      %6342 = vmatprep.subr.mxu0 0.0
      %6343 = vmatpush1.msra.mxu0 0.0
      %6344 = vmatprep.subr.mxu0 0.0
      %6345 = vmatpush1.msra.mxu0 0.0
      %6346 = vmatprep.subr.mxu0 0.0
      %6347 = vmatpush1.msra.mxu0 0.0
      %6348 = vmatprep.subr.mxu0 0.0
      %6349 = vmatpush1.msra.mxu0 0.0
      %6350 = vmatprep.mubr.f32.mxu0 0.0
      %v6351 = vand.u32 %v6089, 4294901760
      %6352 = vmatmul.mubr.f32.gmra.mrb[0].mxu0 %v6351
      %v6353 = vpop.f32.mrb[0].mxu0
      %v6354 = vadd.f32 %v6203, %v6353
      %v6355 = vpop.f32.mrb[0].mxu0
      %6356 = vdwg.mxu0
      %6357 = vmatprep.subr.mxu0 0.0
      %v6358 = vand.u32 %v6099, 4294901760
      %v6359 = vsub.f32 %v6099, %v6358
      %6360 = vmatpush1.msra.mxu0 %v6359
      %6361 = vmatprep.subr.mxu0 0.0
      %v6362 = vand.u32 %v6100, 4294901760
      %v6363 = vsub.f32 %v6100, %v6362
      %6364 = vmatpush1.msra.mxu0 %v6363
      %6365 = vmatprep.subr.mxu0 0.0
      %v6366 = vand.u32 %v6101, 4294901760
      %v6367 = vsub.f32 %v6101, %v6366
      %6368 = vmatpush1.msra.mxu0 %v6367
      %6369 = vmatprep.subr.mxu0 0.0
      %v6370 = vand.u32 %v6102, 4294901760
      %v6371 = vsub.f32 %v6102, %v6370
      %6372 = vmatpush1.msra.mxu0 %v6371
      %6373 = vmatprep.subr.mxu0 0.0
      %v6374 = vand.u32 %v6103, 4294901760
      %v6375 = vsub.f32 %v6103, %v6374
      %6376 = vmatpush1.msra.mxu0 %v6375
      %6377 = vmatprep.subr.mxu0 0.0
      %v6378 = vand.u32 %v6104, 4294901760
      %v6379 = vsub.f32 %v6104, %v6378
      %6380 = vmatpush1.msra.mxu0 %v6379
      %6381 = vmatprep.subr.mxu0 0.0
      %v6382 = vand.u32 %v6105, 4294901760
      %v6383 = vsub.f32 %v6105, %v6382
      %6384 = vmatpush1.msra.mxu0 %v6383
      %6385 = vmatprep.subr.mxu0 0.0
      %v6386 = vand.u32 %v6106, 4294901760
      %v6387 = vsub.f32 %v6106, %v6386
      %6388 = vmatpush1.msra.mxu0 %v6387
      %6389 = vmatprep.subr.mxu0 0.0
      %v6390 = vand.u32 %v6107, 4294901760
      %v6391 = vsub.f32 %v6107, %v6390
      %6392 = vmatpush1.msra.mxu0 %v6391
      %6393 = vmatprep.subr.mxu0 0.0
      %v6394 = vand.u32 %v6108, 4294901760
      %v6395 = vsub.f32 %v6108, %v6394
      %6396 = vmatpush1.msra.mxu0 %v6395
      %6397 = vmatprep.subr.mxu0 0.0
      %v6398 = vand.u32 %v6109, 4294901760
      %v6399 = vsub.f32 %v6109, %v6398
      %6400 = vmatpush1.msra.mxu0 %v6399
      %6401 = vmatprep.subr.mxu0 0.0
      %v6402 = vand.u32 %v6110, 4294901760
      %v6403 = vsub.f32 %v6110, %v6402
      %6404 = vmatpush1.msra.mxu0 %v6403
      %6405 = vmatprep.subr.mxu0 0.0
      %v6406 = vand.u32 %v6111, 4294901760
      %v6407 = vsub.f32 %v6111, %v6406
      %6408 = vmatpush1.msra.mxu0 %v6407
      %6409 = vmatprep.subr.mxu0 0.0
      %v6410 = vand.u32 %v6112, 4294901760
      %v6411 = vsub.f32 %v6112, %v6410
      %6412 = vmatpush1.msra.mxu0 %v6411
      %6413 = vmatprep.subr.mxu0 0.0
      %v6414 = vand.u32 %v6113, 4294901760
      %v6415 = vsub.f32 %v6113, %v6414
      %6416 = vmatpush1.msra.mxu0 %v6415
      %6417 = vmatprep.subr.mxu0 0.0
      %v6418 = vand.u32 %v6114, 4294901760
      %v6419 = vsub.f32 %v6114, %v6418
      %6420 = vmatpush1.msra.mxu0 %v6419
      %6421 = vmatprep.subr.mxu0 0.0
      %6422 = vmatpush1.msra.mxu0 0.0
      %6423 = vmatprep.subr.mxu0 0.0
      %6424 = vmatpush1.msra.mxu0 0.0
      %6425 = vmatprep.subr.mxu0 0.0
      %6426 = vmatpush1.msra.mxu0 0.0
      %6427 = vmatprep.subr.mxu0 0.0
      %6428 = vmatpush1.msra.mxu0 0.0
      %6429 = vmatprep.subr.mxu0 0.0
      %6430 = vmatpush1.msra.mxu0 0.0
      %6431 = vmatprep.subr.mxu0 0.0
      %6432 = vmatpush1.msra.mxu0 0.0
      %6433 = vmatprep.subr.mxu0 0.0
      %6434 = vmatpush1.msra.mxu0 0.0
      %6435 = vmatprep.subr.mxu0 0.0
      %6436 = vmatpush1.msra.mxu0 0.0
      %6437 = vmatprep.subr.mxu0 0.0
      %6438 = vmatpush1.msra.mxu0 0.0
      %6439 = vmatprep.subr.mxu0 0.0
      %6440 = vmatpush1.msra.mxu0 0.0
      %6441 = vmatprep.subr.mxu0 0.0
      %6442 = vmatpush1.msra.mxu0 0.0
      %6443 = vmatprep.subr.mxu0 0.0
      %6444 = vmatpush1.msra.mxu0 0.0
      %6445 = vmatprep.subr.mxu0 0.0
      %6446 = vmatpush1.msra.mxu0 0.0
      %6447 = vmatprep.subr.mxu0 0.0
      %6448 = vmatpush1.msra.mxu0 0.0
      %6449 = vmatprep.subr.mxu0 0.0
      %6450 = vmatpush1.msra.mxu0 0.0
      %6451 = vmatprep.subr.mxu0 0.0
      %6452 = vmatpush1.msra.mxu0 0.0
      %6453 = vmatprep.mubr.f32.mxu0 0.0
      %v6454 = vand.u32 %v6089, 4294901760
      %v6455 = vsub.f32 %v6089, %v6454
      %6456 = vmatmul.mubr.f32.gmra.mrb[0].mxu0 %v6455
      %v6457 = vpop.f32.mrb[0].mxu0
      %v6458 = vadd.f32 %v6354, %v6457
      %v6459 = vpop.f32.mrb[0].mxu0
      %6460 = vdwg.mxu0
      %6461 = vmatprep.subr.mxu0 0.0
      %v6462 = vand.u32 %v6099, 4294901760
      %6463 = vmatpush1.msra.mxu0 %v6462
      %6464 = vmatprep.subr.mxu0 0.0
      %v6465 = vand.u32 %v6100, 4294901760
      %6466 = vmatpush1.msra.mxu0 %v6465
      %6467 = vmatprep.subr.mxu0 0.0
      %v6468 = vand.u32 %v6101, 4294901760
      %6469 = vmatpush1.msra.mxu0 %v6468
      %6470 = vmatprep.subr.mxu0 0.0
      %v6471 = vand.u32 %v6102, 4294901760
      %6472 = vmatpush1.msra.mxu0 %v6471
      %6473 = vmatprep.subr.mxu0 0.0
      %v6474 = vand.u32 %v6103, 4294901760
      %6475 = vmatpush1.msra.mxu0 %v6474
      %6476 = vmatprep.subr.mxu0 0.0
      %v6477 = vand.u32 %v6104, 4294901760
      %6478 = vmatpush1.msra.mxu0 %v6477
      %6479 = vmatprep.subr.mxu0 0.0
      %v6480 = vand.u32 %v6105, 4294901760
      %6481 = vmatpush1.msra.mxu0 %v6480
      %6482 = vmatprep.subr.mxu0 0.0
      %v6483 = vand.u32 %v6106, 4294901760
      %6484 = vmatpush1.msra.mxu0 %v6483
      %6485 = vmatprep.subr.mxu0 0.0
      %v6486 = vand.u32 %v6107, 4294901760
      %6487 = vmatpush1.msra.mxu0 %v6486
      %6488 = vmatprep.subr.mxu0 0.0
      %v6489 = vand.u32 %v6108, 4294901760
      %6490 = vmatpush1.msra.mxu0 %v6489
      %6491 = vmatprep.subr.mxu0 0.0
      %v6492 = vand.u32 %v6109, 4294901760
      %6493 = vmatpush1.msra.mxu0 %v6492
      %6494 = vmatprep.subr.mxu0 0.0
      %v6495 = vand.u32 %v6110, 4294901760
      %6496 = vmatpush1.msra.mxu0 %v6495
      %6497 = vmatprep.subr.mxu0 0.0
      %v6498 = vand.u32 %v6111, 4294901760
      %6499 = vmatpush1.msra.mxu0 %v6498
      %6500 = vmatprep.subr.mxu0 0.0
      %v6501 = vand.u32 %v6112, 4294901760
      %6502 = vmatpush1.msra.mxu0 %v6501
      %6503 = vmatprep.subr.mxu0 0.0
      %v6504 = vand.u32 %v6113, 4294901760
      %6505 = vmatpush1.msra.mxu0 %v6504
      %6506 = vmatprep.subr.mxu0 0.0
      %v6507 = vand.u32 %v6114, 4294901760
      %6508 = vmatpush1.msra.mxu0 %v6507
      %6509 = vmatprep.subr.mxu0 0.0
      %6510 = vmatpush1.msra.mxu0 0.0
      %6511 = vmatprep.subr.mxu0 0.0
      %6512 = vmatpush1.msra.mxu0 0.0
      %6513 = vmatprep.subr.mxu0 0.0
      %6514 = vmatpush1.msra.mxu0 0.0
      %6515 = vmatprep.subr.mxu0 0.0
      %6516 = vmatpush1.msra.mxu0 0.0
      %6517 = vmatprep.subr.mxu0 0.0
      %6518 = vmatpush1.msra.mxu0 0.0
      %6519 = vmatprep.subr.mxu0 0.0
      %6520 = vmatpush1.msra.mxu0 0.0
      %6521 = vmatprep.subr.mxu0 0.0
      %6522 = vmatpush1.msra.mxu0 0.0
      %6523 = vmatprep.subr.mxu0 0.0
      %6524 = vmatpush1.msra.mxu0 0.0
      %6525 = vmatprep.subr.mxu0 0.0
      %6526 = vmatpush1.msra.mxu0 0.0
      %6527 = vmatprep.subr.mxu0 0.0
      %6528 = vmatpush1.msra.mxu0 0.0
      %6529 = vmatprep.subr.mxu0 0.0
      %6530 = vmatpush1.msra.mxu0 0.0
      %6531 = vmatprep.subr.mxu0 0.0
      %6532 = vmatpush1.msra.mxu0 0.0
      %6533 = vmatprep.subr.mxu0 0.0
      %6534 = vmatpush1.msra.mxu0 0.0
      %6535 = vmatprep.subr.mxu0 0.0
      %6536 = vmatpush1.msra.mxu0 0.0
      %6537 = vmatprep.subr.mxu0 0.0
      %6538 = vmatpush1.msra.mxu0 0.0
      %6539 = vmatprep.subr.mxu0 0.0
      %6540 = vmatpush1.msra.mxu0 0.0
      %6541 = vmatprep.mubr.f32.mxu0 0.0
      %v6542 = vand.u32 %v6089, 4294901760
      %v6543 = vsub.f32 %v6089, %v6542
      %v6544 = vand.u32 %v6543, 4294901760
      %6545 = vmatmul.mubr.f32.gmra.mrb[0].mxu0 %v6544
      %v6546 = vpop.f32.mrb[0].mxu0
      %v6547 = vadd.f32 %v6458, %v6546
      %v6548 = vpop.f32.mrb[0].mxu0
      %6549 = vdwg.mxu0
      %6550 = vmatprep.subr.mxu0 0.0
      %v6551 = vand.u32 %v6099, 4294901760
      %v6552 = vsub.f32 %v6099, %v6551
      %v6553 = vand.u32 %v6552, 4294901760
      %6554 = vmatpush1.msra.mxu0 %v6553
      %6555 = vmatprep.subr.mxu0 0.0
      %v6556 = vand.u32 %v6100, 4294901760
      %v6557 = vsub.f32 %v6100, %v6556
      %v6558 = vand.u32 %v6557, 4294901760
      %6559 = vmatpush1.msra.mxu0 %v6558
      %6560 = vmatprep.subr.mxu0 0.0
      %v6561 = vand.u32 %v6101, 4294901760
      %v6562 = vsub.f32 %v6101, %v6561
      %v6563 = vand.u32 %v6562, 4294901760
      %6564 = vmatpush1.msra.mxu0 %v6563
      %6565 = vmatprep.subr.mxu0 0.0
      %v6566 = vand.u32 %v6102, 4294901760
      %v6567 = vsub.f32 %v6102, %v6566
      %v6568 = vand.u32 %v6567, 4294901760
      %6569 = vmatpush1.msra.mxu0 %v6568
      %6570 = vmatprep.subr.mxu0 0.0
      %v6571 = vand.u32 %v6103, 4294901760
      %v6572 = vsub.f32 %v6103, %v6571
      %v6573 = vand.u32 %v6572, 4294901760
      %6574 = vmatpush1.msra.mxu0 %v6573
      %6575 = vmatprep.subr.mxu0 0.0
      %v6576 = vand.u32 %v6104, 4294901760
      %v6577 = vsub.f32 %v6104, %v6576
      %v6578 = vand.u32 %v6577, 4294901760
      %6579 = vmatpush1.msra.mxu0 %v6578
      %6580 = vmatprep.subr.mxu0 0.0
      %v6581 = vand.u32 %v6105, 4294901760
      %v6582 = vsub.f32 %v6105, %v6581
      %v6583 = vand.u32 %v6582, 4294901760
      %6584 = vmatpush1.msra.mxu0 %v6583
      %6585 = vmatprep.subr.mxu0 0.0
      %v6586 = vand.u32 %v6106, 4294901760
      %v6587 = vsub.f32 %v6106, %v6586
      %v6588 = vand.u32 %v6587, 4294901760
      %6589 = vmatpush1.msra.mxu0 %v6588
      %6590 = vmatprep.subr.mxu0 0.0
      %v6591 = vand.u32 %v6107, 4294901760
      %v6592 = vsub.f32 %v6107, %v6591
      %v6593 = vand.u32 %v6592, 4294901760
      %6594 = vmatpush1.msra.mxu0 %v6593
      %6595 = vmatprep.subr.mxu0 0.0
      %v6596 = vand.u32 %v6108, 4294901760
      %v6597 = vsub.f32 %v6108, %v6596
      %v6598 = vand.u32 %v6597, 4294901760
      %6599 = vmatpush1.msra.mxu0 %v6598
      %6600 = vmatprep.subr.mxu0 0.0
      %v6601 = vand.u32 %v6109, 4294901760
      %v6602 = vsub.f32 %v6109, %v6601
      %v6603 = vand.u32 %v6602, 4294901760
      %6604 = vmatpush1.msra.mxu0 %v6603
      %6605 = vmatprep.subr.mxu0 0.0
      %v6606 = vand.u32 %v6110, 4294901760
      %v6607 = vsub.f32 %v6110, %v6606
      %v6608 = vand.u32 %v6607, 4294901760
      %6609 = vmatpush1.msra.mxu0 %v6608
      %6610 = vmatprep.subr.mxu0 0.0
      %v6611 = vand.u32 %v6111, 4294901760
      %v6612 = vsub.f32 %v6111, %v6611
      %v6613 = vand.u32 %v6612, 4294901760
      %6614 = vmatpush1.msra.mxu0 %v6613
      %6615 = vmatprep.subr.mxu0 0.0
      %v6616 = vand.u32 %v6112, 4294901760
      %v6617 = vsub.f32 %v6112, %v6616
      %v6618 = vand.u32 %v6617, 4294901760
      %6619 = vmatpush1.msra.mxu0 %v6618
      %6620 = vmatprep.subr.mxu0 0.0
      %v6621 = vand.u32 %v6113, 4294901760
      %v6622 = vsub.f32 %v6113, %v6621
      %v6623 = vand.u32 %v6622, 4294901760
      %6624 = vmatpush1.msra.mxu0 %v6623
      %6625 = vmatprep.subr.mxu0 0.0
      %v6626 = vand.u32 %v6114, 4294901760
      %v6627 = vsub.f32 %v6114, %v6626
      %v6628 = vand.u32 %v6627, 4294901760
      %6629 = vmatpush1.msra.mxu0 %v6628
      %6630 = vmatprep.subr.mxu0 0.0
      %6631 = vmatpush1.msra.mxu0 0.0
      %6632 = vmatprep.subr.mxu0 0.0
      %6633 = vmatpush1.msra.mxu0 0.0
      %6634 = vmatprep.subr.mxu0 0.0
      %6635 = vmatpush1.msra.mxu0 0.0
      %6636 = vmatprep.subr.mxu0 0.0
      %6637 = vmatpush1.msra.mxu0 0.0
      %6638 = vmatprep.subr.mxu0 0.0
      %6639 = vmatpush1.msra.mxu0 0.0
      %6640 = vmatprep.subr.mxu0 0.0
      %6641 = vmatpush1.msra.mxu0 0.0
      %6642 = vmatprep.subr.mxu0 0.0
      %6643 = vmatpush1.msra.mxu0 0.0
      %6644 = vmatprep.subr.mxu0 0.0
      %6645 = vmatpush1.msra.mxu0 0.0
      %6646 = vmatprep.subr.mxu0 0.0
      %6647 = vmatpush1.msra.mxu0 0.0
      %6648 = vmatprep.subr.mxu0 0.0
      %6649 = vmatpush1.msra.mxu0 0.0
      %6650 = vmatprep.subr.mxu0 0.0
      %6651 = vmatpush1.msra.mxu0 0.0
      %6652 = vmatprep.subr.mxu0 0.0
      %6653 = vmatpush1.msra.mxu0 0.0
      %6654 = vmatprep.subr.mxu0 0.0
      %6655 = vmatpush1.msra.mxu0 0.0
      %6656 = vmatprep.subr.mxu0 0.0
      %6657 = vmatpush1.msra.mxu0 0.0
      %6658 = vmatprep.subr.mxu0 0.0
      %6659 = vmatpush1.msra.mxu0 0.0
      %6660 = vmatprep.subr.mxu0 0.0
      %6661 = vmatpush1.msra.mxu0 0.0
      %6662 = vmatprep.mubr.f32.mxu0 0.0
      %v6663 = vand.u32 %v6089, 4294901760
      %6664 = vmatmul.mubr.f32.gmra.mrb[0].mxu0 %v6663
      %v6665 = vpop.f32.mrb[0].mxu0
      %v6666 = vadd.f32 %v6547, %v6665
      %v6667 = vpop.f32.mrb[0].mxu0
      %6668 = vdwg.mxu0
      %6669 = vmatprep.subr.mxu0 0.0
      %v6670 = vand.u32 %v6099, 4294901760
      %6671 = vmatpush1.msra.mxu0 %v6670
      %6672 = vmatprep.subr.mxu0 0.0
      %v6673 = vand.u32 %v6100, 4294901760
      %6674 = vmatpush1.msra.mxu0 %v6673
      %6675 = vmatprep.subr.mxu0 0.0
      %v6676 = vand.u32 %v6101, 4294901760
      %6677 = vmatpush1.msra.mxu0 %v6676
      %6678 = vmatprep.subr.mxu0 0.0
      %v6679 = vand.u32 %v6102, 4294901760
      %6680 = vmatpush1.msra.mxu0 %v6679
      %6681 = vmatprep.subr.mxu0 0.0
      %v6682 = vand.u32 %v6103, 4294901760
      %6683 = vmatpush1.msra.mxu0 %v6682
      %6684 = vmatprep.subr.mxu0 0.0
      %v6685 = vand.u32 %v6104, 4294901760
      %6686 = vmatpush1.msra.mxu0 %v6685
      %6687 = vmatprep.subr.mxu0 0.0
      %v6688 = vand.u32 %v6105, 4294901760
      %6689 = vmatpush1.msra.mxu0 %v6688
      %6690 = vmatprep.subr.mxu0 0.0
      %v6691 = vand.u32 %v6106, 4294901760
      %6692 = vmatpush1.msra.mxu0 %v6691
      %6693 = vmatprep.subr.mxu0 0.0
      %v6694 = vand.u32 %v6107, 4294901760
      %6695 = vmatpush1.msra.mxu0 %v6694
      %6696 = vmatprep.subr.mxu0 0.0
      %v6697 = vand.u32 %v6108, 4294901760
      %6698 = vmatpush1.msra.mxu0 %v6697
      %6699 = vmatprep.subr.mxu0 0.0
      %v6700 = vand.u32 %v6109, 4294901760
      %6701 = vmatpush1.msra.mxu0 %v6700
      %6702 = vmatprep.subr.mxu0 0.0
      %v6703 = vand.u32 %v6110, 4294901760
      %6704 = vmatpush1.msra.mxu0 %v6703
      %6705 = vmatprep.subr.mxu0 0.0
      %v6706 = vand.u32 %v6111, 4294901760
      %6707 = vmatpush1.msra.mxu0 %v6706
      %6708 = vmatprep.subr.mxu0 0.0
      %v6709 = vand.u32 %v6112, 4294901760
      %6710 = vmatpush1.msra.mxu0 %v6709
      %6711 = vmatprep.subr.mxu0 0.0
      %v6712 = vand.u32 %v6113, 4294901760
      %6713 = vmatpush1.msra.mxu0 %v6712
      %6714 = vmatprep.subr.mxu0 0.0
      %v6715 = vand.u32 %v6114, 4294901760
      %6716 = vmatpush1.msra.mxu0 %v6715
      %6717 = vmatprep.subr.mxu0 0.0
      %6718 = vmatpush1.msra.mxu0 0.0
      %6719 = vmatprep.subr.mxu0 0.0
      %6720 = vmatpush1.msra.mxu0 0.0
      %6721 = vmatprep.subr.mxu0 0.0
      %6722 = vmatpush1.msra.mxu0 0.0
      %6723 = vmatprep.subr.mxu0 0.0
      %6724 = vmatpush1.msra.mxu0 0.0
      %6725 = vmatprep.subr.mxu0 0.0
      %6726 = vmatpush1.msra.mxu0 0.0
      %6727 = vmatprep.subr.mxu0 0.0
      %6728 = vmatpush1.msra.mxu0 0.0
      %6729 = vmatprep.subr.mxu0 0.0
      %6730 = vmatpush1.msra.mxu0 0.0
      %6731 = vmatprep.subr.mxu0 0.0
      %6732 = vmatpush1.msra.mxu0 0.0
      %6733 = vmatprep.subr.mxu0 0.0
      %6734 = vmatpush1.msra.mxu0 0.0
      %6735 = vmatprep.subr.mxu0 0.0
      %6736 = vmatpush1.msra.mxu0 0.0
      %6737 = vmatprep.subr.mxu0 0.0
      %6738 = vmatpush1.msra.mxu0 0.0
      %6739 = vmatprep.subr.mxu0 0.0
      %6740 = vmatpush1.msra.mxu0 0.0
      %6741 = vmatprep.subr.mxu0 0.0
      %6742 = vmatpush1.msra.mxu0 0.0
      %6743 = vmatprep.subr.mxu0 0.0
      %6744 = vmatpush1.msra.mxu0 0.0
      %6745 = vmatprep.subr.mxu0 0.0
      %6746 = vmatpush1.msra.mxu0 0.0
      %6747 = vmatprep.subr.mxu0 0.0
      %6748 = vmatpush1.msra.mxu0 0.0
      %6749 = vmatprep.mubr.f32.mxu0 0.0
      %v6750 = vand.u32 %v6089, 4294901760
      %6751 = vmatmul.mubr.f32.gmra.mrb[0].mxu0 %v6750
      %v6752 = vpop.f32.mrb[0].mxu0
      %v6753 = vadd.f32 %v6666, %v6752
      %v6754 = vpop.f32.mrb[0].mxu0
      %6755 = vdwg.mxu0
      %v6756 = vstv %s6098
      %v6757 = vmul.f32 %v6756, %v6753
      %v6758 = vadd.f32 %v6097, %v6757
      %s6759 = scalar_lea.vmem %s5, 32
      %v6760 = vld [vmem:[%s6759] sm:$0xff]
      %6762 = vset.pattern.permute.xlu0 4
      %6763 = vperm.xlu0 %6762, %v6760
      %v6764 = vpop.permute.xlu0 %6763
      %v6766 = vmul.f32 %v6758, %v6764
      %6767 = vrot.lane.b32.xlu0 %v6758, 5
      %v6768 = vpop.permute.xlu0 %6767
      %v6769 = vmul.f32 %v6768, %v1296
      %6770 = vset.pattern.permute.xlu0 0
      %6771 = vperm.xlu0 %6770, %v6760
      %v6772 = vpop.permute.xlu0 %6771
      %v6774 = vmul.f32 %v6769, %v6772
      %v6775 = vadd.f32 %v6766, %v6774
      %6776 = vrot.lane.b32.xlu0 %v6758, 4
      %v6777 = vpop.permute.xlu0 %6776
      %v6778 = vmul.f32 %v6777, %v1307
      %6779 = vset.pattern.permute.xlu0 1
      %6780 = vperm.xlu0 %6779, %v6760
      %v6781 = vpop.permute.xlu0 %6780
      %v6783 = vmul.f32 %v6778, %v6781
      %v6784 = vadd.f32 %v6775, %v6783
      %6785 = vrot.lane.b32.xlu0 %v6758, 3
      %v6786 = vpop.permute.xlu0 %6785
      %v6787 = vmul.f32 %v6786, %v1320
      %6788 = vset.pattern.permute.xlu0 2
      %6789 = vperm.xlu0 %6788, %v6760
      %v6790 = vpop.permute.xlu0 %6789
      %v6792 = vmul.f32 %v6787, %v6790
      %v6793 = vadd.f32 %v6784, %v6792
      %6794 = vrot.lane.b32.xlu0 %v6758, 1
      %v6795 = vpop.permute.xlu0 %6794
      %v6796 = vmul.f32 %v6795, %v1331
      %6797 = vset.pattern.permute.xlu0 3
      %6798 = vperm.xlu0 %6797, %v6760
      %v6799 = vpop.permute.xlu0 %6798
      %v6801 = vmul.f32 %v6796, %v6799
      %v6802 = vadd.f32 %v6793, %v6801
      %6803 = vrot.lane.b32.xlu0 %v6758, 127
      %v6804 = vpop.permute.xlu0 %6803
      %v6805 = vmul.f32 %v6804, %v1342
      %6806 = vset.pattern.permute.xlu0 5
      %6807 = vperm.xlu0 %6806, %v6760
      %v6808 = vpop.permute.xlu0 %6807
      %v6810 = vmul.f32 %v6805, %v6808
      %v6811 = vadd.f32 %v6802, %v6810
      %6812 = vrot.lane.b32.xlu0 %v6758, 125
      %v6813 = vpop.permute.xlu0 %6812
      %v6814 = vmul.f32 %v6813, %v1355
      %6815 = vset.pattern.permute.xlu0 6
      %6816 = vperm.xlu0 %6815, %v6760
      %v6817 = vpop.permute.xlu0 %6816
      %v6819 = vmul.f32 %v6814, %v6817
      %v6820 = vadd.f32 %v6811, %v6819
      %6821 = vrot.lane.b32.xlu0 %v6758, 124
      %v6822 = vpop.permute.xlu0 %6821
      %v6823 = vmul.f32 %v6822, %v1366
      %6824 = vset.pattern.permute.xlu0 7
      %6825 = vperm.xlu0 %6824, %v6760
      %v6826 = vpop.permute.xlu0 %6825
      %v6828 = vmul.f32 %v6823, %v6826
      %v6829 = vadd.f32 %v6820, %v6828
      %6830 = vrot.lane.b32.xlu0 %v6758, 123
      %v6831 = vpop.permute.xlu0 %6830
      %v6832 = vmul.f32 %v6831, %v1378
      %6833 = vset.pattern.permute.xlu0 8
      %6834 = vperm.xlu0 %6833, %v6760
      %v6835 = vpop.permute.xlu0 %6834
      %v6837 = vmul.f32 %v6832, %v6835
      %v6838 = vadd.f32 %v6829, %v6837
      %s6839 = scalar_lea.vmem %s6, 32
      %v6840 = vld [vmem:[%s6839] sm:$0xff]
      %s6841 = scalar_lea.vmem %s7, 32
      %v6842 = vld [vmem:[%s6841] sm:$0xff]
      %6844 = vset.pattern.permute.xlu0 0
      %6845 = vperm.xlu0 %6844, %v6842
      %v6846 = vpop.permute.xlu0 %6845
      %v6849 = vsel %vm1393, %v6840, 0
      %6851 = vmatprep.subr.mxu0 0.0
      %v6852 = vand.u32 %v6838, 4294901760
      %6853 = vmatpush1.msra.mxu0 %v6852
      %6854 = vmatprep.subr.mxu0 0.0
      %6855 = vmatpush1.msra.mxu0 0.0
      %6856 = vmatprep.subr.mxu0 0.0
      %6857 = vmatpush1.msra.mxu0 0.0
      %6858 = vmatprep.subr.mxu0 0.0
      %6859 = vmatpush1.msra.mxu0 0.0
      %6860 = vmatprep.subr.mxu0 0.0
      %6861 = vmatpush1.msra.mxu0 0.0
      %6862 = vmatprep.subr.mxu0 0.0
      %6863 = vmatpush1.msra.mxu0 0.0
      %6864 = vmatprep.subr.mxu0 0.0
      %6865 = vmatpush1.msra.mxu0 0.0
      %6866 = vmatprep.subr.mxu0 0.0
      %6867 = vmatpush1.msra.mxu0 0.0
      %6868 = vmatprep.subr.mxu0 0.0
      %6869 = vmatpush1.msra.mxu0 0.0
      %6870 = vmatprep.subr.mxu0 0.0
      %6871 = vmatpush1.msra.mxu0 0.0
      %6872 = vmatprep.subr.mxu0 0.0
      %6873 = vmatpush1.msra.mxu0 0.0
      %6874 = vmatprep.subr.mxu0 0.0
      %6875 = vmatpush1.msra.mxu0 0.0
      %6876 = vmatprep.subr.mxu0 0.0
      %6877 = vmatpush1.msra.mxu0 0.0
      %6878 = vmatprep.subr.mxu0 0.0
      %6879 = vmatpush1.msra.mxu0 0.0
      %6880 = vmatprep.subr.mxu0 0.0
      %6881 = vmatpush1.msra.mxu0 0.0
      %6882 = vmatprep.subr.mxu0 0.0
      %6883 = vmatpush1.msra.mxu0 0.0
      %6884 = vmatprep.subr.mxu0 0.0
      %6885 = vmatpush1.msra.mxu0 0.0
      %6886 = vmatprep.subr.mxu0 0.0
      %6887 = vmatpush1.msra.mxu0 0.0
      %6888 = vmatprep.subr.mxu0 0.0
      %6889 = vmatpush1.msra.mxu0 0.0
      %6890 = vmatprep.subr.mxu0 0.0
      %6891 = vmatpush1.msra.mxu0 0.0
      %6892 = vmatprep.subr.mxu0 0.0
      %6893 = vmatpush1.msra.mxu0 0.0
      %6894 = vmatprep.subr.mxu0 0.0
      %6895 = vmatpush1.msra.mxu0 0.0
      %6896 = vmatprep.subr.mxu0 0.0
      %6897 = vmatpush1.msra.mxu0 0.0
      %6898 = vmatprep.subr.mxu0 0.0
      %6899 = vmatpush1.msra.mxu0 0.0
      %6900 = vmatprep.subr.mxu0 0.0
      %6901 = vmatpush1.msra.mxu0 0.0
      %6902 = vmatprep.subr.mxu0 0.0
      %6903 = vmatpush1.msra.mxu0 0.0
      %6904 = vmatprep.subr.mxu0 0.0
      %6905 = vmatpush1.msra.mxu0 0.0
      %6906 = vmatprep.subr.mxu0 0.0
      %6907 = vmatpush1.msra.mxu0 0.0
      %6908 = vmatprep.subr.mxu0 0.0
      %6909 = vmatpush1.msra.mxu0 0.0
      %6910 = vmatprep.subr.mxu0 0.0
      %6911 = vmatpush1.msra.mxu0 0.0
      %6912 = vmatprep.subr.mxu0 0.0
      %6913 = vmatpush1.msra.mxu0 0.0
      %6914 = vmatprep.subr.mxu0 0.0
      %6915 = vmatpush1.msra.mxu0 0.0
      %6916 = vmatprep.mubr.f32.mxu0 0.0
      %v6917 = vand.u32 %v6849, 4294901760
      %v6918 = vsub.f32 %v6849, %v6917
      %v6919 = vand.u32 %v6918, 4294901760
      %v6920 = vsub.f32 %v6918, %v6919
      %v6921 = vand.u32 %v6920, 4294901760
      %6922 = vmatmul.mubr.f32.gmra.mrb[0].mxu0 %v6921
      %v6923 = vpop.f32.mrb[0].mxu0
      %v6924 = vadd.f32 %v6846, %v6923
      %v6925 = vpop.f32.mrb[0].mxu0
      %6926 = vdwg.mxu0
      %6927 = vmatprep.subr.mxu0 0.0
      %v6928 = vand.u32 %v6838, 4294901760
      %v6929 = vsub.f32 %v6838, %v6928
      %v6930 = vand.u32 %v6929, 4294901760
      %v6931 = vsub.f32 %v6929, %v6930
      %v6932 = vand.u32 %v6931, 4294901760
      %6933 = vmatpush1.msra.mxu0 %v6932
      %6934 = vmatprep.subr.mxu0 0.0
      %6935 = vmatpush1.msra.mxu0 0.0
      %6936 = vmatprep.subr.mxu0 0.0
      %6937 = vmatpush1.msra.mxu0 0.0
      %6938 = vmatprep.subr.mxu0 0.0
      %6939 = vmatpush1.msra.mxu0 0.0
      %6940 = vmatprep.subr.mxu0 0.0
      %6941 = vmatpush1.msra.mxu0 0.0
      %6942 = vmatprep.subr.mxu0 0.0
      %6943 = vmatpush1.msra.mxu0 0.0
      %6944 = vmatprep.subr.mxu0 0.0
      %6945 = vmatpush1.msra.mxu0 0.0
      %6946 = vmatprep.subr.mxu0 0.0
      %6947 = vmatpush1.msra.mxu0 0.0
      %6948 = vmatprep.subr.mxu0 0.0
      %6949 = vmatpush1.msra.mxu0 0.0
      %6950 = vmatprep.subr.mxu0 0.0
      %6951 = vmatpush1.msra.mxu0 0.0
      %6952 = vmatprep.subr.mxu0 0.0
      %6953 = vmatpush1.msra.mxu0 0.0
      %6954 = vmatprep.subr.mxu0 0.0
      %6955 = vmatpush1.msra.mxu0 0.0
      %6956 = vmatprep.subr.mxu0 0.0
      %6957 = vmatpush1.msra.mxu0 0.0
      %6958 = vmatprep.subr.mxu0 0.0
      %6959 = vmatpush1.msra.mxu0 0.0
      %6960 = vmatprep.subr.mxu0 0.0
      %6961 = vmatpush1.msra.mxu0 0.0
      %6962 = vmatprep.subr.mxu0 0.0
      %6963 = vmatpush1.msra.mxu0 0.0
      %6964 = vmatprep.subr.mxu0 0.0
      %6965 = vmatpush1.msra.mxu0 0.0
      %6966 = vmatprep.subr.mxu0 0.0
      %6967 = vmatpush1.msra.mxu0 0.0
      %6968 = vmatprep.subr.mxu0 0.0
      %6969 = vmatpush1.msra.mxu0 0.0
      %6970 = vmatprep.subr.mxu0 0.0
      %6971 = vmatpush1.msra.mxu0 0.0
      %6972 = vmatprep.subr.mxu0 0.0
      %6973 = vmatpush1.msra.mxu0 0.0
      %6974 = vmatprep.subr.mxu0 0.0
      %6975 = vmatpush1.msra.mxu0 0.0
      %6976 = vmatprep.subr.mxu0 0.0
      %6977 = vmatpush1.msra.mxu0 0.0
      %6978 = vmatprep.subr.mxu0 0.0
      %6979 = vmatpush1.msra.mxu0 0.0
      %6980 = vmatprep.subr.mxu0 0.0
      %6981 = vmatpush1.msra.mxu0 0.0
      %6982 = vmatprep.subr.mxu0 0.0
      %6983 = vmatpush1.msra.mxu0 0.0
      %6984 = vmatprep.subr.mxu0 0.0
      %6985 = vmatpush1.msra.mxu0 0.0
      %6986 = vmatprep.subr.mxu0 0.0
      %6987 = vmatpush1.msra.mxu0 0.0
      %6988 = vmatprep.subr.mxu0 0.0
      %6989 = vmatpush1.msra.mxu0 0.0
      %6990 = vmatprep.subr.mxu0 0.0
      %6991 = vmatpush1.msra.mxu0 0.0
      %6992 = vmatprep.subr.mxu0 0.0
      %6993 = vmatpush1.msra.mxu0 0.0
      %6994 = vmatprep.subr.mxu0 0.0
      %6995 = vmatpush1.msra.mxu0 0.0
      %6996 = vmatprep.mubr.f32.mxu0 0.0
      %v6997 = vand.u32 %v6849, 4294901760
      %6998 = vmatmul.mubr.f32.gmra.mrb[0].mxu0 %v6997
      %v6999 = vpop.f32.mrb[0].mxu0
      %v7000 = vadd.f32 %v6924, %v6999
      %v7001 = vpop.f32.mrb[0].mxu0
      %7002 = vdwg.mxu0
      %7003 = vmatprep.subr.mxu0 0.0
      %v7004 = vand.u32 %v6838, 4294901760
      %v7005 = vsub.f32 %v6838, %v7004
      %7006 = vmatpush1.msra.mxu0 %v7005
      %7007 = vmatprep.subr.mxu0 0.0
      %7008 = vmatpush1.msra.mxu0 0.0
      %7009 = vmatprep.subr.mxu0 0.0
      %7010 = vmatpush1.msra.mxu0 0.0
      %7011 = vmatprep.subr.mxu0 0.0
      %7012 = vmatpush1.msra.mxu0 0.0
      %7013 = vmatprep.subr.mxu0 0.0
      %7014 = vmatpush1.msra.mxu0 0.0
      %7015 = vmatprep.subr.mxu0 0.0
      %7016 = vmatpush1.msra.mxu0 0.0
      %7017 = vmatprep.subr.mxu0 0.0
      %7018 = vmatpush1.msra.mxu0 0.0
      %7019 = vmatprep.subr.mxu0 0.0
      %7020 = vmatpush1.msra.mxu0 0.0
      %7021 = vmatprep.subr.mxu0 0.0
      %7022 = vmatpush1.msra.mxu0 0.0
      %7023 = vmatprep.subr.mxu0 0.0
      %7024 = vmatpush1.msra.mxu0 0.0
      %7025 = vmatprep.subr.mxu0 0.0
      %7026 = vmatpush1.msra.mxu0 0.0
      %7027 = vmatprep.subr.mxu0 0.0
      %7028 = vmatpush1.msra.mxu0 0.0
      %7029 = vmatprep.subr.mxu0 0.0
      %7030 = vmatpush1.msra.mxu0 0.0
      %7031 = vmatprep.subr.mxu0 0.0
      %7032 = vmatpush1.msra.mxu0 0.0
      %7033 = vmatprep.subr.mxu0 0.0
      %7034 = vmatpush1.msra.mxu0 0.0
      %7035 = vmatprep.subr.mxu0 0.0
      %7036 = vmatpush1.msra.mxu0 0.0
      %7037 = vmatprep.subr.mxu0 0.0
      %7038 = vmatpush1.msra.mxu0 0.0
      %7039 = vmatprep.subr.mxu0 0.0
      %7040 = vmatpush1.msra.mxu0 0.0
      %7041 = vmatprep.subr.mxu0 0.0
      %7042 = vmatpush1.msra.mxu0 0.0
      %7043 = vmatprep.subr.mxu0 0.0
      %7044 = vmatpush1.msra.mxu0 0.0
      %7045 = vmatprep.subr.mxu0 0.0
      %7046 = vmatpush1.msra.mxu0 0.0
      %7047 = vmatprep.subr.mxu0 0.0
      %7048 = vmatpush1.msra.mxu0 0.0
      %7049 = vmatprep.subr.mxu0 0.0
      %7050 = vmatpush1.msra.mxu0 0.0
      %7051 = vmatprep.subr.mxu0 0.0
      %7052 = vmatpush1.msra.mxu0 0.0
      %7053 = vmatprep.subr.mxu0 0.0
      %7054 = vmatpush1.msra.mxu0 0.0
      %7055 = vmatprep.subr.mxu0 0.0
      %7056 = vmatpush1.msra.mxu0 0.0
      %7057 = vmatprep.subr.mxu0 0.0
      %7058 = vmatpush1.msra.mxu0 0.0
      %7059 = vmatprep.subr.mxu0 0.0
      %7060 = vmatpush1.msra.mxu0 0.0
      %7061 = vmatprep.subr.mxu0 0.0
      %7062 = vmatpush1.msra.mxu0 0.0
      %7063 = vmatprep.subr.mxu0 0.0
      %7064 = vmatpush1.msra.mxu0 0.0
      %7065 = vmatprep.subr.mxu0 0.0
      %7066 = vmatpush1.msra.mxu0 0.0
      %7067 = vmatprep.subr.mxu0 0.0
      %7068 = vmatpush1.msra.mxu0 0.0
      %7069 = vmatprep.mubr.f32.mxu0 0.0
      %v7070 = vand.u32 %v6849, 4294901760
      %v7071 = vsub.f32 %v6849, %v7070
      %7072 = vmatmul.mubr.f32.gmra.mrb[0].mxu0 %v7071
      %v7073 = vpop.f32.mrb[0].mxu0
      %v7074 = vadd.f32 %v7000, %v7073
      %v7075 = vpop.f32.mrb[0].mxu0
      %7076 = vdwg.mxu0
      %7077 = vmatprep.subr.mxu0 0.0
      %v7078 = vand.u32 %v6838, 4294901760
      %7079 = vmatpush1.msra.mxu0 %v7078
      %7080 = vmatprep.subr.mxu0 0.0
      %7081 = vmatpush1.msra.mxu0 0.0
      %7082 = vmatprep.subr.mxu0 0.0
      %7083 = vmatpush1.msra.mxu0 0.0
      %7084 = vmatprep.subr.mxu0 0.0
      %7085 = vmatpush1.msra.mxu0 0.0
      %7086 = vmatprep.subr.mxu0 0.0
      %7087 = vmatpush1.msra.mxu0 0.0
      %7088 = vmatprep.subr.mxu0 0.0
      %7089 = vmatpush1.msra.mxu0 0.0
      %7090 = vmatprep.subr.mxu0 0.0
      %7091 = vmatpush1.msra.mxu0 0.0
      %7092 = vmatprep.subr.mxu0 0.0
      %7093 = vmatpush1.msra.mxu0 0.0
      %7094 = vmatprep.subr.mxu0 0.0
      %7095 = vmatpush1.msra.mxu0 0.0
      %7096 = vmatprep.subr.mxu0 0.0
      %7097 = vmatpush1.msra.mxu0 0.0
      %7098 = vmatprep.subr.mxu0 0.0
      %7099 = vmatpush1.msra.mxu0 0.0
      %7100 = vmatprep.subr.mxu0 0.0
      %7101 = vmatpush1.msra.mxu0 0.0
      %7102 = vmatprep.subr.mxu0 0.0
      %7103 = vmatpush1.msra.mxu0 0.0
      %7104 = vmatprep.subr.mxu0 0.0
      %7105 = vmatpush1.msra.mxu0 0.0
      %7106 = vmatprep.subr.mxu0 0.0
      %7107 = vmatpush1.msra.mxu0 0.0
      %7108 = vmatprep.subr.mxu0 0.0
      %7109 = vmatpush1.msra.mxu0 0.0
      %7110 = vmatprep.subr.mxu0 0.0
      %7111 = vmatpush1.msra.mxu0 0.0
      %7112 = vmatprep.subr.mxu0 0.0
      %7113 = vmatpush1.msra.mxu0 0.0
      %7114 = vmatprep.subr.mxu0 0.0
      %7115 = vmatpush1.msra.mxu0 0.0
      %7116 = vmatprep.subr.mxu0 0.0
      %7117 = vmatpush1.msra.mxu0 0.0
      %7118 = vmatprep.subr.mxu0 0.0
      %7119 = vmatpush1.msra.mxu0 0.0
      %7120 = vmatprep.subr.mxu0 0.0
      %7121 = vmatpush1.msra.mxu0 0.0
      %7122 = vmatprep.subr.mxu0 0.0
      %7123 = vmatpush1.msra.mxu0 0.0
      %7124 = vmatprep.subr.mxu0 0.0
      %7125 = vmatpush1.msra.mxu0 0.0
      %7126 = vmatprep.subr.mxu0 0.0
      %7127 = vmatpush1.msra.mxu0 0.0
      %7128 = vmatprep.subr.mxu0 0.0
      %7129 = vmatpush1.msra.mxu0 0.0
      %7130 = vmatprep.subr.mxu0 0.0
      %7131 = vmatpush1.msra.mxu0 0.0
      %7132 = vmatprep.subr.mxu0 0.0
      %7133 = vmatpush1.msra.mxu0 0.0
      %7134 = vmatprep.subr.mxu0 0.0
      %7135 = vmatpush1.msra.mxu0 0.0
      %7136 = vmatprep.subr.mxu0 0.0
      %7137 = vmatpush1.msra.mxu0 0.0
      %7138 = vmatprep.subr.mxu0 0.0
      %7139 = vmatpush1.msra.mxu0 0.0
      %7140 = vmatprep.subr.mxu0 0.0
      %7141 = vmatpush1.msra.mxu0 0.0
      %7142 = vmatprep.mubr.f32.mxu0 0.0
      %v7143 = vand.u32 %v6849, 4294901760
      %v7144 = vsub.f32 %v6849, %v7143
      %v7145 = vand.u32 %v7144, 4294901760
      %7146 = vmatmul.mubr.f32.gmra.mrb[0].mxu0 %v7145
      %v7147 = vpop.f32.mrb[0].mxu0
      %v7148 = vadd.f32 %v7074, %v7147
      %v7149 = vpop.f32.mrb[0].mxu0
      %7150 = vdwg.mxu0
      %7151 = vmatprep.subr.mxu0 0.0
      %v7152 = vand.u32 %v6838, 4294901760
      %v7153 = vsub.f32 %v6838, %v7152
      %v7154 = vand.u32 %v7153, 4294901760
      %7155 = vmatpush1.msra.mxu0 %v7154
      %7156 = vmatprep.subr.mxu0 0.0
      %7157 = vmatpush1.msra.mxu0 0.0
      %7158 = vmatprep.subr.mxu0 0.0
      %7159 = vmatpush1.msra.mxu0 0.0
      %7160 = vmatprep.subr.mxu0 0.0
      %7161 = vmatpush1.msra.mxu0 0.0
      %7162 = vmatprep.subr.mxu0 0.0
      %7163 = vmatpush1.msra.mxu0 0.0
      %7164 = vmatprep.subr.mxu0 0.0
      %7165 = vmatpush1.msra.mxu0 0.0
      %7166 = vmatprep.subr.mxu0 0.0
      %7167 = vmatpush1.msra.mxu0 0.0
      %7168 = vmatprep.subr.mxu0 0.0
      %7169 = vmatpush1.msra.mxu0 0.0
      %7170 = vmatprep.subr.mxu0 0.0
      %7171 = vmatpush1.msra.mxu0 0.0
      %7172 = vmatprep.subr.mxu0 0.0
      %7173 = vmatpush1.msra.mxu0 0.0
      %7174 = vmatprep.subr.mxu0 0.0
      %7175 = vmatpush1.msra.mxu0 0.0
      %7176 = vmatprep.subr.mxu0 0.0
      %7177 = vmatpush1.msra.mxu0 0.0
      %7178 = vmatprep.subr.mxu0 0.0
      %7179 = vmatpush1.msra.mxu0 0.0
      %7180 = vmatprep.subr.mxu0 0.0
      %7181 = vmatpush1.msra.mxu0 0.0
      %7182 = vmatprep.subr.mxu0 0.0
      %7183 = vmatpush1.msra.mxu0 0.0
      %7184 = vmatprep.subr.mxu0 0.0
      %7185 = vmatpush1.msra.mxu0 0.0
      %7186 = vmatprep.subr.mxu0 0.0
      %7187 = vmatpush1.msra.mxu0 0.0
      %7188 = vmatprep.subr.mxu0 0.0
      %7189 = vmatpush1.msra.mxu0 0.0
      %7190 = vmatprep.subr.mxu0 0.0
      %7191 = vmatpush1.msra.mxu0 0.0
      %7192 = vmatprep.subr.mxu0 0.0
      %7193 = vmatpush1.msra.mxu0 0.0
      %7194 = vmatprep.subr.mxu0 0.0
      %7195 = vmatpush1.msra.mxu0 0.0
      %7196 = vmatprep.subr.mxu0 0.0
      %7197 = vmatpush1.msra.mxu0 0.0
      %7198 = vmatprep.subr.mxu0 0.0
      %7199 = vmatpush1.msra.mxu0 0.0
      %7200 = vmatprep.subr.mxu0 0.0
      %7201 = vmatpush1.msra.mxu0 0.0
      %7202 = vmatprep.subr.mxu0 0.0
      %7203 = vmatpush1.msra.mxu0 0.0
      %7204 = vmatprep.subr.mxu0 0.0
      %7205 = vmatpush1.msra.mxu0 0.0
      %7206 = vmatprep.subr.mxu0 0.0
      %7207 = vmatpush1.msra.mxu0 0.0
      %7208 = vmatprep.subr.mxu0 0.0
      %7209 = vmatpush1.msra.mxu0 0.0
      %7210 = vmatprep.subr.mxu0 0.0
      %7211 = vmatpush1.msra.mxu0 0.0
      %7212 = vmatprep.subr.mxu0 0.0
      %7213 = vmatpush1.msra.mxu0 0.0
      %7214 = vmatprep.subr.mxu0 0.0
      %7215 = vmatpush1.msra.mxu0 0.0
      %7216 = vmatprep.subr.mxu0 0.0
      %7217 = vmatpush1.msra.mxu0 0.0
      %7218 = vmatprep.mubr.f32.mxu0 0.0
      %v7219 = vand.u32 %v6849, 4294901760
      %7220 = vmatmul.mubr.f32.gmra.mrb[0].mxu0 %v7219
      %v7221 = vpop.f32.mrb[0].mxu0
      %v7222 = vadd.f32 %v7148, %v7221
      %v7223 = vpop.f32.mrb[0].mxu0
      %7224 = vdwg.mxu0
      %7225 = vmatprep.subr.mxu0 0.0
      %v7226 = vand.u32 %v6838, 4294901760
      %7227 = vmatpush1.msra.mxu0 %v7226
      %7228 = vmatprep.subr.mxu0 0.0
      %7229 = vmatpush1.msra.mxu0 0.0
      %7230 = vmatprep.subr.mxu0 0.0
      %7231 = vmatpush1.msra.mxu0 0.0
      %7232 = vmatprep.subr.mxu0 0.0
      %7233 = vmatpush1.msra.mxu0 0.0
      %7234 = vmatprep.subr.mxu0 0.0
      %7235 = vmatpush1.msra.mxu0 0.0
      %7236 = vmatprep.subr.mxu0 0.0
      %7237 = vmatpush1.msra.mxu0 0.0
      %7238 = vmatprep.subr.mxu0 0.0
      %7239 = vmatpush1.msra.mxu0 0.0
      %7240 = vmatprep.subr.mxu0 0.0
      %7241 = vmatpush1.msra.mxu0 0.0
      %7242 = vmatprep.subr.mxu0 0.0
      %7243 = vmatpush1.msra.mxu0 0.0
      %7244 = vmatprep.subr.mxu0 0.0
      %7245 = vmatpush1.msra.mxu0 0.0
      %7246 = vmatprep.subr.mxu0 0.0
      %7247 = vmatpush1.msra.mxu0 0.0
      %7248 = vmatprep.subr.mxu0 0.0
      %7249 = vmatpush1.msra.mxu0 0.0
      %7250 = vmatprep.subr.mxu0 0.0
      %7251 = vmatpush1.msra.mxu0 0.0
      %7252 = vmatprep.subr.mxu0 0.0
      %7253 = vmatpush1.msra.mxu0 0.0
      %7254 = vmatprep.subr.mxu0 0.0
      %7255 = vmatpush1.msra.mxu0 0.0
      %7256 = vmatprep.subr.mxu0 0.0
      %7257 = vmatpush1.msra.mxu0 0.0
      %7258 = vmatprep.subr.mxu0 0.0
      %7259 = vmatpush1.msra.mxu0 0.0
      %7260 = vmatprep.subr.mxu0 0.0
      %7261 = vmatpush1.msra.mxu0 0.0
      %7262 = vmatprep.subr.mxu0 0.0
      %7263 = vmatpush1.msra.mxu0 0.0
      %7264 = vmatprep.subr.mxu0 0.0
      %7265 = vmatpush1.msra.mxu0 0.0
      %7266 = vmatprep.subr.mxu0 0.0
      %7267 = vmatpush1.msra.mxu0 0.0
      %7268 = vmatprep.subr.mxu0 0.0
      %7269 = vmatpush1.msra.mxu0 0.0
      %7270 = vmatprep.subr.mxu0 0.0
      %7271 = vmatpush1.msra.mxu0 0.0
      %7272 = vmatprep.subr.mxu0 0.0
      %7273 = vmatpush1.msra.mxu0 0.0
      %7274 = vmatprep.subr.mxu0 0.0
      %7275 = vmatpush1.msra.mxu0 0.0
      %7276 = vmatprep.subr.mxu0 0.0
      %7277 = vmatpush1.msra.mxu0 0.0
      %7278 = vmatprep.subr.mxu0 0.0
      %7279 = vmatpush1.msra.mxu0 0.0
      %7280 = vmatprep.subr.mxu0 0.0
      %7281 = vmatpush1.msra.mxu0 0.0
      %7282 = vmatprep.subr.mxu0 0.0
      %7283 = vmatpush1.msra.mxu0 0.0
      %7284 = vmatprep.subr.mxu0 0.0
      %7285 = vmatpush1.msra.mxu0 0.0
      %7286 = vmatprep.subr.mxu0 0.0
      %7287 = vmatpush1.msra.mxu0 0.0
      %7288 = vmatprep.subr.mxu0 0.0
      %7289 = vmatpush1.msra.mxu0 0.0
      %7290 = vmatprep.mubr.f32.mxu0 0.0
      %v7291 = vand.u32 %v6849, 4294901760
      %7292 = vmatmul.mubr.f32.gmra.mrb[0].mxu0 %v7291
      %v7293 = vpop.f32.mrb[0].mxu0
      %v7294 = vadd.f32 %v7222, %v7293
      %v7295 = vpop.f32.mrb[0].mxu0
      %7296 = vdwg.mxu0
      %v7297 = vmax.f32 %v7294, 0.0
      %7298 = vst [vmem:[%s606] sm:$0xff] %v7297
      %s7299 = sld [smem:[#allocation3 + $0xc]]
      %v7300 = vstv %s7299
      %v7301 = vmul.f32 %v7300, %v615
      %s7302 = sld [smem:[#allocation3 + $0xd]]
      %v7303 = vld [vmem:[%s13] sm:$0xff]
      %v7304 = vld [vmem:[%s13 + $0x8] sm:$0xff]
      %v7305 = vld [vmem:[%s13 + $0x10] sm:$0xff]
      %v7306 = vld [vmem:[%s13 + $0x18] sm:$0xff]
      %v7307 = vld [vmem:[%s13 + $0x20] sm:$0xff]
      %v7308 = vld [vmem:[%s13 + $0x28] sm:$0xff]
      %v7309 = vld [vmem:[%s13 + $0x30] sm:$0xff]
      %v7310 = vld [vmem:[%s13 + $0x38] sm:$0xff]
      %v7311 = vld [vmem:[%s13 + $0x40] sm:$0xff]
      %v7312 = vld [vmem:[%s13 + $0x48] sm:$0xff]
      %v7313 = vld [vmem:[%s13 + $0x50] sm:$0xff]
      %v7314 = vld [vmem:[%s13 + $0x58] sm:$0xff]
      %v7315 = vld [vmem:[%s13 + $0x60] sm:$0xff]
      %v7316 = vld [vmem:[%s13 + $0x68] sm:$0xff]
      %v7317 = vld [vmem:[%s13 + $0x70] sm:$0xff]
      %v7318 = vld [vmem:[%s13 + $0x78] sm:$0xff]
      %7319 = vmatprep.subr.mxu0 0.0
      %v7320 = vand.u32 %v7303, 4294901760
      %7321 = vmatpush1.msra.mxu0 %v7320
      %7322 = vmatprep.subr.mxu0 0.0
      %v7323 = vand.u32 %v7304, 4294901760
      %7324 = vmatpush1.msra.mxu0 %v7323
      %7325 = vmatprep.subr.mxu0 0.0
      %v7326 = vand.u32 %v7305, 4294901760
      %7327 = vmatpush1.msra.mxu0 %v7326
      %7328 = vmatprep.subr.mxu0 0.0
      %v7329 = vand.u32 %v7306, 4294901760
      %7330 = vmatpush1.msra.mxu0 %v7329
      %7331 = vmatprep.subr.mxu0 0.0
      %v7332 = vand.u32 %v7307, 4294901760
      %7333 = vmatpush1.msra.mxu0 %v7332
      %7334 = vmatprep.subr.mxu0 0.0
      %v7335 = vand.u32 %v7308, 4294901760
      %7336 = vmatpush1.msra.mxu0 %v7335
      %7337 = vmatprep.subr.mxu0 0.0
      %v7338 = vand.u32 %v7309, 4294901760
      %7339 = vmatpush1.msra.mxu0 %v7338
      %7340 = vmatprep.subr.mxu0 0.0
      %v7341 = vand.u32 %v7310, 4294901760
      %7342 = vmatpush1.msra.mxu0 %v7341
      %7343 = vmatprep.subr.mxu0 0.0
      %v7344 = vand.u32 %v7311, 4294901760
      %7345 = vmatpush1.msra.mxu0 %v7344
      %7346 = vmatprep.subr.mxu0 0.0
      %v7347 = vand.u32 %v7312, 4294901760
      %7348 = vmatpush1.msra.mxu0 %v7347
      %7349 = vmatprep.subr.mxu0 0.0
      %v7350 = vand.u32 %v7313, 4294901760
      %7351 = vmatpush1.msra.mxu0 %v7350
      %7352 = vmatprep.subr.mxu0 0.0
      %v7353 = vand.u32 %v7314, 4294901760
      %7354 = vmatpush1.msra.mxu0 %v7353
      %7355 = vmatprep.subr.mxu0 0.0
      %v7356 = vand.u32 %v7315, 4294901760
      %7357 = vmatpush1.msra.mxu0 %v7356
      %7358 = vmatprep.subr.mxu0 0.0
      %v7359 = vand.u32 %v7316, 4294901760
      %7360 = vmatpush1.msra.mxu0 %v7359
      %7361 = vmatprep.subr.mxu0 0.0
      %v7362 = vand.u32 %v7317, 4294901760
      %7363 = vmatpush1.msra.mxu0 %v7362
      %7364 = vmatprep.subr.mxu0 0.0
      %v7365 = vand.u32 %v7318, 4294901760
      %7366 = vmatpush1.msra.mxu0 %v7365
      %7367 = vmatprep.subr.mxu0 0.0
      %7368 = vmatpush1.msra.mxu0 0.0
      %7369 = vmatprep.subr.mxu0 0.0
      %7370 = vmatpush1.msra.mxu0 0.0
      %7371 = vmatprep.subr.mxu0 0.0
      %7372 = vmatpush1.msra.mxu0 0.0
      %7373 = vmatprep.subr.mxu0 0.0
      %7374 = vmatpush1.msra.mxu0 0.0
      %7375 = vmatprep.subr.mxu0 0.0
      %7376 = vmatpush1.msra.mxu0 0.0
      %7377 = vmatprep.subr.mxu0 0.0
      %7378 = vmatpush1.msra.mxu0 0.0
      %7379 = vmatprep.subr.mxu0 0.0
      %7380 = vmatpush1.msra.mxu0 0.0
      %7381 = vmatprep.subr.mxu0 0.0
      %7382 = vmatpush1.msra.mxu0 0.0
      %7383 = vmatprep.subr.mxu0 0.0
      %7384 = vmatpush1.msra.mxu0 0.0
      %7385 = vmatprep.subr.mxu0 0.0
      %7386 = vmatpush1.msra.mxu0 0.0
      %7387 = vmatprep.subr.mxu0 0.0
      %7388 = vmatpush1.msra.mxu0 0.0
      %7389 = vmatprep.subr.mxu0 0.0
      %7390 = vmatpush1.msra.mxu0 0.0
      %7391 = vmatprep.subr.mxu0 0.0
      %7392 = vmatpush1.msra.mxu0 0.0
      %7393 = vmatprep.subr.mxu0 0.0
      %7394 = vmatpush1.msra.mxu0 0.0
      %7395 = vmatprep.subr.mxu0 0.0
      %7396 = vmatpush1.msra.mxu0 0.0
      %7397 = vmatprep.subr.mxu0 0.0
      %7398 = vmatpush1.msra.mxu0 0.0
      %7399 = vmatprep.mubr.f32.mxu0 0.0
      %v7400 = vand.u32 %v7297, 4294901760
      %v7401 = vsub.f32 %v7297, %v7400
      %v7402 = vand.u32 %v7401, 4294901760
      %v7403 = vsub.f32 %v7401, %v7402
      %v7404 = vand.u32 %v7403, 4294901760
      %7405 = vmatmul.mubr.f32.gmra.mrb[0].mxu0 %v7404
      %v7406 = vpop.f32.mrb[0].mxu0
      %v7407 = vadd.f32 0.0, %v7406
      %v7408 = vpop.f32.mrb[0].mxu0
      %7409 = vdwg.mxu0
      %7410 = vmatprep.subr.mxu0 0.0
      %v7411 = vand.u32 %v7303, 4294901760
      %v7412 = vsub.f32 %v7303, %v7411
      %v7413 = vand.u32 %v7412, 4294901760
      %v7414 = vsub.f32 %v7412, %v7413
      %v7415 = vand.u32 %v7414, 4294901760
      %7416 = vmatpush1.msra.mxu0 %v7415
      %7417 = vmatprep.subr.mxu0 0.0
      %v7418 = vand.u32 %v7304, 4294901760
      %v7419 = vsub.f32 %v7304, %v7418
      %v7420 = vand.u32 %v7419, 4294901760
      %v7421 = vsub.f32 %v7419, %v7420
      %v7422 = vand.u32 %v7421, 4294901760
      %7423 = vmatpush1.msra.mxu0 %v7422
      %7424 = vmatprep.subr.mxu0 0.0
      %v7425 = vand.u32 %v7305, 4294901760
      %v7426 = vsub.f32 %v7305, %v7425
      %v7427 = vand.u32 %v7426, 4294901760
      %v7428 = vsub.f32 %v7426, %v7427
      %v7429 = vand.u32 %v7428, 4294901760
      %7430 = vmatpush1.msra.mxu0 %v7429
      %7431 = vmatprep.subr.mxu0 0.0
      %v7432 = vand.u32 %v7306, 4294901760
      %v7433 = vsub.f32 %v7306, %v7432
      %v7434 = vand.u32 %v7433, 4294901760
      %v7435 = vsub.f32 %v7433, %v7434
      %v7436 = vand.u32 %v7435, 4294901760
      %7437 = vmatpush1.msra.mxu0 %v7436
      %7438 = vmatprep.subr.mxu0 0.0
      %v7439 = vand.u32 %v7307, 4294901760
      %v7440 = vsub.f32 %v7307, %v7439
      %v7441 = vand.u32 %v7440, 4294901760
      %v7442 = vsub.f32 %v7440, %v7441
      %v7443 = vand.u32 %v7442, 4294901760
      %7444 = vmatpush1.msra.mxu0 %v7443
      %7445 = vmatprep.subr.mxu0 0.0
      %v7446 = vand.u32 %v7308, 4294901760
      %v7447 = vsub.f32 %v7308, %v7446
      %v7448 = vand.u32 %v7447, 4294901760
      %v7449 = vsub.f32 %v7447, %v7448
      %v7450 = vand.u32 %v7449, 4294901760
      %7451 = vmatpush1.msra.mxu0 %v7450
      %7452 = vmatprep.subr.mxu0 0.0
      %v7453 = vand.u32 %v7309, 4294901760
      %v7454 = vsub.f32 %v7309, %v7453
      %v7455 = vand.u32 %v7454, 4294901760
      %v7456 = vsub.f32 %v7454, %v7455
      %v7457 = vand.u32 %v7456, 4294901760
      %7458 = vmatpush1.msra.mxu0 %v7457
      %7459 = vmatprep.subr.mxu0 0.0
      %v7460 = vand.u32 %v7310, 4294901760
      %v7461 = vsub.f32 %v7310, %v7460
      %v7462 = vand.u32 %v7461, 4294901760
      %v7463 = vsub.f32 %v7461, %v7462
      %v7464 = vand.u32 %v7463, 4294901760
      %7465 = vmatpush1.msra.mxu0 %v7464
      %7466 = vmatprep.subr.mxu0 0.0
      %v7467 = vand.u32 %v7311, 4294901760
      %v7468 = vsub.f32 %v7311, %v7467
      %v7469 = vand.u32 %v7468, 4294901760
      %v7470 = vsub.f32 %v7468, %v7469
      %v7471 = vand.u32 %v7470, 4294901760
      %7472 = vmatpush1.msra.mxu0 %v7471
      %7473 = vmatprep.subr.mxu0 0.0
      %v7474 = vand.u32 %v7312, 4294901760
      %v7475 = vsub.f32 %v7312, %v7474
      %v7476 = vand.u32 %v7475, 4294901760
      %v7477 = vsub.f32 %v7475, %v7476
      %v7478 = vand.u32 %v7477, 4294901760
      %7479 = vmatpush1.msra.mxu0 %v7478
      %7480 = vmatprep.subr.mxu0 0.0
      %v7481 = vand.u32 %v7313, 4294901760
      %v7482 = vsub.f32 %v7313, %v7481
      %v7483 = vand.u32 %v7482, 4294901760
      %v7484 = vsub.f32 %v7482, %v7483
      %v7485 = vand.u32 %v7484, 4294901760
      %7486 = vmatpush1.msra.mxu0 %v7485
      %7487 = vmatprep.subr.mxu0 0.0
      %v7488 = vand.u32 %v7314, 4294901760
      %v7489 = vsub.f32 %v7314, %v7488
      %v7490 = vand.u32 %v7489, 4294901760
      %v7491 = vsub.f32 %v7489, %v7490
      %v7492 = vand.u32 %v7491, 4294901760
      %7493 = vmatpush1.msra.mxu0 %v7492
      %7494 = vmatprep.subr.mxu0 0.0
      %v7495 = vand.u32 %v7315, 4294901760
      %v7496 = vsub.f32 %v7315, %v7495
      %v7497 = vand.u32 %v7496, 4294901760
      %v7498 = vsub.f32 %v7496, %v7497
      %v7499 = vand.u32 %v7498, 4294901760
      %7500 = vmatpush1.msra.mxu0 %v7499
      %7501 = vmatprep.subr.mxu0 0.0
      %v7502 = vand.u32 %v7316, 4294901760
      %v7503 = vsub.f32 %v7316, %v7502
      %v7504 = vand.u32 %v7503, 4294901760
      %v7505 = vsub.f32 %v7503, %v7504
      %v7506 = vand.u32 %v7505, 4294901760
      %7507 = vmatpush1.msra.mxu0 %v7506
      %7508 = vmatprep.subr.mxu0 0.0
      %v7509 = vand.u32 %v7317, 4294901760
      %v7510 = vsub.f32 %v7317, %v7509
      %v7511 = vand.u32 %v7510, 4294901760
      %v7512 = vsub.f32 %v7510, %v7511
      %v7513 = vand.u32 %v7512, 4294901760
      %7514 = vmatpush1.msra.mxu0 %v7513
      %7515 = vmatprep.subr.mxu0 0.0
      %v7516 = vand.u32 %v7318, 4294901760
      %v7517 = vsub.f32 %v7318, %v7516
      %v7518 = vand.u32 %v7517, 4294901760
      %v7519 = vsub.f32 %v7517, %v7518
      %v7520 = vand.u32 %v7519, 4294901760
      %7521 = vmatpush1.msra.mxu0 %v7520
      %7522 = vmatprep.subr.mxu0 0.0
      %7523 = vmatpush1.msra.mxu0 0.0
      %7524 = vmatprep.subr.mxu0 0.0
      %7525 = vmatpush1.msra.mxu0 0.0
      %7526 = vmatprep.subr.mxu0 0.0
      %7527 = vmatpush1.msra.mxu0 0.0
      %7528 = vmatprep.subr.mxu0 0.0
      %7529 = vmatpush1.msra.mxu0 0.0
      %7530 = vmatprep.subr.mxu0 0.0
      %7531 = vmatpush1.msra.mxu0 0.0
      %7532 = vmatprep.subr.mxu0 0.0
      %7533 = vmatpush1.msra.mxu0 0.0
      %7534 = vmatprep.subr.mxu0 0.0
      %7535 = vmatpush1.msra.mxu0 0.0
      %7536 = vmatprep.subr.mxu0 0.0
      %7537 = vmatpush1.msra.mxu0 0.0
      %7538 = vmatprep.subr.mxu0 0.0
      %7539 = vmatpush1.msra.mxu0 0.0
      %7540 = vmatprep.subr.mxu0 0.0
      %7541 = vmatpush1.msra.mxu0 0.0
      %7542 = vmatprep.subr.mxu0 0.0
      %7543 = vmatpush1.msra.mxu0 0.0
      %7544 = vmatprep.subr.mxu0 0.0
      %7545 = vmatpush1.msra.mxu0 0.0
      %7546 = vmatprep.subr.mxu0 0.0
      %7547 = vmatpush1.msra.mxu0 0.0
      %7548 = vmatprep.subr.mxu0 0.0
      %7549 = vmatpush1.msra.mxu0 0.0
      %7550 = vmatprep.subr.mxu0 0.0
      %7551 = vmatpush1.msra.mxu0 0.0
      %7552 = vmatprep.subr.mxu0 0.0
      %7553 = vmatpush1.msra.mxu0 0.0
      %7554 = vmatprep.mubr.f32.mxu0 0.0
      %v7555 = vand.u32 %v7297, 4294901760
      %7556 = vmatmul.mubr.f32.gmra.mrb[0].mxu0 %v7555
      %v7557 = vpop.f32.mrb[0].mxu0
      %v7558 = vadd.f32 %v7407, %v7557
      %v7559 = vpop.f32.mrb[0].mxu0
      %7560 = vdwg.mxu0
      %7561 = vmatprep.subr.mxu0 0.0
      %v7562 = vand.u32 %v7303, 4294901760
      %v7563 = vsub.f32 %v7303, %v7562
      %7564 = vmatpush1.msra.mxu0 %v7563
      %7565 = vmatprep.subr.mxu0 0.0
      %v7566 = vand.u32 %v7304, 4294901760
      %v7567 = vsub.f32 %v7304, %v7566
      %7568 = vmatpush1.msra.mxu0 %v7567
      %7569 = vmatprep.subr.mxu0 0.0
      %v7570 = vand.u32 %v7305, 4294901760
      %v7571 = vsub.f32 %v7305, %v7570
      %7572 = vmatpush1.msra.mxu0 %v7571
      %7573 = vmatprep.subr.mxu0 0.0
      %v7574 = vand.u32 %v7306, 4294901760
      %v7575 = vsub.f32 %v7306, %v7574
      %7576 = vmatpush1.msra.mxu0 %v7575
      %7577 = vmatprep.subr.mxu0 0.0
      %v7578 = vand.u32 %v7307, 4294901760
      %v7579 = vsub.f32 %v7307, %v7578
      %7580 = vmatpush1.msra.mxu0 %v7579
      %7581 = vmatprep.subr.mxu0 0.0
      %v7582 = vand.u32 %v7308, 4294901760
      %v7583 = vsub.f32 %v7308, %v7582
      %7584 = vmatpush1.msra.mxu0 %v7583
      %7585 = vmatprep.subr.mxu0 0.0
      %v7586 = vand.u32 %v7309, 4294901760
      %v7587 = vsub.f32 %v7309, %v7586
      %7588 = vmatpush1.msra.mxu0 %v7587
      %7589 = vmatprep.subr.mxu0 0.0
      %v7590 = vand.u32 %v7310, 4294901760
      %v7591 = vsub.f32 %v7310, %v7590
      %7592 = vmatpush1.msra.mxu0 %v7591
      %7593 = vmatprep.subr.mxu0 0.0
      %v7594 = vand.u32 %v7311, 4294901760
      %v7595 = vsub.f32 %v7311, %v7594
      %7596 = vmatpush1.msra.mxu0 %v7595
      %7597 = vmatprep.subr.mxu0 0.0
      %v7598 = vand.u32 %v7312, 4294901760
      %v7599 = vsub.f32 %v7312, %v7598
      %7600 = vmatpush1.msra.mxu0 %v7599
      %7601 = vmatprep.subr.mxu0 0.0
      %v7602 = vand.u32 %v7313, 4294901760
      %v7603 = vsub.f32 %v7313, %v7602
      %7604 = vmatpush1.msra.mxu0 %v7603
      %7605 = vmatprep.subr.mxu0 0.0
      %v7606 = vand.u32 %v7314, 4294901760
      %v7607 = vsub.f32 %v7314, %v7606
      %7608 = vmatpush1.msra.mxu0 %v7607
      %7609 = vmatprep.subr.mxu0 0.0
      %v7610 = vand.u32 %v7315, 4294901760
      %v7611 = vsub.f32 %v7315, %v7610
      %7612 = vmatpush1.msra.mxu0 %v7611
      %7613 = vmatprep.subr.mxu0 0.0
      %v7614 = vand.u32 %v7316, 4294901760
      %v7615 = vsub.f32 %v7316, %v7614
      %7616 = vmatpush1.msra.mxu0 %v7615
      %7617 = vmatprep.subr.mxu0 0.0
      %v7618 = vand.u32 %v7317, 4294901760
      %v7619 = vsub.f32 %v7317, %v7618
      %7620 = vmatpush1.msra.mxu0 %v7619
      %7621 = vmatprep.subr.mxu0 0.0
      %v7622 = vand.u32 %v7318, 4294901760
      %v7623 = vsub.f32 %v7318, %v7622
      %7624 = vmatpush1.msra.mxu0 %v7623
      %7625 = vmatprep.subr.mxu0 0.0
      %7626 = vmatpush1.msra.mxu0 0.0
      %7627 = vmatprep.subr.mxu0 0.0
      %7628 = vmatpush1.msra.mxu0 0.0
      %7629 = vmatprep.subr.mxu0 0.0
      %7630 = vmatpush1.msra.mxu0 0.0
      %7631 = vmatprep.subr.mxu0 0.0
      %7632 = vmatpush1.msra.mxu0 0.0
      %7633 = vmatprep.subr.mxu0 0.0
      %7634 = vmatpush1.msra.mxu0 0.0
      %7635 = vmatprep.subr.mxu0 0.0
      %7636 = vmatpush1.msra.mxu0 0.0
      %7637 = vmatprep.subr.mxu0 0.0
      %7638 = vmatpush1.msra.mxu0 0.0
      %7639 = vmatprep.subr.mxu0 0.0
      %7640 = vmatpush1.msra.mxu0 0.0
      %7641 = vmatprep.subr.mxu0 0.0
      %7642 = vmatpush1.msra.mxu0 0.0
      %7643 = vmatprep.subr.mxu0 0.0
      %7644 = vmatpush1.msra.mxu0 0.0
      %7645 = vmatprep.subr.mxu0 0.0
      %7646 = vmatpush1.msra.mxu0 0.0
      %7647 = vmatprep.subr.mxu0 0.0
      %7648 = vmatpush1.msra.mxu0 0.0
      %7649 = vmatprep.subr.mxu0 0.0
      %7650 = vmatpush1.msra.mxu0 0.0
      %7651 = vmatprep.subr.mxu0 0.0
      %7652 = vmatpush1.msra.mxu0 0.0
      %7653 = vmatprep.subr.mxu0 0.0
      %7654 = vmatpush1.msra.mxu0 0.0
      %7655 = vmatprep.subr.mxu0 0.0
      %7656 = vmatpush1.msra.mxu0 0.0
      %7657 = vmatprep.mubr.f32.mxu0 0.0
      %v7658 = vand.u32 %v7297, 4294901760
      %v7659 = vsub.f32 %v7297, %v7658
      %7660 = vmatmul.mubr.f32.gmra.mrb[0].mxu0 %v7659
      %v7661 = vpop.f32.mrb[0].mxu0
      %v7662 = vadd.f32 %v7558, %v7661
      %v7663 = vpop.f32.mrb[0].mxu0
      %7664 = vdwg.mxu0
      %7665 = vmatprep.subr.mxu0 0.0
      %v7666 = vand.u32 %v7303, 4294901760
      %7667 = vmatpush1.msra.mxu0 %v7666
      %7668 = vmatprep.subr.mxu0 0.0
      %v7669 = vand.u32 %v7304, 4294901760
      %7670 = vmatpush1.msra.mxu0 %v7669
      %7671 = vmatprep.subr.mxu0 0.0
      %v7672 = vand.u32 %v7305, 4294901760
      %7673 = vmatpush1.msra.mxu0 %v7672
      %7674 = vmatprep.subr.mxu0 0.0
      %v7675 = vand.u32 %v7306, 4294901760
      %7676 = vmatpush1.msra.mxu0 %v7675
      %7677 = vmatprep.subr.mxu0 0.0
      %v7678 = vand.u32 %v7307, 4294901760
      %7679 = vmatpush1.msra.mxu0 %v7678
      %7680 = vmatprep.subr.mxu0 0.0
      %v7681 = vand.u32 %v7308, 4294901760
      %7682 = vmatpush1.msra.mxu0 %v7681
      %7683 = vmatprep.subr.mxu0 0.0
      %v7684 = vand.u32 %v7309, 4294901760
      %7685 = vmatpush1.msra.mxu0 %v7684
      %7686 = vmatprep.subr.mxu0 0.0
      %v7687 = vand.u32 %v7310, 4294901760
      %7688 = vmatpush1.msra.mxu0 %v7687
      %7689 = vmatprep.subr.mxu0 0.0
      %v7690 = vand.u32 %v7311, 4294901760
      %7691 = vmatpush1.msra.mxu0 %v7690
      %7692 = vmatprep.subr.mxu0 0.0
      %v7693 = vand.u32 %v7312, 4294901760
      %7694 = vmatpush1.msra.mxu0 %v7693
      %7695 = vmatprep.subr.mxu0 0.0
      %v7696 = vand.u32 %v7313, 4294901760
      %7697 = vmatpush1.msra.mxu0 %v7696
      %7698 = vmatprep.subr.mxu0 0.0
      %v7699 = vand.u32 %v7314, 4294901760
      %7700 = vmatpush1.msra.mxu0 %v7699
      %7701 = vmatprep.subr.mxu0 0.0
      %v7702 = vand.u32 %v7315, 4294901760
      %7703 = vmatpush1.msra.mxu0 %v7702
      %7704 = vmatprep.subr.mxu0 0.0
      %v7705 = vand.u32 %v7316, 4294901760
      %7706 = vmatpush1.msra.mxu0 %v7705
      %7707 = vmatprep.subr.mxu0 0.0
      %v7708 = vand.u32 %v7317, 4294901760
      %7709 = vmatpush1.msra.mxu0 %v7708
      %7710 = vmatprep.subr.mxu0 0.0
      %v7711 = vand.u32 %v7318, 4294901760
      %7712 = vmatpush1.msra.mxu0 %v7711
      %7713 = vmatprep.subr.mxu0 0.0
      %7714 = vmatpush1.msra.mxu0 0.0
      %7715 = vmatprep.subr.mxu0 0.0
      %7716 = vmatpush1.msra.mxu0 0.0
      %7717 = vmatprep.subr.mxu0 0.0
      %7718 = vmatpush1.msra.mxu0 0.0
      %7719 = vmatprep.subr.mxu0 0.0
      %7720 = vmatpush1.msra.mxu0 0.0
      %7721 = vmatprep.subr.mxu0 0.0
      %7722 = vmatpush1.msra.mxu0 0.0
      %7723 = vmatprep.subr.mxu0 0.0
      %7724 = vmatpush1.msra.mxu0 0.0
      %7725 = vmatprep.subr.mxu0 0.0
      %7726 = vmatpush1.msra.mxu0 0.0
      %7727 = vmatprep.subr.mxu0 0.0
      %7728 = vmatpush1.msra.mxu0 0.0
      %7729 = vmatprep.subr.mxu0 0.0
      %7730 = vmatpush1.msra.mxu0 0.0
      %7731 = vmatprep.subr.mxu0 0.0
      %7732 = vmatpush1.msra.mxu0 0.0
      %7733 = vmatprep.subr.mxu0 0.0
      %7734 = vmatpush1.msra.mxu0 0.0
      %7735 = vmatprep.subr.mxu0 0.0
      %7736 = vmatpush1.msra.mxu0 0.0
      %7737 = vmatprep.subr.mxu0 0.0
      %7738 = vmatpush1.msra.mxu0 0.0
      %7739 = vmatprep.subr.mxu0 0.0
      %7740 = vmatpush1.msra.mxu0 0.0
      %7741 = vmatprep.subr.mxu0 0.0
      %7742 = vmatpush1.msra.mxu0 0.0
      %7743 = vmatprep.subr.mxu0 0.0
      %7744 = vmatpush1.msra.mxu0 0.0
      %7745 = vmatprep.mubr.f32.mxu0 0.0
      %v7746 = vand.u32 %v7297, 4294901760
      %v7747 = vsub.f32 %v7297, %v7746
      %v7748 = vand.u32 %v7747, 4294901760
      %7749 = vmatmul.mubr.f32.gmra.mrb[0].mxu0 %v7748
      %v7750 = vpop.f32.mrb[0].mxu0
      %v7751 = vadd.f32 %v7662, %v7750
      %v7752 = vpop.f32.mrb[0].mxu0
      %7753 = vdwg.mxu0
      %7754 = vmatprep.subr.mxu0 0.0
      %v7755 = vand.u32 %v7303, 4294901760
      %v7756 = vsub.f32 %v7303, %v7755
      %v7757 = vand.u32 %v7756, 4294901760
      %7758 = vmatpush1.msra.mxu0 %v7757
      %7759 = vmatprep.subr.mxu0 0.0
      %v7760 = vand.u32 %v7304, 4294901760
      %v7761 = vsub.f32 %v7304, %v7760
      %v7762 = vand.u32 %v7761, 4294901760
      %7763 = vmatpush1.msra.mxu0 %v7762
      %7764 = vmatprep.subr.mxu0 0.0
      %v7765 = vand.u32 %v7305, 4294901760
      %v7766 = vsub.f32 %v7305, %v7765
      %v7767 = vand.u32 %v7766, 4294901760
      %7768 = vmatpush1.msra.mxu0 %v7767
      %7769 = vmatprep.subr.mxu0 0.0
      %v7770 = vand.u32 %v7306, 4294901760
      %v7771 = vsub.f32 %v7306, %v7770
      %v7772 = vand.u32 %v7771, 4294901760
      %7773 = vmatpush1.msra.mxu0 %v7772
      %7774 = vmatprep.subr.mxu0 0.0
      %v7775 = vand.u32 %v7307, 4294901760
      %v7776 = vsub.f32 %v7307, %v7775
      %v7777 = vand.u32 %v7776, 4294901760
      %7778 = vmatpush1.msra.mxu0 %v7777
      %7779 = vmatprep.subr.mxu0 0.0
      %v7780 = vand.u32 %v7308, 4294901760
      %v7781 = vsub.f32 %v7308, %v7780
      %v7782 = vand.u32 %v7781, 4294901760
      %7783 = vmatpush1.msra.mxu0 %v7782
      %7784 = vmatprep.subr.mxu0 0.0
      %v7785 = vand.u32 %v7309, 4294901760
      %v7786 = vsub.f32 %v7309, %v7785
      %v7787 = vand.u32 %v7786, 4294901760
      %7788 = vmatpush1.msra.mxu0 %v7787
      %7789 = vmatprep.subr.mxu0 0.0
      %v7790 = vand.u32 %v7310, 4294901760
      %v7791 = vsub.f32 %v7310, %v7790
      %v7792 = vand.u32 %v7791, 4294901760
      %7793 = vmatpush1.msra.mxu0 %v7792
      %7794 = vmatprep.subr.mxu0 0.0
      %v7795 = vand.u32 %v7311, 4294901760
      %v7796 = vsub.f32 %v7311, %v7795
      %v7797 = vand.u32 %v7796, 4294901760
      %7798 = vmatpush1.msra.mxu0 %v7797
      %7799 = vmatprep.subr.mxu0 0.0
      %v7800 = vand.u32 %v7312, 4294901760
      %v7801 = vsub.f32 %v7312, %v7800
      %v7802 = vand.u32 %v7801, 4294901760
      %7803 = vmatpush1.msra.mxu0 %v7802
      %7804 = vmatprep.subr.mxu0 0.0
      %v7805 = vand.u32 %v7313, 4294901760
      %v7806 = vsub.f32 %v7313, %v7805
      %v7807 = vand.u32 %v7806, 4294901760
      %7808 = vmatpush1.msra.mxu0 %v7807
      %7809 = vmatprep.subr.mxu0 0.0
      %v7810 = vand.u32 %v7314, 4294901760
      %v7811 = vsub.f32 %v7314, %v7810
      %v7812 = vand.u32 %v7811, 4294901760
      %7813 = vmatpush1.msra.mxu0 %v7812
      %7814 = vmatprep.subr.mxu0 0.0
      %v7815 = vand.u32 %v7315, 4294901760
      %v7816 = vsub.f32 %v7315, %v7815
      %v7817 = vand.u32 %v7816, 4294901760
      %7818 = vmatpush1.msra.mxu0 %v7817
      %7819 = vmatprep.subr.mxu0 0.0
      %v7820 = vand.u32 %v7316, 4294901760
      %v7821 = vsub.f32 %v7316, %v7820
      %v7822 = vand.u32 %v7821, 4294901760
      %7823 = vmatpush1.msra.mxu0 %v7822
      %7824 = vmatprep.subr.mxu0 0.0
      %v7825 = vand.u32 %v7317, 4294901760
      %v7826 = vsub.f32 %v7317, %v7825
      %v7827 = vand.u32 %v7826, 4294901760
      %7828 = vmatpush1.msra.mxu0 %v7827
      %7829 = vmatprep.subr.mxu0 0.0
      %v7830 = vand.u32 %v7318, 4294901760
      %v7831 = vsub.f32 %v7318, %v7830
      %v7832 = vand.u32 %v7831, 4294901760
      %7833 = vmatpush1.msra.mxu0 %v7832
      %7834 = vmatprep.subr.mxu0 0.0
      %7835 = vmatpush1.msra.mxu0 0.0
      %7836 = vmatprep.subr.mxu0 0.0
      %7837 = vmatpush1.msra.mxu0 0.0
      %7838 = vmatprep.subr.mxu0 0.0
      %7839 = vmatpush1.msra.mxu0 0.0
      %7840 = vmatprep.subr.mxu0 0.0
      %7841 = vmatpush1.msra.mxu0 0.0
      %7842 = vmatprep.subr.mxu0 0.0
      %7843 = vmatpush1.msra.mxu0 0.0
      %7844 = vmatprep.subr.mxu0 0.0
      %7845 = vmatpush1.msra.mxu0 0.0
      %7846 = vmatprep.subr.mxu0 0.0
      %7847 = vmatpush1.msra.mxu0 0.0
      %7848 = vmatprep.subr.mxu0 0.0
      %7849 = vmatpush1.msra.mxu0 0.0
      %7850 = vmatprep.subr.mxu0 0.0
      %7851 = vmatpush1.msra.mxu0 0.0
      %7852 = vmatprep.subr.mxu0 0.0
      %7853 = vmatpush1.msra.mxu0 0.0
      %7854 = vmatprep.subr.mxu0 0.0
      %7855 = vmatpush1.msra.mxu0 0.0
      %7856 = vmatprep.subr.mxu0 0.0
      %7857 = vmatpush1.msra.mxu0 0.0
      %7858 = vmatprep.subr.mxu0 0.0
      %7859 = vmatpush1.msra.mxu0 0.0
      %7860 = vmatprep.subr.mxu0 0.0
      %7861 = vmatpush1.msra.mxu0 0.0
      %7862 = vmatprep.subr.mxu0 0.0
      %7863 = vmatpush1.msra.mxu0 0.0
      %7864 = vmatprep.subr.mxu0 0.0
      %7865 = vmatpush1.msra.mxu0 0.0
      %7866 = vmatprep.mubr.f32.mxu0 0.0
      %v7867 = vand.u32 %v7297, 4294901760
      %7868 = vmatmul.mubr.f32.gmra.mrb[0].mxu0 %v7867
      %v7869 = vpop.f32.mrb[0].mxu0
      %v7870 = vadd.f32 %v7751, %v7869
      %v7871 = vpop.f32.mrb[0].mxu0
      %7872 = vdwg.mxu0
      %7873 = vmatprep.subr.mxu0 0.0
      %v7874 = vand.u32 %v7303, 4294901760
      %7875 = vmatpush1.msra.mxu0 %v7874
      %7876 = vmatprep.subr.mxu0 0.0
      %v7877 = vand.u32 %v7304, 4294901760
      %7878 = vmatpush1.msra.mxu0 %v7877
      %7879 = vmatprep.subr.mxu0 0.0
      %v7880 = vand.u32 %v7305, 4294901760
      %7881 = vmatpush1.msra.mxu0 %v7880
      %7882 = vmatprep.subr.mxu0 0.0
      %v7883 = vand.u32 %v7306, 4294901760
      %7884 = vmatpush1.msra.mxu0 %v7883
      %7885 = vmatprep.subr.mxu0 0.0
      %v7886 = vand.u32 %v7307, 4294901760
      %7887 = vmatpush1.msra.mxu0 %v7886
      %7888 = vmatprep.subr.mxu0 0.0
      %v7889 = vand.u32 %v7308, 4294901760
      %7890 = vmatpush1.msra.mxu0 %v7889
      %7891 = vmatprep.subr.mxu0 0.0
      %v7892 = vand.u32 %v7309, 4294901760
      %7893 = vmatpush1.msra.mxu0 %v7892
      %7894 = vmatprep.subr.mxu0 0.0
      %v7895 = vand.u32 %v7310, 4294901760
      %7896 = vmatpush1.msra.mxu0 %v7895
      %7897 = vmatprep.subr.mxu0 0.0
      %v7898 = vand.u32 %v7311, 4294901760
      %7899 = vmatpush1.msra.mxu0 %v7898
      %7900 = vmatprep.subr.mxu0 0.0
      %v7901 = vand.u32 %v7312, 4294901760
      %7902 = vmatpush1.msra.mxu0 %v7901
      %7903 = vmatprep.subr.mxu0 0.0
      %v7904 = vand.u32 %v7313, 4294901760
      %7905 = vmatpush1.msra.mxu0 %v7904
      %7906 = vmatprep.subr.mxu0 0.0
      %v7907 = vand.u32 %v7314, 4294901760
      %7908 = vmatpush1.msra.mxu0 %v7907
      %7909 = vmatprep.subr.mxu0 0.0
      %v7910 = vand.u32 %v7315, 4294901760
      %7911 = vmatpush1.msra.mxu0 %v7910
      %7912 = vmatprep.subr.mxu0 0.0
      %v7913 = vand.u32 %v7316, 4294901760
      %7914 = vmatpush1.msra.mxu0 %v7913
      %7915 = vmatprep.subr.mxu0 0.0
      %v7916 = vand.u32 %v7317, 4294901760
      %7917 = vmatpush1.msra.mxu0 %v7916
      %7918 = vmatprep.subr.mxu0 0.0
      %v7919 = vand.u32 %v7318, 4294901760
      %7920 = vmatpush1.msra.mxu0 %v7919
      %7921 = vmatprep.subr.mxu0 0.0
      %7922 = vmatpush1.msra.mxu0 0.0
      %7923 = vmatprep.subr.mxu0 0.0
      %7924 = vmatpush1.msra.mxu0 0.0
      %7925 = vmatprep.subr.mxu0 0.0
      %7926 = vmatpush1.msra.mxu0 0.0
      %7927 = vmatprep.subr.mxu0 0.0
      %7928 = vmatpush1.msra.mxu0 0.0
      %7929 = vmatprep.subr.mxu0 0.0
      %7930 = vmatpush1.msra.mxu0 0.0
      %7931 = vmatprep.subr.mxu0 0.0
      %7932 = vmatpush1.msra.mxu0 0.0
      %7933 = vmatprep.subr.mxu0 0.0
      %7934 = vmatpush1.msra.mxu0 0.0
      %7935 = vmatprep.subr.mxu0 0.0
      %7936 = vmatpush1.msra.mxu0 0.0
      %7937 = vmatprep.subr.mxu0 0.0
      %7938 = vmatpush1.msra.mxu0 0.0
      %7939 = vmatprep.subr.mxu0 0.0
      %7940 = vmatpush1.msra.mxu0 0.0
      %7941 = vmatprep.subr.mxu0 0.0
      %7942 = vmatpush1.msra.mxu0 0.0
      %7943 = vmatprep.subr.mxu0 0.0
      %7944 = vmatpush1.msra.mxu0 0.0
      %7945 = vmatprep.subr.mxu0 0.0
      %7946 = vmatpush1.msra.mxu0 0.0
      %7947 = vmatprep.subr.mxu0 0.0
      %7948 = vmatpush1.msra.mxu0 0.0
      %7949 = vmatprep.subr.mxu0 0.0
      %7950 = vmatpush1.msra.mxu0 0.0
      %7951 = vmatprep.subr.mxu0 0.0
      %7952 = vmatpush1.msra.mxu0 0.0
      %7953 = vmatprep.mubr.f32.mxu0 0.0
      %v7954 = vand.u32 %v7297, 4294901760
      %7955 = vmatmul.mubr.f32.gmra.mrb[0].mxu0 %v7954
      %v7956 = vpop.f32.mrb[0].mxu0
      %v7957 = vadd.f32 %v7870, %v7956
      %v7958 = vpop.f32.mrb[0].mxu0
      %7959 = vdwg.mxu0
      %v7960 = vstv %s7302
      %v7961 = vmul.f32 %v7960, %v7957
      %v7962 = vadd.f32 %v7301, %v7961
      %v7963 = vand.u32 %v1281, 1
      %s7964 = scalar_lea.vmem %s5, 40
      %v7965 = vld [vmem:[%s7964] sm:$0xff]
      %7967 = vset.pattern.permute.xlu0 4
      %7968 = vperm.xlu0 %7967, %v7965
      %v7969 = vpop.permute.xlu0 %7968
      %v7971 = vmul.f32 %v7962, %v7969
      %7972 = vrot.lane.b32.xlu0 %v7962, 3
      %v7973 = vpop.permute.xlu0 %7972
      %vm7974 = vcmp.ge.s32.totalorder %v1281, 2
      %vm7975 = vcmp.ne.s32.totalorder %v7963, 0
      %vm7976 = vmand %vm7974, %vm7975
      %v7977 = vsel %vm7976, 1, 0
      %v7978 = vcvt.s32.f32 %v7977
      %v7979 = vmul.f32 %v7973, %v7978
      %7980 = vset.pattern.permute.xlu0 0
      %7981 = vperm.xlu0 %7980, %v7965
      %v7982 = vpop.permute.xlu0 %7981
      %v7984 = vmul.f32 %v7979, %v7982
      %v7985 = vadd.f32 %v7971, %v7984
      %7986 = vrot.lane.b32.xlu0 %v7962, 2
      %v7987 = vpop.permute.xlu0 %7986
      %v7988 = vsel %vm7974, 1, 0
      %v7989 = vcvt.s32.f32 %v7988
      %v7990 = vmul.f32 %v7987, %v7989
      %7991 = vset.pattern.permute.xlu0 1
      %7992 = vperm.xlu0 %7991, %v7965
      %v7993 = vpop.permute.xlu0 %7992
      %v7995 = vmul.f32 %v7990, %v7993
      %v7996 = vadd.f32 %v7985, %v7995
      %7997 = vrot.lane.b32.xlu0 %v7962, 1
      %v7998 = vpop.permute.xlu0 %7997
      %vm7999 = vcmp.ne.s32.totalorder %v7963, 1
      %vm8000 = vmand %vm7974, %vm7999
      %v8001 = vsel %vm8000, 1, 0
      %v8002 = vcvt.s32.f32 %v8001
      %v8003 = vmul.f32 %v7998, %v8002
      %8004 = vset.pattern.permute.xlu0 2
      %8005 = vperm.xlu0 %8004, %v7965
      %v8006 = vpop.permute.xlu0 %8005
      %v8008 = vmul.f32 %v8003, %v8006
      %v8009 = vadd.f32 %v7996, %v8008
      %v8010 = vsel %vm7975, 1, 0
      %v8011 = vcvt.s32.f32 %v8010
      %v8012 = vmul.f32 %v7998, %v8011
      %8013 = vset.pattern.permute.xlu0 3
      %8014 = vperm.xlu0 %8013, %v7965
      %v8015 = vpop.permute.xlu0 %8014
      %v8017 = vmul.f32 %v8012, %v8015
      %v8018 = vadd.f32 %v8009, %v8017
      %8019 = vrot.lane.b32.xlu0 %v7962, 127
      %v8020 = vpop.permute.xlu0 %8019
      %v8021 = vsel %vm7999, 1, 0
      %v8022 = vcvt.s32.f32 %v8021
      %v8023 = vmul.f32 %v8020, %v8022
      %8024 = vset.pattern.permute.xlu0 5
      %8025 = vperm.xlu0 %8024, %v7965
      %v8026 = vpop.permute.xlu0 %8025
      %v8028 = vmul.f32 %v8023, %v8026
      %v8029 = vadd.f32 %v8018, %v8028
      %vm8030 = vcmp.lt.s32.totalorder %v1281, 2
      %vm8031 = vmand %vm8030, %vm7975
      %v8032 = vsel %vm8031, 1, 0
      %v8033 = vcvt.s32.f32 %v8032
      %v8034 = vmul.f32 %v8020, %v8033
      %8035 = vset.pattern.permute.xlu0 6
      %8036 = vperm.xlu0 %8035, %v7965
      %v8037 = vpop.permute.xlu0 %8036
      %v8039 = vmul.f32 %v8034, %v8037
      %v8040 = vadd.f32 %v8029, %v8039
      %8041 = vrot.lane.b32.xlu0 %v7962, 126
      %v8042 = vpop.permute.xlu0 %8041
      %v8043 = vsel %vm8030, 1, 0
      %v8044 = vcvt.s32.f32 %v8043
      %v8045 = vmul.f32 %v8042, %v8044
      %8046 = vset.pattern.permute.xlu0 7
      %8047 = vperm.xlu0 %8046, %v7965
      %v8048 = vpop.permute.xlu0 %8047
      %v8050 = vmul.f32 %v8045, %v8048
      %v8051 = vadd.f32 %v8040, %v8050
      %8052 = vrot.lane.b32.xlu0 %v7962, 125
      %v8053 = vpop.permute.xlu0 %8052
      %vm8054 = vmand %vm8030, %vm7999
      %v8055 = vsel %vm8054, 1, 0
      %v8056 = vcvt.s32.f32 %v8055
      %v8057 = vmul.f32 %v8053, %v8056
      %8058 = vset.pattern.permute.xlu0 8
      %8059 = vperm.xlu0 %8058, %v7965
      %v8060 = vpop.permute.xlu0 %8059
      %v8062 = vmul.f32 %v8057, %v8060
      %v8063 = vadd.f32 %v8051, %v8062
      %s8064 = scalar_lea.vmem %s6, 40
      %v8065 = vld [vmem:[%s8064] sm:$0xff]
      %s8066 = scalar_lea.vmem %s7, 40
      %v8067 = vld [vmem:[%s8066] sm:$0xff]
      %8069 = vset.pattern.permute.xlu0 0
      %8070 = vperm.xlu0 %8069, %v8067
      %v8071 = vpop.permute.xlu0 %8070
      %v8074 = vsel %vm1393, %v8065, 0
      %8076 = vmatprep.subr.mxu0 0.0
      %v8077 = vand.u32 %v8063, 4294901760
      %8078 = vmatpush1.msra.mxu0 %v8077
      %8079 = vmatprep.subr.mxu0 0.0
      %8080 = vmatpush1.msra.mxu0 0.0
      %8081 = vmatprep.subr.mxu0 0.0
      %8082 = vmatpush1.msra.mxu0 0.0
      %8083 = vmatprep.subr.mxu0 0.0
      %8084 = vmatpush1.msra.mxu0 0.0
      %8085 = vmatprep.subr.mxu0 0.0
      %8086 = vmatpush1.msra.mxu0 0.0
      %8087 = vmatprep.subr.mxu0 0.0
      %8088 = vmatpush1.msra.mxu0 0.0
      %8089 = vmatprep.subr.mxu0 0.0
      %8090 = vmatpush1.msra.mxu0 0.0
      %8091 = vmatprep.subr.mxu0 0.0
      %8092 = vmatpush1.msra.mxu0 0.0
      %8093 = vmatprep.subr.mxu0 0.0
      %8094 = vmatpush1.msra.mxu0 0.0
      %8095 = vmatprep.subr.mxu0 0.0
      %8096 = vmatpush1.msra.mxu0 0.0
      %8097 = vmatprep.subr.mxu0 0.0
      %8098 = vmatpush1.msra.mxu0 0.0
      %8099 = vmatprep.subr.mxu0 0.0
      %8100 = vmatpush1.msra.mxu0 0.0
      %8101 = vmatprep.subr.mxu0 0.0
      %8102 = vmatpush1.msra.mxu0 0.0
      %8103 = vmatprep.subr.mxu0 0.0
      %8104 = vmatpush1.msra.mxu0 0.0
      %8105 = vmatprep.subr.mxu0 0.0
      %8106 = vmatpush1.msra.mxu0 0.0
      %8107 = vmatprep.subr.mxu0 0.0
      %8108 = vmatpush1.msra.mxu0 0.0
      %8109 = vmatprep.subr.mxu0 0.0
      %8110 = vmatpush1.msra.mxu0 0.0
      %8111 = vmatprep.subr.mxu0 0.0
      %8112 = vmatpush1.msra.mxu0 0.0
      %8113 = vmatprep.subr.mxu0 0.0
      %8114 = vmatpush1.msra.mxu0 0.0
      %8115 = vmatprep.subr.mxu0 0.0
      %8116 = vmatpush1.msra.mxu0 0.0
      %8117 = vmatprep.subr.mxu0 0.0
      %8118 = vmatpush1.msra.mxu0 0.0
      %8119 = vmatprep.subr.mxu0 0.0
      %8120 = vmatpush1.msra.mxu0 0.0
      %8121 = vmatprep.subr.mxu0 0.0
      %8122 = vmatpush1.msra.mxu0 0.0
      %8123 = vmatprep.subr.mxu0 0.0
      %8124 = vmatpush1.msra.mxu0 0.0
      %8125 = vmatprep.subr.mxu0 0.0
      %8126 = vmatpush1.msra.mxu0 0.0
      %8127 = vmatprep.subr.mxu0 0.0
      %8128 = vmatpush1.msra.mxu0 0.0
      %8129 = vmatprep.subr.mxu0 0.0
      %8130 = vmatpush1.msra.mxu0 0.0
      %8131 = vmatprep.subr.mxu0 0.0
      %8132 = vmatpush1.msra.mxu0 0.0
      %8133 = vmatprep.subr.mxu0 0.0
      %8134 = vmatpush1.msra.mxu0 0.0
      %8135 = vmatprep.subr.mxu0 0.0
      %8136 = vmatpush1.msra.mxu0 0.0
      %8137 = vmatprep.subr.mxu0 0.0
      %8138 = vmatpush1.msra.mxu0 0.0
      %8139 = vmatprep.subr.mxu0 0.0
      %8140 = vmatpush1.msra.mxu0 0.0
      %8141 = vmatprep.mubr.f32.mxu0 0.0
      %v8142 = vand.u32 %v8074, 4294901760
      %v8143 = vsub.f32 %v8074, %v8142
      %v8144 = vand.u32 %v8143, 4294901760
      %v8145 = vsub.f32 %v8143, %v8144
      %v8146 = vand.u32 %v8145, 4294901760
      %8147 = vmatmul.mubr.f32.gmra.mrb[0].mxu0 %v8146
      %v8148 = vpop.f32.mrb[0].mxu0
      %v8149 = vadd.f32 %v8071, %v8148
      %v8150 = vpop.f32.mrb[0].mxu0
      %8151 = vdwg.mxu0
      %8152 = vmatprep.subr.mxu0 0.0
      %v8153 = vand.u32 %v8063, 4294901760
      %v8154 = vsub.f32 %v8063, %v8153
      %v8155 = vand.u32 %v8154, 4294901760
      %v8156 = vsub.f32 %v8154, %v8155
      %v8157 = vand.u32 %v8156, 4294901760
      %8158 = vmatpush1.msra.mxu0 %v8157
      %8159 = vmatprep.subr.mxu0 0.0
      %8160 = vmatpush1.msra.mxu0 0.0
      %8161 = vmatprep.subr.mxu0 0.0
      %8162 = vmatpush1.msra.mxu0 0.0
      %8163 = vmatprep.subr.mxu0 0.0
      %8164 = vmatpush1.msra.mxu0 0.0
      %8165 = vmatprep.subr.mxu0 0.0
      %8166 = vmatpush1.msra.mxu0 0.0
      %8167 = vmatprep.subr.mxu0 0.0
      %8168 = vmatpush1.msra.mxu0 0.0
      %8169 = vmatprep.subr.mxu0 0.0
      %8170 = vmatpush1.msra.mxu0 0.0
      %8171 = vmatprep.subr.mxu0 0.0
      %8172 = vmatpush1.msra.mxu0 0.0
      %8173 = vmatprep.subr.mxu0 0.0
      %8174 = vmatpush1.msra.mxu0 0.0
      %8175 = vmatprep.subr.mxu0 0.0
      %8176 = vmatpush1.msra.mxu0 0.0
      %8177 = vmatprep.subr.mxu0 0.0
      %8178 = vmatpush1.msra.mxu0 0.0
      %8179 = vmatprep.subr.mxu0 0.0
      %8180 = vmatpush1.msra.mxu0 0.0
      %8181 = vmatprep.subr.mxu0 0.0
      %8182 = vmatpush1.msra.mxu0 0.0
      %8183 = vmatprep.subr.mxu0 0.0
      %8184 = vmatpush1.msra.mxu0 0.0
      %8185 = vmatprep.subr.mxu0 0.0
      %8186 = vmatpush1.msra.mxu0 0.0
      %8187 = vmatprep.subr.mxu0 0.0
      %8188 = vmatpush1.msra.mxu0 0.0
      %8189 = vmatprep.subr.mxu0 0.0
      %8190 = vmatpush1.msra.mxu0 0.0
      %8191 = vmatprep.subr.mxu0 0.0
      %8192 = vmatpush1.msra.mxu0 0.0
      %8193 = vmatprep.subr.mxu0 0.0
      %8194 = vmatpush1.msra.mxu0 0.0
      %8195 = vmatprep.subr.mxu0 0.0
      %8196 = vmatpush1.msra.mxu0 0.0
      %8197 = vmatprep.subr.mxu0 0.0
      %8198 = vmatpush1.msra.mxu0 0.0
      %8199 = vmatprep.subr.mxu0 0.0
      %8200 = vmatpush1.msra.mxu0 0.0
      %8201 = vmatprep.subr.mxu0 0.0
      %8202 = vmatpush1.msra.mxu0 0.0
      %8203 = vmatprep.subr.mxu0 0.0
      %8204 = vmatpush1.msra.mxu0 0.0
      %8205 = vmatprep.subr.mxu0 0.0
      %8206 = vmatpush1.msra.mxu0 0.0
      %8207 = vmatprep.subr.mxu0 0.0
      %8208 = vmatpush1.msra.mxu0 0.0
      %8209 = vmatprep.subr.mxu0 0.0
      %8210 = vmatpush1.msra.mxu0 0.0
      %8211 = vmatprep.subr.mxu0 0.0
      %8212 = vmatpush1.msra.mxu0 0.0
      %8213 = vmatprep.subr.mxu0 0.0
      %8214 = vmatpush1.msra.mxu0 0.0
      %8215 = vmatprep.subr.mxu0 0.0
      %8216 = vmatpush1.msra.mxu0 0.0
      %8217 = vmatprep.subr.mxu0 0.0
      %8218 = vmatpush1.msra.mxu0 0.0
      %8219 = vmatprep.subr.mxu0 0.0
      %8220 = vmatpush1.msra.mxu0 0.0
      %8221 = vmatprep.mubr.f32.mxu0 0.0
      %v8222 = vand.u32 %v8074, 4294901760
      %8223 = vmatmul.mubr.f32.gmra.mrb[0].mxu0 %v8222
      %v8224 = vpop.f32.mrb[0].mxu0
      %v8225 = vadd.f32 %v8149, %v8224
      %v8226 = vpop.f32.mrb[0].mxu0
      %8227 = vdwg.mxu0
      %8228 = vmatprep.subr.mxu0 0.0
      %v8229 = vand.u32 %v8063, 4294901760
      %v8230 = vsub.f32 %v8063, %v8229
      %8231 = vmatpush1.msra.mxu0 %v8230
      %8232 = vmatprep.subr.mxu0 0.0
      %8233 = vmatpush1.msra.mxu0 0.0
      %8234 = vmatprep.subr.mxu0 0.0
      %8235 = vmatpush1.msra.mxu0 0.0
      %8236 = vmatprep.subr.mxu0 0.0
      %8237 = vmatpush1.msra.mxu0 0.0
      %8238 = vmatprep.subr.mxu0 0.0
      %8239 = vmatpush1.msra.mxu0 0.0
      %8240 = vmatprep.subr.mxu0 0.0
      %8241 = vmatpush1.msra.mxu0 0.0
      %8242 = vmatprep.subr.mxu0 0.0
      %8243 = vmatpush1.msra.mxu0 0.0
      %8244 = vmatprep.subr.mxu0 0.0
      %8245 = vmatpush1.msra.mxu0 0.0
      %8246 = vmatprep.subr.mxu0 0.0
      %8247 = vmatpush1.msra.mxu0 0.0
      %8248 = vmatprep.subr.mxu0 0.0
      %8249 = vmatpush1.msra.mxu0 0.0
      %8250 = vmatprep.subr.mxu0 0.0
      %8251 = vmatpush1.msra.mxu0 0.0
      %8252 = vmatprep.subr.mxu0 0.0
      %8253 = vmatpush1.msra.mxu0 0.0
      %8254 = vmatprep.subr.mxu0 0.0
      %8255 = vmatpush1.msra.mxu0 0.0
      %8256 = vmatprep.subr.mxu0 0.0
      %8257 = vmatpush1.msra.mxu0 0.0
      %8258 = vmatprep.subr.mxu0 0.0
      %8259 = vmatpush1.msra.mxu0 0.0
      %8260 = vmatprep.subr.mxu0 0.0
      %8261 = vmatpush1.msra.mxu0 0.0
      %8262 = vmatprep.subr.mxu0 0.0
      %8263 = vmatpush1.msra.mxu0 0.0
      %8264 = vmatprep.subr.mxu0 0.0
      %8265 = vmatpush1.msra.mxu0 0.0
      %8266 = vmatprep.subr.mxu0 0.0
      %8267 = vmatpush1.msra.mxu0 0.0
      %8268 = vmatprep.subr.mxu0 0.0
      %8269 = vmatpush1.msra.mxu0 0.0
      %8270 = vmatprep.subr.mxu0 0.0
      %8271 = vmatpush1.msra.mxu0 0.0
      %8272 = vmatprep.subr.mxu0 0.0
      %8273 = vmatpush1.msra.mxu0 0.0
      %8274 = vmatprep.subr.mxu0 0.0
      %8275 = vmatpush1.msra.mxu0 0.0
      %8276 = vmatprep.subr.mxu0 0.0
      %8277 = vmatpush1.msra.mxu0 0.0
      %8278 = vmatprep.subr.mxu0 0.0
      %8279 = vmatpush1.msra.mxu0 0.0
      %8280 = vmatprep.subr.mxu0 0.0
      %8281 = vmatpush1.msra.mxu0 0.0
      %8282 = vmatprep.subr.mxu0 0.0
      %8283 = vmatpush1.msra.mxu0 0.0
      %8284 = vmatprep.subr.mxu0 0.0
      %8285 = vmatpush1.msra.mxu0 0.0
      %8286 = vmatprep.subr.mxu0 0.0
      %8287 = vmatpush1.msra.mxu0 0.0
      %8288 = vmatprep.subr.mxu0 0.0
      %8289 = vmatpush1.msra.mxu0 0.0
      %8290 = vmatprep.subr.mxu0 0.0
      %8291 = vmatpush1.msra.mxu0 0.0
      %8292 = vmatprep.subr.mxu0 0.0
      %8293 = vmatpush1.msra.mxu0 0.0
      %8294 = vmatprep.mubr.f32.mxu0 0.0
      %v8295 = vand.u32 %v8074, 4294901760
      %v8296 = vsub.f32 %v8074, %v8295
      %8297 = vmatmul.mubr.f32.gmra.mrb[0].mxu0 %v8296
      %v8298 = vpop.f32.mrb[0].mxu0
      %v8299 = vadd.f32 %v8225, %v8298
      %v8300 = vpop.f32.mrb[0].mxu0
      %8301 = vdwg.mxu0
      %8302 = vmatprep.subr.mxu0 0.0
      %v8303 = vand.u32 %v8063, 4294901760
      %8304 = vmatpush1.msra.mxu0 %v8303
      %8305 = vmatprep.subr.mxu0 0.0
      %8306 = vmatpush1.msra.mxu0 0.0
      %8307 = vmatprep.subr.mxu0 0.0
      %8308 = vmatpush1.msra.mxu0 0.0
      %8309 = vmatprep.subr.mxu0 0.0
      %8310 = vmatpush1.msra.mxu0 0.0
      %8311 = vmatprep.subr.mxu0 0.0
      %8312 = vmatpush1.msra.mxu0 0.0
      %8313 = vmatprep.subr.mxu0 0.0
      %8314 = vmatpush1.msra.mxu0 0.0
      %8315 = vmatprep.subr.mxu0 0.0
      %8316 = vmatpush1.msra.mxu0 0.0
      %8317 = vmatprep.subr.mxu0 0.0
      %8318 = vmatpush1.msra.mxu0 0.0
      %8319 = vmatprep.subr.mxu0 0.0
      %8320 = vmatpush1.msra.mxu0 0.0
      %8321 = vmatprep.subr.mxu0 0.0
      %8322 = vmatpush1.msra.mxu0 0.0
      %8323 = vmatprep.subr.mxu0 0.0
      %8324 = vmatpush1.msra.mxu0 0.0
      %8325 = vmatprep.subr.mxu0 0.0
      %8326 = vmatpush1.msra.mxu0 0.0
      %8327 = vmatprep.subr.mxu0 0.0
      %8328 = vmatpush1.msra.mxu0 0.0
      %8329 = vmatprep.subr.mxu0 0.0
      %8330 = vmatpush1.msra.mxu0 0.0
      %8331 = vmatprep.subr.mxu0 0.0
      %8332 = vmatpush1.msra.mxu0 0.0
      %8333 = vmatprep.subr.mxu0 0.0
      %8334 = vmatpush1.msra.mxu0 0.0
      %8335 = vmatprep.subr.mxu0 0.0
      %8336 = vmatpush1.msra.mxu0 0.0
      %8337 = vmatprep.subr.mxu0 0.0
      %8338 = vmatpush1.msra.mxu0 0.0
      %8339 = vmatprep.subr.mxu0 0.0
      %8340 = vmatpush1.msra.mxu0 0.0
      %8341 = vmatprep.subr.mxu0 0.0
      %8342 = vmatpush1.msra.mxu0 0.0
      %8343 = vmatprep.subr.mxu0 0.0
      %8344 = vmatpush1.msra.mxu0 0.0
      %8345 = vmatprep.subr.mxu0 0.0
      %8346 = vmatpush1.msra.mxu0 0.0
      %8347 = vmatprep.subr.mxu0 0.0
      %8348 = vmatpush1.msra.mxu0 0.0
      %8349 = vmatprep.subr.mxu0 0.0
      %8350 = vmatpush1.msra.mxu0 0.0
      %8351 = vmatprep.subr.mxu0 0.0
      %8352 = vmatpush1.msra.mxu0 0.0
      %8353 = vmatprep.subr.mxu0 0.0
      %8354 = vmatpush1.msra.mxu0 0.0
      %8355 = vmatprep.subr.mxu0 0.0
      %8356 = vmatpush1.msra.mxu0 0.0
      %8357 = vmatprep.subr.mxu0 0.0
      %8358 = vmatpush1.msra.mxu0 0.0
      %8359 = vmatprep.subr.mxu0 0.0
      %8360 = vmatpush1.msra.mxu0 0.0
      %8361 = vmatprep.subr.mxu0 0.0
      %8362 = vmatpush1.msra.mxu0 0.0
      %8363 = vmatprep.subr.mxu0 0.0
      %8364 = vmatpush1.msra.mxu0 0.0
      %8365 = vmatprep.subr.mxu0 0.0
      %8366 = vmatpush1.msra.mxu0 0.0
      %8367 = vmatprep.mubr.f32.mxu0 0.0
      %v8368 = vand.u32 %v8074, 4294901760
      %v8369 = vsub.f32 %v8074, %v8368
      %v8370 = vand.u32 %v8369, 4294901760
      %8371 = vmatmul.mubr.f32.gmra.mrb[0].mxu0 %v8370
      %v8372 = vpop.f32.mrb[0].mxu0
      %v8373 = vadd.f32 %v8299, %v8372
      %v8374 = vpop.f32.mrb[0].mxu0
      %8375 = vdwg.mxu0
      %8376 = vmatprep.subr.mxu0 0.0
      %v8377 = vand.u32 %v8063, 4294901760
      %v8378 = vsub.f32 %v8063, %v8377
      %v8379 = vand.u32 %v8378, 4294901760
      %8380 = vmatpush1.msra.mxu0 %v8379
      %8381 = vmatprep.subr.mxu0 0.0
      %8382 = vmatpush1.msra.mxu0 0.0
      %8383 = vmatprep.subr.mxu0 0.0
      %8384 = vmatpush1.msra.mxu0 0.0
      %8385 = vmatprep.subr.mxu0 0.0
      %8386 = vmatpush1.msra.mxu0 0.0
      %8387 = vmatprep.subr.mxu0 0.0
      %8388 = vmatpush1.msra.mxu0 0.0
      %8389 = vmatprep.subr.mxu0 0.0
      %8390 = vmatpush1.msra.mxu0 0.0
      %8391 = vmatprep.subr.mxu0 0.0
      %8392 = vmatpush1.msra.mxu0 0.0
      %8393 = vmatprep.subr.mxu0 0.0
      %8394 = vmatpush1.msra.mxu0 0.0
      %8395 = vmatprep.subr.mxu0 0.0
      %8396 = vmatpush1.msra.mxu0 0.0
      %8397 = vmatprep.subr.mxu0 0.0
      %8398 = vmatpush1.msra.mxu0 0.0
      %8399 = vmatprep.subr.mxu0 0.0
      %8400 = vmatpush1.msra.mxu0 0.0
      %8401 = vmatprep.subr.mxu0 0.0
      %8402 = vmatpush1.msra.mxu0 0.0
      %8403 = vmatprep.subr.mxu0 0.0
      %8404 = vmatpush1.msra.mxu0 0.0
      %8405 = vmatprep.subr.mxu0 0.0
      %8406 = vmatpush1.msra.mxu0 0.0
      %8407 = vmatprep.subr.mxu0 0.0
      %8408 = vmatpush1.msra.mxu0 0.0
      %8409 = vmatprep.subr.mxu0 0.0
      %8410 = vmatpush1.msra.mxu0 0.0
      %8411 = vmatprep.subr.mxu0 0.0
      %8412 = vmatpush1.msra.mxu0 0.0
      %8413 = vmatprep.subr.mxu0 0.0
      %8414 = vmatpush1.msra.mxu0 0.0
      %8415 = vmatprep.subr.mxu0 0.0
      %8416 = vmatpush1.msra.mxu0 0.0
      %8417 = vmatprep.subr.mxu0 0.0
      %8418 = vmatpush1.msra.mxu0 0.0
      %8419 = vmatprep.subr.mxu0 0.0
      %8420 = vmatpush1.msra.mxu0 0.0
      %8421 = vmatprep.subr.mxu0 0.0
      %8422 = vmatpush1.msra.mxu0 0.0
      %8423 = vmatprep.subr.mxu0 0.0
      %8424 = vmatpush1.msra.mxu0 0.0
      %8425 = vmatprep.subr.mxu0 0.0
      %8426 = vmatpush1.msra.mxu0 0.0
      %8427 = vmatprep.subr.mxu0 0.0
      %8428 = vmatpush1.msra.mxu0 0.0
      %8429 = vmatprep.subr.mxu0 0.0
      %8430 = vmatpush1.msra.mxu0 0.0
      %8431 = vmatprep.subr.mxu0 0.0
      %8432 = vmatpush1.msra.mxu0 0.0
      %8433 = vmatprep.subr.mxu0 0.0
      %8434 = vmatpush1.msra.mxu0 0.0
      %8435 = vmatprep.subr.mxu0 0.0
      %8436 = vmatpush1.msra.mxu0 0.0
      %8437 = vmatprep.subr.mxu0 0.0
      %8438 = vmatpush1.msra.mxu0 0.0
      %8439 = vmatprep.subr.mxu0 0.0
      %8440 = vmatpush1.msra.mxu0 0.0
      %8441 = vmatprep.subr.mxu0 0.0
      %8442 = vmatpush1.msra.mxu0 0.0
      %8443 = vmatprep.mubr.f32.mxu0 0.0
      %v8444 = vand.u32 %v8074, 4294901760
      %8445 = vmatmul.mubr.f32.gmra.mrb[0].mxu0 %v8444
      %v8446 = vpop.f32.mrb[0].mxu0
      %v8447 = vadd.f32 %v8373, %v8446
      %v8448 = vpop.f32.mrb[0].mxu0
      %8449 = vdwg.mxu0
      %8450 = vmatprep.subr.mxu0 0.0
      %v8451 = vand.u32 %v8063, 4294901760
      %8452 = vmatpush1.msra.mxu0 %v8451
      %8453 = vmatprep.subr.mxu0 0.0
      %8454 = vmatpush1.msra.mxu0 0.0
      %8455 = vmatprep.subr.mxu0 0.0
      %8456 = vmatpush1.msra.mxu0 0.0
      %8457 = vmatprep.subr.mxu0 0.0
      %8458 = vmatpush1.msra.mxu0 0.0
      %8459 = vmatprep.subr.mxu0 0.0
      %8460 = vmatpush1.msra.mxu0 0.0
      %8461 = vmatprep.subr.mxu0 0.0
      %8462 = vmatpush1.msra.mxu0 0.0
      %8463 = vmatprep.subr.mxu0 0.0
      %8464 = vmatpush1.msra.mxu0 0.0
      %8465 = vmatprep.subr.mxu0 0.0
      %8466 = vmatpush1.msra.mxu0 0.0
      %8467 = vmatprep.subr.mxu0 0.0
      %8468 = vmatpush1.msra.mxu0 0.0
      %8469 = vmatprep.subr.mxu0 0.0
      %8470 = vmatpush1.msra.mxu0 0.0
      %8471 = vmatprep.subr.mxu0 0.0
      %8472 = vmatpush1.msra.mxu0 0.0
      %8473 = vmatprep.subr.mxu0 0.0
      %8474 = vmatpush1.msra.mxu0 0.0
      %8475 = vmatprep.subr.mxu0 0.0
      %8476 = vmatpush1.msra.mxu0 0.0
      %8477 = vmatprep.subr.mxu0 0.0
      %8478 = vmatpush1.msra.mxu0 0.0
      %8479 = vmatprep.subr.mxu0 0.0
      %8480 = vmatpush1.msra.mxu0 0.0
      %8481 = vmatprep.subr.mxu0 0.0
      %8482 = vmatpush1.msra.mxu0 0.0
      %8483 = vmatprep.subr.mxu0 0.0
      %8484 = vmatpush1.msra.mxu0 0.0
      %8485 = vmatprep.subr.mxu0 0.0
      %8486 = vmatpush1.msra.mxu0 0.0
      %8487 = vmatprep.subr.mxu0 0.0
      %8488 = vmatpush1.msra.mxu0 0.0
      %8489 = vmatprep.subr.mxu0 0.0
      %8490 = vmatpush1.msra.mxu0 0.0
      %8491 = vmatprep.subr.mxu0 0.0
      %8492 = vmatpush1.msra.mxu0 0.0
      %8493 = vmatprep.subr.mxu0 0.0
      %8494 = vmatpush1.msra.mxu0 0.0
      %8495 = vmatprep.subr.mxu0 0.0
      %8496 = vmatpush1.msra.mxu0 0.0
      %8497 = vmatprep.subr.mxu0 0.0
      %8498 = vmatpush1.msra.mxu0 0.0
      %8499 = vmatprep.subr.mxu0 0.0
      %8500 = vmatpush1.msra.mxu0 0.0
      %8501 = vmatprep.subr.mxu0 0.0
      %8502 = vmatpush1.msra.mxu0 0.0
      %8503 = vmatprep.subr.mxu0 0.0
      %8504 = vmatpush1.msra.mxu0 0.0
      %8505 = vmatprep.subr.mxu0 0.0
      %8506 = vmatpush1.msra.mxu0 0.0
      %8507 = vmatprep.subr.mxu0 0.0
      %8508 = vmatpush1.msra.mxu0 0.0
      %8509 = vmatprep.subr.mxu0 0.0
      %8510 = vmatpush1.msra.mxu0 0.0
      %8511 = vmatprep.subr.mxu0 0.0
      %8512 = vmatpush1.msra.mxu0 0.0
      %8513 = vmatprep.subr.mxu0 0.0
      %8514 = vmatpush1.msra.mxu0 0.0
      %8515 = vmatprep.mubr.f32.mxu0 0.0
      %v8516 = vand.u32 %v8074, 4294901760
      %8517 = vmatmul.mubr.f32.gmra.mrb[0].mxu0 %v8516
      %v8518 = vpop.f32.mrb[0].mxu0
      %v8519 = vadd.f32 %v8447, %v8518
      %v8520 = vpop.f32.mrb[0].mxu0
      %8521 = vdwg.mxu0
      %v8522 = vmax.f32 %v8519, 0.0
      %8523 = vst [vmem:[%s610] sm:$0xff] %v8522
      %p8524 = scmp.lt.s32.totalorder %s35, 1
      %s8525 = scalar_select %p8524, %s35, 1
      %s8526 = smul.addr %s8525, 2
      %s8527 = smul.addr %s8526, 8
      %s8528 = scalar_lea.vmem %s14, %s8527
      %p8529 = scmp.lt.s32.totalorder %s35, 1
      %s8530 = scalar_select %p8529, %s35, 1
      %s8531 = smul.addr %s8530, 8
      %s8532 = scalar_lea.vmem %s15, %s8531
      %p8533 = scmp.lt.s32.totalorder %s35, 1
      %s8534 = scalar_select %p8533, %s35, 1
      %s8535 = smul.addr %s8534, 8
      %s8536 = scalar_lea.vmem %s16, %s8535
      %p8537 = scmp.lt.s32.totalorder %s35, 1
      %s8538 = scalar_select %p8537, %s35, 1
      %s8539 = smul.addr %s8538, 8
      %s8540 = scalar_lea.vmem %s17, %s8539
      // Predicated region
      $region73: #{bifpn_forward.1} parent=71 // pred_check
        %p8541 = pneg %p346
      $region74: #{bifpn_forward.1} parent=71 // pred_check_branch
        %8543 = sbr.rel (%p8541) target = $region76
      $region75: #{bifpn_forward.1} parent=71 // pred_region
        _
      $region76: #{bifpn_forward.1} parent=71 // pred_fallthru
        _
      // Predicated region
      $region77: #{bifpn_forward.1} parent=71 // pred_check
        %p8544 = pneg %p372
      $region78: #{bifpn_forward.1} parent=71 // pred_check_branch
        %8546 = sbr.rel (%p8544) target = $region80
      $region79: #{bifpn_forward.1} parent=71 // pred_region
        _
      $region80: #{bifpn_forward.1} parent=71 // pred_fallthru
        _
      // Predicated region
      $region81: #{bifpn_forward.1} parent=71 // pred_check
        %p8547 = pneg %p398
      $region82: #{bifpn_forward.1} parent=71 // pred_check_branch
        %8549 = sbr.rel (%p8547) target = $region84
      $region83: #{bifpn_forward.1} parent=71 // pred_region
        _
      $region84: #{bifpn_forward.1} parent=71 // pred_fallthru
        _
      // Predicated region
      $region85: #{bifpn_forward.1} parent=71 // pred_check
        %p8550 = pneg %p424
      $region86: #{bifpn_forward.1} parent=71 // pred_check_branch
        %8552 = sbr.rel (%p8550) target = $region88
      $region87: #{bifpn_forward.1} parent=71 // pred_region
        _
      $region88: #{bifpn_forward.1} parent=71 // pred_fallthru
        _
    $region72: #{bifpn_forward.1} parent=5 // pred_fallthru
      _
    %p8553 = scmp.le.s32.totalorder 2, %s30
    // Predicated region
    $region89: #{bifpn_forward.1} parent=5 // pred_check
      %p8554 = pneg %p8553
    $region90: #{bifpn_forward.1} parent=5 // pred_check_branch
      %8556 = sbr.rel (%p8554) target = $region92
    $region91: #{bifpn_forward.1} parent=5 // pred_region
      %s8557 = ssub.s32 %s30, 2
      // Predicated region
      $region93: #{bifpn_forward.1} parent=91 // pred_check
        %p8558 = pneg %p352
      $region94: #{bifpn_forward.1} parent=91 // pred_check_branch
        %8560 = sbr.rel (%p8558) target = $region96
      $region95: #{bifpn_forward.1} parent=91 // pred_region
        %p8561 = scmp.lt.s32.totalorder %s36, 1
        %s8562 = scalar_select %p8561, %s36, 1
        %s8563 = smul.addr %s8562, 2
        %s8564 = smul.addr %s8563, 8
        %s8565 = scalar_lea.vmem %s14, %s8564
      $region96: #{bifpn_forward.1} parent=91 // pred_fallthru
        _
      // Predicated region
      $region97: #{bifpn_forward.1} parent=91 // pred_check
        %p8566 = pneg %p378
      $region98: #{bifpn_forward.1} parent=91 // pred_check_branch
        %8568 = sbr.rel (%p8566) target = $region100
      $region99: #{bifpn_forward.1} parent=91 // pred_region
        %p8569 = scmp.lt.s32.totalorder %s36, 1
        %s8570 = scalar_select %p8569, %s36, 1
        %s8571 = smul.addr %s8570, 8
        %s8572 = scalar_lea.vmem %s15, %s8571
      $region100: #{bifpn_forward.1} parent=91 // pred_fallthru
        _
      // Predicated region
      $region101: #{bifpn_forward.1} parent=91 // pred_check
        %p8573 = pneg %p404
      $region102: #{bifpn_forward.1} parent=91 // pred_check_branch
        %8575 = sbr.rel (%p8573) target = $region104
      $region103: #{bifpn_forward.1} parent=91 // pred_region
        %p8576 = scmp.lt.s32.totalorder %s36, 1
        %s8577 = scalar_select %p8576, %s36, 1
        %s8578 = smul.addr %s8577, 8
        %s8579 = scalar_lea.vmem %s16, %s8578
      $region104: #{bifpn_forward.1} parent=91 // pred_fallthru
        _
      // Predicated region
      $region105: #{bifpn_forward.1} parent=91 // pred_check
        %p8580 = pneg %p430
      $region106: #{bifpn_forward.1} parent=91 // pred_check_branch
        %8582 = sbr.rel (%p8580) target = $region108
      $region107: #{bifpn_forward.1} parent=91 // pred_region
        %p8583 = scmp.lt.s32.totalorder %s36, 1
        %s8584 = scalar_select %p8583, %s36, 1
        %s8585 = smul.addr %s8584, 8
        %s8586 = scalar_lea.vmem %s17, %s8585
      $region108: #{bifpn_forward.1} parent=91 // pred_fallthru
        _
    $region92: #{bifpn_forward.1} parent=5 // pred_fallthru
      _
  $region6: #{bifpn_forward.1} parent=0 // loop_footer
    %s34 = sadd.s32 1, %s30
  $region7: #{bifpn_forward.1} parent=0 // loop_footer_branch
    %29 = sbr.rel target = $region3
  $region8: #{bifpn_forward.1} parent=0 // loop_exit
    _

</llo_original>
